<compile_context>
chip_gen: v7x
topology: tpu7x:2x2x1
jax: 0.10.0
libtpu: 0.0.40
codegen_flags: <defaults>
</compile_context>

<pallas_src>
import functools

import jax
import jax.numpy as jnp
import numpy as np
from jax.experimental import pallas as pl
from jax.experimental.pallas import tpu as pltpu

EPS = 1e-5
LANE = 128                       # pad matmul N dims to this for lane-dense stores
VMEM_LIMIT = 32 * 1024 * 1024    # explicit scoped-VMEM budget (ok for v5e/v6e/v7x)


def _round_up(x, m):
    return (x + m - 1) // m * m


def _pick_tile(s, cap=1024):
    """Largest power-of-two tile (8..cap) dividing s; falls back to the full extent."""
    t = 8
    while t * 2 <= min(cap, s) and s % (t * 2) == 0:
        t *= 2
    return t if s % t == 0 else s


# ----------------------------- Pallas kernels --------------------------------
def _stats_kernel(x_ref, st_ref):
    """Per-tile partial BN statistics: rows = (sum, sum of squares)."""
    x = x_ref[...]
    s = jnp.sum(x, axis=0, keepdims=True)
    s2 = jnp.sum(x * x, axis=0, keepdims=True)
    st_ref[...] = jnp.concatenate([s, s2], axis=0)[None]


def channel_stats(x2d):
    """(sum, sum_sq) per channel of a (S, C) array via a tiled Pallas pass."""
    S, C = x2d.shape
    ts = _pick_tile(S)
    nt = S // ts
    part = pl.pallas_call(
        _stats_kernel,
        out_shape=jax.ShapeDtypeStruct((nt, 2, C), jnp.float32),
        grid=(nt,),
        in_specs=[pl.BlockSpec((ts, C), lambda i: (i, 0))],
        out_specs=pl.BlockSpec((1, 2, C), lambda i: (i, 0, 0)),
        compiler_params=pltpu.CompilerParams(
            dimension_semantics=("parallel",),
            vmem_limit_bytes=VMEM_LIMIT),
    )(x2d)
    return part.sum(axis=0)                                        # (2, C)


def _bn_relu_conv1_kernel(x_ref, sc_ref, sh_ref, w_ref, h_ref, st_ref):
    """h = relu(x*scale1 + shift1) @ w1, plus partial stats of h for bn2."""
    xh = jnp.maximum(x_ref[...] * sc_ref[...] + sh_ref[...], 0.0)  # f32 VPU work
    h = jnp.dot(xh.astype(jnp.bfloat16), w_ref[...],               # bf16 MXU, f32 acc
                preferred_element_type=jnp.float32)                # (ts, mid_pad)
    h_ref[...] = h
    s = jnp.sum(h, axis=0, keepdims=True)
    s2 = jnp.sum(h * h, axis=0, keepdims=True)
    st_ref[...] = jnp.concatenate([s, s2], axis=0)[None]


def bn_relu_conv1(x2d, scale1, shift1, w1p):
    S, cin = x2d.shape
    midp = w1p.shape[1]
    ts = _pick_tile(S)
    nt = S // ts
    h, part = pl.pallas_call(
        _bn_relu_conv1_kernel,
        out_shape=(jax.ShapeDtypeStruct((S, midp), jnp.float32),
                   jax.ShapeDtypeStruct((nt, 2, midp), jnp.float32)),
        grid=(nt,),
        in_specs=[pl.BlockSpec((ts, cin), lambda i: (i, 0)),
                  pl.BlockSpec((1, cin), lambda i: (0, 0)),
                  pl.BlockSpec((1, cin), lambda i: (0, 0)),
                  pl.BlockSpec((cin, midp), lambda i: (0, 0))],
        out_specs=(pl.BlockSpec((ts, midp), lambda i: (i, 0)),
                   pl.BlockSpec((1, 2, midp), lambda i: (i, 0, 0))),
        compiler_params=pltpu.CompilerParams(
            dimension_semantics=("parallel",),
            vmem_limit_bytes=VMEM_LIMIT),
    )(x2d, scale1, shift1, w1p)
    return h, part.sum(axis=0)                                     # (S, midp), (2, midp)


def _shift_rows(a, delta):
    """result[s] = a[s + delta] for 0 <= s+delta < S, zero-filled outside (no wrap)."""
    if delta == 0:
        return a
    z = jnp.zeros((abs(delta), a.shape[1]), a.dtype)
    if delta > 0:
        return jnp.concatenate([a[delta:], z], axis=0)
    return jnp.concatenate([z, a[:delta]], axis=0)


def _bn_relu_conv2_kernel(h_ref, sc_ref, sh_ref, w_ref, o_ref, st_ref, *, H, W):
    """3x3 conv (pad=1) of relu(bn2(h)) for one image as a single im2col matmul."""
    HW = H * W
    hh = jnp.maximum(h_ref[...] * sc_ref[...] + sh_ref[...], 0.0)  # (HW, mid_pad) f32
    xx = jax.lax.broadcasted_iota(jnp.int32, (HW, 1), 0) % W       # pixel column
    cols = []
    for ky in range(3):
        for kx in range(3):
            dy, dx = ky - 1, kx - 1
            # zero-filled shift handles the dy image border; only dx taps need a mask
            t = _shift_rows(hh, dy * W + dx)
            if dx != 0:
                t = jnp.where((xx + dx >= 0) & (xx + dx < W), t, 0.0)
            cols.append(t.astype(jnp.bfloat16))
    patches = jnp.concatenate(cols, axis=1)                        # (HW, 9*mid_pad) bf16
    out = jnp.dot(patches, w_ref[...],                             # one MXU call
                  preferred_element_type=jnp.float32)              # (HW, 128) f32
    o_ref[...] = out                                               # lane-dense store
    s = jnp.sum(out, axis=0, keepdims=True)
    s2 = jnp.sum(out * out, axis=0, keepdims=True)
    st_ref[...] = jnp.concatenate([s, s2], axis=0)                 # stats for next bn1


def bn_relu_conv2(h3, scale2, shift2, w2flat, H, W):
    N, HW, midp = h3.shape
    gpad = w2flat.shape[1]
    kern = functools.partial(_bn_relu_conv2_kernel, H=H, W=W)
    out, part = pl.pallas_call(
        kern,
        out_shape=(jax.ShapeDtypeStruct((N, HW, gpad), jnp.float32),
                   jax.ShapeDtypeStruct((N, 2, gpad), jnp.float32)),
        grid=(N,),
        in_specs=[pl.BlockSpec((None, HW, midp), lambda n: (n, 0, 0)),
                  pl.BlockSpec((1, midp), lambda n: (0, 0)),
                  pl.BlockSpec((1, midp), lambda n: (0, 0)),
                  pl.BlockSpec((9 * midp, gpad), lambda n: (0, 0))],
        out_specs=(pl.BlockSpec((None, HW, gpad), lambda n: (n, 0, 0)),
                   pl.BlockSpec((None, 2, gpad), lambda n: (n, 0, 0))),
        compiler_params=pltpu.CompilerParams(
            dimension_semantics=("parallel",),
            vmem_limit_bytes=VMEM_LIMIT),
    )(h3, scale2, shift2, w2flat)
    return out, part.sum(axis=0)


# ------------------------------- DenseBlock -----------------------------------
def dense_block_forward(x_nchw, params):
    """DenseBlock.forward (training-mode BN statistics, drop_rate == 0)."""
    N, C0, H, W = x_nchw.shape
    S, HW = N * H * W, H * W
    # layout conversion once at block entry / exit only
    x2d = jnp.transpose(x_nchw, (0, 2, 3, 1)).reshape(S, C0).astype(jnp.float32)

    feats = [x2d]                    # per-feature (S, c_i) slabs (NHWC-flat rows)
    stats = [channel_stats(x2d)]     # per-feature (2, c_i): (sum, sum_sq) over S

    for p in params:
        xcat = jnp.concatenate(feats, axis=-1)                     # torch.cat(prev, 1)
        scat = jnp.concatenate(stats, axis=-1)                     # stats of the concat
        cin = xcat.shape[1]
        mid = p["w1"].shape[1]
        growth = p["w2"].shape[2]
        midp, gpad = _round_up(mid, LANE), _round_up(growth, LANE)

        # bn1 folded into scale/shift (biased batch var = E[x^2] - mean^2)
        mean1 = scat[0] / S
        var1 = scat[1] / S - mean1 * mean1
        inv1 = p["g1"][0] * jax.lax.rsqrt(var1 + EPS)
        scale1 = inv1[None, :]
        shift1 = (p["b1"][0] - mean1 * inv1)[None, :]

        # conv1 weight padded to a lane-dense (cin, mid_pad) bf16 slab
        w1p = jnp.zeros((cin, midp), jnp.bfloat16).at[:, :mid].set(
            p["w1"].astype(jnp.bfloat16))

        h, hstats = bn_relu_conv1(xcat, scale1, shift1, w1p)       # (S, midp), (2, midp)

        # bn2 folded into scale/shift; padded channels get scale=shift=0 -> stay 0
        mean2 = hstats[0, :mid] / S
        var2 = hstats[1, :mid] / S - mean2 * mean2
        inv2 = p["g2"][0] * jax.lax.rsqrt(var2 + EPS)
        scale2 = jnp.zeros((1, midp), jnp.float32).at[0, :mid].set(inv2)
        shift2 = jnp.zeros((1, midp), jnp.float32).at[0, :mid].set(
            p["b2"][0] - mean2 * inv2)

        # conv2 weight as a lane-dense (9*mid_pad, growth_pad) bf16 im2col matrix
        w2p = jnp.zeros((9, midp, gpad), jnp.bfloat16).at[:, :mid, :growth].set(
            p["w2"].astype(jnp.bfloat16))
        w2flat = w2p.reshape(9 * midp, gpad)

        out3, ostats = bn_relu_conv2(h.reshape(N, HW, midp), scale2, shift2,
                                     w2flat, H, W)

        feats.append(out3.reshape(S, gpad)[:, :growth])
        stats.append(ostats[:, :growth])

    out2d = jnp.concatenate(feats, axis=-1)
    return jnp.transpose(out2d.reshape(N, H, W, -1), (0, 3, 1, 2))  # back to NCHW


# ---------------------------- pure-JAX reference ------------------------------
def ref_dense_block(x_nchw, params):
    def bn_relu(x, g, b):
        mean = x.mean(axis=(0, 1, 2), keepdims=True)
        var = ((x - mean) ** 2).mean(axis=(0, 1, 2), keepdims=True)
        return jax.nn.relu((x - mean) / jnp.sqrt(var + EPS) * g + b)

    feats = [jnp.transpose(x_nchw, (0, 2, 3, 1))]
    for p in params:
        xc = jnp.concatenate(feats, axis=-1)
        mid = p["w1"].shape[1]
        growth = p["w2"].shape[2]
        y = bn_relu(xc, p["g1"][0], p["b1"][0])
        h = jnp.einsum("nhwc,cm->nhwm", y, p["w1"])
        h = bn_relu(h, p["g2"][0], p["b2"][0])
        w = p["w2"].reshape(3, 3, mid, growth)                     # HWIO
        o = jax.lax.conv_general_dilated(
            h, w, (1, 1), "SAME",
            dimension_numbers=("NHWC", "HWIO", "NHWC"))
        feats.append(o)
    return jnp.transpose(jnp.concatenate(feats, axis=-1), (0, 3, 1, 2))


# ------------------------------ parameter init --------------------------------
def init_params(key, num_layers, num_channels, growth_rate, bn_size):
    params = []
    mid = int(growth_rate * bn_size)
    for i in range(num_layers):
        cin = num_channels + i * growth_rate
        key, *ks = jax.random.split(key, 7)
        params.append(dict(
            g1=1.0 + 0.1 * jax.random.normal(ks[0], (1, cin), jnp.float32),
            b1=0.1 * jax.random.normal(ks[1], (1, cin), jnp.float32),
            # PyTorch conv1 weight (mid, cin, 1, 1) stored transposed as (cin, mid)
            w1=0.1 * jax.random.normal(ks[2], (cin, mid), jnp.float32),
            g2=1.0 + 0.1 * jax.random.normal(ks[3], (1, mid), jnp.float32),
            b2=0.1 * jax.random.normal(ks[4], (1, mid), jnp.float32),
            # PyTorch conv2 weight (growth, mid, 3, 3) stored as (9, mid, growth),
            # k = ky*3 + kx, i.e. w2[k][cin, cout].
            w2=0.1 * jax.random.normal(ks[5], (9, mid, growth_rate), jnp.float32),
        ))
    return params


if __name__ == "__main__":
    num_layers, num_channels, growth_rate, bn_size = 3, 16, 8, 4
    drop_rate = 0.0          # identity dropout (see TODO at top)
    N, H, W = 2, 16, 16      # small test shapes -> S = 512 rows (multiple of 8)

    key = jax.random.PRNGKey(0)
    kx, kp = jax.random.split(key)
    x = jax.random.normal(kx, (N, num_channels, H, W), jnp.float32)   # NCHW input
    params = init_params(kp, num_layers, num_channels, growth_rate, bn_size)

    fwd = jax.jit(dense_block_forward)
    out = jax.block_until_ready(fwd(x, params))
    assert out.shape == (N, num_channels + num_layers * growth_rate, H, W)

    ref = jax.block_until_ready(ref_dense_block(x, params))
    # bf16 MXU operands (f32 accumulation) -> slightly looser tolerance than f32
    np.testing.assert_allclose(np.asarray(out), np.asarray(ref),
                               rtol=5e-2, atol=5e-2)
    print("KERNEL_OK")
</pallas_src>

<mosaic_0001>
module attributes {stable_mosaic.version = 11 : i64} {
  func.func @_stats_kernel(%arg0: i32, %arg1: memref<512x16xf32, #tpu.memory_space<vmem>>, %arg2: memref<1x2x16xf32, #tpu.memory_space<vmem>>) attributes {dimension_semantics = [#tpu.dimension_semantics<parallel>], iteration_bounds = array<i64: 1>, scalar_prefetch = 0 : i64, scratch_operands = 0 : i64, tpu.core_type = #tpu.core_type<tc>, window_params = [{transform_indices = @transform_0, window_bounds = array<i64: 512, 16>}, {transform_indices = @transform_1, window_bounds = array<i64: 1, 2, 16>}]} {
    %c0 = arith.constant 0 : index
    %c0_0 = arith.constant 0 : index
    %0 = vector.load %arg1[%c0, %c0_0] : memref<512x16xf32, #tpu.memory_space<vmem>>, vector<512x16xf32>
    %cst = arith.constant dense<0.000000e+00> : vector<16xf32>
    %1 = vector.multi_reduction <add>, %0, %cst [0] : vector<512x16xf32> to vector<16xf32>
    %2 = vector.shape_cast %1 : vector<16xf32> to vector<1x16xf32>
    %3 = arith.mulf %0, %0 : vector<512x16xf32>
    %cst_1 = arith.constant dense<0.000000e+00> : vector<16xf32>
    %4 = vector.multi_reduction <add>, %3, %cst_1 [0] : vector<512x16xf32> to vector<16xf32>
    %5 = vector.shape_cast %4 : vector<16xf32> to vector<1x16xf32>
    %6 = tpu.concatenate %2, %5 in 0 : vector<1x16xf32>, vector<1x16xf32> -> vector<2x16xf32>
    %7 = vector.shape_cast %6 : vector<2x16xf32> to vector<1x2x16xf32>
    %c0_2 = arith.constant 0 : index
    %c0_3 = arith.constant 0 : index
    %c0_4 = arith.constant 0 : index
    %8 = vector.load %arg2[%c0_2, %c0_3, %c0_4] : memref<1x2x16xf32, #tpu.memory_space<vmem>>, vector<1x2x16xf32>
    tpu.vector_store %arg2[%c0_2, %c0_3, %c0_4], %7 {strides = array<i32>} : memref<1x2x16xf32, #tpu.memory_space<vmem>>, vector<1x2x16xf32>,
    return
  }
  func.func @transform_0(%arg0: i32) -> (i32, i32) {
    %c0_i32 = arith.constant 0 : i32
    %c0_i32_0 = arith.constant 0 : i32
    return %arg0, %c0_i32 : i32, i32
  }
  func.func @transform_1(%arg0: i32) -> (i32, i32, i32) {
    %c0_i32 = arith.constant 0 : i32
    %c0_i32_0 = arith.constant 0 : i32
    %c0_i32_1 = arith.constant 0 : i32
    return %arg0, %c0_i32, %c0_i32_0 : i32, i32, i32
  }
}

module attributes {stable_mosaic.version = 11 : i64} {
  func.func @_bn_relu_conv1_kernel(%arg0: i32, %arg1: memref<512x16xf32, #tpu.memory_space<vmem>>, %arg2: memref<1x16xf32, #tpu.memory_space<vmem>>, %arg3: memref<1x16xf32, #tpu.memory_space<vmem>>, %arg4: memref<16x128xbf16, #tpu.memory_space<vmem>>, %arg5: memref<512x128xf32, #tpu.memory_space<vmem>>, %arg6: memref<1x2x128xf32, #tpu.memory_space<vmem>>) attributes {dimension_semantics = [#tpu.dimension_semantics<parallel>], iteration_bounds = array<i64: 1>, scalar_prefetch = 0 : i64, scratch_operands = 0 : i64, tpu.core_type = #tpu.core_type<tc>, window_params = [{transform_indices = @transform_0, window_bounds = array<i64: 512, 16>}, {pipeline_mode = #tpu.pipeline_mode<synchronous>, transform_indices = @transform_1, window_bounds = array<i64: 1, 16>}, {pipeline_mode = #tpu.pipeline_mode<synchronous>, transform_indices = @transform_2, window_bounds = array<i64: 1, 16>}, {pipeline_mode = #tpu.pipeline_mode<synchronous>, transform_indices = @transform_3, window_bounds = array<i64: 16, 128>}, {transform_indices = @transform_4, window_bounds = array<i64: 512, 128>}, {transform_indices = @transform_5, window_bounds = array<i64: 1, 2, 128>}]} {
    %c0 = arith.constant 0 : index
    %c0_0 = arith.constant 0 : index
    %0 = vector.load %arg1[%c0, %c0_0] : memref<512x16xf32, #tpu.memory_space<vmem>>, vector<512x16xf32>
    %c0_1 = arith.constant 0 : index
    %c0_2 = arith.constant 0 : index
    %1 = vector.load %arg2[%c0_1, %c0_2] : memref<1x16xf32, #tpu.memory_space<vmem>>, vector<1x16xf32>
    %2 = vector.broadcast %1 : vector<1x16xf32> to vector<512x16xf32>
    %3 = arith.mulf %0, %2 : vector<512x16xf32>
    %c0_3 = arith.constant 0 : index
    %c0_4 = arith.constant 0 : index
    %4 = vector.load %arg3[%c0_3, %c0_4] : memref<1x16xf32, #tpu.memory_space<vmem>>, vector<1x16xf32>
    %5 = vector.broadcast %4 : vector<1x16xf32> to vector<512x16xf32>
    %6 = arith.addf %3, %5 : vector<512x16xf32>
    %cst = arith.constant 0.000000e+00 : f32
    %7 = vector.broadcast %cst : f32 to vector<512x16xf32>
    %8 = arith.maximumf %6, %7 : vector<512x16xf32>
    %9 = arith.truncf %8 : vector<512x16xf32> to vector<512x16xbf16>
    %c0_5 = arith.constant 0 : index
    %c0_6 = arith.constant 0 : index
    %10 = vector.load %arg4[%c0_5, %c0_6] : memref<16x128xbf16, #tpu.memory_space<vmem>>, vector<16x128xbf16>
    %cst_7 = arith.constant dense<0.000000e+00> : vector<512x128xf32>
    %11 = tpu.matmul %9, %10, %cst_7 {dimension_numbers = #tpu.dot_dimension_numbers<[1], [0], [0], [1], [0, 0, 1, 1], [], []>} : vector<512x16xbf16>, vector<16x128xbf16>, vector<512x128xf32> -> vector<512x128xf32>
    %c0_8 = arith.constant 0 : index
    %c0_9 = arith.constant 0 : index
    %12 = vector.load %arg5[%c0_8, %c0_9] : memref<512x128xf32, #tpu.memory_space<vmem>>, vector<512x128xf32>
    tpu.vector_store %arg5[%c0_8, %c0_9], %11 {strides = array<i32>} : memref<512x128xf32, #tpu.memory_space<vmem>>, vector<512x128xf32>,
    %cst_10 = arith.constant dense<0.000000e+00> : vector<128xf32>
    %13 = vector.multi_reduction <add>, %11, %cst_10 [0] : vector<512x128xf32> to vector<128xf32>
    %14 = vector.shape_cast %13 : vector<128xf32> to vector<1x128xf32>
    %15 = arith.mulf %11, %11 : vector<512x128xf32>
    %cst_11 = arith.constant dense<0.000000e+00> : vector<128xf32>
    %16 = vector.multi_reduction <add>, %15, %cst_11 [0] : vector<512x128xf32> to vector<128xf32>
    %17 = vector.shape_cast %16 : vector<128xf32> to vector<1x128xf32>
    %18 = tpu.concatenate %14, %17 in 0 : vector<1x128xf32>, vector<1x128xf32> -> vector<2x128xf32>
    %19 = vector.shape_cast %18 : vector<2x128xf32> to vector<1x2x128xf32>
    %c0_12 = arith.constant 0 : index
    %c0_13 = arith.constant 0 : index
    %c0_14 = arith.constant 0 : index
    %20 = vector.load %arg6[%c0_12, %c0_13, %c0_14] : memref<1x2x128xf32, #tpu.memory_space<vmem>>, vector<1x2x128xf32>
    tpu.vector_store %arg6[%c0_12, %c0_13, %c0_14], %19 {strides = array<i32>} : memref<1x2x128xf32, #tpu.memory_space<vmem>>, vector<1x2x128xf32>,
    return
  }
  func.func @transform_0(%arg0: i32) -> (i32, i32) {
    %c0_i32 = arith.constant 0 : i32
    %c0_i32_0 = arith.constant 0 : i32
    return %arg0, %c0_i32 : i32, i32
  }
  func.func @transform_1(%arg0: i32) -> (i32, i32) {
    %c0_i32 = arith.constant 0 : i32
    %c0_i32_0 = arith.constant 0 : i32
    %c0_i32_1 = arith.constant 0 : i32
    return %c0_i32, %c0_i32_0 : i32, i32
  }
  func.func @transform_2(%arg0: i32) -> (i32, i32) {
    %c0_i32 = arith.constant 0 : i32
    %c0_i32_0 = arith.constant 0 : i32
    %c0_i32_1 = arith.constant 0 : i32
    return %c0_i32, %c0_i32_0 : i32, i32
  }
  func.func @transform_3(%arg0: i32) -> (i32, i32) {
    %c0_i32 = arith.constant 0 : i32
    %c0_i32_0 = arith.constant 0 : i32
    %c0_i32_1 = arith.constant 0 : i32
    return %c0_i32, %c0_i32_0 : i32, i32
  }
  func.func @transform_4(%arg0: i32) -> (i32, i32) {
    %c0_i32 = arith.constant 0 : i32
    %c0_i32_0 = arith.constant 0 : i32
    return %arg0, %c0_i32 : i32, i32
  }
  func.func @transform_5(%arg0: i32) -> (i32, i32, i32) {
    %c0_i32 = arith.constant 0 : i32
    %c0_i32_0 = arith.constant 0 : i32
    %c0_i32_1 = arith.constant 0 : i32
    return %arg0, %c0_i32, %c0_i32_0 : i32, i32, i32
  }
}

module attributes {stable_mosaic.version = 11 : i64} {
  func.func @_bn_relu_conv2_kernel(%arg0: i32, %arg1: memref<1x256x128xf32, #tpu.memory_space<vmem>>, %arg2: memref<1x128xf32, #tpu.memory_space<vmem>>, %arg3: memref<1x128xf32, #tpu.memory_space<vmem>>, %arg4: memref<1152x128xbf16, #tpu.memory_space<vmem>>, %arg5: memref<1x256x128xf32, #tpu.memory_space<vmem>>, %arg6: memref<1x2x128xf32, #tpu.memory_space<vmem>>) attributes {dimension_semantics = [#tpu.dimension_semantics<parallel>], iteration_bounds = array<i64: 2>, scalar_prefetch = 0 : i64, scratch_operands = 0 : i64, tpu.core_type = #tpu.core_type<tc>, window_params = [{transform_indices = @transform_0, window_bounds = array<i64: 1, 256, 128>}, {pipeline_mode = #tpu.pipeline_mode<synchronous>, transform_indices = @transform_1, window_bounds = array<i64: 1, 128>}, {pipeline_mode = #tpu.pipeline_mode<synchronous>, transform_indices = @transform_2, window_bounds = array<i64: 1, 128>}, {pipeline_mode = #tpu.pipeline_mode<synchronous>, transform_indices = @transform_3, window_bounds = array<i64: 1152, 128>}, {transform_indices = @transform_4, window_bounds = array<i64: 1, 256, 128>}, {transform_indices = @transform_5, window_bounds = array<i64: 1, 2, 128>}]} {
    %c0 = arith.constant 0 : index
    %c0_0 = arith.constant 0 : index
    %c0_1 = arith.constant 0 : index
    %0 = vector.load %arg1[%c0, %c0_0, %c0_1] : memref<1x256x128xf32, #tpu.memory_space<vmem>>, vector<1x256x128xf32>
    %1 = vector.shape_cast %0 : vector<1x256x128xf32> to vector<256x128xf32>
    %c0_2 = arith.constant 0 : index
    %c0_3 = arith.constant 0 : index
    %2 = vector.load %arg2[%c0_2, %c0_3] : memref<1x128xf32, #tpu.memory_space<vmem>>, vector<1x128xf32>
    %3 = vector.broadcast %2 : vector<1x128xf32> to vector<256x128xf32>
    %4 = arith.mulf %1, %3 : vector<256x128xf32>
    %c0_4 = arith.constant 0 : index
    %c0_5 = arith.constant 0 : index
    %5 = vector.load %arg3[%c0_4, %c0_5] : memref<1x128xf32, #tpu.memory_space<vmem>>, vector<1x128xf32>
    %6 = vector.broadcast %5 : vector<1x128xf32> to vector<256x128xf32>
    %7 = arith.addf %4, %6 : vector<256x128xf32>
    %cst = arith.constant 0.000000e+00 : f32
    %8 = vector.broadcast %cst : f32 to vector<256x128xf32>
    %9 = arith.maximumf %7, %8 : vector<256x128xf32>
    %10 = tpu.iota {dimensions = array<i32: 0>} : vector<256x1xi32>
    %c16_i32 = arith.constant 16 : i32
    %c0_i32 = arith.constant 0 : i32
    %11 = arith.cmpi eq, %c16_i32, %c0_i32 : i32
    %c1_i32 = arith.constant 1 : i32
    %12 = arith.select %11, %c1_i32, %c16_i32 : i32
    %13 = vector.broadcast %12 : i32 to vector<256x1xi32>
    %14 = arith.remsi %10, %13 : vector<256x1xi32>
    %c0_i32_6 = arith.constant 0 : i32
    %15 = vector.broadcast %c0_i32_6 : i32 to vector<256x1xi32>
    %16 = arith.cmpi ne, %14, %15 : vector<256x1xi32>
    %c0_i32_7 = arith.constant 0 : i32
    %17 = vector.broadcast %c0_i32_7 : i32 to vector<256x1xi32>
    %18 = arith.cmpi slt, %14, %17 : vector<256x1xi32>
    %c0_i32_8 = arith.constant 0 : i32
    %19 = arith.cmpi slt, %12, %c0_i32_8 : i32
    %20 = vector.broadcast %19 : i1 to vector<256x1xi1>
    %21 = vector.broadcast %20 : vector<256x1xi1> to vector<256x1xi1>
    %22 = arith.xori %18, %21 : vector<256x1xi1>
    %23 = arith.andi %22, %16 : vector<256x1xi1>
    %24 = vector.broadcast %12 : i32 to vector<256x1xi32>
    %25 = arith.addi %14, %24 : vector<256x1xi32>
    %26 = arith.select %23, %25, %14 : vector<256x1xi1>, vector<256x1xi32>
    %cst_9 = arith.constant 0.000000e+00 : f32
    %27 = vector.broadcast %cst_9 : f32 to vector<17x128xf32>
    %28 = vector.extract_strided_slice %9 {offsets = [0, 0], sizes = [239, 128], strides = [1, 1]} : vector<256x128xf32> to vector<239x128xf32>
    %29 = tpu.concatenate %27, %28 in 0 : vector<17x128xf32>, vector<239x128xf32> -> vector<256x128xf32>
    %c-1_i32 = arith.constant -1 : i32
    %30 = vector.broadcast %c-1_i32 : i32 to vector<256x1xi32>
    %31 = arith.addi %26, %30 : vector<256x1xi32>
    %c0_i32_10 = arith.constant 0 : i32
    %32 = vector.broadcast %c0_i32_10 : i32 to vector<256x1xi32>
    %33 = arith.cmpi sge, %31, %32 : vector<256x1xi32>
    %c-1_i32_11 = arith.constant -1 : i32
    %34 = vector.broadcast %c-1_i32_11 : i32 to vector<256x1xi32>
    %35 = arith.addi %26, %34 : vector<256x1xi32>
    %c16_i32_12 = arith.constant 16 : i32
    %36 = vector.broadcast %c16_i32_12 : i32 to vector<256x1xi32>
    %37 = arith.cmpi slt, %35, %36 : vector<256x1xi32>
    %38 = arith.andi %33, %37 : vector<256x1xi1>
    %cst_13 = arith.constant 0.000000e+00 : f32
    %39 = vector.shape_cast %38 : vector<256x1xi1> to vector<256x1xi1>
    %40 = vector.broadcast %39 : vector<256x1xi1> to vector<256x128xi1>
    %41 = vector.broadcast %cst_13 : f32 to vector<256x128xf32>
    %42 = arith.select %40, %29, %41 : vector<256x128xi1>, vector<256x128xf32>
    %43 = arith.truncf %42 : vector<256x128xf32> to vector<256x128xbf16>
    %cst_14 = arith.constant 0.000000e+00 : f32
    %44 = vector.broadcast %cst_14 : f32 to vector<16x128xf32>
    %45 = vector.extract_strided_slice %9 {offsets = [0, 0], sizes = [240, 128], strides = [1, 1]} : vector<256x128xf32> to vector<240x128xf32>
    %46 = tpu.concatenate %44, %45 in 0 : vector<16x128xf32>, vector<240x128xf32> -> vector<256x128xf32>
    %47 = arith.truncf %46 : vector<256x128xf32> to vector<256x128xbf16>
    %cst_15 = arith.constant 0.000000e+00 : f32
    %48 = vector.broadcast %cst_15 : f32 to vector<15x128xf32>
    %49 = vector.extract_strided_slice %9 {offsets = [0, 0], sizes = [241, 128], strides = [1, 1]} : vector<256x128xf32> to vector<241x128xf32>
    %50 = tpu.concatenate %48, %49 in 0 : vector<15x128xf32>, vector<241x128xf32> -> vector<256x128xf32>
    %c1_i32_16 = arith.constant 1 : i32
    %51 = vector.broadcast %c1_i32_16 : i32 to vector<256x1xi32>
    %52 = arith.addi %26, %51 : vector<256x1xi32>
    %c0_i32_17 = arith.constant 0 : i32
    %53 = vector.broadcast %c0_i32_17 : i32 to vector<256x1xi32>
    %54 = arith.cmpi sge, %52, %53 : vector<256x1xi32>
    %c1_i32_18 = arith.constant 1 : i32
    %55 = vector.broadcast %c1_i32_18 : i32 to vector<256x1xi32>
    %56 = arith.addi %26, %55 : vector<256x1xi32>
    %c16_i32_19 = arith.constant 16 : i32
    %57 = vector.broadcast %c16_i32_19 : i32 to vector<256x1xi32>
    %58 = arith.cmpi slt, %56, %57 : vector<256x1xi32>
    %59 = arith.andi %54, %58 : vector<256x1xi1>
    %cst_20 = arith.constant 0.000000e+00 : f32
    %60 = vector.shape_cast %59 : vector<256x1xi1> to vector<256x1xi1>
    %61 = vector.broadcast %60 : vector<256x1xi1> to vector<256x128xi1>
    %62 = vector.broadcast %cst_20 : f32 to vector<256x128xf32>
    %63 = arith.select %61, %50, %62 : vector<256x128xi1>, vector<256x128xf32>
    %64 = arith.truncf %63 : vector<256x128xf32> to vector<256x128xbf16>
    %cst_21 = arith.constant 0.000000e+00 : f32
    %65 = vector.broadcast %cst_21 : f32 to vector<1x128xf32>
    %66 = vector.extract_strided_slice %9 {offsets = [0, 0], sizes = [255, 128], strides = [1, 1]} : vector<256x128xf32> to vector<255x128xf32>
    %67 = tpu.concatenate %65, %66 in 0 : vector<1x128xf32>, vector<255x128xf32> -> vector<256x128xf32>
    %c-1_i32_22 = arith.constant -1 : i32
    %68 = vector.broadcast %c-1_i32_22 : i32 to vector<256x1xi32>
    %69 = arith.addi %26, %68 : vector<256x1xi32>
    %c0_i32_23 = arith.constant 0 : i32
    %70 = vector.broadcast %c0_i32_23 : i32 to vector<256x1xi32>
    %71 = arith.cmpi sge, %69, %70 : vector<256x1xi32>
    %c-1_i32_24 = arith.constant -1 : i32
    %72 = vector.broadcast %c-1_i32_24 : i32 to vector<256x1xi32>
    %73 = arith.addi %26, %72 : vector<256x1xi32>
    %c16_i32_25 = arith.constant 16 : i32
    %74 = vector.broadcast %c16_i32_25 : i32 to vector<256x1xi32>
    %75 = arith.cmpi slt, %73, %74 : vector<256x1xi32>
    %76 = arith.andi %71, %75 : vector<256x1xi1>
    %cst_26 = arith.constant 0.000000e+00 : f32
    %77 = vector.shape_cast %76 : vector<256x1xi1> to vector<256x1xi1>
    %78 = vector.broadcast %77 : vector<256x1xi1> to vector<256x128xi1>
    %79 = vector.broadcast %cst_26 : f32 to vector<256x128xf32>
    %80 = arith.select %78, %67, %79 : vector<256x128xi1>, vector<256x128xf32>
    %81 = arith.truncf %80 : vector<256x128xf32> to vector<256x128xbf16>
    %82 = arith.truncf %9 : vector<256x128xf32> to vector<256x128xbf16>
    %cst_27 = arith.constant 0.000000e+00 : f32
    %83 = vector.broadcast %cst_27 : f32 to vector<1x128xf32>
    %84 = vector.extract_strided_slice %9 {offsets = [1, 0], sizes = [255, 128], strides = [1, 1]} : vector<256x128xf32> to vector<255x128xf32>
    %85 = tpu.concatenate %84, %83 in 0 : vector<255x128xf32>, vector<1x128xf32> -> vector<256x128xf32>
    %c1_i32_28 = arith.constant 1 : i32
    %86 = vector.broadcast %c1_i32_28 : i32 to vector<256x1xi32>
    %87 = arith.addi %26, %86 : vector<256x1xi32>
    %c0_i32_29 = arith.constant 0 : i32
    %88 = vector.broadcast %c0_i32_29 : i32 to vector<256x1xi32>
    %89 = arith.cmpi sge, %87, %88 : vector<256x1xi32>
    %c1_i32_30 = arith.constant 1 : i32
    %90 = vector.broadcast %c1_i32_30 : i32 to vector<256x1xi32>
    %91 = arith.addi %26, %90 : vector<256x1xi32>
    %c16_i32_31 = arith.constant 16 : i32
    %92 = vector.broadcast %c16_i32_31 : i32 to vector<256x1xi32>
    %93 = arith.cmpi slt, %91, %92 : vector<256x1xi32>
    %94 = arith.andi %89, %93 : vector<256x1xi1>
    %cst_32 = arith.constant 0.000000e+00 : f32
    %95 = vector.shape_cast %94 : vector<256x1xi1> to vector<256x1xi1>
    %96 = vector.broadcast %95 : vector<256x1xi1> to vector<256x128xi1>
    %97 = vector.broadcast %cst_32 : f32 to vector<256x128xf32>
    %98 = arith.select %96, %85, %97 : vector<256x128xi1>, vector<256x128xf32>
    %99 = arith.truncf %98 : vector<256x128xf32> to vector<256x128xbf16>
    %cst_33 = arith.constant 0.000000e+00 : f32
    %100 = vector.broadcast %cst_33 : f32 to vector<15x128xf32>
    %101 = vector.extract_strided_slice %9 {offsets = [15, 0], sizes = [241, 128], strides = [1, 1]} : vector<256x128xf32> to vector<241x128xf32>
    %102 = tpu.concatenate %101, %100 in 0 : vector<241x128xf32>, vector<15x128xf32> -> vector<256x128xf32>
    %c-1_i32_34 = arith.constant -1 : i32
    %103 = vector.broadcast %c-1_i32_34 : i32 to vector<256x1xi32>
    %104 = arith.addi %26, %103 : vector<256x1xi32>
    %c0_i32_35 = arith.constant 0 : i32
    %105 = vector.broadcast %c0_i32_35 : i32 to vector<256x1xi32>
    %106 = arith.cmpi sge, %104, %105 : vector<256x1xi32>
    %c-1_i32_36 = arith.constant -1 : i32
    %107 = vector.broadcast %c-1_i32_36 : i32 to vector<256x1xi32>
    %108 = arith.addi %26, %107 : vector<256x1xi32>
    %c16_i32_37 = arith.constant 16 : i32
    %109 = vector.broadcast %c16_i32_37 : i32 to vector<256x1xi32>
    %110 = arith.cmpi slt, %108, %109 : vector<256x1xi32>
    %111 = arith.andi %106, %110 : vector<256x1xi1>
    %cst_38 = arith.constant 0.000000e+00 : f32
    %112 = vector.shape_cast %111 : vector<256x1xi1> to vector<256x1xi1>
    %113 = vector.broadcast %112 : vector<256x1xi1> to vector<256x128xi1>
    %114 = vector.broadcast %cst_38 : f32 to vector<256x128xf32>
    %115 = arith.select %113, %102, %114 : vector<256x128xi1>, vector<256x128xf32>
    %116 = arith.truncf %115 : vector<256x128xf32> to vector<256x128xbf16>
    %cst_39 = arith.constant 0.000000e+00 : f32
    %117 = vector.broadcast %cst_39 : f32 to vector<16x128xf32>
    %118 = vector.extract_strided_slice %9 {offsets = [16, 0], sizes = [240, 128], strides = [1, 1]} : vector<256x128xf32> to vector<240x128xf32>
    %119 = tpu.concatenate %118, %117 in 0 : vector<240x128xf32>, vector<16x128xf32> -> vector<256x128xf32>
    %120 = arith.truncf %119 : vector<256x128xf32> to vector<256x128xbf16>
    %cst_40 = arith.constant 0.000000e+00 : f32
    %121 = vector.broadcast %cst_40 : f32 to vector<17x128xf32>
    %122 = vector.extract_strided_slice %9 {offsets = [17, 0], sizes = [239, 128], strides = [1, 1]} : vector<256x128xf32> to vector<239x128xf32>
    %123 = tpu.concatenate %122, %121 in 0 : vector<239x128xf32>, vector<17x128xf32> -> vector<256x128xf32>
    %c1_i32_41 = arith.constant 1 : i32
    %124 = vector.broadcast %c1_i32_41 : i32 to vector<256x1xi32>
    %125 = arith.addi %26, %124 : vector<256x1xi32>
    %c0_i32_42 = arith.constant 0 : i32
    %126 = vector.broadcast %c0_i32_42 : i32 to vector<256x1xi32>
    %127 = arith.cmpi sge, %125, %126 : vector<256x1xi32>
    %c1_i32_43 = arith.constant 1 : i32
    %128 = vector.broadcast %c1_i32_43 : i32 to vector<256x1xi32>
    %129 = arith.addi %26, %128 : vector<256x1xi32>
    %c16_i32_44 = arith.constant 16 : i32
    %130 = vector.broadcast %c16_i32_44 : i32 to vector<256x1xi32>
    %131 = arith.cmpi slt, %129, %130 : vector<256x1xi32>
    %132 = arith.andi %127, %131 : vector<256x1xi1>
    %cst_45 = arith.constant 0.000000e+00 : f32
    %133 = vector.shape_cast %132 : vector<256x1xi1> to vector<256x1xi1>
    %134 = vector.broadcast %133 : vector<256x1xi1> to vector<256x128xi1>
    %135 = vector.broadcast %cst_45 : f32 to vector<256x128xf32>
    %136 = arith.select %134, %123, %135 : vector<256x128xi1>, vector<256x128xf32>
    %137 = arith.truncf %136 : vector<256x128xf32> to vector<256x128xbf16>
    %138 = tpu.concatenate %43, %47, %64, %81, %82, %99, %116, %120, %137 in 1 : vector<256x128xbf16>, vector<256x128xbf16>, vector<256x128xbf16>, vector<256x128xbf16>, vector<256x128xbf16>, vector<256x128xbf16>, vector<256x128xbf16>, vector<256x128xbf16>, vector<256x128xbf16> -> vector<256x1152xbf16>
    %c0_46 = arith.constant 0 : index
    %c0_47 = arith.constant 0 : index
    %139 = vector.load %arg4[%c0_46, %c0_47] : memref<1152x128xbf16, #tpu.memory_space<vmem>>, vector<1152x128xbf16>
    %cst_48 = arith.constant dense<0.000000e+00> : vector<256x128xf32>
    %140 = tpu.matmul %138, %139, %cst_48 {dimension_numbers = #tpu.dot_dimension_numbers<[1], [0], [0], [1], [0, 0, 1, 1], [], []>} : vector<256x1152xbf16>, vector<1152x128xbf16>, vector<256x128xf32> -> vector<256x128xf32>
    %c0_49 = arith.constant 0 : index
    %c0_50 = arith.constant 0 : index
    %c0_51 = arith.constant 0 : index
    %141 = vector.load %arg5[%c0_49, %c0_50, %c0_51] : memref<1x256x128xf32, #tpu.memory_space<vmem>>, vector<1x256x128xf32>
    %142 = vector.shape_cast %141 : vector<1x256x128xf32> to vector<256x128xf32>
    %143 = vector.shape_cast %140 : vector<256x128xf32> to vector<1x256x128xf32>
    tpu.vector_store %arg5[%c0_49, %c0_50, %c0_51], %143 {strides = array<i32>} : memref<1x256x128xf32, #tpu.memory_space<vmem>>, vector<1x256x128xf32>,
    %cst_52 = arith.constant dense<0.000000e+00> : vector<128xf32>
    %144 = vector.multi_reduction <add>, %140, %cst_52 [0] : vector<256x128xf32> to vector<128xf32>
    %145 = vector.shape_cast %144 : vector<128xf32> to vector<1x128xf32>
    %146 = arith.mulf %140, %140 : vector<256x128xf32>
    %cst_53 = arith.constant dense<0.000000e+00> : vector<128xf32>
    %147 = vector.multi_reduction <add>, %146, %cst_53 [0] : vector<256x128xf32> to vector<128xf32>
    %148 = vector.shape_cast %147 : vector<128xf32> to vector<1x128xf32>
    %149 = tpu.concatenate %145, %148 in 0 : vector<1x128xf32>, vector<1x128xf32> -> vector<2x128xf32>
    %c0_54 = arith.constant 0 : index
    %c0_55 = arith.constant 0 : index
    %c0_56 = arith.constant 0 : index
    %150 = vector.load %arg6[%c0_54, %c0_55, %c0_56] : memref<1x2x128xf32, #tpu.memory_space<vmem>>, vector<1x2x128xf32>
    %151 = vector.shape_cast %150 : vector<1x2x128xf32> to vector<2x128xf32>
    %152 = vector.shape_cast %149 : vector<2x128xf32> to vector<1x2x128xf32>
    tpu.vector_store %arg6[%c0_54, %c0_55, %c0_56], %152 {strides = array<i32>} : memref<1x2x128xf32, #tpu.memory_space<vmem>>, vector<1x2x128xf32>,
    return
  }
  func.func @transform_0(%arg0: i32) -> (i32, i32, i32) {
    %c0_i32 = arith.constant 0 : i32
    %c0_i32_0 = arith.constant 0 : i32
    %c0_i32_1 = arith.constant 0 : i32
    return %arg0, %c0_i32, %c0_i32_0 : i32, i32, i32
  }
  func.func @transform_1(%arg0: i32) -> (i32, i32) {
    %c0_i32 = arith.constant 0 : i32
    %c0_i32_0 = arith.constant 0 : i32
    %c0_i32_1 = arith.constant 0 : i32
    return %c0_i32, %c0_i32_0 : i32, i32
  }
  func.func @transform_2(%arg0: i32) -> (i32, i32) {
    %c0_i32 = arith.constant 0 : i32
    %c0_i32_0 = arith.constant 0 : i32
    %c0_i32_1 = arith.constant 0 : i32
    return %c0_i32, %c0_i32_0 : i32, i32
  }
  func.func @transform_3(%arg0: i32) -> (i32, i32) {
    %c0_i32 = arith.constant 0 : i32
    %c0_i32_0 = arith.constant 0 : i32
    %c0_i32_1 = arith.constant 0 : i32
    return %c0_i32, %c0_i32_0 : i32, i32
  }
  func.func @transform_4(%arg0: i32) -> (i32, i32, i32) {
    %c0_i32 = arith.constant 0 : i32
    %c0_i32_0 = arith.constant 0 : i32
    %c0_i32_1 = arith.constant 0 : i32
    return %arg0, %c0_i32, %c0_i32_0 : i32, i32, i32
  }
  func.func @transform_5(%arg0: i32) -> (i32, i32, i32) {
    %c0_i32 = arith.constant 0 : i32
    %c0_i32_0 = arith.constant 0 : i32
    %c0_i32_1 = arith.constant 0 : i32
    return %arg0, %c0_i32, %c0_i32_0 : i32, i32, i32
  }
}

module attributes {stable_mosaic.version = 11 : i64} {
  func.func @_bn_relu_conv1_kernel(%arg0: i32, %arg1: memref<512x24xf32, #tpu.memory_space<vmem>>, %arg2: memref<1x24xf32, #tpu.memory_space<vmem>>, %arg3: memref<1x24xf32, #tpu.memory_space<vmem>>, %arg4: memref<24x128xbf16, #tpu.memory_space<vmem>>, %arg5: memref<512x128xf32, #tpu.memory_space<vmem>>, %arg6: memref<1x2x128xf32, #tpu.memory_space<vmem>>) attributes {dimension_semantics = [#tpu.dimension_semantics<parallel>], iteration_bounds = array<i64: 1>, scalar_prefetch = 0 : i64, scratch_operands = 0 : i64, tpu.core_type = #tpu.core_type<tc>, window_params = [{transform_indices = @transform_0, window_bounds = array<i64: 512, 24>}, {pipeline_mode = #tpu.pipeline_mode<synchronous>, transform_indices = @transform_1, window_bounds = array<i64: 1, 24>}, {pipeline_mode = #tpu.pipeline_mode<synchronous>, transform_indices = @transform_2, window_bounds = array<i64: 1, 24>}, {pipeline_mode = #tpu.pipeline_mode<synchronous>, transform_indices = @transform_3, window_bounds = array<i64: 24, 128>}, {transform_indices = @transform_4, window_bounds = array<i64: 512, 128>}, {transform_indices = @transform_5, window_bounds = array<i64: 1, 2, 128>}]} {
    %c0 = arith.constant 0 : index
    %c0_0 = arith.constant 0 : index
    %0 = vector.load %arg1[%c0, %c0_0] : memref<512x24xf32, #tpu.memory_space<vmem>>, vector<512x24xf32>
    %c0_1 = arith.constant 0 : index
    %c0_2 = arith.constant 0 : index
    %1 = vector.load %arg2[%c0_1, %c0_2] : memref<1x24xf32, #tpu.memory_space<vmem>>, vector<1x24xf32>
    %2 = vector.broadcast %1 : vector<1x24xf32> to vector<512x24xf32>
    %3 = arith.mulf %0, %2 : vector<512x24xf32>
    %c0_3 = arith.constant 0 : index
    %c0_4 = arith.constant 0 : index
    %4 = vector.load %arg3[%c0_3, %c0_4] : memref<1x24xf32, #tpu.memory_space<vmem>>, vector<1x24xf32>
    %5 = vector.broadcast %4 : vector<1x24xf32> to vector<512x24xf32>
    %6 = arith.addf %3, %5 : vector<512x24xf32>
    %cst = arith.constant 0.000000e+00 : f32
    %7 = vector.broadcast %cst : f32 to vector<512x24xf32>
    %8 = arith.maximumf %6, %7 : vector<512x24xf32>
    %9 = arith.truncf %8 : vector<512x24xf32> to vector<512x24xbf16>
    %c0_5 = arith.constant 0 : index
    %c0_6 = arith.constant 0 : index
    %10 = vector.load %arg4[%c0_5, %c0_6] : memref<24x128xbf16, #tpu.memory_space<vmem>>, vector<24x128xbf16>
    %cst_7 = arith.constant dense<0.000000e+00> : vector<512x128xf32>
    %11 = tpu.matmul %9, %10, %cst_7 {dimension_numbers = #tpu.dot_dimension_numbers<[1], [0], [0], [1], [0, 0, 1, 1], [], []>} : vector<512x24xbf16>, vector<24x128xbf16>, vector<512x128xf32> -> vector<512x128xf32>
    %c0_8 = arith.constant 0 : index
    %c0_9 = arith.constant 0 : index
    %12 = vector.load %arg5[%c0_8, %c0_9] : memref<512x128xf32, #tpu.memory_space<vmem>>, vector<512x128xf32>
    tpu.vector_store %arg5[%c0_8, %c0_9], %11 {strides = array<i32>} : memref<512x128xf32, #tpu.memory_space<vmem>>, vector<512x128xf32>,
    %cst_10 = arith.constant dense<0.000000e+00> : vector<128xf32>
    %13 = vector.multi_reduction <add>, %11, %cst_10 [0] : vector<512x128xf32> to vector<128xf32>
    %14 = vector.shape_cast %13 : vector<128xf32> to vector<1x128xf32>
    %15 = arith.mulf %11, %11 : vector<512x128xf32>
    %cst_11 = arith.constant dense<0.000000e+00> : vector<128xf32>
    %16 = vector.multi_reduction <add>, %15, %cst_11 [0] : vector<512x128xf32> to vector<128xf32>
    %17 = vector.shape_cast %16 : vector<128xf32> to vector<1x128xf32>
    %18 = tpu.concatenate %14, %17 in 0 : vector<1x128xf32>, vector<1x128xf32> -> vector<2x128xf32>
    %19 = vector.shape_cast %18 : vector<2x128xf32> to vector<1x2x128xf32>
    %c0_12 = arith.constant 0 : index
    %c0_13 = arith.constant 0 : index
    %c0_14 = arith.constant 0 : index
    %20 = vector.load %arg6[%c0_12, %c0_13, %c0_14] : memref<1x2x128xf32, #tpu.memory_space<vmem>>, vector<1x2x128xf32>
    tpu.vector_store %arg6[%c0_12, %c0_13, %c0_14], %19 {strides = array<i32>} : memref<1x2x128xf32, #tpu.memory_space<vmem>>, vector<1x2x128xf32>,
    return
  }
  func.func @transform_0(%arg0: i32) -> (i32, i32) {
    %c0_i32 = arith.constant 0 : i32
    %c0_i32_0 = arith.constant 0 : i32
    return %arg0, %c0_i32 : i32, i32
  }
  func.func @transform_1(%arg0: i32) -> (i32, i32) {
    %c0_i32 = arith.constant 0 : i32
    %c0_i32_0 = arith.constant 0 : i32
    %c0_i32_1 = arith.constant 0 : i32
    return %c0_i32, %c0_i32_0 : i32, i32
  }
  func.func @transform_2(%arg0: i32) -> (i32, i32) {
    %c0_i32 = arith.constant 0 : i32
    %c0_i32_0 = arith.constant 0 : i32
    %c0_i32_1 = arith.constant 0 : i32
    return %c0_i32, %c0_i32_0 : i32, i32
  }
  func.func @transform_3(%arg0: i32) -> (i32, i32) {
    %c0_i32 = arith.constant 0 : i32
    %c0_i32_0 = arith.constant 0 : i32
    %c0_i32_1 = arith.constant 0 : i32
    return %c0_i32, %c0_i32_0 : i32, i32
  }
  func.func @transform_4(%arg0: i32) -> (i32, i32) {
    %c0_i32 = arith.constant 0 : i32
    %c0_i32_0 = arith.constant 0 : i32
    return %arg0, %c0_i32 : i32, i32
  }
  func.func @transform_5(%arg0: i32) -> (i32, i32, i32) {
    %c0_i32 = arith.constant 0 : i32
    %c0_i32_0 = arith.constant 0 : i32
    %c0_i32_1 = arith.constant 0 : i32
    return %arg0, %c0_i32, %c0_i32_0 : i32, i32, i32
  }
}

module attributes {stable_mosaic.version = 11 : i64} {
  func.func @_bn_relu_conv1_kernel(%arg0: i32, %arg1: memref<512x32xf32, #tpu.memory_space<vmem>>, %arg2: memref<1x32xf32, #tpu.memory_space<vmem>>, %arg3: memref<1x32xf32, #tpu.memory_space<vmem>>, %arg4: memref<32x128xbf16, #tpu.memory_space<vmem>>, %arg5: memref<512x128xf32, #tpu.memory_space<vmem>>, %arg6: memref<1x2x128xf32, #tpu.memory_space<vmem>>) attributes {dimension_semantics = [#tpu.dimension_semantics<parallel>], iteration_bounds = array<i64: 1>, scalar_prefetch = 0 : i64, scratch_operands = 0 : i64, tpu.core_type = #tpu.core_type<tc>, window_params = [{transform_indices = @transform_0, window_bounds = array<i64: 512, 32>}, {pipeline_mode = #tpu.pipeline_mode<synchronous>, transform_indices = @transform_1, window_bounds = array<i64: 1, 32>}, {pipeline_mode = #tpu.pipeline_mode<synchronous>, transform_indices = @transform_2, window_bounds = array<i64: 1, 32>}, {pipeline_mode = #tpu.pipeline_mode<synchronous>, transform_indices = @transform_3, window_bounds = array<i64: 32, 128>}, {transform_indices = @transform_4, window_bounds = array<i64: 512, 128>}, {transform_indices = @transform_5, window_bounds = array<i64: 1, 2, 128>}]} {
    %c0 = arith.constant 0 : index
    %c0_0 = arith.constant 0 : index
    %0 = vector.load %arg1[%c0, %c0_0] : memref<512x32xf32, #tpu.memory_space<vmem>>, vector<512x32xf32>
    %c0_1 = arith.constant 0 : index
    %c0_2 = arith.constant 0 : index
    %1 = vector.load %arg2[%c0_1, %c0_2] : memref<1x32xf32, #tpu.memory_space<vmem>>, vector<1x32xf32>
    %2 = vector.broadcast %1 : vector<1x32xf32> to vector<512x32xf32>
    %3 = arith.mulf %0, %2 : vector<512x32xf32>
    %c0_3 = arith.constant 0 : index
    %c0_4 = arith.constant 0 : index
    %4 = vector.load %arg3[%c0_3, %c0_4] : memref<1x32xf32, #tpu.memory_space<vmem>>, vector<1x32xf32>
    %5 = vector.broadcast %4 : vector<1x32xf32> to vector<512x32xf32>
    %6 = arith.addf %3, %5 : vector<512x32xf32>
    %cst = arith.constant 0.000000e+00 : f32
    %7 = vector.broadcast %cst : f32 to vector<512x32xf32>
    %8 = arith.maximumf %6, %7 : vector<512x32xf32>
    %9 = arith.truncf %8 : vector<512x32xf32> to vector<512x32xbf16>
    %c0_5 = arith.constant 0 : index
    %c0_6 = arith.constant 0 : index
    %10 = vector.load %arg4[%c0_5, %c0_6] : memref<32x128xbf16, #tpu.memory_space<vmem>>, vector<32x128xbf16>
    %cst_7 = arith.constant dense<0.000000e+00> : vector<512x128xf32>
    %11 = tpu.matmul %9, %10, %cst_7 {dimension_numbers = #tpu.dot_dimension_numbers<[1], [0], [0], [1], [0, 0, 1, 1], [], []>} : vector<512x32xbf16>, vector<32x128xbf16>, vector<512x128xf32> -> vector<512x128xf32>
    %c0_8 = arith.constant 0 : index
    %c0_9 = arith.constant 0 : index
    %12 = vector.load %arg5[%c0_8, %c0_9] : memref<512x128xf32, #tpu.memory_space<vmem>>, vector<512x128xf32>
    tpu.vector_store %arg5[%c0_8, %c0_9], %11 {strides = array<i32>} : memref<512x128xf32, #tpu.memory_space<vmem>>, vector<512x128xf32>,
    %cst_10 = arith.constant dense<0.000000e+00> : vector<128xf32>
    %13 = vector.multi_reduction <add>, %11, %cst_10 [0] : vector<512x128xf32> to vector<128xf32>
    %14 = vector.shape_cast %13 : vector<128xf32> to vector<1x128xf32>
    %15 = arith.mulf %11, %11 : vector<512x128xf32>
    %cst_11 = arith.constant dense<0.000000e+00> : vector<128xf32>
    %16 = vector.multi_reduction <add>, %15, %cst_11 [0] : vector<512x128xf32> to vector<128xf32>
    %17 = vector.shape_cast %16 : vector<128xf32> to vector<1x128xf32>
    %18 = tpu.concatenate %14, %17 in 0 : vector<1x128xf32>, vector<1x128xf32> -> vector<2x128xf32>
    %19 = vector.shape_cast %18 : vector<2x128xf32> to vector<1x2x128xf32>
    %c0_12 = arith.constant 0 : index
    %c0_13 = arith.constant 0 : index
    %c0_14 = arith.constant 0 : index
    %20 = vector.load %arg6[%c0_12, %c0_13, %c0_14] : memref<1x2x128xf32, #tpu.memory_space<vmem>>, vector<1x2x128xf32>
    tpu.vector_store %arg6[%c0_12, %c0_13, %c0_14], %19 {strides = array<i32>} : memref<1x2x128xf32, #tpu.memory_space<vmem>>, vector<1x2x128xf32>,
    return
  }
  func.func @transform_0(%arg0: i32) -> (i32, i32) {
    %c0_i32 = arith.constant 0 : i32
    %c0_i32_0 = arith.constant 0 : i32
    return %arg0, %c0_i32 : i32, i32
  }
  func.func @transform_1(%arg0: i32) -> (i32, i32) {
    %c0_i32 = arith.constant 0 : i32
    %c0_i32_0 = arith.constant 0 : i32
    %c0_i32_1 = arith.constant 0 : i32
    return %c0_i32, %c0_i32_0 : i32, i32
  }
  func.func @transform_2(%arg0: i32) -> (i32, i32) {
    %c0_i32 = arith.constant 0 : i32
    %c0_i32_0 = arith.constant 0 : i32
    %c0_i32_1 = arith.constant 0 : i32
    return %c0_i32, %c0_i32_0 : i32, i32
  }
  func.func @transform_3(%arg0: i32) -> (i32, i32) {
    %c0_i32 = arith.constant 0 : i32
    %c0_i32_0 = arith.constant 0 : i32
    %c0_i32_1 = arith.constant 0 : i32
    return %c0_i32, %c0_i32_0 : i32, i32
  }
  func.func @transform_4(%arg0: i32) -> (i32, i32) {
    %c0_i32 = arith.constant 0 : i32
    %c0_i32_0 = arith.constant 0 : i32
    return %arg0, %c0_i32 : i32, i32
  }
  func.func @transform_5(%arg0: i32) -> (i32, i32, i32) {
    %c0_i32 = arith.constant 0 : i32
    %c0_i32_0 = arith.constant 0 : i32
    %c0_i32_1 = arith.constant 0 : i32
    return %arg0, %c0_i32, %c0_i32_0 : i32, i32, i32
  }
}

module attributes {stable_mosaic.version = 11 : i64} {
  func.func @_bn_relu_conv2_kernel(%arg0: i32, %arg1: memref<1x256x128xf32, #tpu.memory_space<vmem>>, %arg2: memref<1x128xf32, #tpu.memory_space<vmem>>, %arg3: memref<1x128xf32, #tpu.memory_space<vmem>>, %arg4: memref<1152x128xbf16, #tpu.memory_space<vmem>>, %arg5: memref<1x256x128xf32, #tpu.memory_space<vmem>>, %arg6: memref<1x2x128xf32, #tpu.memory_space<vmem>>) attributes {dimension_semantics = [#tpu.dimension_semantics<parallel>], iteration_bounds = array<i64: 2>, scalar_prefetch = 0 : i64, scratch_operands = 0 : i64, tpu.core_type = #tpu.core_type<tc>, window_params = [{transform_indices = @transform_0, window_bounds = array<i64: 1, 256, 128>}, {pipeline_mode = #tpu.pipeline_mode<synchronous>, transform_indices = @transform_1, window_bounds = array<i64: 1, 128>}, {pipeline_mode = #tpu.pipeline_mode<synchronous>, transform_indices = @transform_2, window_bounds = array<i64: 1, 128>}, {pipeline_mode = #tpu.pipeline_mode<synchronous>, transform_indices = @transform_3, window_bounds = array<i64: 1152, 128>}, {transform_indices = @transform_4, window_bounds = array<i64: 1, 256, 128>}, {transform_indices = @transform_5, window_bounds = array<i64: 1, 2, 128>}]} {
    %c0 = arith.constant 0 : index
    %c0_0 = arith.constant 0 : index
    %c0_1 = arith.constant 0 : index
    %0 = vector.load %arg1[%c0, %c0_0, %c0_1] : memref<1x256x128xf32, #tpu.memory_space<vmem>>, vector<1x256x128xf32>
    %1 = vector.shape_cast %0 : vector<1x256x128xf32> to vector<256x128xf32>
    %c0_2 = arith.constant 0 : index
    %c0_3 = arith.constant 0 : index
    %2 = vector.load %arg2[%c0_2, %c0_3] : memref<1x128xf32, #tpu.memory_space<vmem>>, vector<1x128xf32>
    %3 = vector.broadcast %2 : vector<1x128xf32> to vector<256x128xf32>
    %4 = arith.mulf %1, %3 : vector<256x128xf32>
    %c0_4 = arith.constant 0 : index
    %c0_5 = arith.constant 0 : index
    %5 = vector.load %arg3[%c0_4, %c0_5] : memref<1x128xf32, #tpu.memory_space<vmem>>, vector<1x128xf32>
    %6 = vector.broadcast %5 : vector<1x128xf32> to vector<256x128xf32>
    %7 = arith.addf %4, %6 : vector<256x128xf32>
    %cst = arith.constant 0.000000e+00 : f32
    %8 = vector.broadcast %cst : f32 to vector<256x128xf32>
    %9 = arith.maximumf %7, %8 : vector<256x128xf32>
    %10 = tpu.iota {dimensions = array<i32: 0>} : vector<256x1xi32>
    %c16_i32 = arith.constant 16 : i32
    %c0_i32 = arith.constant 0 : i32
    %11 = arith.cmpi eq, %c16_i32, %c0_i32 : i32
    %c1_i32 = arith.constant 1 : i32
    %12 = arith.select %11, %c1_i32, %c16_i32 : i32
    %13 = vector.broadcast %12 : i32 to vector<256x1xi32>
    %14 = arith.remsi %10, %13 : vector<256x1xi32>
    %c0_i32_6 = arith.constant 0 : i32
    %15 = vector.broadcast %c0_i32_6 : i32 to vector<256x1xi32>
    %16 = arith.cmpi ne, %14, %15 : vector<256x1xi32>
    %c0_i32_7 = arith.constant 0 : i32
    %17 = vector.broadcast %c0_i32_7 : i32 to vector<256x1xi32>
    %18 = arith.cmpi slt, %14, %17 : vector<256x1xi32>
    %c0_i32_8 = arith.constant 0 : i32
    %19 = arith.cmpi slt, %12, %c0_i32_8 : i32
    %20 = vector.broadcast %19 : i1 to vector<256x1xi1>
    %21 = vector.broadcast %20 : vector<256x1xi1> to vector<256x1xi1>
    %22 = arith.xori %18, %21 : vector<256x1xi1>
    %23 = arith.andi %22, %16 : vector<256x1xi1>
    %24 = vector.broadcast %12 : i32 to vector<256x1xi32>
    %25 = arith.addi %14, %24 : vector<256x1xi32>
    %26 = arith.select %23, %25, %14 : vector<256x1xi1>, vector<256x1xi32>
    %cst_9 = arith.constant 0.000000e+00 : f32
    %27 = vector.broadcast %cst_9 : f32 to vector<17x128xf32>
    %28 = vector.extract_strided_slice %9 {offsets = [0, 0], sizes = [239, 128], strides = [1, 1]} : vector<256x128xf32> to vector<239x128xf32>
    %29 = tpu.concatenate %27, %28 in 0 : vector<17x128xf32>, vector<239x128xf32> -> vector<256x128xf32>
    %c-1_i32 = arith.constant -1 : i32
    %30 = vector.broadcast %c-1_i32 : i32 to vector<256x1xi32>
    %31 = arith.addi %26, %30 : vector<256x1xi32>
    %c0_i32_10 = arith.constant 0 : i32
    %32 = vector.broadcast %c0_i32_10 : i32 to vector<256x1xi32>
    %33 = arith.cmpi sge, %31, %32 : vector<256x1xi32>
    %c-1_i32_11 = arith.constant -1 : i32
    %34 = vector.broadcast %c-1_i32_11 : i32 to vector<256x1xi32>
    %35 = arith.addi %26, %34 : vector<256x1xi32>
    %c16_i32_12 = arith.constant 16 : i32
    %36 = vector.broadcast %c16_i32_12 : i32 to vector<256x1xi32>
    %37 = arith.cmpi slt, %35, %36 : vector<256x1xi32>
    %38 = arith.andi %33, %37 : vector<256x1xi1>
    %cst_13 = arith.constant 0.000000e+00 : f32
    %39 = vector.shape_cast %38 : vector<256x1xi1> to vector<256x1xi1>
    %40 = vector.broadcast %39 : vector<256x1xi1> to vector<256x128xi1>
    %41 = vector.broadcast %cst_13 : f32 to vector<256x128xf32>
    %42 = arith.select %40, %29, %41 : vector<256x128xi1>, vector<256x128xf32>
    %43 = arith.truncf %42 : vector<256x128xf32> to vector<256x128xbf16>
    %cst_14 = arith.constant 0.000000e+00 : f32
    %44 = vector.broadcast %cst_14 : f32 to vector<16x128xf32>
    %45 = vector.extract_strided_slice %9 {offsets = [0, 0], sizes = [240, 128], strides = [1, 1]} : vector<256x128xf32> to vector<240x128xf32>
    %46 = tpu.concatenate %44, %45 in 0 : vector<16x128xf32>, vector<240x128xf32> -> vector<256x128xf32>
    %47 = arith.truncf %46 : vector<256x128xf32> to vector<256x128xbf16>
    %cst_15 = arith.constant 0.000000e+00 : f32
    %48 = vector.broadcast %cst_15 : f32 to vector<15x128xf32>
    %49 = vector.extract_strided_slice %9 {offsets = [0, 0], sizes = [241, 128], strides = [1, 1]} : vector<256x128xf32> to vector<241x128xf32>
    %50 = tpu.concatenate %48, %49 in 0 : vector<15x128xf32>, vector<241x128xf32> -> vector<256x128xf32>
    %c1_i32_16 = arith.constant 1 : i32
    %51 = vector.broadcast %c1_i32_16 : i32 to vector<256x1xi32>
    %52 = arith.addi %26, %51 : vector<256x1xi32>
    %c0_i32_17 = arith.constant 0 : i32
    %53 = vector.broadcast %c0_i32_17 : i32 to vector<256x1xi32>
    %54 = arith.cmpi sge, %52, %53 : vector<256x1xi32>
    %c1_i32_18 = arith.constant 1 : i32
    %55 = vector.broadcast %c1_i32_18 : i32 to vector<256x1xi32>
    %56 = arith.addi %26, %55 : vector<256x1xi32>
    %c16_i32_19 = arith.constant 16 : i32
    %57 = vector.broadcast %c16_i32_19 : i32 to vector<256x1xi32>
    %58 = arith.cmpi slt, %56, %57 : vector<256x1xi32>
    %59 = arith.andi %54, %58 : vector<256x1xi1>
    %cst_20 = arith.constant 0.000000e+00 : f32
    %60 = vector.shape_cast %59 : vector<256x1xi1> to vector<256x1xi1>
    %61 = vector.broadcast %60 : vector<256x1xi1> to vector<256x128xi1>
    %62 = vector.broadcast %cst_20 : f32 to vector<256x128xf32>
    %63 = arith.select %61, %50, %62 : vector<256x128xi1>, vector<256x128xf32>
    %64 = arith.truncf %63 : vector<256x128xf32> to vector<256x128xbf16>
    %cst_21 = arith.constant 0.000000e+00 : f32
    %65 = vector.broadcast %cst_21 : f32 to vector<1x128xf32>
    %66 = vector.extract_strided_slice %9 {offsets = [0, 0], sizes = [255, 128], strides = [1, 1]} : vector<256x128xf32> to vector<255x128xf32>
    %67 = tpu.concatenate %65, %66 in 0 : vector<1x128xf32>, vector<255x128xf32> -> vector<256x128xf32>
    %c-1_i32_22 = arith.constant -1 : i32
    %68 = vector.broadcast %c-1_i32_22 : i32 to vector<256x1xi32>
    %69 = arith.addi %26, %68 : vector<256x1xi32>
    %c0_i32_23 = arith.constant 0 : i32
    %70 = vector.broadcast %c0_i32_23 : i32 to vector<256x1xi32>
    %71 = arith.cmpi sge, %69, %70 : vector<256x1xi32>
    %c-1_i32_24 = arith.constant -1 : i32
    %72 = vector.broadcast %c-1_i32_24 : i32 to vector<256x1xi32>
    %73 = arith.addi %26, %72 : vector<256x1xi32>
    %c16_i32_25 = arith.constant 16 : i32
    %74 = vector.broadcast %c16_i32_25 : i32 to vector<256x1xi32>
    %75 = arith.cmpi slt, %73, %74 : vector<256x1xi32>
    %76 = arith.andi %71, %75 : vector<256x1xi1>
    %cst_26 = arith.constant 0.000000e+00 : f32
    %77 = vector.shape_cast %76 : vector<256x1xi1> to vector<256x1xi1>
    %78 = vector.broadcast %77 : vector<256x1xi1> to vector<256x128xi1>
    %79 = vector.broadcast %cst_26 : f32 to vector<256x128xf32>
    %80 = arith.select %78, %67, %79 : vector<256x128xi1>, vector<256x128xf32>
    %81 = arith.truncf %80 : vector<256x128xf32> to vector<256x128xbf16>
    %82 = arith.truncf %9 : vector<256x128xf32> to vector<256x128xbf16>
    %cst_27 = arith.constant 0.000000e+00 : f32
    %83 = vector.broadcast %cst_27 : f32 to vector<1x128xf32>
    %84 = vector.extract_strided_slice %9 {offsets = [1, 0], sizes = [255, 128], strides = [1, 1]} : vector<256x128xf32> to vector<255x128xf32>
    %85 = tpu.concatenate %84, %83 in 0 : vector<255x128xf32>, vector<1x128xf32> -> vector<256x128xf32>
    %c1_i32_28 = arith.constant 1 : i32
    %86 = vector.broadcast %c1_i32_28 : i32 to vector<256x1xi32>
    %87 = arith.addi %26, %86 : vector<256x1xi32>
    %c0_i32_29 = arith.constant 0 : i32
    %88 = vector.broadcast %c0_i32_29 : i32 to vector<256x1xi32>
    %89 = arith.cmpi sge, %87, %88 : vector<256x1xi32>
    %c1_i32_30 = arith.constant 1 : i32
    %90 = vector.broadcast %c1_i32_30 : i32 to vector<256x1xi32>
    %91 = arith.addi %26, %90 : vector<256x1xi32>
    %c16_i32_31 = arith.constant 16 : i32
    %92 = vector.broadcast %c16_i32_31 : i32 to vector<256x1xi32>
    %93 = arith.cmpi slt, %91, %92 : vector<256x1xi32>
    %94 = arith.andi %89, %93 : vector<256x1xi1>
    %cst_32 = arith.constant 0.000000e+00 : f32
    %95 = vector.shape_cast %94 : vector<256x1xi1> to vector<256x1xi1>
    %96 = vector.broadcast %95 : vector<256x1xi1> to vector<256x128xi1>
    %97 = vector.broadcast %cst_32 : f32 to vector<256x128xf32>
    %98 = arith.select %96, %85, %97 : vector<256x128xi1>, vector<256x128xf32>
    %99 = arith.truncf %98 : vector<256x128xf32> to vector<256x128xbf16>
    %cst_33 = arith.constant 0.000000e+00 : f32
    %100 = vector.broadcast %cst_33 : f32 to vector<15x128xf32>
    %101 = vector.extract_strided_slice %9 {offsets = [15, 0], sizes = [241, 128], strides = [1, 1]} : vector<256x128xf32> to vector<241x128xf32>
    %102 = tpu.concatenate %101, %100 in 0 : vector<241x128xf32>, vector<15x128xf32> -> vector<256x128xf32>
    %c-1_i32_34 = arith.constant -1 : i32
    %103 = vector.broadcast %c-1_i32_34 : i32 to vector<256x1xi32>
    %104 = arith.addi %26, %103 : vector<256x1xi32>
    %c0_i32_35 = arith.constant 0 : i32
    %105 = vector.broadcast %c0_i32_35 : i32 to vector<256x1xi32>
    %106 = arith.cmpi sge, %104, %105 : vector<256x1xi32>
    %c-1_i32_36 = arith.constant -1 : i32
    %107 = vector.broadcast %c-1_i32_36 : i32 to vector<256x1xi32>
    %108 = arith.addi %26, %107 : vector<256x1xi32>
    %c16_i32_37 = arith.constant 16 : i32
    %109 = vector.broadcast %c16_i32_37 : i32 to vector<256x1xi32>
    %110 = arith.cmpi slt, %108, %109 : vector<256x1xi32>
    %111 = arith.andi %106, %110 : vector<256x1xi1>
    %cst_38 = arith.constant 0.000000e+00 : f32
    %112 = vector.shape_cast %111 : vector<256x1xi1> to vector<256x1xi1>
    %113 = vector.broadcast %112 : vector<256x1xi1> to vector<256x128xi1>
    %114 = vector.broadcast %cst_38 : f32 to vector<256x128xf32>
    %115 = arith.select %113, %102, %114 : vector<256x128xi1>, vector<256x128xf32>
    %116 = arith.truncf %115 : vector<256x128xf32> to vector<256x128xbf16>
    %cst_39 = arith.constant 0.000000e+00 : f32
    %117 = vector.broadcast %cst_39 : f32 to vector<16x128xf32>
    %118 = vector.extract_strided_slice %9 {offsets = [16, 0], sizes = [240, 128], strides = [1, 1]} : vector<256x128xf32> to vector<240x128xf32>
    %119 = tpu.concatenate %118, %117 in 0 : vector<240x128xf32>, vector<16x128xf32> -> vector<256x128xf32>
    %120 = arith.truncf %119 : vector<256x128xf32> to vector<256x128xbf16>
    %cst_40 = arith.constant 0.000000e+00 : f32
    %121 = vector.broadcast %cst_40 : f32 to vector<17x128xf32>
    %122 = vector.extract_strided_slice %9 {offsets = [17, 0], sizes = [239, 128], strides = [1, 1]} : vector<256x128xf32> to vector<239x128xf32>
    %123 = tpu.concatenate %122, %121 in 0 : vector<239x128xf32>, vector<17x128xf32> -> vector<256x128xf32>
    %c1_i32_41 = arith.constant 1 : i32
    %124 = vector.broadcast %c1_i32_41 : i32 to vector<256x1xi32>
    %125 = arith.addi %26, %124 : vector<256x1xi32>
    %c0_i32_42 = arith.constant 0 : i32
    %126 = vector.broadcast %c0_i32_42 : i32 to vector<256x1xi32>
    %127 = arith.cmpi sge, %125, %126 : vector<256x1xi32>
    %c1_i32_43 = arith.constant 1 : i32
    %128 = vector.broadcast %c1_i32_43 : i32 to vector<256x1xi32>
    %129 = arith.addi %26, %128 : vector<256x1xi32>
    %c16_i32_44 = arith.constant 16 : i32
    %130 = vector.broadcast %c16_i32_44 : i32 to vector<256x1xi32>
    %131 = arith.cmpi slt, %129, %130 : vector<256x1xi32>
    %132 = arith.andi %127, %131 : vector<256x1xi1>
    %cst_45 = arith.constant 0.000000e+00 : f32
    %133 = vector.shape_cast %132 : vector<256x1xi1> to vector<256x1xi1>
    %134 = vector.broadcast %133 : vector<256x1xi1> to vector<256x128xi1>
    %135 = vector.broadcast %cst_45 : f32 to vector<256x128xf32>
    %136 = arith.select %134, %123, %135 : vector<256x128xi1>, vector<256x128xf32>
    %137 = arith.truncf %136 : vector<256x128xf32> to vector<256x128xbf16>
    %138 = tpu.concatenate %43, %47, %64, %81, %82, %99, %116, %120, %137 in 1 : vector<256x128xbf16>, vector<256x128xbf16>, vector<256x128xbf16>, vector<256x128xbf16>, vector<256x128xbf16>, vector<256x128xbf16>, vector<256x128xbf16>, vector<256x128xbf16>, vector<256x128xbf16> -> vector<256x1152xbf16>
    %c0_46 = arith.constant 0 : index
    %c0_47 = arith.constant 0 : index
    %139 = vector.load %arg4[%c0_46, %c0_47] : memref<1152x128xbf16, #tpu.memory_space<vmem>>, vector<1152x128xbf16>
    %cst_48 = arith.constant dense<0.000000e+00> : vector<256x128xf32>
    %140 = tpu.matmul %138, %139, %cst_48 {dimension_numbers = #tpu.dot_dimension_numbers<[1], [0], [0], [1], [0, 0, 1, 1], [], []>} : vector<256x1152xbf16>, vector<1152x128xbf16>, vector<256x128xf32> -> vector<256x128xf32>
    %c0_49 = arith.constant 0 : index
    %c0_50 = arith.constant 0 : index
    %c0_51 = arith.constant 0 : index
    %141 = vector.load %arg5[%c0_49, %c0_50, %c0_51] : memref<1x256x128xf32, #tpu.memory_space<vmem>>, vector<1x256x128xf32>
    %142 = vector.shape_cast %141 : vector<1x256x128xf32> to vector<256x128xf32>
    %143 = vector.shape_cast %140 : vector<256x128xf32> to vector<1x256x128xf32>
    tpu.vector_store %arg5[%c0_49, %c0_50, %c0_51], %143 {strides = array<i32>} : memref<1x256x128xf32, #tpu.memory_space<vmem>>, vector<1x256x128xf32>,
    %cst_52 = arith.constant dense<0.000000e+00> : vector<128xf32>
    %144 = vector.multi_reduction <add>, %140, %cst_52 [0] : vector<256x128xf32> to vector<128xf32>
    %145 = vector.shape_cast %144 : vector<128xf32> to vector<1x128xf32>
    %146 = arith.mulf %140, %140 : vector<256x128xf32>
    %cst_53 = arith.constant dense<0.000000e+00> : vector<128xf32>
    %147 = vector.multi_reduction <add>, %146, %cst_53 [0] : vector<256x128xf32> to vector<128xf32>
    %148 = vector.shape_cast %147 : vector<128xf32> to vector<1x128xf32>
    %149 = tpu.concatenate %145, %148 in 0 : vector<1x128xf32>, vector<1x128xf32> -> vector<2x128xf32>
    %c0_54 = arith.constant 0 : index
    %c0_55 = arith.constant 0 : index
    %c0_56 = arith.constant 0 : index
    %150 = vector.load %arg6[%c0_54, %c0_55, %c0_56] : memref<1x2x128xf32, #tpu.memory_space<vmem>>, vector<1x2x128xf32>
    %151 = vector.shape_cast %150 : vector<1x2x128xf32> to vector<2x128xf32>
    %152 = vector.shape_cast %149 : vector<2x128xf32> to vector<1x2x128xf32>
    tpu.vector_store %arg6[%c0_54, %c0_55, %c0_56], %152 {strides = array<i32>} : memref<1x2x128xf32, #tpu.memory_space<vmem>>, vector<1x2x128xf32>,
    return
  }
  func.func @transform_0(%arg0: i32) -> (i32, i32, i32) {
    %c0_i32 = arith.constant 0 : i32
    %c0_i32_0 = arith.constant 0 : i32
    %c0_i32_1 = arith.constant 0 : i32
    return %arg0, %c0_i32, %c0_i32_0 : i32, i32, i32
  }
  func.func @transform_1(%arg0: i32) -> (i32, i32) {
    %c0_i32 = arith.constant 0 : i32
    %c0_i32_0 = arith.constant 0 : i32
    %c0_i32_1 = arith.constant 0 : i32
    return %c0_i32, %c0_i32_0 : i32, i32
  }
  func.func @transform_2(%arg0: i32) -> (i32, i32) {
    %c0_i32 = arith.constant 0 : i32
    %c0_i32_0 = arith.constant 0 : i32
    %c0_i32_1 = arith.constant 0 : i32
    return %c0_i32, %c0_i32_0 : i32, i32
  }
  func.func @transform_3(%arg0: i32) -> (i32, i32) {
    %c0_i32 = arith.constant 0 : i32
    %c0_i32_0 = arith.constant 0 : i32
    %c0_i32_1 = arith.constant 0 : i32
    return %c0_i32, %c0_i32_0 : i32, i32
  }
  func.func @transform_4(%arg0: i32) -> (i32, i32, i32) {
    %c0_i32 = arith.constant 0 : i32
    %c0_i32_0 = arith.constant 0 : i32
    %c0_i32_1 = arith.constant 0 : i32
    return %arg0, %c0_i32, %c0_i32_0 : i32, i32, i32
  }
  func.func @transform_5(%arg0: i32) -> (i32, i32, i32) {
    %c0_i32 = arith.constant 0 : i32
    %c0_i32_0 = arith.constant 0 : i32
    %c0_i32_1 = arith.constant 0 : i32
    return %arg0, %c0_i32, %c0_i32_0 : i32, i32, i32
  }
}

</mosaic_0001>

<llo_original>
// kernel: dense_block_forward.7
$region0: #{dense_block_forward.7}
  #allocation0 [shape = 'u32[]', space=smem, size = 0x4, offset = 0x4, fixed_abs, tag = 'smem constant byte address 0x4 - core index']
  #allocation1 [shape = 'u32[144,128]{1,0:T(1,128)}', space=vmem, size = 0x12000, scoped, tag = 'internal scratch']
  %s0 = inlined_call_operand.vmem [shape: f32[512,16], index: 0, kind: input, shape index: {}]
  %s1 = inlined_call_operand.vmem [shape: f32[1,2,16], index: 1, kind: output, shape index: {}]
  %s2 = sld [smem:[#allocation0]]
  $region14: #{dense_block_forward.7} parent=0
    _
  %s4 = ssub.s32 1, %s2
  %s5 = scalar_select 0, %s4, %s2
  // Predicated region
  $region2: #{dense_block_forward.7} parent=0 // pred_check
    _
  $region3: #{dense_block_forward.7} parent=0 // pred_check_branch
    %7 = sbr.rel (0) target = $region5
  $region4: #{dense_block_forward.7} parent=0 // pred_region
    _
  $region5: #{dense_block_forward.7} parent=0 // pred_fallthru
    _
  %v8 = vld [vmem:[%s0] sm:$0xff]
  %v9 = vld [vmem:[%s0 + $0x8] sm:$0xff]
  %v10 = vld [vmem:[%s0 + $0x10] sm:$0xff]
  %v11 = vld [vmem:[%s0 + $0x18] sm:$0xff]
  %v12 = vld [vmem:[%s0 + $0x20] sm:$0xff]
  %v13 = vld [vmem:[%s0 + $0x28] sm:$0xff]
  %v14 = vld [vmem:[%s0 + $0x30] sm:$0xff]
  %v15 = vld [vmem:[%s0 + $0x38] sm:$0xff]
  %v16 = vld [vmem:[%s0 + $0x40] sm:$0xff]
  %v17 = vld [vmem:[%s0 + $0x48] sm:$0xff]
  %v18 = vld [vmem:[%s0 + $0x50] sm:$0xff]
  %v19 = vld [vmem:[%s0 + $0x58] sm:$0xff]
  %v20 = vld [vmem:[%s0 + $0x60] sm:$0xff]
  %v21 = vld [vmem:[%s0 + $0x68] sm:$0xff]
  %v22 = vld [vmem:[%s0 + $0x70] sm:$0xff]
  %v23 = vld [vmem:[%s0 + $0x78] sm:$0xff]
  %v24 = vld [vmem:[%s0 + $0x80] sm:$0xff]
  %v25 = vld [vmem:[%s0 + $0x88] sm:$0xff]
  %v26 = vld [vmem:[%s0 + $0x90] sm:$0xff]
  %v27 = vld [vmem:[%s0 + $0x98] sm:$0xff]
  %v28 = vld [vmem:[%s0 + $0xa0] sm:$0xff]
  %v29 = vld [vmem:[%s0 + $0xa8] sm:$0xff]
  %v30 = vld [vmem:[%s0 + $0xb0] sm:$0xff]
  %v31 = vld [vmem:[%s0 + $0xb8] sm:$0xff]
  %v32 = vld [vmem:[%s0 + $0xc0] sm:$0xff]
  %v33 = vld [vmem:[%s0 + $0xc8] sm:$0xff]
  %v34 = vld [vmem:[%s0 + $0xd0] sm:$0xff]
  %v35 = vld [vmem:[%s0 + $0xd8] sm:$0xff]
  %v36 = vld [vmem:[%s0 + $0xe0] sm:$0xff]
  %v37 = vld [vmem:[%s0 + $0xe8] sm:$0xff]
  %v38 = vld [vmem:[%s0 + $0xf0] sm:$0xff]
  %v39 = vld [vmem:[%s0 + $0xf8] sm:$0xff]
  %v40 = vld [vmem:[%s0 + $0x100] sm:$0xff]
  %v41 = vld [vmem:[%s0 + $0x108] sm:$0xff]
  %v42 = vld [vmem:[%s0 + $0x110] sm:$0xff]
  %v43 = vld [vmem:[%s0 + $0x118] sm:$0xff]
  %v44 = vld [vmem:[%s0 + $0x120] sm:$0xff]
  %v45 = vld [vmem:[%s0 + $0x128] sm:$0xff]
  %v46 = vld [vmem:[%s0 + $0x130] sm:$0xff]
  %v47 = vld [vmem:[%s0 + $0x138] sm:$0xff]
  %v48 = vld [vmem:[%s0 + $0x140] sm:$0xff]
  %v49 = vld [vmem:[%s0 + $0x148] sm:$0xff]
  %v50 = vld [vmem:[%s0 + $0x150] sm:$0xff]
  %v51 = vld [vmem:[%s0 + $0x158] sm:$0xff]
  %v52 = vld [vmem:[%s0 + $0x160] sm:$0xff]
  %v53 = vld [vmem:[%s0 + $0x168] sm:$0xff]
  %v54 = vld [vmem:[%s0 + $0x170] sm:$0xff]
  %v55 = vld [vmem:[%s0 + $0x178] sm:$0xff]
  %v56 = vld [vmem:[%s0 + $0x180] sm:$0xff]
  %v57 = vld [vmem:[%s0 + $0x188] sm:$0xff]
  %v58 = vld [vmem:[%s0 + $0x190] sm:$0xff]
  %v59 = vld [vmem:[%s0 + $0x198] sm:$0xff]
  %v60 = vld [vmem:[%s0 + $0x1a0] sm:$0xff]
  %v61 = vld [vmem:[%s0 + $0x1a8] sm:$0xff]
  %v62 = vld [vmem:[%s0 + $0x1b0] sm:$0xff]
  %v63 = vld [vmem:[%s0 + $0x1b8] sm:$0xff]
  %v64 = vld [vmem:[%s0 + $0x1c0] sm:$0xff]
  %v65 = vld [vmem:[%s0 + $0x1c8] sm:$0xff]
  %v66 = vld [vmem:[%s0 + $0x1d0] sm:$0xff]
  %v67 = vld [vmem:[%s0 + $0x1d8] sm:$0xff]
  %v68 = vld [vmem:[%s0 + $0x1e0] sm:$0xff]
  %v69 = vld [vmem:[%s0 + $0x1e8] sm:$0xff]
  %v70 = vld [vmem:[%s0 + $0x1f0] sm:$0xff]
  %v71 = vld [vmem:[%s0 + $0x1f8] sm:$0xff]
  %vm72 = vcmask 130048
  %v73 = vsel %vm72, %v8, 0.0
  %v74 = vsel %vm72, %v9, 0.0
  %v75 = vadd.f32 %v73, %v74
  %v76 = vsel %vm72, %v10, 0.0
  %v77 = vadd.f32 %v75, %v76
  %v78 = vsel %vm72, %v11, 0.0
  %v79 = vadd.f32 %v77, %v78
  %v80 = vsel %vm72, %v12, 0.0
  %v81 = vadd.f32 %v79, %v80
  %v82 = vsel %vm72, %v13, 0.0
  %v83 = vadd.f32 %v81, %v82
  %v84 = vsel %vm72, %v14, 0.0
  %v85 = vadd.f32 %v83, %v84
  %v86 = vsel %vm72, %v15, 0.0
  %v87 = vadd.f32 %v85, %v86
  %v88 = vsel %vm72, %v16, 0.0
  %v89 = vadd.f32 %v87, %v88
  %v90 = vsel %vm72, %v17, 0.0
  %v91 = vadd.f32 %v89, %v90
  %v92 = vsel %vm72, %v18, 0.0
  %v93 = vadd.f32 %v91, %v92
  %v94 = vsel %vm72, %v19, 0.0
  %v95 = vadd.f32 %v93, %v94
  %v96 = vsel %vm72, %v20, 0.0
  %v97 = vadd.f32 %v95, %v96
  %v98 = vsel %vm72, %v21, 0.0
  %v99 = vadd.f32 %v97, %v98
  %v100 = vsel %vm72, %v22, 0.0
  %v101 = vadd.f32 %v99, %v100
  %v102 = vsel %vm72, %v23, 0.0
  %v103 = vadd.f32 %v101, %v102
  %v104 = vsel %vm72, %v24, 0.0
  %v105 = vadd.f32 %v103, %v104
  %v106 = vsel %vm72, %v25, 0.0
  %v107 = vadd.f32 %v105, %v106
  %v108 = vsel %vm72, %v26, 0.0
  %v109 = vadd.f32 %v107, %v108
  %v110 = vsel %vm72, %v27, 0.0
  %v111 = vadd.f32 %v109, %v110
  %v112 = vsel %vm72, %v28, 0.0
  %v113 = vadd.f32 %v111, %v112
  %v114 = vsel %vm72, %v29, 0.0
  %v115 = vadd.f32 %v113, %v114
  %v116 = vsel %vm72, %v30, 0.0
  %v117 = vadd.f32 %v115, %v116
  %v118 = vsel %vm72, %v31, 0.0
  %v119 = vadd.f32 %v117, %v118
  %v120 = vsel %vm72, %v32, 0.0
  %v121 = vadd.f32 %v119, %v120
  %v122 = vsel %vm72, %v33, 0.0
  %v123 = vadd.f32 %v121, %v122
  %v124 = vsel %vm72, %v34, 0.0
  %v125 = vadd.f32 %v123, %v124
  %v126 = vsel %vm72, %v35, 0.0
  %v127 = vadd.f32 %v125, %v126
  %v128 = vsel %vm72, %v36, 0.0
  %v129 = vadd.f32 %v127, %v128
  %v130 = vsel %vm72, %v37, 0.0
  %v131 = vadd.f32 %v129, %v130
  %v132 = vsel %vm72, %v38, 0.0
  %v133 = vadd.f32 %v131, %v132
  %v134 = vsel %vm72, %v39, 0.0
  %v135 = vadd.f32 %v133, %v134
  %v136 = vsel %vm72, %v40, 0.0
  %v137 = vadd.f32 %v135, %v136
  %v138 = vsel %vm72, %v41, 0.0
  %v139 = vadd.f32 %v137, %v138
  %v140 = vsel %vm72, %v42, 0.0
  %v141 = vadd.f32 %v139, %v140
  %v142 = vsel %vm72, %v43, 0.0
  %v143 = vadd.f32 %v141, %v142
  %v144 = vsel %vm72, %v44, 0.0
  %v145 = vadd.f32 %v143, %v144
  %v146 = vsel %vm72, %v45, 0.0
  %v147 = vadd.f32 %v145, %v146
  %v148 = vsel %vm72, %v46, 0.0
  %v149 = vadd.f32 %v147, %v148
  %v150 = vsel %vm72, %v47, 0.0
  %v151 = vadd.f32 %v149, %v150
  %v152 = vsel %vm72, %v48, 0.0
  %v153 = vadd.f32 %v151, %v152
  %v154 = vsel %vm72, %v49, 0.0
  %v155 = vadd.f32 %v153, %v154
  %v156 = vsel %vm72, %v50, 0.0
  %v157 = vadd.f32 %v155, %v156
  %v158 = vsel %vm72, %v51, 0.0
  %v159 = vadd.f32 %v157, %v158
  %v160 = vsel %vm72, %v52, 0.0
  %v161 = vadd.f32 %v159, %v160
  %v162 = vsel %vm72, %v53, 0.0
  %v163 = vadd.f32 %v161, %v162
  %v164 = vsel %vm72, %v54, 0.0
  %v165 = vadd.f32 %v163, %v164
  %v166 = vsel %vm72, %v55, 0.0
  %v167 = vadd.f32 %v165, %v166
  %v168 = vsel %vm72, %v56, 0.0
  %v169 = vadd.f32 %v167, %v168
  %v170 = vsel %vm72, %v57, 0.0
  %v171 = vadd.f32 %v169, %v170
  %v172 = vsel %vm72, %v58, 0.0
  %v173 = vadd.f32 %v171, %v172
  %v174 = vsel %vm72, %v59, 0.0
  %v175 = vadd.f32 %v173, %v174
  %v176 = vsel %vm72, %v60, 0.0
  %v177 = vadd.f32 %v175, %v176
  %v178 = vsel %vm72, %v61, 0.0
  %v179 = vadd.f32 %v177, %v178
  %v180 = vsel %vm72, %v62, 0.0
  %v181 = vadd.f32 %v179, %v180
  %v182 = vsel %vm72, %v63, 0.0
  %v183 = vadd.f32 %v181, %v182
  %v184 = vsel %vm72, %v64, 0.0
  %v185 = vadd.f32 %v183, %v184
  %v186 = vsel %vm72, %v65, 0.0
  %v187 = vadd.f32 %v185, %v186
  %v188 = vsel %vm72, %v66, 0.0
  %v189 = vadd.f32 %v187, %v188
  %v190 = vsel %vm72, %v67, 0.0
  %v191 = vadd.f32 %v189, %v190
  %v192 = vsel %vm72, %v68, 0.0
  %v193 = vadd.f32 %v191, %v192
  %v194 = vsel %vm72, %v69, 0.0
  %v195 = vadd.f32 %v193, %v194
  %v196 = vsel %vm72, %v70, 0.0
  %v197 = vadd.f32 %v195, %v196
  %v198 = vsel %vm72, %v71, 0.0
  %v199 = vadd.f32 %v197, %v198
  %v200 = vrot.slane %v199, 4
  %v201 = vadd.f32 %v199, %v200
  %v202 = vrot.slane %v201, 2
  %v203 = vadd.f32 %v201, %v202
  %v204 = vrot.slane %v203, 1
  %v205 = vadd.f32 %v203, %v204
  %v206 = vmul.f32 %v8, %v8
  %v207 = vmul.f32 %v9, %v9
  %v208 = vmul.f32 %v10, %v10
  %v209 = vmul.f32 %v11, %v11
  %v210 = vmul.f32 %v12, %v12
  %v211 = vmul.f32 %v13, %v13
  %v212 = vmul.f32 %v14, %v14
  %v213 = vmul.f32 %v15, %v15
  %v214 = vmul.f32 %v16, %v16
  %v215 = vmul.f32 %v17, %v17
  %v216 = vmul.f32 %v18, %v18
  %v217 = vmul.f32 %v19, %v19
  %v218 = vmul.f32 %v20, %v20
  %v219 = vmul.f32 %v21, %v21
  %v220 = vmul.f32 %v22, %v22
  %v221 = vmul.f32 %v23, %v23
  %v222 = vmul.f32 %v24, %v24
  %v223 = vmul.f32 %v25, %v25
  %v224 = vmul.f32 %v26, %v26
  %v225 = vmul.f32 %v27, %v27
  %v226 = vmul.f32 %v28, %v28
  %v227 = vmul.f32 %v29, %v29
  %v228 = vmul.f32 %v30, %v30
  %v229 = vmul.f32 %v31, %v31
  %v230 = vmul.f32 %v32, %v32
  %v231 = vmul.f32 %v33, %v33
  %v232 = vmul.f32 %v34, %v34
  %v233 = vmul.f32 %v35, %v35
  %v234 = vmul.f32 %v36, %v36
  %v235 = vmul.f32 %v37, %v37
  %v236 = vmul.f32 %v38, %v38
  %v237 = vmul.f32 %v39, %v39
  %v238 = vmul.f32 %v40, %v40
  %v239 = vmul.f32 %v41, %v41
  %v240 = vmul.f32 %v42, %v42
  %v241 = vmul.f32 %v43, %v43
  %v242 = vmul.f32 %v44, %v44
  %v243 = vmul.f32 %v45, %v45
  %v244 = vmul.f32 %v46, %v46
  %v245 = vmul.f32 %v47, %v47
  %v246 = vmul.f32 %v48, %v48
  %v247 = vmul.f32 %v49, %v49
  %v248 = vmul.f32 %v50, %v50
  %v249 = vmul.f32 %v51, %v51
  %v250 = vmul.f32 %v52, %v52
  %v251 = vmul.f32 %v53, %v53
  %v252 = vmul.f32 %v54, %v54
  %v253 = vmul.f32 %v55, %v55
  %v254 = vmul.f32 %v56, %v56
  %v255 = vmul.f32 %v57, %v57
  %v256 = vmul.f32 %v58, %v58
  %v257 = vmul.f32 %v59, %v59
  %v258 = vmul.f32 %v60, %v60
  %v259 = vmul.f32 %v61, %v61
  %v260 = vmul.f32 %v62, %v62
  %v261 = vmul.f32 %v63, %v63
  %v262 = vmul.f32 %v64, %v64
  %v263 = vmul.f32 %v65, %v65
  %v264 = vmul.f32 %v66, %v66
  %v265 = vmul.f32 %v67, %v67
  %v266 = vmul.f32 %v68, %v68
  %v267 = vmul.f32 %v69, %v69
  %v268 = vmul.f32 %v70, %v70
  %v269 = vmul.f32 %v71, %v71
  %v270 = vsel %vm72, %v206, 0.0
  %v271 = vsel %vm72, %v207, 0.0
  %v272 = vadd.f32 %v270, %v271
  %v273 = vsel %vm72, %v208, 0.0
  %v274 = vadd.f32 %v272, %v273
  %v275 = vsel %vm72, %v209, 0.0
  %v276 = vadd.f32 %v274, %v275
  %v277 = vsel %vm72, %v210, 0.0
  %v278 = vadd.f32 %v276, %v277
  %v279 = vsel %vm72, %v211, 0.0
  %v280 = vadd.f32 %v278, %v279
  %v281 = vsel %vm72, %v212, 0.0
  %v282 = vadd.f32 %v280, %v281
  %v283 = vsel %vm72, %v213, 0.0
  %v284 = vadd.f32 %v282, %v283
  %v285 = vsel %vm72, %v214, 0.0
  %v286 = vadd.f32 %v284, %v285
  %v287 = vsel %vm72, %v215, 0.0
  %v288 = vadd.f32 %v286, %v287
  %v289 = vsel %vm72, %v216, 0.0
  %v290 = vadd.f32 %v288, %v289
  %v291 = vsel %vm72, %v217, 0.0
  %v292 = vadd.f32 %v290, %v291
  %v293 = vsel %vm72, %v218, 0.0
  %v294 = vadd.f32 %v292, %v293
  %v295 = vsel %vm72, %v219, 0.0
  %v296 = vadd.f32 %v294, %v295
  %v297 = vsel %vm72, %v220, 0.0
  %v298 = vadd.f32 %v296, %v297
  %v299 = vsel %vm72, %v221, 0.0
  %v300 = vadd.f32 %v298, %v299
  %v301 = vsel %vm72, %v222, 0.0
  %v302 = vadd.f32 %v300, %v301
  %v303 = vsel %vm72, %v223, 0.0
  %v304 = vadd.f32 %v302, %v303
  %v305 = vsel %vm72, %v224, 0.0
  %v306 = vadd.f32 %v304, %v305
  %v307 = vsel %vm72, %v225, 0.0
  %v308 = vadd.f32 %v306, %v307
  %v309 = vsel %vm72, %v226, 0.0
  %v310 = vadd.f32 %v308, %v309
  %v311 = vsel %vm72, %v227, 0.0
  %v312 = vadd.f32 %v310, %v311
  %v313 = vsel %vm72, %v228, 0.0
  %v314 = vadd.f32 %v312, %v313
  %v315 = vsel %vm72, %v229, 0.0
  %v316 = vadd.f32 %v314, %v315
  %v317 = vsel %vm72, %v230, 0.0
  %v318 = vadd.f32 %v316, %v317
  %v319 = vsel %vm72, %v231, 0.0
  %v320 = vadd.f32 %v318, %v319
  %v321 = vsel %vm72, %v232, 0.0
  %v322 = vadd.f32 %v320, %v321
  %v323 = vsel %vm72, %v233, 0.0
  %v324 = vadd.f32 %v322, %v323
  %v325 = vsel %vm72, %v234, 0.0
  %v326 = vadd.f32 %v324, %v325
  %v327 = vsel %vm72, %v235, 0.0
  %v328 = vadd.f32 %v326, %v327
  %v329 = vsel %vm72, %v236, 0.0
  %v330 = vadd.f32 %v328, %v329
  %v331 = vsel %vm72, %v237, 0.0
  %v332 = vadd.f32 %v330, %v331
  %v333 = vsel %vm72, %v238, 0.0
  %v334 = vadd.f32 %v332, %v333
  %v335 = vsel %vm72, %v239, 0.0
  %v336 = vadd.f32 %v334, %v335
  %v337 = vsel %vm72, %v240, 0.0
  %v338 = vadd.f32 %v336, %v337
  %v339 = vsel %vm72, %v241, 0.0
  %v340 = vadd.f32 %v338, %v339
  %v341 = vsel %vm72, %v242, 0.0
  %v342 = vadd.f32 %v340, %v341
  %v343 = vsel %vm72, %v243, 0.0
  %v344 = vadd.f32 %v342, %v343
  %v345 = vsel %vm72, %v244, 0.0
  %v346 = vadd.f32 %v344, %v345
  %v347 = vsel %vm72, %v245, 0.0
  %v348 = vadd.f32 %v346, %v347
  %v349 = vsel %vm72, %v246, 0.0
  %v350 = vadd.f32 %v348, %v349
  %v351 = vsel %vm72, %v247, 0.0
  %v352 = vadd.f32 %v350, %v351
  %v353 = vsel %vm72, %v248, 0.0
  %v354 = vadd.f32 %v352, %v353
  %v355 = vsel %vm72, %v249, 0.0
  %v356 = vadd.f32 %v354, %v355
  %v357 = vsel %vm72, %v250, 0.0
  %v358 = vadd.f32 %v356, %v357
  %v359 = vsel %vm72, %v251, 0.0
  %v360 = vadd.f32 %v358, %v359
  %v361 = vsel %vm72, %v252, 0.0
  %v362 = vadd.f32 %v360, %v361
  %v363 = vsel %vm72, %v253, 0.0
  %v364 = vadd.f32 %v362, %v363
  %v365 = vsel %vm72, %v254, 0.0
  %v366 = vadd.f32 %v364, %v365
  %v367 = vsel %vm72, %v255, 0.0
  %v368 = vadd.f32 %v366, %v367
  %v369 = vsel %vm72, %v256, 0.0
  %v370 = vadd.f32 %v368, %v369
  %v371 = vsel %vm72, %v257, 0.0
  %v372 = vadd.f32 %v370, %v371
  %v373 = vsel %vm72, %v258, 0.0
  %v374 = vadd.f32 %v372, %v373
  %v375 = vsel %vm72, %v259, 0.0
  %v376 = vadd.f32 %v374, %v375
  %v377 = vsel %vm72, %v260, 0.0
  %v378 = vadd.f32 %v376, %v377
  %v379 = vsel %vm72, %v261, 0.0
  %v380 = vadd.f32 %v378, %v379
  %v381 = vsel %vm72, %v262, 0.0
  %v382 = vadd.f32 %v380, %v381
  %v383 = vsel %vm72, %v263, 0.0
  %v384 = vadd.f32 %v382, %v383
  %v385 = vsel %vm72, %v264, 0.0
  %v386 = vadd.f32 %v384, %v385
  %v387 = vsel %vm72, %v265, 0.0
  %v388 = vadd.f32 %v386, %v387
  %v389 = vsel %vm72, %v266, 0.0
  %v390 = vadd.f32 %v388, %v389
  %v391 = vsel %vm72, %v267, 0.0
  %v392 = vadd.f32 %v390, %v391
  %v393 = vsel %vm72, %v268, 0.0
  %v394 = vadd.f32 %v392, %v393
  %v395 = vsel %vm72, %v269, 0.0
  %v396 = vadd.f32 %v394, %v395
  %v397 = vrot.slane %v396, 4
  %v398 = vadd.f32 %v396, %v397
  %v399 = vrot.slane %v398, 2
  %v400 = vadd.f32 %v398, %v399
  %v401 = vrot.slane %v400, 1
  %v402 = vadd.f32 %v400, %v401
  %vm403 = vcmask 1040384
  %v404 = vsel %vm403, %v205, %v402
  %vm405 = vcmask 123904
  %406 = vst.msk [vmem:[%s1] sm:$0x3] %vm405, %v404
  // Predicated region
  $region6: #{dense_block_forward.7} parent=0 // pred_check
    _
  $region7: #{dense_block_forward.7} parent=0 // pred_check_branch
    %408 = sbr.rel (0) target = $region9
  $region8: #{dense_block_forward.7} parent=0 // pred_region
    _
  $region9: #{dense_block_forward.7} parent=0 // pred_fallthru
    _
  // Predicated region
  $region10: #{dense_block_forward.7} parent=0 // pred_check
    _
  $region11: #{dense_block_forward.7} parent=0 // pred_check_branch
    %410 = sbr.rel (0) target = $region13
  $region12: #{dense_block_forward.7} parent=0 // pred_region
    _
  $region13: #{dense_block_forward.7} parent=0 // pred_fallthru
    _

// kernel: dense_block_forward.8
$region0: #{dense_block_forward.8}
  #allocation0 [shape = 'u32[]', space=smem, size = 0x4, offset = 0x4, fixed_abs, tag = 'smem constant byte address 0x4 - core index']
  #allocation1 [shape = 'u32[144,128]{1,0:T(1,128)}', space=vmem, size = 0x12000, scoped, tag = 'internal scratch']
  %s0 = inlined_call_operand.vmem [shape: f32[512,16], index: 0, kind: input, shape index: {}]
  %s1 = inlined_call_operand.vmem [shape: f32[1,16], index: 1, kind: input, shape index: {}]
  %s2 = inlined_call_operand.vmem [shape: f32[1,16], index: 2, kind: input, shape index: {}]
  %s3 = inlined_call_operand.vmem [shape: bf16[16,128], index: 3, kind: input, shape index: {}]
  %s4 = inlined_call_operand.vmem [shape: f32[512,128], index: 4, kind: output, shape index: {0}]
  %s5 = inlined_call_operand.vmem [shape: f32[1,2,128], index: 5, kind: output, shape index: {1}]
  %6 = xla_tuple %s4, %s5
  %s7 = sld [smem:[#allocation0]]
  $region34: #{dense_block_forward.8} parent=0
    _
  %s9 = ssub.s32 1, %s7
  %s10 = scalar_select 0, %s9, %s7
  // Predicated region
  $region2: #{dense_block_forward.8} parent=0 // pred_check
    _
  $region3: #{dense_block_forward.8} parent=0 // pred_check_branch
    %12 = sbr.rel (0) target = $region5
  $region4: #{dense_block_forward.8} parent=0 // pred_region
    _
  $region5: #{dense_block_forward.8} parent=0 // pred_fallthru
    _
  // Predicated region
  $region6: #{dense_block_forward.8} parent=0 // pred_check
    _
  $region7: #{dense_block_forward.8} parent=0 // pred_check_branch
    %14 = sbr.rel (0) target = $region9
  $region8: #{dense_block_forward.8} parent=0 // pred_region
    _
  $region9: #{dense_block_forward.8} parent=0 // pred_fallthru
    _
  // Predicated region
  $region10: #{dense_block_forward.8} parent=0 // pred_check
    _
  $region11: #{dense_block_forward.8} parent=0 // pred_check_branch
    %16 = sbr.rel (0) target = $region13
  $region12: #{dense_block_forward.8} parent=0 // pred_region
    _
  $region13: #{dense_block_forward.8} parent=0 // pred_fallthru
    _
  // Predicated region
  $region14: #{dense_block_forward.8} parent=0 // pred_check
    _
  $region15: #{dense_block_forward.8} parent=0 // pred_check_branch
    %18 = sbr.rel (0) target = $region17
  $region16: #{dense_block_forward.8} parent=0 // pred_region
    _
  $region17: #{dense_block_forward.8} parent=0 // pred_fallthru
    _
  %v20 = vld [vmem:[%s0] sm:$0xff]
  %v21 = vld [vmem:[%s0 + $0x8] sm:$0xff]
  %v22 = vld [vmem:[%s0 + $0x10] sm:$0xff]
  %v23 = vld [vmem:[%s0 + $0x18] sm:$0xff]
  %v24 = vld [vmem:[%s0 + $0x20] sm:$0xff]
  %v25 = vld [vmem:[%s0 + $0x28] sm:$0xff]
  %v26 = vld [vmem:[%s0 + $0x30] sm:$0xff]
  %v27 = vld [vmem:[%s0 + $0x38] sm:$0xff]
  %v28 = vld [vmem:[%s0 + $0x40] sm:$0xff]
  %v29 = vld [vmem:[%s0 + $0x48] sm:$0xff]
  %v30 = vld [vmem:[%s0 + $0x50] sm:$0xff]
  %v31 = vld [vmem:[%s0 + $0x58] sm:$0xff]
  %v32 = vld [vmem:[%s0 + $0x60] sm:$0xff]
  %v33 = vld [vmem:[%s0 + $0x68] sm:$0xff]
  %v34 = vld [vmem:[%s0 + $0x70] sm:$0xff]
  %v35 = vld [vmem:[%s0 + $0x78] sm:$0xff]
  %v36 = vld [vmem:[%s0 + $0x80] sm:$0xff]
  %v37 = vld [vmem:[%s0 + $0x88] sm:$0xff]
  %v38 = vld [vmem:[%s0 + $0x90] sm:$0xff]
  %v39 = vld [vmem:[%s0 + $0x98] sm:$0xff]
  %v40 = vld [vmem:[%s0 + $0xa0] sm:$0xff]
  %v41 = vld [vmem:[%s0 + $0xa8] sm:$0xff]
  %v42 = vld [vmem:[%s0 + $0xb0] sm:$0xff]
  %v43 = vld [vmem:[%s0 + $0xb8] sm:$0xff]
  %v44 = vld [vmem:[%s0 + $0xc0] sm:$0xff]
  %v45 = vld [vmem:[%s0 + $0xc8] sm:$0xff]
  %v46 = vld [vmem:[%s0 + $0xd0] sm:$0xff]
  %v47 = vld [vmem:[%s0 + $0xd8] sm:$0xff]
  %v48 = vld [vmem:[%s0 + $0xe0] sm:$0xff]
  %v49 = vld [vmem:[%s0 + $0xe8] sm:$0xff]
  %v50 = vld [vmem:[%s0 + $0xf0] sm:$0xff]
  %v51 = vld [vmem:[%s0 + $0xf8] sm:$0xff]
  %v52 = vld [vmem:[%s0 + $0x100] sm:$0xff]
  %v53 = vld [vmem:[%s0 + $0x108] sm:$0xff]
  %v54 = vld [vmem:[%s0 + $0x110] sm:$0xff]
  %v55 = vld [vmem:[%s0 + $0x118] sm:$0xff]
  %v56 = vld [vmem:[%s0 + $0x120] sm:$0xff]
  %v57 = vld [vmem:[%s0 + $0x128] sm:$0xff]
  %v58 = vld [vmem:[%s0 + $0x130] sm:$0xff]
  %v59 = vld [vmem:[%s0 + $0x138] sm:$0xff]
  %v60 = vld [vmem:[%s0 + $0x140] sm:$0xff]
  %v61 = vld [vmem:[%s0 + $0x148] sm:$0xff]
  %v62 = vld [vmem:[%s0 + $0x150] sm:$0xff]
  %v63 = vld [vmem:[%s0 + $0x158] sm:$0xff]
  %v64 = vld [vmem:[%s0 + $0x160] sm:$0xff]
  %v65 = vld [vmem:[%s0 + $0x168] sm:$0xff]
  %v66 = vld [vmem:[%s0 + $0x170] sm:$0xff]
  %v67 = vld [vmem:[%s0 + $0x178] sm:$0xff]
  %v68 = vld [vmem:[%s0 + $0x180] sm:$0xff]
  %v69 = vld [vmem:[%s0 + $0x188] sm:$0xff]
  %v70 = vld [vmem:[%s0 + $0x190] sm:$0xff]
  %v71 = vld [vmem:[%s0 + $0x198] sm:$0xff]
  %v72 = vld [vmem:[%s0 + $0x1a0] sm:$0xff]
  %v73 = vld [vmem:[%s0 + $0x1a8] sm:$0xff]
  %v74 = vld [vmem:[%s0 + $0x1b0] sm:$0xff]
  %v75 = vld [vmem:[%s0 + $0x1b8] sm:$0xff]
  %v76 = vld [vmem:[%s0 + $0x1c0] sm:$0xff]
  %v77 = vld [vmem:[%s0 + $0x1c8] sm:$0xff]
  %v78 = vld [vmem:[%s0 + $0x1d0] sm:$0xff]
  %v79 = vld [vmem:[%s0 + $0x1d8] sm:$0xff]
  %v80 = vld [vmem:[%s0 + $0x1e0] sm:$0xff]
  %v81 = vld [vmem:[%s0 + $0x1e8] sm:$0xff]
  %v82 = vld [vmem:[%s0 + $0x1f0] sm:$0xff]
  %v83 = vld [vmem:[%s0 + $0x1f8] sm:$0xff]
  %v84 = vld [vmem:[%s1] sm:$0x1]
  %v86 = vlaneseq
  %v87 = vshrl.u32 %v86, 7
  %v88 = vsub.s32 0, %v87
  %v89 = vrot.slane %v84, %v88
  %v91 = vmul.f32 %v20, %v89
  %v92 = vmul.f32 %v21, %v89
  %v93 = vmul.f32 %v22, %v89
  %v94 = vmul.f32 %v23, %v89
  %v95 = vmul.f32 %v24, %v89
  %v96 = vmul.f32 %v25, %v89
  %v97 = vmul.f32 %v26, %v89
  %v98 = vmul.f32 %v27, %v89
  %v99 = vmul.f32 %v28, %v89
  %v100 = vmul.f32 %v29, %v89
  %v101 = vmul.f32 %v30, %v89
  %v102 = vmul.f32 %v31, %v89
  %v103 = vmul.f32 %v32, %v89
  %v104 = vmul.f32 %v33, %v89
  %v105 = vmul.f32 %v34, %v89
  %v106 = vmul.f32 %v35, %v89
  %v107 = vmul.f32 %v36, %v89
  %v108 = vmul.f32 %v37, %v89
  %v109 = vmul.f32 %v38, %v89
  %v110 = vmul.f32 %v39, %v89
  %v111 = vmul.f32 %v40, %v89
  %v112 = vmul.f32 %v41, %v89
  %v113 = vmul.f32 %v42, %v89
  %v114 = vmul.f32 %v43, %v89
  %v115 = vmul.f32 %v44, %v89
  %v116 = vmul.f32 %v45, %v89
  %v117 = vmul.f32 %v46, %v89
  %v118 = vmul.f32 %v47, %v89
  %v119 = vmul.f32 %v48, %v89
  %v120 = vmul.f32 %v49, %v89
  %v121 = vmul.f32 %v50, %v89
  %v122 = vmul.f32 %v51, %v89
  %v123 = vmul.f32 %v52, %v89
  %v124 = vmul.f32 %v53, %v89
  %v125 = vmul.f32 %v54, %v89
  %v126 = vmul.f32 %v55, %v89
  %v127 = vmul.f32 %v56, %v89
  %v128 = vmul.f32 %v57, %v89
  %v129 = vmul.f32 %v58, %v89
  %v130 = vmul.f32 %v59, %v89
  %v131 = vmul.f32 %v60, %v89
  %v132 = vmul.f32 %v61, %v89
  %v133 = vmul.f32 %v62, %v89
  %v134 = vmul.f32 %v63, %v89
  %v135 = vmul.f32 %v64, %v89
  %v136 = vmul.f32 %v65, %v89
  %v137 = vmul.f32 %v66, %v89
  %v138 = vmul.f32 %v67, %v89
  %v139 = vmul.f32 %v68, %v89
  %v140 = vmul.f32 %v69, %v89
  %v141 = vmul.f32 %v70, %v89
  %v142 = vmul.f32 %v71, %v89
  %v143 = vmul.f32 %v72, %v89
  %v144 = vmul.f32 %v73, %v89
  %v145 = vmul.f32 %v74, %v89
  %v146 = vmul.f32 %v75, %v89
  %v147 = vmul.f32 %v76, %v89
  %v148 = vmul.f32 %v77, %v89
  %v149 = vmul.f32 %v78, %v89
  %v150 = vmul.f32 %v79, %v89
  %v151 = vmul.f32 %v80, %v89
  %v152 = vmul.f32 %v81, %v89
  %v153 = vmul.f32 %v82, %v89
  %v154 = vmul.f32 %v83, %v89
  %v155 = vld [vmem:[%s2] sm:$0x1]
  %v157 = vlaneseq
  %v158 = vshrl.u32 %v157, 7
  %v159 = vsub.s32 0, %v158
  %v160 = vrot.slane %v155, %v159
  %v162 = vadd.f32 %v91, %v160
  %v163 = vadd.f32 %v92, %v160
  %v164 = vadd.f32 %v93, %v160
  %v165 = vadd.f32 %v94, %v160
  %v166 = vadd.f32 %v95, %v160
  %v167 = vadd.f32 %v96, %v160
  %v168 = vadd.f32 %v97, %v160
  %v169 = vadd.f32 %v98, %v160
  %v170 = vadd.f32 %v99, %v160
  %v171 = vadd.f32 %v100, %v160
  %v172 = vadd.f32 %v101, %v160
  %v173 = vadd.f32 %v102, %v160
  %v174 = vadd.f32 %v103, %v160
  %v175 = vadd.f32 %v104, %v160
  %v176 = vadd.f32 %v105, %v160
  %v177 = vadd.f32 %v106, %v160
  %v178 = vadd.f32 %v107, %v160
  %v179 = vadd.f32 %v108, %v160
  %v180 = vadd.f32 %v109, %v160
  %v181 = vadd.f32 %v110, %v160
  %v182 = vadd.f32 %v111, %v160
  %v183 = vadd.f32 %v112, %v160
  %v184 = vadd.f32 %v113, %v160
  %v185 = vadd.f32 %v114, %v160
  %v186 = vadd.f32 %v115, %v160
  %v187 = vadd.f32 %v116, %v160
  %v188 = vadd.f32 %v117, %v160
  %v189 = vadd.f32 %v118, %v160
  %v190 = vadd.f32 %v119, %v160
  %v191 = vadd.f32 %v120, %v160
  %v192 = vadd.f32 %v121, %v160
  %v193 = vadd.f32 %v122, %v160
  %v194 = vadd.f32 %v123, %v160
  %v195 = vadd.f32 %v124, %v160
  %v196 = vadd.f32 %v125, %v160
  %v197 = vadd.f32 %v126, %v160
  %v198 = vadd.f32 %v127, %v160
  %v199 = vadd.f32 %v128, %v160
  %v200 = vadd.f32 %v129, %v160
  %v201 = vadd.f32 %v130, %v160
  %v202 = vadd.f32 %v131, %v160
  %v203 = vadd.f32 %v132, %v160
  %v204 = vadd.f32 %v133, %v160
  %v205 = vadd.f32 %v134, %v160
  %v206 = vadd.f32 %v135, %v160
  %v207 = vadd.f32 %v136, %v160
  %v208 = vadd.f32 %v137, %v160
  %v209 = vadd.f32 %v138, %v160
  %v210 = vadd.f32 %v139, %v160
  %v211 = vadd.f32 %v140, %v160
  %v212 = vadd.f32 %v141, %v160
  %v213 = vadd.f32 %v142, %v160
  %v214 = vadd.f32 %v143, %v160
  %v215 = vadd.f32 %v144, %v160
  %v216 = vadd.f32 %v145, %v160
  %v217 = vadd.f32 %v146, %v160
  %v218 = vadd.f32 %v147, %v160
  %v219 = vadd.f32 %v148, %v160
  %v220 = vadd.f32 %v149, %v160
  %v221 = vadd.f32 %v150, %v160
  %v222 = vadd.f32 %v151, %v160
  %v223 = vadd.f32 %v152, %v160
  %v224 = vadd.f32 %v153, %v160
  %v225 = vadd.f32 %v154, %v160
  %v226 = vmax.f32 %v162, 0.0
  %v227 = vmax.f32 %v163, 0.0
  %v228 = vmax.f32 %v164, 0.0
  %v229 = vmax.f32 %v165, 0.0
  %v230 = vmax.f32 %v166, 0.0
  %v231 = vmax.f32 %v167, 0.0
  %v232 = vmax.f32 %v168, 0.0
  %v233 = vmax.f32 %v169, 0.0
  %v234 = vmax.f32 %v170, 0.0
  %v235 = vmax.f32 %v171, 0.0
  %v236 = vmax.f32 %v172, 0.0
  %v237 = vmax.f32 %v173, 0.0
  %v238 = vmax.f32 %v174, 0.0
  %v239 = vmax.f32 %v175, 0.0
  %v240 = vmax.f32 %v176, 0.0
  %v241 = vmax.f32 %v177, 0.0
  %v242 = vmax.f32 %v178, 0.0
  %v243 = vmax.f32 %v179, 0.0
  %v244 = vmax.f32 %v180, 0.0
  %v245 = vmax.f32 %v181, 0.0
  %v246 = vmax.f32 %v182, 0.0
  %v247 = vmax.f32 %v183, 0.0
  %v248 = vmax.f32 %v184, 0.0
  %v249 = vmax.f32 %v185, 0.0
  %v250 = vmax.f32 %v186, 0.0
  %v251 = vmax.f32 %v187, 0.0
  %v252 = vmax.f32 %v188, 0.0
  %v253 = vmax.f32 %v189, 0.0
  %v254 = vmax.f32 %v190, 0.0
  %v255 = vmax.f32 %v191, 0.0
  %v256 = vmax.f32 %v192, 0.0
  %v257 = vmax.f32 %v193, 0.0
  %v258 = vmax.f32 %v194, 0.0
  %v259 = vmax.f32 %v195, 0.0
  %v260 = vmax.f32 %v196, 0.0
  %v261 = vmax.f32 %v197, 0.0
  %v262 = vmax.f32 %v198, 0.0
  %v263 = vmax.f32 %v199, 0.0
  %v264 = vmax.f32 %v200, 0.0
  %v265 = vmax.f32 %v201, 0.0
  %v266 = vmax.f32 %v202, 0.0
  %v267 = vmax.f32 %v203, 0.0
  %v268 = vmax.f32 %v204, 0.0
  %v269 = vmax.f32 %v205, 0.0
  %v270 = vmax.f32 %v206, 0.0
  %v271 = vmax.f32 %v207, 0.0
  %v272 = vmax.f32 %v208, 0.0
  %v273 = vmax.f32 %v209, 0.0
  %v274 = vmax.f32 %v210, 0.0
  %v275 = vmax.f32 %v211, 0.0
  %v276 = vmax.f32 %v212, 0.0
  %v277 = vmax.f32 %v213, 0.0
  %v278 = vmax.f32 %v214, 0.0
  %v279 = vmax.f32 %v215, 0.0
  %v280 = vmax.f32 %v216, 0.0
  %v281 = vmax.f32 %v217, 0.0
  %v282 = vmax.f32 %v218, 0.0
  %v283 = vmax.f32 %v219, 0.0
  %v284 = vmax.f32 %v220, 0.0
  %v285 = vmax.f32 %v221, 0.0
  %v286 = vmax.f32 %v222, 0.0
  %v287 = vmax.f32 %v223, 0.0
  %v288 = vmax.f32 %v224, 0.0
  %v289 = vmax.f32 %v225, 0.0
  %v290 = vpack.c.bf16 %v227, %v226
  %v291 = vpack.c.bf16 %v229, %v228
  %v292 = vpack.c.bf16 %v231, %v230
  %v293 = vpack.c.bf16 %v233, %v232
  %v294 = vpack.c.bf16 %v235, %v234
  %v295 = vpack.c.bf16 %v237, %v236
  %v296 = vpack.c.bf16 %v239, %v238
  %v297 = vpack.c.bf16 %v241, %v240
  %v298 = vpack.c.bf16 %v243, %v242
  %v299 = vpack.c.bf16 %v245, %v244
  %v300 = vpack.c.bf16 %v247, %v246
  %v301 = vpack.c.bf16 %v249, %v248
  %v302 = vpack.c.bf16 %v251, %v250
  %v303 = vpack.c.bf16 %v253, %v252
  %v304 = vpack.c.bf16 %v255, %v254
  %v305 = vpack.c.bf16 %v257, %v256
  %v306 = vpack.c.bf16 %v259, %v258
  %v307 = vpack.c.bf16 %v261, %v260
  %v308 = vpack.c.bf16 %v263, %v262
  %v309 = vpack.c.bf16 %v265, %v264
  %v310 = vpack.c.bf16 %v267, %v266
  %v311 = vpack.c.bf16 %v269, %v268
  %v312 = vpack.c.bf16 %v271, %v270
  %v313 = vpack.c.bf16 %v273, %v272
  %v314 = vpack.c.bf16 %v275, %v274
  %v315 = vpack.c.bf16 %v277, %v276
  %v316 = vpack.c.bf16 %v279, %v278
  %v317 = vpack.c.bf16 %v281, %v280
  %v318 = vpack.c.bf16 %v283, %v282
  %v319 = vpack.c.bf16 %v285, %v284
  %v320 = vpack.c.bf16 %v287, %v286
  %v321 = vpack.c.bf16 %v289, %v288
  %v322 = vld [vmem:[%s3] sm:$0xf]
  %v323 = vld [vmem:[%s3 + $0x4] sm:$0xf]
  %v326 = vunpack.c.l.b16 %v322
  %v327 = vunpack.c.l.b16 %v323
  %v328 = vpack.c.b16 %v327, %v326
  %vm330 = vcmask 130048
  %v332 = vsel %vm330, %v290, 0
  %v335 = vsel %vm330, %v291, 0
  %v338 = vsel %vm330, %v292, 0
  %v341 = vsel %vm330, %v293, 0
  %v344 = vsel %vm330, %v294, 0
  %v347 = vsel %vm330, %v295, 0
  %v350 = vsel %vm330, %v296, 0
  %v353 = vsel %vm330, %v297, 0
  %v356 = vsel %vm330, %v298, 0
  %v359 = vsel %vm330, %v299, 0
  %v362 = vsel %vm330, %v300, 0
  %v365 = vsel %vm330, %v301, 0
  %v368 = vsel %vm330, %v302, 0
  %v371 = vsel %vm330, %v303, 0
  %v374 = vsel %vm330, %v304, 0
  %v377 = vsel %vm330, %v305, 0
  %v380 = vsel %vm330, %v306, 0
  %v383 = vsel %vm330, %v307, 0
  %v386 = vsel %vm330, %v308, 0
  %v389 = vsel %vm330, %v309, 0
  %v392 = vsel %vm330, %v310, 0
  %v395 = vsel %vm330, %v311, 0
  %v398 = vsel %vm330, %v312, 0
  %v401 = vsel %vm330, %v313, 0
  %v404 = vsel %vm330, %v314, 0
  %v407 = vsel %vm330, %v315, 0
  %v410 = vsel %vm330, %v316, 0
  %v413 = vsel %vm330, %v317, 0
  %v416 = vsel %vm330, %v318, 0
  %v419 = vsel %vm330, %v319, 0
  %v422 = vsel %vm330, %v320, 0
  %v425 = vsel %vm330, %v321, 0
  %427 = vmatprep.subr.bf16.mxu0 0
  %428 = vmatpush1.bf16.msra.mxu0 %v328
  %429 = vmatprep.subr.bf16.mxu0 0
  %430 = vmatpush1.bf16.msra.mxu0 0
  %431 = vmatprep.subr.bf16.mxu0 0
  %432 = vmatpush1.bf16.msra.mxu0 0
  %433 = vmatprep.subr.bf16.mxu0 0
  %434 = vmatpush1.bf16.msra.mxu0 0
  %435 = vmatprep.subr.bf16.mxu0 0
  %436 = vmatpush1.bf16.msra.mxu0 0
  %437 = vmatprep.subr.bf16.mxu0 0
  %438 = vmatpush1.bf16.msra.mxu0 0
  %439 = vmatprep.subr.bf16.mxu0 0
  %440 = vmatpush1.bf16.msra.mxu0 0
  %441 = vmatprep.subr.bf16.mxu0 0
  %442 = vmatpush1.bf16.msra.mxu0 0
  %443 = vmatprep.subr.bf16.mxu0 0
  %444 = vmatpush1.bf16.msra.mxu0 0
  %445 = vmatprep.subr.bf16.mxu0 0
  %446 = vmatpush1.bf16.msra.mxu0 0
  %447 = vmatprep.subr.bf16.mxu0 0
  %448 = vmatpush1.bf16.msra.mxu0 0
  %449 = vmatprep.subr.bf16.mxu0 0
  %450 = vmatpush1.bf16.msra.mxu0 0
  %451 = vmatprep.subr.bf16.mxu0 0
  %452 = vmatpush1.bf16.msra.mxu0 0
  %453 = vmatprep.subr.bf16.mxu0 0
  %454 = vmatpush1.bf16.msra.mxu0 0
  %455 = vmatprep.subr.bf16.mxu0 0
  %456 = vmatpush1.bf16.msra.mxu0 0
  %457 = vmatprep.subr.bf16.mxu0 0
  %458 = vmatpush1.bf16.msra.mxu0 0
  %459 = vmatprep.mubr.bf16.mxu0 0
  %460 = vmatmul.mubr.bf16.gmra.mrb[0].mxu0 %v332
  %v461 = vpop.f32.mrb[0].mxu0
  %v462 = vadd.f32 0.0, %v461
  %v463 = vpop.f32.mrb[0].mxu0
  %v464 = vpop.f32.mrb[0].mxu0
  %v465 = vadd.f32 0.0, %v464
  %v466 = vpop.f32.mrb[0].mxu0
  %467 = vmatprep.mubr.bf16.mxu0 0
  %468 = vmatmul.mubr.bf16.gmra.mrb[0].mxu0 %v335
  %v469 = vpop.f32.mrb[0].mxu0
  %v470 = vadd.f32 0.0, %v469
  %v471 = vpop.f32.mrb[0].mxu0
  %v472 = vpop.f32.mrb[0].mxu0
  %v473 = vadd.f32 0.0, %v472
  %v474 = vpop.f32.mrb[0].mxu0
  %475 = vmatprep.mubr.bf16.mxu0 0
  %476 = vmatmul.mubr.bf16.gmra.mrb[0].mxu0 %v338
  %v477 = vpop.f32.mrb[0].mxu0
  %v478 = vadd.f32 0.0, %v477
  %v479 = vpop.f32.mrb[0].mxu0
  %v480 = vpop.f32.mrb[0].mxu0
  %v481 = vadd.f32 0.0, %v480
  %v482 = vpop.f32.mrb[0].mxu0
  %483 = vmatprep.mubr.bf16.mxu0 0
  %484 = vmatmul.mubr.bf16.gmra.mrb[0].mxu0 %v341
  %v485 = vpop.f32.mrb[0].mxu0
  %v486 = vadd.f32 0.0, %v485
  %v487 = vpop.f32.mrb[0].mxu0
  %v488 = vpop.f32.mrb[0].mxu0
  %v489 = vadd.f32 0.0, %v488
  %v490 = vpop.f32.mrb[0].mxu0
  %491 = vmatprep.mubr.bf16.mxu0 0
  %492 = vmatmul.mubr.bf16.gmra.mrb[0].mxu0 %v344
  %v493 = vpop.f32.mrb[0].mxu0
  %v494 = vadd.f32 0.0, %v493
  %v495 = vpop.f32.mrb[0].mxu0
  %v496 = vpop.f32.mrb[0].mxu0
  %v497 = vadd.f32 0.0, %v496
  %v498 = vpop.f32.mrb[0].mxu0
  %499 = vmatprep.mubr.bf16.mxu0 0
  %500 = vmatmul.mubr.bf16.gmra.mrb[0].mxu0 %v347
  %v501 = vpop.f32.mrb[0].mxu0
  %v502 = vadd.f32 0.0, %v501
  %v503 = vpop.f32.mrb[0].mxu0
  %v504 = vpop.f32.mrb[0].mxu0
  %v505 = vadd.f32 0.0, %v504
  %v506 = vpop.f32.mrb[0].mxu0
  %507 = vmatprep.mubr.bf16.mxu0 0
  %508 = vmatmul.mubr.bf16.gmra.mrb[0].mxu0 %v350
  %v509 = vpop.f32.mrb[0].mxu0
  %v510 = vadd.f32 0.0, %v509
  %v511 = vpop.f32.mrb[0].mxu0
  %v512 = vpop.f32.mrb[0].mxu0
  %v513 = vadd.f32 0.0, %v512
  %v514 = vpop.f32.mrb[0].mxu0
  %515 = vmatprep.mubr.bf16.mxu0 0
  %516 = vmatmul.mubr.bf16.gmra.mrb[0].mxu0 %v353
  %v517 = vpop.f32.mrb[0].mxu0
  %v518 = vadd.f32 0.0, %v517
  %v519 = vpop.f32.mrb[0].mxu0
  %v520 = vpop.f32.mrb[0].mxu0
  %v521 = vadd.f32 0.0, %v520
  %v522 = vpop.f32.mrb[0].mxu0
  %523 = vmatprep.mubr.bf16.mxu0 0
  %524 = vmatmul.mubr.bf16.gmra.mrb[0].mxu0 %v356
  %v525 = vpop.f32.mrb[0].mxu0
  %v526 = vadd.f32 0.0, %v525
  %v527 = vpop.f32.mrb[0].mxu0
  %v528 = vpop.f32.mrb[0].mxu0
  %v529 = vadd.f32 0.0, %v528
  %v530 = vpop.f32.mrb[0].mxu0
  %531 = vmatprep.mubr.bf16.mxu0 0
  %532 = vmatmul.mubr.bf16.gmra.mrb[0].mxu0 %v359
  %v533 = vpop.f32.mrb[0].mxu0
  %v534 = vadd.f32 0.0, %v533
  %v535 = vpop.f32.mrb[0].mxu0
  %v536 = vpop.f32.mrb[0].mxu0
  %v537 = vadd.f32 0.0, %v536
  %v538 = vpop.f32.mrb[0].mxu0
  %539 = vmatprep.mubr.bf16.mxu0 0
  %540 = vmatmul.mubr.bf16.gmra.mrb[0].mxu0 %v362
  %v541 = vpop.f32.mrb[0].mxu0
  %v542 = vadd.f32 0.0, %v541
  %v543 = vpop.f32.mrb[0].mxu0
  %v544 = vpop.f32.mrb[0].mxu0
  %v545 = vadd.f32 0.0, %v544
  %v546 = vpop.f32.mrb[0].mxu0
  %547 = vmatprep.mubr.bf16.mxu0 0
  %548 = vmatmul.mubr.bf16.gmra.mrb[0].mxu0 %v365
  %v549 = vpop.f32.mrb[0].mxu0
  %v550 = vadd.f32 0.0, %v549
  %v551 = vpop.f32.mrb[0].mxu0
  %v552 = vpop.f32.mrb[0].mxu0
  %v553 = vadd.f32 0.0, %v552
  %v554 = vpop.f32.mrb[0].mxu0
  %555 = vmatprep.mubr.bf16.mxu0 0
  %556 = vmatmul.mubr.bf16.gmra.mrb[0].mxu0 %v368
  %v557 = vpop.f32.mrb[0].mxu0
  %v558 = vadd.f32 0.0, %v557
  %v559 = vpop.f32.mrb[0].mxu0
  %v560 = vpop.f32.mrb[0].mxu0
  %v561 = vadd.f32 0.0, %v560
  %v562 = vpop.f32.mrb[0].mxu0
  %563 = vmatprep.mubr.bf16.mxu0 0
  %564 = vmatmul.mubr.bf16.gmra.mrb[0].mxu0 %v371
  %v565 = vpop.f32.mrb[0].mxu0
  %v566 = vadd.f32 0.0, %v565
  %v567 = vpop.f32.mrb[0].mxu0
  %v568 = vpop.f32.mrb[0].mxu0
  %v569 = vadd.f32 0.0, %v568
  %v570 = vpop.f32.mrb[0].mxu0
  %571 = vmatprep.mubr.bf16.mxu0 0
  %572 = vmatmul.mubr.bf16.gmra.mrb[0].mxu0 %v374
  %v573 = vpop.f32.mrb[0].mxu0
  %v574 = vadd.f32 0.0, %v573
  %v575 = vpop.f32.mrb[0].mxu0
  %v576 = vpop.f32.mrb[0].mxu0
  %v577 = vadd.f32 0.0, %v576
  %v578 = vpop.f32.mrb[0].mxu0
  %579 = vmatprep.mubr.bf16.mxu0 0
  %580 = vmatmul.mubr.bf16.gmra.mrb[0].mxu0 %v377
  %v581 = vpop.f32.mrb[0].mxu0
  %v582 = vadd.f32 0.0, %v581
  %v583 = vpop.f32.mrb[0].mxu0
  %v584 = vpop.f32.mrb[0].mxu0
  %v585 = vadd.f32 0.0, %v584
  %v586 = vpop.f32.mrb[0].mxu0
  %587 = vmatprep.mubr.bf16.mxu0 0
  %588 = vmatmul.mubr.bf16.gmra.mrb[0].mxu0 %v380
  %v589 = vpop.f32.mrb[0].mxu0
  %v590 = vadd.f32 0.0, %v589
  %v591 = vpop.f32.mrb[0].mxu0
  %v592 = vpop.f32.mrb[0].mxu0
  %v593 = vadd.f32 0.0, %v592
  %v594 = vpop.f32.mrb[0].mxu0
  %595 = vmatprep.mubr.bf16.mxu0 0
  %596 = vmatmul.mubr.bf16.gmra.mrb[0].mxu0 %v383
  %v597 = vpop.f32.mrb[0].mxu0
  %v598 = vadd.f32 0.0, %v597
  %v599 = vpop.f32.mrb[0].mxu0
  %v600 = vpop.f32.mrb[0].mxu0
  %v601 = vadd.f32 0.0, %v600
  %v602 = vpop.f32.mrb[0].mxu0
  %603 = vmatprep.mubr.bf16.mxu0 0
  %604 = vmatmul.mubr.bf16.gmra.mrb[0].mxu0 %v386
  %v605 = vpop.f32.mrb[0].mxu0
  %v606 = vadd.f32 0.0, %v605
  %v607 = vpop.f32.mrb[0].mxu0
  %v608 = vpop.f32.mrb[0].mxu0
  %v609 = vadd.f32 0.0, %v608
  %v610 = vpop.f32.mrb[0].mxu0
  %611 = vmatprep.mubr.bf16.mxu0 0
  %612 = vmatmul.mubr.bf16.gmra.mrb[0].mxu0 %v389
  %v613 = vpop.f32.mrb[0].mxu0
  %v614 = vadd.f32 0.0, %v613
  %v615 = vpop.f32.mrb[0].mxu0
  %v616 = vpop.f32.mrb[0].mxu0
  %v617 = vadd.f32 0.0, %v616
  %v618 = vpop.f32.mrb[0].mxu0
  %619 = vmatprep.mubr.bf16.mxu0 0
  %620 = vmatmul.mubr.bf16.gmra.mrb[0].mxu0 %v392
  %v621 = vpop.f32.mrb[0].mxu0
  %v622 = vadd.f32 0.0, %v621
  %v623 = vpop.f32.mrb[0].mxu0
  %v624 = vpop.f32.mrb[0].mxu0
  %v625 = vadd.f32 0.0, %v624
  %v626 = vpop.f32.mrb[0].mxu0
  %627 = vmatprep.mubr.bf16.mxu0 0
  %628 = vmatmul.mubr.bf16.gmra.mrb[0].mxu0 %v395
  %v629 = vpop.f32.mrb[0].mxu0
  %v630 = vadd.f32 0.0, %v629
  %v631 = vpop.f32.mrb[0].mxu0
  %v632 = vpop.f32.mrb[0].mxu0
  %v633 = vadd.f32 0.0, %v632
  %v634 = vpop.f32.mrb[0].mxu0
  %635 = vmatprep.mubr.bf16.mxu0 0
  %636 = vmatmul.mubr.bf16.gmra.mrb[0].mxu0 %v398
  %v637 = vpop.f32.mrb[0].mxu0
  %v638 = vadd.f32 0.0, %v637
  %v639 = vpop.f32.mrb[0].mxu0
  %v640 = vpop.f32.mrb[0].mxu0
  %v641 = vadd.f32 0.0, %v640
  %v642 = vpop.f32.mrb[0].mxu0
  %643 = vmatprep.mubr.bf16.mxu0 0
  %644 = vmatmul.mubr.bf16.gmra.mrb[0].mxu0 %v401
  %v645 = vpop.f32.mrb[0].mxu0
  %v646 = vadd.f32 0.0, %v645
  %v647 = vpop.f32.mrb[0].mxu0
  %v648 = vpop.f32.mrb[0].mxu0
  %v649 = vadd.f32 0.0, %v648
  %v650 = vpop.f32.mrb[0].mxu0
  %651 = vmatprep.mubr.bf16.mxu0 0
  %652 = vmatmul.mubr.bf16.gmra.mrb[0].mxu0 %v404
  %v653 = vpop.f32.mrb[0].mxu0
  %v654 = vadd.f32 0.0, %v653
  %v655 = vpop.f32.mrb[0].mxu0
  %v656 = vpop.f32.mrb[0].mxu0
  %v657 = vadd.f32 0.0, %v656
  %v658 = vpop.f32.mrb[0].mxu0
  %659 = vmatprep.mubr.bf16.mxu0 0
  %660 = vmatmul.mubr.bf16.gmra.mrb[0].mxu0 %v407
  %v661 = vpop.f32.mrb[0].mxu0
  %v662 = vadd.f32 0.0, %v661
  %v663 = vpop.f32.mrb[0].mxu0
  %v664 = vpop.f32.mrb[0].mxu0
  %v665 = vadd.f32 0.0, %v664
  %v666 = vpop.f32.mrb[0].mxu0
  %667 = vmatprep.mubr.bf16.mxu0 0
  %668 = vmatmul.mubr.bf16.gmra.mrb[0].mxu0 %v410
  %v669 = vpop.f32.mrb[0].mxu0
  %v670 = vadd.f32 0.0, %v669
  %v671 = vpop.f32.mrb[0].mxu0
  %v672 = vpop.f32.mrb[0].mxu0
  %v673 = vadd.f32 0.0, %v672
  %v674 = vpop.f32.mrb[0].mxu0
  %675 = vmatprep.mubr.bf16.mxu0 0
  %676 = vmatmul.mubr.bf16.gmra.mrb[0].mxu0 %v413
  %v677 = vpop.f32.mrb[0].mxu0
  %v678 = vadd.f32 0.0, %v677
  %v679 = vpop.f32.mrb[0].mxu0
  %v680 = vpop.f32.mrb[0].mxu0
  %v681 = vadd.f32 0.0, %v680
  %v682 = vpop.f32.mrb[0].mxu0
  %683 = vmatprep.mubr.bf16.mxu0 0
  %684 = vmatmul.mubr.bf16.gmra.mrb[0].mxu0 %v416
  %v685 = vpop.f32.mrb[0].mxu0
  %v686 = vadd.f32 0.0, %v685
  %v687 = vpop.f32.mrb[0].mxu0
  %v688 = vpop.f32.mrb[0].mxu0
  %v689 = vadd.f32 0.0, %v688
  %v690 = vpop.f32.mrb[0].mxu0
  %691 = vmatprep.mubr.bf16.mxu0 0
  %692 = vmatmul.mubr.bf16.gmra.mrb[0].mxu0 %v419
  %v693 = vpop.f32.mrb[0].mxu0
  %v694 = vadd.f32 0.0, %v693
  %v695 = vpop.f32.mrb[0].mxu0
  %v696 = vpop.f32.mrb[0].mxu0
  %v697 = vadd.f32 0.0, %v696
  %v698 = vpop.f32.mrb[0].mxu0
  %699 = vmatprep.mubr.bf16.mxu0 0
  %700 = vmatmul.mubr.bf16.gmra.mrb[0].mxu0 %v422
  %v701 = vpop.f32.mrb[0].mxu0
  %v702 = vadd.f32 0.0, %v701
  %v703 = vpop.f32.mrb[0].mxu0
  %v704 = vpop.f32.mrb[0].mxu0
  %v705 = vadd.f32 0.0, %v704
  %v706 = vpop.f32.mrb[0].mxu0
  %707 = vmatprep.mubr.bf16.mxu0 0
  %708 = vmatmul.mubr.bf16.gmra.mrb[0].mxu0 %v425
  %v709 = vpop.f32.mrb[0].mxu0
  %v710 = vadd.f32 0.0, %v709
  %v711 = vpop.f32.mrb[0].mxu0
  %v712 = vpop.f32.mrb[0].mxu0
  %v713 = vadd.f32 0.0, %v712
  %v714 = vpop.f32.mrb[0].mxu0
  %715 = vdwg.mxu0
  %716 = vst [vmem:[%s4] sm:$0xff] %v462
  %717 = vst [vmem:[%s4 + $0x8] sm:$0xff] %v465
  %718 = vst [vmem:[%s4 + $0x10] sm:$0xff] %v470
  %719 = vst [vmem:[%s4 + $0x18] sm:$0xff] %v473
  %720 = vst [vmem:[%s4 + $0x20] sm:$0xff] %v478
  %721 = vst [vmem:[%s4 + $0x28] sm:$0xff] %v481
  %722 = vst [vmem:[%s4 + $0x30] sm:$0xff] %v486
  %723 = vst [vmem:[%s4 + $0x38] sm:$0xff] %v489
  %724 = vst [vmem:[%s4 + $0x40] sm:$0xff] %v494
  %725 = vst [vmem:[%s4 + $0x48] sm:$0xff] %v497
  %726 = vst [vmem:[%s4 + $0x50] sm:$0xff] %v502
  %727 = vst [vmem:[%s4 + $0x58] sm:$0xff] %v505
  %728 = vst [vmem:[%s4 + $0x60] sm:$0xff] %v510
  %729 = vst [vmem:[%s4 + $0x68] sm:$0xff] %v513
  %730 = vst [vmem:[%s4 + $0x70] sm:$0xff] %v518
  %731 = vst [vmem:[%s4 + $0x78] sm:$0xff] %v521
  %732 = vst [vmem:[%s4 + $0x80] sm:$0xff] %v526
  %733 = vst [vmem:[%s4 + $0x88] sm:$0xff] %v529
  %734 = vst [vmem:[%s4 + $0x90] sm:$0xff] %v534
  %735 = vst [vmem:[%s4 + $0x98] sm:$0xff] %v537
  %736 = vst [vmem:[%s4 + $0xa0] sm:$0xff] %v542
  %737 = vst [vmem:[%s4 + $0xa8] sm:$0xff] %v545
  %738 = vst [vmem:[%s4 + $0xb0] sm:$0xff] %v550
  %739 = vst [vmem:[%s4 + $0xb8] sm:$0xff] %v553
  %740 = vst [vmem:[%s4 + $0xc0] sm:$0xff] %v558
  %741 = vst [vmem:[%s4 + $0xc8] sm:$0xff] %v561
  %742 = vst [vmem:[%s4 + $0xd0] sm:$0xff] %v566
  %743 = vst [vmem:[%s4 + $0xd8] sm:$0xff] %v569
  %744 = vst [vmem:[%s4 + $0xe0] sm:$0xff] %v574
  %745 = vst [vmem:[%s4 + $0xe8] sm:$0xff] %v577
  %746 = vst [vmem:[%s4 + $0xf0] sm:$0xff] %v582
  %747 = vst [vmem:[%s4 + $0xf8] sm:$0xff] %v585
  %748 = vst [vmem:[%s4 + $0x100] sm:$0xff] %v590
  %749 = vst [vmem:[%s4 + $0x108] sm:$0xff] %v593
  %750 = vst [vmem:[%s4 + $0x110] sm:$0xff] %v598
  %751 = vst [vmem:[%s4 + $0x118] sm:$0xff] %v601
  %752 = vst [vmem:[%s4 + $0x120] sm:$0xff] %v606
  %753 = vst [vmem:[%s4 + $0x128] sm:$0xff] %v609
  %754 = vst [vmem:[%s4 + $0x130] sm:$0xff] %v614
  %755 = vst [vmem:[%s4 + $0x138] sm:$0xff] %v617
  %756 = vst [vmem:[%s4 + $0x140] sm:$0xff] %v622
  %757 = vst [vmem:[%s4 + $0x148] sm:$0xff] %v625
  %758 = vst [vmem:[%s4 + $0x150] sm:$0xff] %v630
  %759 = vst [vmem:[%s4 + $0x158] sm:$0xff] %v633
  %760 = vst [vmem:[%s4 + $0x160] sm:$0xff] %v638
  %761 = vst [vmem:[%s4 + $0x168] sm:$0xff] %v641
  %762 = vst [vmem:[%s4 + $0x170] sm:$0xff] %v646
  %763 = vst [vmem:[%s4 + $0x178] sm:$0xff] %v649
  %764 = vst [vmem:[%s4 + $0x180] sm:$0xff] %v654
  %765 = vst [vmem:[%s4 + $0x188] sm:$0xff] %v657
  %766 = vst [vmem:[%s4 + $0x190] sm:$0xff] %v662
  %767 = vst [vmem:[%s4 + $0x198] sm:$0xff] %v665
  %768 = vst [vmem:[%s4 + $0x1a0] sm:$0xff] %v670
  %769 = vst [vmem:[%s4 + $0x1a8] sm:$0xff] %v673
  %770 = vst [vmem:[%s4 + $0x1b0] sm:$0xff] %v678
  %771 = vst [vmem:[%s4 + $0x1b8] sm:$0xff] %v681
  %772 = vst [vmem:[%s4 + $0x1c0] sm:$0xff] %v686
  %773 = vst [vmem:[%s4 + $0x1c8] sm:$0xff] %v689
  %774 = vst [vmem:[%s4 + $0x1d0] sm:$0xff] %v694
  %775 = vst [vmem:[%s4 + $0x1d8] sm:$0xff] %v697
  %776 = vst [vmem:[%s4 + $0x1e0] sm:$0xff] %v702
  %777 = vst [vmem:[%s4 + $0x1e8] sm:$0xff] %v705
  %778 = vst [vmem:[%s4 + $0x1f0] sm:$0xff] %v710
  %779 = vst [vmem:[%s4 + $0x1f8] sm:$0xff] %v713
  %v780 = vadd.f32 %v462, %v465
  %v781 = vadd.f32 %v780, %v470
  %v782 = vadd.f32 %v781, %v473
  %v783 = vadd.f32 %v782, %v478
  %v784 = vadd.f32 %v783, %v481
  %v785 = vadd.f32 %v784, %v486
  %v786 = vadd.f32 %v785, %v489
  %v787 = vadd.f32 %v786, %v494
  %v788 = vadd.f32 %v787, %v497
  %v789 = vadd.f32 %v788, %v502
  %v790 = vadd.f32 %v789, %v505
  %v791 = vadd.f32 %v790, %v510
  %v792 = vadd.f32 %v791, %v513
  %v793 = vadd.f32 %v792, %v518
  %v794 = vadd.f32 %v793, %v521
  %v795 = vadd.f32 %v794, %v526
  %v796 = vadd.f32 %v795, %v529
  %v797 = vadd.f32 %v796, %v534
  %v798 = vadd.f32 %v797, %v537
  %v799 = vadd.f32 %v798, %v542
  %v800 = vadd.f32 %v799, %v545
  %v801 = vadd.f32 %v800, %v550
  %v802 = vadd.f32 %v801, %v553
  %v803 = vadd.f32 %v802, %v558
  %v804 = vadd.f32 %v803, %v561
  %v805 = vadd.f32 %v804, %v566
  %v806 = vadd.f32 %v805, %v569
  %v807 = vadd.f32 %v806, %v574
  %v808 = vadd.f32 %v807, %v577
  %v809 = vadd.f32 %v808, %v582
  %v810 = vadd.f32 %v809, %v585
  %v811 = vadd.f32 %v810, %v590
  %v812 = vadd.f32 %v811, %v593
  %v813 = vadd.f32 %v812, %v598
  %v814 = vadd.f32 %v813, %v601
  %v815 = vadd.f32 %v814, %v606
  %v816 = vadd.f32 %v815, %v609
  %v817 = vadd.f32 %v816, %v614
  %v818 = vadd.f32 %v817, %v617
  %v819 = vadd.f32 %v818, %v622
  %v820 = vadd.f32 %v819, %v625
  %v821 = vadd.f32 %v820, %v630
  %v822 = vadd.f32 %v821, %v633
  %v823 = vadd.f32 %v822, %v638
  %v824 = vadd.f32 %v823, %v641
  %v825 = vadd.f32 %v824, %v646
  %v826 = vadd.f32 %v825, %v649
  %v827 = vadd.f32 %v826, %v654
  %v828 = vadd.f32 %v827, %v657
  %v829 = vadd.f32 %v828, %v662
  %v830 = vadd.f32 %v829, %v665
  %v831 = vadd.f32 %v830, %v670
  %v832 = vadd.f32 %v831, %v673
  %v833 = vadd.f32 %v832, %v678
  %v834 = vadd.f32 %v833, %v681
  %v835 = vadd.f32 %v834, %v686
  %v836 = vadd.f32 %v835, %v689
  %v837 = vadd.f32 %v836, %v694
  %v838 = vadd.f32 %v837, %v697
  %v839 = vadd.f32 %v838, %v702
  %v840 = vadd.f32 %v839, %v705
  %v841 = vadd.f32 %v840, %v710
  %v842 = vadd.f32 %v841, %v713
  %v843 = vrot.slane %v842, 4
  %v844 = vadd.f32 %v842, %v843
  %v845 = vrot.slane %v844, 2
  %v846 = vadd.f32 %v844, %v845
  %v847 = vrot.slane %v846, 1
  %v848 = vadd.f32 %v846, %v847
  %v849 = vmul.f32 %v462, %v462
  %v850 = vmul.f32 %v465, %v465
  %v851 = vmul.f32 %v470, %v470
  %v852 = vmul.f32 %v473, %v473
  %v853 = vmul.f32 %v478, %v478
  %v854 = vmul.f32 %v481, %v481
  %v855 = vmul.f32 %v486, %v486
  %v856 = vmul.f32 %v489, %v489
  %v857 = vmul.f32 %v494, %v494
  %v858 = vmul.f32 %v497, %v497
  %v859 = vmul.f32 %v502, %v502
  %v860 = vmul.f32 %v505, %v505
  %v861 = vmul.f32 %v510, %v510
  %v862 = vmul.f32 %v513, %v513
  %v863 = vmul.f32 %v518, %v518
  %v864 = vmul.f32 %v521, %v521
  %v865 = vmul.f32 %v526, %v526
  %v866 = vmul.f32 %v529, %v529
  %v867 = vmul.f32 %v534, %v534
  %v868 = vmul.f32 %v537, %v537
  %v869 = vmul.f32 %v542, %v542
  %v870 = vmul.f32 %v545, %v545
  %v871 = vmul.f32 %v550, %v550
  %v872 = vmul.f32 %v553, %v553
  %v873 = vmul.f32 %v558, %v558
  %v874 = vmul.f32 %v561, %v561
  %v875 = vmul.f32 %v566, %v566
  %v876 = vmul.f32 %v569, %v569
  %v877 = vmul.f32 %v574, %v574
  %v878 = vmul.f32 %v577, %v577
  %v879 = vmul.f32 %v582, %v582
  %v880 = vmul.f32 %v585, %v585
  %v881 = vmul.f32 %v590, %v590
  %v882 = vmul.f32 %v593, %v593
  %v883 = vmul.f32 %v598, %v598
  %v884 = vmul.f32 %v601, %v601
  %v885 = vmul.f32 %v606, %v606
  %v886 = vmul.f32 %v609, %v609
  %v887 = vmul.f32 %v614, %v614
  %v888 = vmul.f32 %v617, %v617
  %v889 = vmul.f32 %v622, %v622
  %v890 = vmul.f32 %v625, %v625
  %v891 = vmul.f32 %v630, %v630
  %v892 = vmul.f32 %v633, %v633
  %v893 = vmul.f32 %v638, %v638
  %v894 = vmul.f32 %v641, %v641
  %v895 = vmul.f32 %v646, %v646
  %v896 = vmul.f32 %v649, %v649
  %v897 = vmul.f32 %v654, %v654
  %v898 = vmul.f32 %v657, %v657
  %v899 = vmul.f32 %v662, %v662
  %v900 = vmul.f32 %v665, %v665
  %v901 = vmul.f32 %v670, %v670
  %v902 = vmul.f32 %v673, %v673
  %v903 = vmul.f32 %v678, %v678
  %v904 = vmul.f32 %v681, %v681
  %v905 = vmul.f32 %v686, %v686
  %v906 = vmul.f32 %v689, %v689
  %v907 = vmul.f32 %v694, %v694
  %v908 = vmul.f32 %v697, %v697
  %v909 = vmul.f32 %v702, %v702
  %v910 = vmul.f32 %v705, %v705
  %v911 = vmul.f32 %v710, %v710
  %v912 = vmul.f32 %v713, %v713
  %v913 = vadd.f32 %v849, %v850
  %v914 = vadd.f32 %v913, %v851
  %v915 = vadd.f32 %v914, %v852
  %v916 = vadd.f32 %v915, %v853
  %v917 = vadd.f32 %v916, %v854
  %v918 = vadd.f32 %v917, %v855
  %v919 = vadd.f32 %v918, %v856
  %v920 = vadd.f32 %v919, %v857
  %v921 = vadd.f32 %v920, %v858
  %v922 = vadd.f32 %v921, %v859
  %v923 = vadd.f32 %v922, %v860
  %v924 = vadd.f32 %v923, %v861
  %v925 = vadd.f32 %v924, %v862
  %v926 = vadd.f32 %v925, %v863
  %v927 = vadd.f32 %v926, %v864
  %v928 = vadd.f32 %v927, %v865
  %v929 = vadd.f32 %v928, %v866
  %v930 = vadd.f32 %v929, %v867
  %v931 = vadd.f32 %v930, %v868
  %v932 = vadd.f32 %v931, %v869
  %v933 = vadd.f32 %v932, %v870
  %v934 = vadd.f32 %v933, %v871
  %v935 = vadd.f32 %v934, %v872
  %v936 = vadd.f32 %v935, %v873
  %v937 = vadd.f32 %v936, %v874
  %v938 = vadd.f32 %v937, %v875
  %v939 = vadd.f32 %v938, %v876
  %v940 = vadd.f32 %v939, %v877
  %v941 = vadd.f32 %v940, %v878
  %v942 = vadd.f32 %v941, %v879
  %v943 = vadd.f32 %v942, %v880
  %v944 = vadd.f32 %v943, %v881
  %v945 = vadd.f32 %v944, %v882
  %v946 = vadd.f32 %v945, %v883
  %v947 = vadd.f32 %v946, %v884
  %v948 = vadd.f32 %v947, %v885
  %v949 = vadd.f32 %v948, %v886
  %v950 = vadd.f32 %v949, %v887
  %v951 = vadd.f32 %v950, %v888
  %v952 = vadd.f32 %v951, %v889
  %v953 = vadd.f32 %v952, %v890
  %v954 = vadd.f32 %v953, %v891
  %v955 = vadd.f32 %v954, %v892
  %v956 = vadd.f32 %v955, %v893
  %v957 = vadd.f32 %v956, %v894
  %v958 = vadd.f32 %v957, %v895
  %v959 = vadd.f32 %v958, %v896
  %v960 = vadd.f32 %v959, %v897
  %v961 = vadd.f32 %v960, %v898
  %v962 = vadd.f32 %v961, %v899
  %v963 = vadd.f32 %v962, %v900
  %v964 = vadd.f32 %v963, %v901
  %v965 = vadd.f32 %v964, %v902
  %v966 = vadd.f32 %v965, %v903
  %v967 = vadd.f32 %v966, %v904
  %v968 = vadd.f32 %v967, %v905
  %v969 = vadd.f32 %v968, %v906
  %v970 = vadd.f32 %v969, %v907
  %v971 = vadd.f32 %v970, %v908
  %v972 = vadd.f32 %v971, %v909
  %v973 = vadd.f32 %v972, %v910
  %v974 = vadd.f32 %v973, %v911
  %v975 = vadd.f32 %v974, %v912
  %v976 = vrot.slane %v975, 4
  %v977 = vadd.f32 %v975, %v976
  %v978 = vrot.slane %v977, 2
  %v979 = vadd.f32 %v977, %v978
  %v980 = vrot.slane %v979, 1
  %v981 = vadd.f32 %v979, %v980
  %vm982 = vcmask 1040384
  %v983 = vsel %vm982, %v848, %v981
  %984 = vst [vmem:[%s5] sm:$0x3] %v983
  // Predicated region
  $region18: #{dense_block_forward.8} parent=0 // pred_check
    _
  $region19: #{dense_block_forward.8} parent=0 // pred_check_branch
    %986 = sbr.rel (0) target = $region21
  $region20: #{dense_block_forward.8} parent=0 // pred_region
    _
  $region21: #{dense_block_forward.8} parent=0 // pred_fallthru
    _
  // Predicated region
  $region22: #{dense_block_forward.8} parent=0 // pred_check
    _
  $region23: #{dense_block_forward.8} parent=0 // pred_check_branch
    %988 = sbr.rel (0) target = $region25
  $region24: #{dense_block_forward.8} parent=0 // pred_region
    _
  $region25: #{dense_block_forward.8} parent=0 // pred_fallthru
    _
  // Predicated region
  $region26: #{dense_block_forward.8} parent=0 // pred_check
    _
  $region27: #{dense_block_forward.8} parent=0 // pred_check_branch
    %990 = sbr.rel (0) target = $region29
  $region28: #{dense_block_forward.8} parent=0 // pred_region
    _
  $region29: #{dense_block_forward.8} parent=0 // pred_fallthru
    _
  // Predicated region
  $region30: #{dense_block_forward.8} parent=0 // pred_check
    _
  $region31: #{dense_block_forward.8} parent=0 // pred_check_branch
    %992 = sbr.rel (0) target = $region33
  $region32: #{dense_block_forward.8} parent=0 // pred_region
    _
  $region33: #{dense_block_forward.8} parent=0 // pred_fallthru
    _

// kernel: dense_block_forward.10
$region0: #{dense_block_forward.10}
  #allocation0 [shape = 'u32[]', space=smem, size = 0x4, offset = 0x4, fixed_abs, tag = 'smem constant byte address 0x4 - core index']
  #allocation1 [shape = 'u32[144,128]{1,0:T(1,128)}', space=vmem, size = 0x12000, scoped, tag = 'internal scratch']
  %s0 = inlined_call_operand.vmem [shape: f32[512,24], index: 0, kind: input, shape index: {}]
  %s1 = inlined_call_operand.vmem [shape: f32[1,24], index: 1, kind: input, shape index: {}]
  %s2 = inlined_call_operand.vmem [shape: f32[1,24], index: 2, kind: input, shape index: {}]
  %s3 = inlined_call_operand.vmem [shape: bf16[24,128], index: 3, kind: input, shape index: {}]
  %s4 = inlined_call_operand.vmem [shape: f32[512,128], index: 4, kind: output, shape index: {0}]
  %s5 = inlined_call_operand.vmem [shape: f32[1,2,128], index: 5, kind: output, shape index: {1}]
  %6 = xla_tuple %s4, %s5
  %s7 = sld [smem:[#allocation0]]
  $region34: #{dense_block_forward.10} parent=0
    _
  %s9 = ssub.s32 1, %s7
  %s10 = scalar_select 0, %s9, %s7
  // Predicated region
  $region2: #{dense_block_forward.10} parent=0 // pred_check
    _
  $region3: #{dense_block_forward.10} parent=0 // pred_check_branch
    %12 = sbr.rel (0) target = $region5
  $region4: #{dense_block_forward.10} parent=0 // pred_region
    _
  $region5: #{dense_block_forward.10} parent=0 // pred_fallthru
    _
  // Predicated region
  $region6: #{dense_block_forward.10} parent=0 // pred_check
    _
  $region7: #{dense_block_forward.10} parent=0 // pred_check_branch
    %14 = sbr.rel (0) target = $region9
  $region8: #{dense_block_forward.10} parent=0 // pred_region
    _
  $region9: #{dense_block_forward.10} parent=0 // pred_fallthru
    _
  // Predicated region
  $region10: #{dense_block_forward.10} parent=0 // pred_check
    _
  $region11: #{dense_block_forward.10} parent=0 // pred_check_branch
    %16 = sbr.rel (0) target = $region13
  $region12: #{dense_block_forward.10} parent=0 // pred_region
    _
  $region13: #{dense_block_forward.10} parent=0 // pred_fallthru
    _
  // Predicated region
  $region14: #{dense_block_forward.10} parent=0 // pred_check
    _
  $region15: #{dense_block_forward.10} parent=0 // pred_check_branch
    %18 = sbr.rel (0) target = $region17
  $region16: #{dense_block_forward.10} parent=0 // pred_region
    _
  $region17: #{dense_block_forward.10} parent=0 // pred_fallthru
    _
  %v20 = vld [vmem:[%s0] sm:$0xff]
  %v21 = vld [vmem:[%s0 + $0x8] sm:$0xff]
  %v22 = vld [vmem:[%s0 + $0x10] sm:$0xff]
  %v23 = vld [vmem:[%s0 + $0x18] sm:$0xff]
  %v24 = vld [vmem:[%s0 + $0x20] sm:$0xff]
  %v25 = vld [vmem:[%s0 + $0x28] sm:$0xff]
  %v26 = vld [vmem:[%s0 + $0x30] sm:$0xff]
  %v27 = vld [vmem:[%s0 + $0x38] sm:$0xff]
  %v28 = vld [vmem:[%s0 + $0x40] sm:$0xff]
  %v29 = vld [vmem:[%s0 + $0x48] sm:$0xff]
  %v30 = vld [vmem:[%s0 + $0x50] sm:$0xff]
  %v31 = vld [vmem:[%s0 + $0x58] sm:$0xff]
  %v32 = vld [vmem:[%s0 + $0x60] sm:$0xff]
  %v33 = vld [vmem:[%s0 + $0x68] sm:$0xff]
  %v34 = vld [vmem:[%s0 + $0x70] sm:$0xff]
  %v35 = vld [vmem:[%s0 + $0x78] sm:$0xff]
  %v36 = vld [vmem:[%s0 + $0x80] sm:$0xff]
  %v37 = vld [vmem:[%s0 + $0x88] sm:$0xff]
  %v38 = vld [vmem:[%s0 + $0x90] sm:$0xff]
  %v39 = vld [vmem:[%s0 + $0x98] sm:$0xff]
  %v40 = vld [vmem:[%s0 + $0xa0] sm:$0xff]
  %v41 = vld [vmem:[%s0 + $0xa8] sm:$0xff]
  %v42 = vld [vmem:[%s0 + $0xb0] sm:$0xff]
  %v43 = vld [vmem:[%s0 + $0xb8] sm:$0xff]
  %v44 = vld [vmem:[%s0 + $0xc0] sm:$0xff]
  %v45 = vld [vmem:[%s0 + $0xc8] sm:$0xff]
  %v46 = vld [vmem:[%s0 + $0xd0] sm:$0xff]
  %v47 = vld [vmem:[%s0 + $0xd8] sm:$0xff]
  %v48 = vld [vmem:[%s0 + $0xe0] sm:$0xff]
  %v49 = vld [vmem:[%s0 + $0xe8] sm:$0xff]
  %v50 = vld [vmem:[%s0 + $0xf0] sm:$0xff]
  %v51 = vld [vmem:[%s0 + $0xf8] sm:$0xff]
  %v52 = vld [vmem:[%s0 + $0x100] sm:$0xff]
  %v53 = vld [vmem:[%s0 + $0x108] sm:$0xff]
  %v54 = vld [vmem:[%s0 + $0x110] sm:$0xff]
  %v55 = vld [vmem:[%s0 + $0x118] sm:$0xff]
  %v56 = vld [vmem:[%s0 + $0x120] sm:$0xff]
  %v57 = vld [vmem:[%s0 + $0x128] sm:$0xff]
  %v58 = vld [vmem:[%s0 + $0x130] sm:$0xff]
  %v59 = vld [vmem:[%s0 + $0x138] sm:$0xff]
  %v60 = vld [vmem:[%s0 + $0x140] sm:$0xff]
  %v61 = vld [vmem:[%s0 + $0x148] sm:$0xff]
  %v62 = vld [vmem:[%s0 + $0x150] sm:$0xff]
  %v63 = vld [vmem:[%s0 + $0x158] sm:$0xff]
  %v64 = vld [vmem:[%s0 + $0x160] sm:$0xff]
  %v65 = vld [vmem:[%s0 + $0x168] sm:$0xff]
  %v66 = vld [vmem:[%s0 + $0x170] sm:$0xff]
  %v67 = vld [vmem:[%s0 + $0x178] sm:$0xff]
  %v68 = vld [vmem:[%s0 + $0x180] sm:$0xff]
  %v69 = vld [vmem:[%s0 + $0x188] sm:$0xff]
  %v70 = vld [vmem:[%s0 + $0x190] sm:$0xff]
  %v71 = vld [vmem:[%s0 + $0x198] sm:$0xff]
  %v72 = vld [vmem:[%s0 + $0x1a0] sm:$0xff]
  %v73 = vld [vmem:[%s0 + $0x1a8] sm:$0xff]
  %v74 = vld [vmem:[%s0 + $0x1b0] sm:$0xff]
  %v75 = vld [vmem:[%s0 + $0x1b8] sm:$0xff]
  %v76 = vld [vmem:[%s0 + $0x1c0] sm:$0xff]
  %v77 = vld [vmem:[%s0 + $0x1c8] sm:$0xff]
  %v78 = vld [vmem:[%s0 + $0x1d0] sm:$0xff]
  %v79 = vld [vmem:[%s0 + $0x1d8] sm:$0xff]
  %v80 = vld [vmem:[%s0 + $0x1e0] sm:$0xff]
  %v81 = vld [vmem:[%s0 + $0x1e8] sm:$0xff]
  %v82 = vld [vmem:[%s0 + $0x1f0] sm:$0xff]
  %v83 = vld [vmem:[%s0 + $0x1f8] sm:$0xff]
  %v84 = vld [vmem:[%s1] sm:$0x1]
  %v86 = vlaneseq
  %v87 = vshrl.u32 %v86, 7
  %v88 = vsub.s32 0, %v87
  %v89 = vrot.slane %v84, %v88
  %v91 = vmul.f32 %v20, %v89
  %v92 = vmul.f32 %v21, %v89
  %v93 = vmul.f32 %v22, %v89
  %v94 = vmul.f32 %v23, %v89
  %v95 = vmul.f32 %v24, %v89
  %v96 = vmul.f32 %v25, %v89
  %v97 = vmul.f32 %v26, %v89
  %v98 = vmul.f32 %v27, %v89
  %v99 = vmul.f32 %v28, %v89
  %v100 = vmul.f32 %v29, %v89
  %v101 = vmul.f32 %v30, %v89
  %v102 = vmul.f32 %v31, %v89
  %v103 = vmul.f32 %v32, %v89
  %v104 = vmul.f32 %v33, %v89
  %v105 = vmul.f32 %v34, %v89
  %v106 = vmul.f32 %v35, %v89
  %v107 = vmul.f32 %v36, %v89
  %v108 = vmul.f32 %v37, %v89
  %v109 = vmul.f32 %v38, %v89
  %v110 = vmul.f32 %v39, %v89
  %v111 = vmul.f32 %v40, %v89
  %v112 = vmul.f32 %v41, %v89
  %v113 = vmul.f32 %v42, %v89
  %v114 = vmul.f32 %v43, %v89
  %v115 = vmul.f32 %v44, %v89
  %v116 = vmul.f32 %v45, %v89
  %v117 = vmul.f32 %v46, %v89
  %v118 = vmul.f32 %v47, %v89
  %v119 = vmul.f32 %v48, %v89
  %v120 = vmul.f32 %v49, %v89
  %v121 = vmul.f32 %v50, %v89
  %v122 = vmul.f32 %v51, %v89
  %v123 = vmul.f32 %v52, %v89
  %v124 = vmul.f32 %v53, %v89
  %v125 = vmul.f32 %v54, %v89
  %v126 = vmul.f32 %v55, %v89
  %v127 = vmul.f32 %v56, %v89
  %v128 = vmul.f32 %v57, %v89
  %v129 = vmul.f32 %v58, %v89
  %v130 = vmul.f32 %v59, %v89
  %v131 = vmul.f32 %v60, %v89
  %v132 = vmul.f32 %v61, %v89
  %v133 = vmul.f32 %v62, %v89
  %v134 = vmul.f32 %v63, %v89
  %v135 = vmul.f32 %v64, %v89
  %v136 = vmul.f32 %v65, %v89
  %v137 = vmul.f32 %v66, %v89
  %v138 = vmul.f32 %v67, %v89
  %v139 = vmul.f32 %v68, %v89
  %v140 = vmul.f32 %v69, %v89
  %v141 = vmul.f32 %v70, %v89
  %v142 = vmul.f32 %v71, %v89
  %v143 = vmul.f32 %v72, %v89
  %v144 = vmul.f32 %v73, %v89
  %v145 = vmul.f32 %v74, %v89
  %v146 = vmul.f32 %v75, %v89
  %v147 = vmul.f32 %v76, %v89
  %v148 = vmul.f32 %v77, %v89
  %v149 = vmul.f32 %v78, %v89
  %v150 = vmul.f32 %v79, %v89
  %v151 = vmul.f32 %v80, %v89
  %v152 = vmul.f32 %v81, %v89
  %v153 = vmul.f32 %v82, %v89
  %v154 = vmul.f32 %v83, %v89
  %v155 = vld [vmem:[%s2] sm:$0x1]
  %v157 = vlaneseq
  %v158 = vshrl.u32 %v157, 7
  %v159 = vsub.s32 0, %v158
  %v160 = vrot.slane %v155, %v159
  %v162 = vadd.f32 %v91, %v160
  %v163 = vadd.f32 %v92, %v160
  %v164 = vadd.f32 %v93, %v160
  %v165 = vadd.f32 %v94, %v160
  %v166 = vadd.f32 %v95, %v160
  %v167 = vadd.f32 %v96, %v160
  %v168 = vadd.f32 %v97, %v160
  %v169 = vadd.f32 %v98, %v160
  %v170 = vadd.f32 %v99, %v160
  %v171 = vadd.f32 %v100, %v160
  %v172 = vadd.f32 %v101, %v160
  %v173 = vadd.f32 %v102, %v160
  %v174 = vadd.f32 %v103, %v160
  %v175 = vadd.f32 %v104, %v160
  %v176 = vadd.f32 %v105, %v160
  %v177 = vadd.f32 %v106, %v160
  %v178 = vadd.f32 %v107, %v160
  %v179 = vadd.f32 %v108, %v160
  %v180 = vadd.f32 %v109, %v160
  %v181 = vadd.f32 %v110, %v160
  %v182 = vadd.f32 %v111, %v160
  %v183 = vadd.f32 %v112, %v160
  %v184 = vadd.f32 %v113, %v160
  %v185 = vadd.f32 %v114, %v160
  %v186 = vadd.f32 %v115, %v160
  %v187 = vadd.f32 %v116, %v160
  %v188 = vadd.f32 %v117, %v160
  %v189 = vadd.f32 %v118, %v160
  %v190 = vadd.f32 %v119, %v160
  %v191 = vadd.f32 %v120, %v160
  %v192 = vadd.f32 %v121, %v160
  %v193 = vadd.f32 %v122, %v160
  %v194 = vadd.f32 %v123, %v160
  %v195 = vadd.f32 %v124, %v160
  %v196 = vadd.f32 %v125, %v160
  %v197 = vadd.f32 %v126, %v160
  %v198 = vadd.f32 %v127, %v160
  %v199 = vadd.f32 %v128, %v160
  %v200 = vadd.f32 %v129, %v160
  %v201 = vadd.f32 %v130, %v160
  %v202 = vadd.f32 %v131, %v160
  %v203 = vadd.f32 %v132, %v160
  %v204 = vadd.f32 %v133, %v160
  %v205 = vadd.f32 %v134, %v160
  %v206 = vadd.f32 %v135, %v160
  %v207 = vadd.f32 %v136, %v160
  %v208 = vadd.f32 %v137, %v160
  %v209 = vadd.f32 %v138, %v160
  %v210 = vadd.f32 %v139, %v160
  %v211 = vadd.f32 %v140, %v160
  %v212 = vadd.f32 %v141, %v160
  %v213 = vadd.f32 %v142, %v160
  %v214 = vadd.f32 %v143, %v160
  %v215 = vadd.f32 %v144, %v160
  %v216 = vadd.f32 %v145, %v160
  %v217 = vadd.f32 %v146, %v160
  %v218 = vadd.f32 %v147, %v160
  %v219 = vadd.f32 %v148, %v160
  %v220 = vadd.f32 %v149, %v160
  %v221 = vadd.f32 %v150, %v160
  %v222 = vadd.f32 %v151, %v160
  %v223 = vadd.f32 %v152, %v160
  %v224 = vadd.f32 %v153, %v160
  %v225 = vadd.f32 %v154, %v160
  %v226 = vmax.f32 %v162, 0.0
  %v227 = vmax.f32 %v163, 0.0
  %v228 = vmax.f32 %v164, 0.0
  %v229 = vmax.f32 %v165, 0.0
  %v230 = vmax.f32 %v166, 0.0
  %v231 = vmax.f32 %v167, 0.0
  %v232 = vmax.f32 %v168, 0.0
  %v233 = vmax.f32 %v169, 0.0
  %v234 = vmax.f32 %v170, 0.0
  %v235 = vmax.f32 %v171, 0.0
  %v236 = vmax.f32 %v172, 0.0
  %v237 = vmax.f32 %v173, 0.0
  %v238 = vmax.f32 %v174, 0.0
  %v239 = vmax.f32 %v175, 0.0
  %v240 = vmax.f32 %v176, 0.0
  %v241 = vmax.f32 %v177, 0.0
  %v242 = vmax.f32 %v178, 0.0
  %v243 = vmax.f32 %v179, 0.0
  %v244 = vmax.f32 %v180, 0.0
  %v245 = vmax.f32 %v181, 0.0
  %v246 = vmax.f32 %v182, 0.0
  %v247 = vmax.f32 %v183, 0.0
  %v248 = vmax.f32 %v184, 0.0
  %v249 = vmax.f32 %v185, 0.0
  %v250 = vmax.f32 %v186, 0.0
  %v251 = vmax.f32 %v187, 0.0
  %v252 = vmax.f32 %v188, 0.0
  %v253 = vmax.f32 %v189, 0.0
  %v254 = vmax.f32 %v190, 0.0
  %v255 = vmax.f32 %v191, 0.0
  %v256 = vmax.f32 %v192, 0.0
  %v257 = vmax.f32 %v193, 0.0
  %v258 = vmax.f32 %v194, 0.0
  %v259 = vmax.f32 %v195, 0.0
  %v260 = vmax.f32 %v196, 0.0
  %v261 = vmax.f32 %v197, 0.0
  %v262 = vmax.f32 %v198, 0.0
  %v263 = vmax.f32 %v199, 0.0
  %v264 = vmax.f32 %v200, 0.0
  %v265 = vmax.f32 %v201, 0.0
  %v266 = vmax.f32 %v202, 0.0
  %v267 = vmax.f32 %v203, 0.0
  %v268 = vmax.f32 %v204, 0.0
  %v269 = vmax.f32 %v205, 0.0
  %v270 = vmax.f32 %v206, 0.0
  %v271 = vmax.f32 %v207, 0.0
  %v272 = vmax.f32 %v208, 0.0
  %v273 = vmax.f32 %v209, 0.0
  %v274 = vmax.f32 %v210, 0.0
  %v275 = vmax.f32 %v211, 0.0
  %v276 = vmax.f32 %v212, 0.0
  %v277 = vmax.f32 %v213, 0.0
  %v278 = vmax.f32 %v214, 0.0
  %v279 = vmax.f32 %v215, 0.0
  %v280 = vmax.f32 %v216, 0.0
  %v281 = vmax.f32 %v217, 0.0
  %v282 = vmax.f32 %v218, 0.0
  %v283 = vmax.f32 %v219, 0.0
  %v284 = vmax.f32 %v220, 0.0
  %v285 = vmax.f32 %v221, 0.0
  %v286 = vmax.f32 %v222, 0.0
  %v287 = vmax.f32 %v223, 0.0
  %v288 = vmax.f32 %v224, 0.0
  %v289 = vmax.f32 %v225, 0.0
  %v290 = vpack.c.bf16 %v227, %v226
  %v291 = vpack.c.bf16 %v229, %v228
  %v292 = vpack.c.bf16 %v231, %v230
  %v293 = vpack.c.bf16 %v233, %v232
  %v294 = vpack.c.bf16 %v235, %v234
  %v295 = vpack.c.bf16 %v237, %v236
  %v296 = vpack.c.bf16 %v239, %v238
  %v297 = vpack.c.bf16 %v241, %v240
  %v298 = vpack.c.bf16 %v243, %v242
  %v299 = vpack.c.bf16 %v245, %v244
  %v300 = vpack.c.bf16 %v247, %v246
  %v301 = vpack.c.bf16 %v249, %v248
  %v302 = vpack.c.bf16 %v251, %v250
  %v303 = vpack.c.bf16 %v253, %v252
  %v304 = vpack.c.bf16 %v255, %v254
  %v305 = vpack.c.bf16 %v257, %v256
  %v306 = vpack.c.bf16 %v259, %v258
  %v307 = vpack.c.bf16 %v261, %v260
  %v308 = vpack.c.bf16 %v263, %v262
  %v309 = vpack.c.bf16 %v265, %v264
  %v310 = vpack.c.bf16 %v267, %v266
  %v311 = vpack.c.bf16 %v269, %v268
  %v312 = vpack.c.bf16 %v271, %v270
  %v313 = vpack.c.bf16 %v273, %v272
  %v314 = vpack.c.bf16 %v275, %v274
  %v315 = vpack.c.bf16 %v277, %v276
  %v316 = vpack.c.bf16 %v279, %v278
  %v317 = vpack.c.bf16 %v281, %v280
  %v318 = vpack.c.bf16 %v283, %v282
  %v319 = vpack.c.bf16 %v285, %v284
  %v320 = vpack.c.bf16 %v287, %v286
  %v321 = vpack.c.bf16 %v289, %v288
  %v322 = vld [vmem:[%s3] sm:$0xf]
  %v323 = vld [vmem:[%s3 + $0x4] sm:$0xf]
  %v324 = vld [vmem:[%s3 + $0x8] sm:$0xf]
  %v328 = vunpack.c.l.b16 %v322
  %v329 = vunpack.c.l.b16 %v323
  %v330 = vunpack.c.l.b16 %v324
  %v331 = vpack.c.b16 %v329, %v328
  %v332 = vpack.c.b16 %v330, %v330
  %vm334 = vcmask 195584
  %v336 = vsel %vm334, %v290, 0
  %v339 = vsel %vm334, %v291, 0
  %v342 = vsel %vm334, %v292, 0
  %v345 = vsel %vm334, %v293, 0
  %v348 = vsel %vm334, %v294, 0
  %v351 = vsel %vm334, %v295, 0
  %v354 = vsel %vm334, %v296, 0
  %v357 = vsel %vm334, %v297, 0
  %v360 = vsel %vm334, %v298, 0
  %v363 = vsel %vm334, %v299, 0
  %v366 = vsel %vm334, %v300, 0
  %v369 = vsel %vm334, %v301, 0
  %v372 = vsel %vm334, %v302, 0
  %v375 = vsel %vm334, %v303, 0
  %v378 = vsel %vm334, %v304, 0
  %v381 = vsel %vm334, %v305, 0
  %v384 = vsel %vm334, %v306, 0
  %v387 = vsel %vm334, %v307, 0
  %v390 = vsel %vm334, %v308, 0
  %v393 = vsel %vm334, %v309, 0
  %v396 = vsel %vm334, %v310, 0
  %v399 = vsel %vm334, %v311, 0
  %v402 = vsel %vm334, %v312, 0
  %v405 = vsel %vm334, %v313, 0
  %v408 = vsel %vm334, %v314, 0
  %v411 = vsel %vm334, %v315, 0
  %v414 = vsel %vm334, %v316, 0
  %v417 = vsel %vm334, %v317, 0
  %v420 = vsel %vm334, %v318, 0
  %v423 = vsel %vm334, %v319, 0
  %v426 = vsel %vm334, %v320, 0
  %v429 = vsel %vm334, %v321, 0
  %vm431 = vcmask 1043456
  %v433 = vsel %vm431, %v332, 0
  %435 = vmatprep.subr.bf16.mxu0 0
  %436 = vmatpush1.bf16.msra.mxu0 %v331
  %437 = vmatprep.subr.bf16.mxu0 0
  %438 = vmatpush1.bf16.msra.mxu0 %v433
  %439 = vmatprep.subr.bf16.mxu0 0
  %440 = vmatpush1.bf16.msra.mxu0 0
  %441 = vmatprep.subr.bf16.mxu0 0
  %442 = vmatpush1.bf16.msra.mxu0 0
  %443 = vmatprep.subr.bf16.mxu0 0
  %444 = vmatpush1.bf16.msra.mxu0 0
  %445 = vmatprep.subr.bf16.mxu0 0
  %446 = vmatpush1.bf16.msra.mxu0 0
  %447 = vmatprep.subr.bf16.mxu0 0
  %448 = vmatpush1.bf16.msra.mxu0 0
  %449 = vmatprep.subr.bf16.mxu0 0
  %450 = vmatpush1.bf16.msra.mxu0 0
  %451 = vmatprep.subr.bf16.mxu0 0
  %452 = vmatpush1.bf16.msra.mxu0 0
  %453 = vmatprep.subr.bf16.mxu0 0
  %454 = vmatpush1.bf16.msra.mxu0 0
  %455 = vmatprep.subr.bf16.mxu0 0
  %456 = vmatpush1.bf16.msra.mxu0 0
  %457 = vmatprep.subr.bf16.mxu0 0
  %458 = vmatpush1.bf16.msra.mxu0 0
  %459 = vmatprep.subr.bf16.mxu0 0
  %460 = vmatpush1.bf16.msra.mxu0 0
  %461 = vmatprep.subr.bf16.mxu0 0
  %462 = vmatpush1.bf16.msra.mxu0 0
  %463 = vmatprep.subr.bf16.mxu0 0
  %464 = vmatpush1.bf16.msra.mxu0 0
  %465 = vmatprep.subr.bf16.mxu0 0
  %466 = vmatpush1.bf16.msra.mxu0 0
  %467 = vmatprep.mubr.bf16.mxu0 0
  %468 = vmatmul.mubr.bf16.gmra.mrb[0].mxu0 %v336
  %v469 = vpop.f32.mrb[0].mxu0
  %v470 = vadd.f32 0.0, %v469
  %v471 = vpop.f32.mrb[0].mxu0
  %v472 = vpop.f32.mrb[0].mxu0
  %v473 = vadd.f32 0.0, %v472
  %v474 = vpop.f32.mrb[0].mxu0
  %475 = vmatprep.mubr.bf16.mxu0 0
  %476 = vmatmul.mubr.bf16.gmra.mrb[0].mxu0 %v339
  %v477 = vpop.f32.mrb[0].mxu0
  %v478 = vadd.f32 0.0, %v477
  %v479 = vpop.f32.mrb[0].mxu0
  %v480 = vpop.f32.mrb[0].mxu0
  %v481 = vadd.f32 0.0, %v480
  %v482 = vpop.f32.mrb[0].mxu0
  %483 = vmatprep.mubr.bf16.mxu0 0
  %484 = vmatmul.mubr.bf16.gmra.mrb[0].mxu0 %v342
  %v485 = vpop.f32.mrb[0].mxu0
  %v486 = vadd.f32 0.0, %v485
  %v487 = vpop.f32.mrb[0].mxu0
  %v488 = vpop.f32.mrb[0].mxu0
  %v489 = vadd.f32 0.0, %v488
  %v490 = vpop.f32.mrb[0].mxu0
  %491 = vmatprep.mubr.bf16.mxu0 0
  %492 = vmatmul.mubr.bf16.gmra.mrb[0].mxu0 %v345
  %v493 = vpop.f32.mrb[0].mxu0
  %v494 = vadd.f32 0.0, %v493
  %v495 = vpop.f32.mrb[0].mxu0
  %v496 = vpop.f32.mrb[0].mxu0
  %v497 = vadd.f32 0.0, %v496
  %v498 = vpop.f32.mrb[0].mxu0
  %499 = vmatprep.mubr.bf16.mxu0 0
  %500 = vmatmul.mubr.bf16.gmra.mrb[0].mxu0 %v348
  %v501 = vpop.f32.mrb[0].mxu0
  %v502 = vadd.f32 0.0, %v501
  %v503 = vpop.f32.mrb[0].mxu0
  %v504 = vpop.f32.mrb[0].mxu0
  %v505 = vadd.f32 0.0, %v504
  %v506 = vpop.f32.mrb[0].mxu0
  %507 = vmatprep.mubr.bf16.mxu0 0
  %508 = vmatmul.mubr.bf16.gmra.mrb[0].mxu0 %v351
  %v509 = vpop.f32.mrb[0].mxu0
  %v510 = vadd.f32 0.0, %v509
  %v511 = vpop.f32.mrb[0].mxu0
  %v512 = vpop.f32.mrb[0].mxu0
  %v513 = vadd.f32 0.0, %v512
  %v514 = vpop.f32.mrb[0].mxu0
  %515 = vmatprep.mubr.bf16.mxu0 0
  %516 = vmatmul.mubr.bf16.gmra.mrb[0].mxu0 %v354
  %v517 = vpop.f32.mrb[0].mxu0
  %v518 = vadd.f32 0.0, %v517
  %v519 = vpop.f32.mrb[0].mxu0
  %v520 = vpop.f32.mrb[0].mxu0
  %v521 = vadd.f32 0.0, %v520
  %v522 = vpop.f32.mrb[0].mxu0
  %523 = vmatprep.mubr.bf16.mxu0 0
  %524 = vmatmul.mubr.bf16.gmra.mrb[0].mxu0 %v357
  %v525 = vpop.f32.mrb[0].mxu0
  %v526 = vadd.f32 0.0, %v525
  %v527 = vpop.f32.mrb[0].mxu0
  %v528 = vpop.f32.mrb[0].mxu0
  %v529 = vadd.f32 0.0, %v528
  %v530 = vpop.f32.mrb[0].mxu0
  %531 = vmatprep.mubr.bf16.mxu0 0
  %532 = vmatmul.mubr.bf16.gmra.mrb[0].mxu0 %v360
  %v533 = vpop.f32.mrb[0].mxu0
  %v534 = vadd.f32 0.0, %v533
  %v535 = vpop.f32.mrb[0].mxu0
  %v536 = vpop.f32.mrb[0].mxu0
  %v537 = vadd.f32 0.0, %v536
  %v538 = vpop.f32.mrb[0].mxu0
  %539 = vmatprep.mubr.bf16.mxu0 0
  %540 = vmatmul.mubr.bf16.gmra.mrb[0].mxu0 %v363
  %v541 = vpop.f32.mrb[0].mxu0
  %v542 = vadd.f32 0.0, %v541
  %v543 = vpop.f32.mrb[0].mxu0
  %v544 = vpop.f32.mrb[0].mxu0
  %v545 = vadd.f32 0.0, %v544
  %v546 = vpop.f32.mrb[0].mxu0
  %547 = vmatprep.mubr.bf16.mxu0 0
  %548 = vmatmul.mubr.bf16.gmra.mrb[0].mxu0 %v366
  %v549 = vpop.f32.mrb[0].mxu0
  %v550 = vadd.f32 0.0, %v549
  %v551 = vpop.f32.mrb[0].mxu0
  %v552 = vpop.f32.mrb[0].mxu0
  %v553 = vadd.f32 0.0, %v552
  %v554 = vpop.f32.mrb[0].mxu0
  %555 = vmatprep.mubr.bf16.mxu0 0
  %556 = vmatmul.mubr.bf16.gmra.mrb[0].mxu0 %v369
  %v557 = vpop.f32.mrb[0].mxu0
  %v558 = vadd.f32 0.0, %v557
  %v559 = vpop.f32.mrb[0].mxu0
  %v560 = vpop.f32.mrb[0].mxu0
  %v561 = vadd.f32 0.0, %v560
  %v562 = vpop.f32.mrb[0].mxu0
  %563 = vmatprep.mubr.bf16.mxu0 0
  %564 = vmatmul.mubr.bf16.gmra.mrb[0].mxu0 %v372
  %v565 = vpop.f32.mrb[0].mxu0
  %v566 = vadd.f32 0.0, %v565
  %v567 = vpop.f32.mrb[0].mxu0
  %v568 = vpop.f32.mrb[0].mxu0
  %v569 = vadd.f32 0.0, %v568
  %v570 = vpop.f32.mrb[0].mxu0
  %571 = vmatprep.mubr.bf16.mxu0 0
  %572 = vmatmul.mubr.bf16.gmra.mrb[0].mxu0 %v375
  %v573 = vpop.f32.mrb[0].mxu0
  %v574 = vadd.f32 0.0, %v573
  %v575 = vpop.f32.mrb[0].mxu0
  %v576 = vpop.f32.mrb[0].mxu0
  %v577 = vadd.f32 0.0, %v576
  %v578 = vpop.f32.mrb[0].mxu0
  %579 = vmatprep.mubr.bf16.mxu0 0
  %580 = vmatmul.mubr.bf16.gmra.mrb[0].mxu0 %v378
  %v581 = vpop.f32.mrb[0].mxu0
  %v582 = vadd.f32 0.0, %v581
  %v583 = vpop.f32.mrb[0].mxu0
  %v584 = vpop.f32.mrb[0].mxu0
  %v585 = vadd.f32 0.0, %v584
  %v586 = vpop.f32.mrb[0].mxu0
  %587 = vmatprep.mubr.bf16.mxu0 0
  %588 = vmatmul.mubr.bf16.gmra.mrb[0].mxu0 %v381
  %v589 = vpop.f32.mrb[0].mxu0
  %v590 = vadd.f32 0.0, %v589
  %v591 = vpop.f32.mrb[0].mxu0
  %v592 = vpop.f32.mrb[0].mxu0
  %v593 = vadd.f32 0.0, %v592
  %v594 = vpop.f32.mrb[0].mxu0
  %595 = vmatprep.mubr.bf16.mxu0 0
  %596 = vmatmul.mubr.bf16.gmra.mrb[0].mxu0 %v384
  %v597 = vpop.f32.mrb[0].mxu0
  %v598 = vadd.f32 0.0, %v597
  %v599 = vpop.f32.mrb[0].mxu0
  %v600 = vpop.f32.mrb[0].mxu0
  %v601 = vadd.f32 0.0, %v600
  %v602 = vpop.f32.mrb[0].mxu0
  %603 = vmatprep.mubr.bf16.mxu0 0
  %604 = vmatmul.mubr.bf16.gmra.mrb[0].mxu0 %v387
  %v605 = vpop.f32.mrb[0].mxu0
  %v606 = vadd.f32 0.0, %v605
  %v607 = vpop.f32.mrb[0].mxu0
  %v608 = vpop.f32.mrb[0].mxu0
  %v609 = vadd.f32 0.0, %v608
  %v610 = vpop.f32.mrb[0].mxu0
  %611 = vmatprep.mubr.bf16.mxu0 0
  %612 = vmatmul.mubr.bf16.gmra.mrb[0].mxu0 %v390
  %v613 = vpop.f32.mrb[0].mxu0
  %v614 = vadd.f32 0.0, %v613
  %v615 = vpop.f32.mrb[0].mxu0
  %v616 = vpop.f32.mrb[0].mxu0
  %v617 = vadd.f32 0.0, %v616
  %v618 = vpop.f32.mrb[0].mxu0
  %619 = vmatprep.mubr.bf16.mxu0 0
  %620 = vmatmul.mubr.bf16.gmra.mrb[0].mxu0 %v393
  %v621 = vpop.f32.mrb[0].mxu0
  %v622 = vadd.f32 0.0, %v621
  %v623 = vpop.f32.mrb[0].mxu0
  %v624 = vpop.f32.mrb[0].mxu0
  %v625 = vadd.f32 0.0, %v624
  %v626 = vpop.f32.mrb[0].mxu0
  %627 = vmatprep.mubr.bf16.mxu0 0
  %628 = vmatmul.mubr.bf16.gmra.mrb[0].mxu0 %v396
  %v629 = vpop.f32.mrb[0].mxu0
  %v630 = vadd.f32 0.0, %v629
  %v631 = vpop.f32.mrb[0].mxu0
  %v632 = vpop.f32.mrb[0].mxu0
  %v633 = vadd.f32 0.0, %v632
  %v634 = vpop.f32.mrb[0].mxu0
  %635 = vmatprep.mubr.bf16.mxu0 0
  %636 = vmatmul.mubr.bf16.gmra.mrb[0].mxu0 %v399
  %v637 = vpop.f32.mrb[0].mxu0
  %v638 = vadd.f32 0.0, %v637
  %v639 = vpop.f32.mrb[0].mxu0
  %v640 = vpop.f32.mrb[0].mxu0
  %v641 = vadd.f32 0.0, %v640
  %v642 = vpop.f32.mrb[0].mxu0
  %643 = vmatprep.mubr.bf16.mxu0 0
  %644 = vmatmul.mubr.bf16.gmra.mrb[0].mxu0 %v402
  %v645 = vpop.f32.mrb[0].mxu0
  %v646 = vadd.f32 0.0, %v645
  %v647 = vpop.f32.mrb[0].mxu0
  %v648 = vpop.f32.mrb[0].mxu0
  %v649 = vadd.f32 0.0, %v648
  %v650 = vpop.f32.mrb[0].mxu0
  %651 = vmatprep.mubr.bf16.mxu0 0
  %652 = vmatmul.mubr.bf16.gmra.mrb[0].mxu0 %v405
  %v653 = vpop.f32.mrb[0].mxu0
  %v654 = vadd.f32 0.0, %v653
  %v655 = vpop.f32.mrb[0].mxu0
  %v656 = vpop.f32.mrb[0].mxu0
  %v657 = vadd.f32 0.0, %v656
  %v658 = vpop.f32.mrb[0].mxu0
  %659 = vmatprep.mubr.bf16.mxu0 0
  %660 = vmatmul.mubr.bf16.gmra.mrb[0].mxu0 %v408
  %v661 = vpop.f32.mrb[0].mxu0
  %v662 = vadd.f32 0.0, %v661
  %v663 = vpop.f32.mrb[0].mxu0
  %v664 = vpop.f32.mrb[0].mxu0
  %v665 = vadd.f32 0.0, %v664
  %v666 = vpop.f32.mrb[0].mxu0
  %667 = vmatprep.mubr.bf16.mxu0 0
  %668 = vmatmul.mubr.bf16.gmra.mrb[0].mxu0 %v411
  %v669 = vpop.f32.mrb[0].mxu0
  %v670 = vadd.f32 0.0, %v669
  %v671 = vpop.f32.mrb[0].mxu0
  %v672 = vpop.f32.mrb[0].mxu0
  %v673 = vadd.f32 0.0, %v672
  %v674 = vpop.f32.mrb[0].mxu0
  %675 = vmatprep.mubr.bf16.mxu0 0
  %676 = vmatmul.mubr.bf16.gmra.mrb[0].mxu0 %v414
  %v677 = vpop.f32.mrb[0].mxu0
  %v678 = vadd.f32 0.0, %v677
  %v679 = vpop.f32.mrb[0].mxu0
  %v680 = vpop.f32.mrb[0].mxu0
  %v681 = vadd.f32 0.0, %v680
  %v682 = vpop.f32.mrb[0].mxu0
  %683 = vmatprep.mubr.bf16.mxu0 0
  %684 = vmatmul.mubr.bf16.gmra.mrb[0].mxu0 %v417
  %v685 = vpop.f32.mrb[0].mxu0
  %v686 = vadd.f32 0.0, %v685
  %v687 = vpop.f32.mrb[0].mxu0
  %v688 = vpop.f32.mrb[0].mxu0
  %v689 = vadd.f32 0.0, %v688
  %v690 = vpop.f32.mrb[0].mxu0
  %691 = vmatprep.mubr.bf16.mxu0 0
  %692 = vmatmul.mubr.bf16.gmra.mrb[0].mxu0 %v420
  %v693 = vpop.f32.mrb[0].mxu0
  %v694 = vadd.f32 0.0, %v693
  %v695 = vpop.f32.mrb[0].mxu0
  %v696 = vpop.f32.mrb[0].mxu0
  %v697 = vadd.f32 0.0, %v696
  %v698 = vpop.f32.mrb[0].mxu0
  %699 = vmatprep.mubr.bf16.mxu0 0
  %700 = vmatmul.mubr.bf16.gmra.mrb[0].mxu0 %v423
  %v701 = vpop.f32.mrb[0].mxu0
  %v702 = vadd.f32 0.0, %v701
  %v703 = vpop.f32.mrb[0].mxu0
  %v704 = vpop.f32.mrb[0].mxu0
  %v705 = vadd.f32 0.0, %v704
  %v706 = vpop.f32.mrb[0].mxu0
  %707 = vmatprep.mubr.bf16.mxu0 0
  %708 = vmatmul.mubr.bf16.gmra.mrb[0].mxu0 %v426
  %v709 = vpop.f32.mrb[0].mxu0
  %v710 = vadd.f32 0.0, %v709
  %v711 = vpop.f32.mrb[0].mxu0
  %v712 = vpop.f32.mrb[0].mxu0
  %v713 = vadd.f32 0.0, %v712
  %v714 = vpop.f32.mrb[0].mxu0
  %715 = vmatprep.mubr.bf16.mxu0 0
  %716 = vmatmul.mubr.bf16.gmra.mrb[0].mxu0 %v429
  %v717 = vpop.f32.mrb[0].mxu0
  %v718 = vadd.f32 0.0, %v717
  %v719 = vpop.f32.mrb[0].mxu0
  %v720 = vpop.f32.mrb[0].mxu0
  %v721 = vadd.f32 0.0, %v720
  %v722 = vpop.f32.mrb[0].mxu0
  %723 = vdwg.mxu0
  %724 = vst [vmem:[%s4] sm:$0xff] %v470
  %725 = vst [vmem:[%s4 + $0x8] sm:$0xff] %v473
  %726 = vst [vmem:[%s4 + $0x10] sm:$0xff] %v478
  %727 = vst [vmem:[%s4 + $0x18] sm:$0xff] %v481
  %728 = vst [vmem:[%s4 + $0x20] sm:$0xff] %v486
  %729 = vst [vmem:[%s4 + $0x28] sm:$0xff] %v489
  %730 = vst [vmem:[%s4 + $0x30] sm:$0xff] %v494
  %731 = vst [vmem:[%s4 + $0x38] sm:$0xff] %v497
  %732 = vst [vmem:[%s4 + $0x40] sm:$0xff] %v502
  %733 = vst [vmem:[%s4 + $0x48] sm:$0xff] %v505
  %734 = vst [vmem:[%s4 + $0x50] sm:$0xff] %v510
  %735 = vst [vmem:[%s4 + $0x58] sm:$0xff] %v513
  %736 = vst [vmem:[%s4 + $0x60] sm:$0xff] %v518
  %737 = vst [vmem:[%s4 + $0x68] sm:$0xff] %v521
  %738 = vst [vmem:[%s4 + $0x70] sm:$0xff] %v526
  %739 = vst [vmem:[%s4 + $0x78] sm:$0xff] %v529
  %740 = vst [vmem:[%s4 + $0x80] sm:$0xff] %v534
  %741 = vst [vmem:[%s4 + $0x88] sm:$0xff] %v537
  %742 = vst [vmem:[%s4 + $0x90] sm:$0xff] %v542
  %743 = vst [vmem:[%s4 + $0x98] sm:$0xff] %v545
  %744 = vst [vmem:[%s4 + $0xa0] sm:$0xff] %v550
  %745 = vst [vmem:[%s4 + $0xa8] sm:$0xff] %v553
  %746 = vst [vmem:[%s4 + $0xb0] sm:$0xff] %v558
  %747 = vst [vmem:[%s4 + $0xb8] sm:$0xff] %v561
  %748 = vst [vmem:[%s4 + $0xc0] sm:$0xff] %v566
  %749 = vst [vmem:[%s4 + $0xc8] sm:$0xff] %v569
  %750 = vst [vmem:[%s4 + $0xd0] sm:$0xff] %v574
  %751 = vst [vmem:[%s4 + $0xd8] sm:$0xff] %v577
  %752 = vst [vmem:[%s4 + $0xe0] sm:$0xff] %v582
  %753 = vst [vmem:[%s4 + $0xe8] sm:$0xff] %v585
  %754 = vst [vmem:[%s4 + $0xf0] sm:$0xff] %v590
  %755 = vst [vmem:[%s4 + $0xf8] sm:$0xff] %v593
  %756 = vst [vmem:[%s4 + $0x100] sm:$0xff] %v598
  %757 = vst [vmem:[%s4 + $0x108] sm:$0xff] %v601
  %758 = vst [vmem:[%s4 + $0x110] sm:$0xff] %v606
  %759 = vst [vmem:[%s4 + $0x118] sm:$0xff] %v609
  %760 = vst [vmem:[%s4 + $0x120] sm:$0xff] %v614
  %761 = vst [vmem:[%s4 + $0x128] sm:$0xff] %v617
  %762 = vst [vmem:[%s4 + $0x130] sm:$0xff] %v622
  %763 = vst [vmem:[%s4 + $0x138] sm:$0xff] %v625
  %764 = vst [vmem:[%s4 + $0x140] sm:$0xff] %v630
  %765 = vst [vmem:[%s4 + $0x148] sm:$0xff] %v633
  %766 = vst [vmem:[%s4 + $0x150] sm:$0xff] %v638
  %767 = vst [vmem:[%s4 + $0x158] sm:$0xff] %v641
  %768 = vst [vmem:[%s4 + $0x160] sm:$0xff] %v646
  %769 = vst [vmem:[%s4 + $0x168] sm:$0xff] %v649
  %770 = vst [vmem:[%s4 + $0x170] sm:$0xff] %v654
  %771 = vst [vmem:[%s4 + $0x178] sm:$0xff] %v657
  %772 = vst [vmem:[%s4 + $0x180] sm:$0xff] %v662
  %773 = vst [vmem:[%s4 + $0x188] sm:$0xff] %v665
  %774 = vst [vmem:[%s4 + $0x190] sm:$0xff] %v670
  %775 = vst [vmem:[%s4 + $0x198] sm:$0xff] %v673
  %776 = vst [vmem:[%s4 + $0x1a0] sm:$0xff] %v678
  %777 = vst [vmem:[%s4 + $0x1a8] sm:$0xff] %v681
  %778 = vst [vmem:[%s4 + $0x1b0] sm:$0xff] %v686
  %779 = vst [vmem:[%s4 + $0x1b8] sm:$0xff] %v689
  %780 = vst [vmem:[%s4 + $0x1c0] sm:$0xff] %v694
  %781 = vst [vmem:[%s4 + $0x1c8] sm:$0xff] %v697
  %782 = vst [vmem:[%s4 + $0x1d0] sm:$0xff] %v702
  %783 = vst [vmem:[%s4 + $0x1d8] sm:$0xff] %v705
  %784 = vst [vmem:[%s4 + $0x1e0] sm:$0xff] %v710
  %785 = vst [vmem:[%s4 + $0x1e8] sm:$0xff] %v713
  %786 = vst [vmem:[%s4 + $0x1f0] sm:$0xff] %v718
  %787 = vst [vmem:[%s4 + $0x1f8] sm:$0xff] %v721
  %v788 = vadd.f32 %v470, %v473
  %v789 = vadd.f32 %v788, %v478
  %v790 = vadd.f32 %v789, %v481
  %v791 = vadd.f32 %v790, %v486
  %v792 = vadd.f32 %v791, %v489
  %v793 = vadd.f32 %v792, %v494
  %v794 = vadd.f32 %v793, %v497
  %v795 = vadd.f32 %v794, %v502
  %v796 = vadd.f32 %v795, %v505
  %v797 = vadd.f32 %v796, %v510
  %v798 = vadd.f32 %v797, %v513
  %v799 = vadd.f32 %v798, %v518
  %v800 = vadd.f32 %v799, %v521
  %v801 = vadd.f32 %v800, %v526
  %v802 = vadd.f32 %v801, %v529
  %v803 = vadd.f32 %v802, %v534
  %v804 = vadd.f32 %v803, %v537
  %v805 = vadd.f32 %v804, %v542
  %v806 = vadd.f32 %v805, %v545
  %v807 = vadd.f32 %v806, %v550
  %v808 = vadd.f32 %v807, %v553
  %v809 = vadd.f32 %v808, %v558
  %v810 = vadd.f32 %v809, %v561
  %v811 = vadd.f32 %v810, %v566
  %v812 = vadd.f32 %v811, %v569
  %v813 = vadd.f32 %v812, %v574
  %v814 = vadd.f32 %v813, %v577
  %v815 = vadd.f32 %v814, %v582
  %v816 = vadd.f32 %v815, %v585
  %v817 = vadd.f32 %v816, %v590
  %v818 = vadd.f32 %v817, %v593
  %v819 = vadd.f32 %v818, %v598
  %v820 = vadd.f32 %v819, %v601
  %v821 = vadd.f32 %v820, %v606
  %v822 = vadd.f32 %v821, %v609
  %v823 = vadd.f32 %v822, %v614
  %v824 = vadd.f32 %v823, %v617
  %v825 = vadd.f32 %v824, %v622
  %v826 = vadd.f32 %v825, %v625
  %v827 = vadd.f32 %v826, %v630
  %v828 = vadd.f32 %v827, %v633
  %v829 = vadd.f32 %v828, %v638
  %v830 = vadd.f32 %v829, %v641
  %v831 = vadd.f32 %v830, %v646
  %v832 = vadd.f32 %v831, %v649
  %v833 = vadd.f32 %v832, %v654
  %v834 = vadd.f32 %v833, %v657
  %v835 = vadd.f32 %v834, %v662
  %v836 = vadd.f32 %v835, %v665
  %v837 = vadd.f32 %v836, %v670
  %v838 = vadd.f32 %v837, %v673
  %v839 = vadd.f32 %v838, %v678
  %v840 = vadd.f32 %v839, %v681
  %v841 = vadd.f32 %v840, %v686
  %v842 = vadd.f32 %v841, %v689
  %v843 = vadd.f32 %v842, %v694
  %v844 = vadd.f32 %v843, %v697
  %v845 = vadd.f32 %v844, %v702
  %v846 = vadd.f32 %v845, %v705
  %v847 = vadd.f32 %v846, %v710
  %v848 = vadd.f32 %v847, %v713
  %v849 = vadd.f32 %v848, %v718
  %v850 = vadd.f32 %v849, %v721
  %v851 = vrot.slane %v850, 4
  %v852 = vadd.f32 %v850, %v851
  %v853 = vrot.slane %v852, 2
  %v854 = vadd.f32 %v852, %v853
  %v855 = vrot.slane %v854, 1
  %v856 = vadd.f32 %v854, %v855
  %v857 = vmul.f32 %v470, %v470
  %v858 = vmul.f32 %v473, %v473
  %v859 = vmul.f32 %v478, %v478
  %v860 = vmul.f32 %v481, %v481
  %v861 = vmul.f32 %v486, %v486
  %v862 = vmul.f32 %v489, %v489
  %v863 = vmul.f32 %v494, %v494
  %v864 = vmul.f32 %v497, %v497
  %v865 = vmul.f32 %v502, %v502
  %v866 = vmul.f32 %v505, %v505
  %v867 = vmul.f32 %v510, %v510
  %v868 = vmul.f32 %v513, %v513
  %v869 = vmul.f32 %v518, %v518
  %v870 = vmul.f32 %v521, %v521
  %v871 = vmul.f32 %v526, %v526
  %v872 = vmul.f32 %v529, %v529
  %v873 = vmul.f32 %v534, %v534
  %v874 = vmul.f32 %v537, %v537
  %v875 = vmul.f32 %v542, %v542
  %v876 = vmul.f32 %v545, %v545
  %v877 = vmul.f32 %v550, %v550
  %v878 = vmul.f32 %v553, %v553
  %v879 = vmul.f32 %v558, %v558
  %v880 = vmul.f32 %v561, %v561
  %v881 = vmul.f32 %v566, %v566
  %v882 = vmul.f32 %v569, %v569
  %v883 = vmul.f32 %v574, %v574
  %v884 = vmul.f32 %v577, %v577
  %v885 = vmul.f32 %v582, %v582
  %v886 = vmul.f32 %v585, %v585
  %v887 = vmul.f32 %v590, %v590
  %v888 = vmul.f32 %v593, %v593
  %v889 = vmul.f32 %v598, %v598
  %v890 = vmul.f32 %v601, %v601
  %v891 = vmul.f32 %v606, %v606
  %v892 = vmul.f32 %v609, %v609
  %v893 = vmul.f32 %v614, %v614
  %v894 = vmul.f32 %v617, %v617
  %v895 = vmul.f32 %v622, %v622
  %v896 = vmul.f32 %v625, %v625
  %v897 = vmul.f32 %v630, %v630
  %v898 = vmul.f32 %v633, %v633
  %v899 = vmul.f32 %v638, %v638
  %v900 = vmul.f32 %v641, %v641
  %v901 = vmul.f32 %v646, %v646
  %v902 = vmul.f32 %v649, %v649
  %v903 = vmul.f32 %v654, %v654
  %v904 = vmul.f32 %v657, %v657
  %v905 = vmul.f32 %v662, %v662
  %v906 = vmul.f32 %v665, %v665
  %v907 = vmul.f32 %v670, %v670
  %v908 = vmul.f32 %v673, %v673
  %v909 = vmul.f32 %v678, %v678
  %v910 = vmul.f32 %v681, %v681
  %v911 = vmul.f32 %v686, %v686
  %v912 = vmul.f32 %v689, %v689
  %v913 = vmul.f32 %v694, %v694
  %v914 = vmul.f32 %v697, %v697
  %v915 = vmul.f32 %v702, %v702
  %v916 = vmul.f32 %v705, %v705
  %v917 = vmul.f32 %v710, %v710
  %v918 = vmul.f32 %v713, %v713
  %v919 = vmul.f32 %v718, %v718
  %v920 = vmul.f32 %v721, %v721
  %v921 = vadd.f32 %v857, %v858
  %v922 = vadd.f32 %v921, %v859
  %v923 = vadd.f32 %v922, %v860
  %v924 = vadd.f32 %v923, %v861
  %v925 = vadd.f32 %v924, %v862
  %v926 = vadd.f32 %v925, %v863
  %v927 = vadd.f32 %v926, %v864
  %v928 = vadd.f32 %v927, %v865
  %v929 = vadd.f32 %v928, %v866
  %v930 = vadd.f32 %v929, %v867
  %v931 = vadd.f32 %v930, %v868
  %v932 = vadd.f32 %v931, %v869
  %v933 = vadd.f32 %v932, %v870
  %v934 = vadd.f32 %v933, %v871
  %v935 = vadd.f32 %v934, %v872
  %v936 = vadd.f32 %v935, %v873
  %v937 = vadd.f32 %v936, %v874
  %v938 = vadd.f32 %v937, %v875
  %v939 = vadd.f32 %v938, %v876
  %v940 = vadd.f32 %v939, %v877
  %v941 = vadd.f32 %v940, %v878
  %v942 = vadd.f32 %v941, %v879
  %v943 = vadd.f32 %v942, %v880
  %v944 = vadd.f32 %v943, %v881
  %v945 = vadd.f32 %v944, %v882
  %v946 = vadd.f32 %v945, %v883
  %v947 = vadd.f32 %v946, %v884
  %v948 = vadd.f32 %v947, %v885
  %v949 = vadd.f32 %v948, %v886
  %v950 = vadd.f32 %v949, %v887
  %v951 = vadd.f32 %v950, %v888
  %v952 = vadd.f32 %v951, %v889
  %v953 = vadd.f32 %v952, %v890
  %v954 = vadd.f32 %v953, %v891
  %v955 = vadd.f32 %v954, %v892
  %v956 = vadd.f32 %v955, %v893
  %v957 = vadd.f32 %v956, %v894
  %v958 = vadd.f32 %v957, %v895
  %v959 = vadd.f32 %v958, %v896
  %v960 = vadd.f32 %v959, %v897
  %v961 = vadd.f32 %v960, %v898
  %v962 = vadd.f32 %v961, %v899
  %v963 = vadd.f32 %v962, %v900
  %v964 = vadd.f32 %v963, %v901
  %v965 = vadd.f32 %v964, %v902
  %v966 = vadd.f32 %v965, %v903
  %v967 = vadd.f32 %v966, %v904
  %v968 = vadd.f32 %v967, %v905
  %v969 = vadd.f32 %v968, %v906
  %v970 = vadd.f32 %v969, %v907
  %v971 = vadd.f32 %v970, %v908
  %v972 = vadd.f32 %v971, %v909
  %v973 = vadd.f32 %v972, %v910
  %v974 = vadd.f32 %v973, %v911
  %v975 = vadd.f32 %v974, %v912
  %v976 = vadd.f32 %v975, %v913
  %v977 = vadd.f32 %v976, %v914
  %v978 = vadd.f32 %v977, %v915
  %v979 = vadd.f32 %v978, %v916
  %v980 = vadd.f32 %v979, %v917
  %v981 = vadd.f32 %v980, %v918
  %v982 = vadd.f32 %v981, %v919
  %v983 = vadd.f32 %v982, %v920
  %v984 = vrot.slane %v983, 4
  %v985 = vadd.f32 %v983, %v984
  %v986 = vrot.slane %v985, 2
  %v987 = vadd.f32 %v985, %v986
  %v988 = vrot.slane %v987, 1
  %v989 = vadd.f32 %v987, %v988
  %vm990 = vcmask 1040384
  %v991 = vsel %vm990, %v856, %v989
  %992 = vst [vmem:[%s5] sm:$0x3] %v991
  // Predicated region
  $region18: #{dense_block_forward.10} parent=0 // pred_check
    _
  $region19: #{dense_block_forward.10} parent=0 // pred_check_branch
    %994 = sbr.rel (0) target = $region21
  $region20: #{dense_block_forward.10} parent=0 // pred_region
    _
  $region21: #{dense_block_forward.10} parent=0 // pred_fallthru
    _
  // Predicated region
  $region22: #{dense_block_forward.10} parent=0 // pred_check
    _
  $region23: #{dense_block_forward.10} parent=0 // pred_check_branch
    %996 = sbr.rel (0) target = $region25
  $region24: #{dense_block_forward.10} parent=0 // pred_region
    _
  $region25: #{dense_block_forward.10} parent=0 // pred_fallthru
    _
  // Predicated region
  $region26: #{dense_block_forward.10} parent=0 // pred_check
    _
  $region27: #{dense_block_forward.10} parent=0 // pred_check_branch
    %998 = sbr.rel (0) target = $region29
  $region28: #{dense_block_forward.10} parent=0 // pred_region
    _
  $region29: #{dense_block_forward.10} parent=0 // pred_fallthru
    _
  // Predicated region
  $region30: #{dense_block_forward.10} parent=0 // pred_check
    _
  $region31: #{dense_block_forward.10} parent=0 // pred_check_branch
    %1000 = sbr.rel (0) target = $region33
  $region32: #{dense_block_forward.10} parent=0 // pred_region
    _
  $region33: #{dense_block_forward.10} parent=0 // pred_fallthru
    _

// kernel: dense_block_forward.9
$region0: #{dense_block_forward.9}
  #allocation0 [shape = 'u32[]', space=smem, size = 0x4, offset = 0x4, fixed_abs, tag = 'smem constant byte address 0x4 - core index']
  #allocation1 [shape = 'u32[144,128]{1,0:T(1,128)}', space=vmem, size = 0x12000, scoped, tag = 'internal scratch']
  %s0 = inlined_call_operand.vmem [shape: f32[2,256,128], index: 0, kind: input, shape index: {}]
  %s1 = inlined_call_operand.vmem [shape: f32[1,128], index: 1, kind: input, shape index: {}]
  %s2 = inlined_call_operand.vmem [shape: f32[1,128], index: 2, kind: input, shape index: {}]
  %s3 = inlined_call_operand.vmem [shape: bf16[1152,128], index: 3, kind: input, shape index: {}]
  %s4 = inlined_call_operand.vmem [shape: f32[2,256,128], index: 4, kind: output, shape index: {0}]
  %s5 = inlined_call_operand.vmem [shape: f32[2,2,128], index: 5, kind: output, shape index: {1}]
  %6 = xla_tuple %s4, %s5
  %s7 = sld [smem:[#allocation0]]
  $region57: #{dense_block_forward.9} parent=0
    _
  %s9 = ssub.s32 1, %s7
  %s10 = scalar_select 0, %s9, %s7
  loop: start=0, step=1, limit=4
  $region2: #{dense_block_forward.9} parent=0 // loop_pre_header
    _
  $region3: #{dense_block_forward.9} parent=0 // loop_header
    %s12 = sphi 0, %s16
    %p13 = scmp.ge.s32.totalorder %s12, 4
    %s22 = sphi 0, %s24
    %s25 = sphi 0, %s22
    %s26 = sphi 0, %s25
    %s42 = sphi 0, %s26
    %s46 = sphi 0, %s46
    %s48 = sphi 0, %s46
    %s49 = sphi 0, %s48
    %s63 = sphi 0, %s49
    %s67 = sphi 0, %s67
    %s69 = sphi 0, %s67
    %s70 = sphi 0, %s69
    %s84 = sphi 0, %s70
    %s88 = sphi 0, %s88
    %s90 = sphi 0, %s88
    %s91 = sphi 0, %s90
    %s105 = sphi 0, %s91
    %s111 = sphi 0, %s113
    %s114 = sphi 0, %s111
    %s115 = sphi 0, %s114
    %s131 = sphi 0, %s115
    %s137 = sphi 0, %s139
    %s140 = sphi 0, %s137
    %s141 = sphi 0, %s140
    %s157 = sphi 0, %s141
  $region4: #{dense_block_forward.9} parent=0 // loop_header_branch
    %15 = sbr.rel (%p13) target = $region8
  $region5: #{dense_block_forward.9} parent=0 // loop_body
    %s17 = ssub.s32 %s12, 1
    %s18 = ssub.s32 %s12, 2
    %s19 = sadd.s32 %s12, 1
    %s20 = ssub.s32 %s12, %s19
    %p21 = scmp.eq.s32.totalorder %s20, 0
    %s23 = sadd.s32 %s22, 1
    %s24 = scalar_select %p21, %s22, %s23
    %p27 = pneg %p21
    %p28 = scmp.eq.s32.totalorder %s12, 1
    %p29 = por %p27, %p28
    %p30 = scmp.ne.s32.totalorder %s22, %s25
    %p31 = scmp.eq.s32.totalorder %s12, 0
    %p32 = por %p30, %p31
    %p33 = scmp.ne.s32.totalorder %s22, %s25
    %p34 = scmp.eq.s32.totalorder %s17, 1
    %p35 = por %p33, %p34
    %p36 = scmp.ne.s32.totalorder %s25, %s26
    %p37 = scmp.eq.s32.totalorder %s17, 0
    %p38 = por %p36, %p37
    %p39 = scmp.ne.s32.totalorder %s25, %s26
    %p40 = scmp.eq.s32.totalorder %s18, 1
    %p41 = por %p39, %p40
    %p43 = scmp.ne.s32.totalorder %s26, %s42
    %p44 = scmp.eq.s32.totalorder %s18, 0
    %p45 = por %p43, %p44
    %s47 = sadd.s32 %s46, 1
    %p50 = scmp.eq.s32.totalorder %s12, 1
    %p51 = scmp.ne.s32.totalorder %s46, %s48
    %p52 = scmp.eq.s32.totalorder %s12, 0
    %p53 = por %p51, %p52
    %p54 = scmp.ne.s32.totalorder %s46, %s48
    %p55 = scmp.eq.s32.totalorder %s17, 1
    %p56 = por %p54, %p55
    %p57 = scmp.ne.s32.totalorder %s48, %s49
    %p58 = scmp.eq.s32.totalorder %s17, 0
    %p59 = por %p57, %p58
    %p60 = scmp.ne.s32.totalorder %s48, %s49
    %p61 = scmp.eq.s32.totalorder %s18, 1
    %p62 = por %p60, %p61
    %p64 = scmp.ne.s32.totalorder %s49, %s63
    %p65 = scmp.eq.s32.totalorder %s18, 0
    %p66 = por %p64, %p65
    %s68 = sadd.s32 %s67, 1
    %p71 = scmp.eq.s32.totalorder %s12, 1
    %p72 = scmp.ne.s32.totalorder %s67, %s69
    %p73 = scmp.eq.s32.totalorder %s12, 0
    %p74 = por %p72, %p73
    %p75 = scmp.ne.s32.totalorder %s67, %s69
    %p76 = scmp.eq.s32.totalorder %s17, 1
    %p77 = por %p75, %p76
    %p78 = scmp.ne.s32.totalorder %s69, %s70
    %p79 = scmp.eq.s32.totalorder %s17, 0
    %p80 = por %p78, %p79
    %p81 = scmp.ne.s32.totalorder %s69, %s70
    %p82 = scmp.eq.s32.totalorder %s18, 1
    %p83 = por %p81, %p82
    %p85 = scmp.ne.s32.totalorder %s70, %s84
    %p86 = scmp.eq.s32.totalorder %s18, 0
    %p87 = por %p85, %p86
    %s89 = sadd.s32 %s88, 1
    %p92 = scmp.eq.s32.totalorder %s12, 1
    %p93 = scmp.ne.s32.totalorder %s88, %s90
    %p94 = scmp.eq.s32.totalorder %s12, 0
    %p95 = por %p93, %p94
    %p96 = scmp.ne.s32.totalorder %s88, %s90
    %p97 = scmp.eq.s32.totalorder %s17, 1
    %p98 = por %p96, %p97
    %p99 = scmp.ne.s32.totalorder %s90, %s91
    %p100 = scmp.eq.s32.totalorder %s17, 0
    %p101 = por %p99, %p100
    %p102 = scmp.ne.s32.totalorder %s90, %s91
    %p103 = scmp.eq.s32.totalorder %s18, 1
    %p104 = por %p102, %p103
    %p106 = scmp.ne.s32.totalorder %s91, %s105
    %p107 = scmp.eq.s32.totalorder %s18, 0
    %p108 = por %p106, %p107
    %s109 = ssub.s32 %s12, %s19
    %p110 = scmp.eq.s32.totalorder %s109, 0
    %s112 = sadd.s32 %s111, 1
    %s113 = scalar_select %p110, %s111, %s112
    %p116 = pneg %p110
    %p117 = scmp.eq.s32.totalorder %s12, 1
    %p118 = por %p116, %p117
    %p119 = scmp.ne.s32.totalorder %s111, %s114
    %p120 = scmp.eq.s32.totalorder %s12, 0
    %p121 = por %p119, %p120
    %p122 = scmp.ne.s32.totalorder %s111, %s114
    %p123 = scmp.eq.s32.totalorder %s17, 1
    %p124 = por %p122, %p123
    %p125 = scmp.ne.s32.totalorder %s114, %s115
    %p126 = scmp.eq.s32.totalorder %s17, 0
    %p127 = por %p125, %p126
    %p128 = scmp.ne.s32.totalorder %s114, %s115
    %p129 = scmp.eq.s32.totalorder %s18, 1
    %p130 = por %p128, %p129
    %p132 = scmp.ne.s32.totalorder %s115, %s131
    %p133 = scmp.eq.s32.totalorder %s18, 0
    %p134 = por %p132, %p133
    %s135 = ssub.s32 %s12, %s19
    %p136 = scmp.eq.s32.totalorder %s135, 0
    %s138 = sadd.s32 %s137, 1
    %s139 = scalar_select %p136, %s137, %s138
    %p142 = pneg %p136
    %p143 = scmp.eq.s32.totalorder %s12, 1
    %p144 = por %p142, %p143
    %p145 = scmp.ne.s32.totalorder %s137, %s140
    %p146 = scmp.eq.s32.totalorder %s12, 0
    %p147 = por %p145, %p146
    %p148 = scmp.ne.s32.totalorder %s137, %s140
    %p149 = scmp.eq.s32.totalorder %s17, 1
    %p150 = por %p148, %p149
    %p151 = scmp.ne.s32.totalorder %s140, %s141
    %p152 = scmp.eq.s32.totalorder %s17, 0
    %p153 = por %p151, %p152
    %p154 = scmp.ne.s32.totalorder %s140, %s141
    %p155 = scmp.eq.s32.totalorder %s18, 1
    %p156 = por %p154, %p155
    %p158 = scmp.ne.s32.totalorder %s141, %s157
    %p159 = scmp.eq.s32.totalorder %s18, 0
    %p160 = por %p158, %p159
    %p161 = scmp.le.s32.totalorder 1, %s12
    %p162 = scmp.lt.s32.totalorder %s12, 3
    %p163 = pnand %p161, %p162
    %p164 = pneg %p163
    // Predicated region
    $region9: #{dense_block_forward.9} parent=5 // pred_check
      _
    $region10: #{dense_block_forward.9} parent=5 // pred_check_branch
      %166 = sbr.rel (%p163) target = $region12
    $region11: #{dense_block_forward.9} parent=5 // pred_region
      %s167 = ssub.s32 %s12, 1
      // Predicated region
      $region13: #{dense_block_forward.9} parent=11 // pred_check
        %p168 = pneg %p59
      $region14: #{dense_block_forward.9} parent=11 // pred_check_branch
        %170 = sbr.rel (%p168) target = $region16
      $region15: #{dense_block_forward.9} parent=11 // pred_region
        _
      $region16: #{dense_block_forward.9} parent=11 // pred_fallthru
        _
      // Predicated region
      $region17: #{dense_block_forward.9} parent=11 // pred_check
        %p171 = pneg %p80
      $region18: #{dense_block_forward.9} parent=11 // pred_check_branch
        %173 = sbr.rel (%p171) target = $region20
      $region19: #{dense_block_forward.9} parent=11 // pred_region
        _
      $region20: #{dense_block_forward.9} parent=11 // pred_fallthru
        _
      // Predicated region
      $region21: #{dense_block_forward.9} parent=11 // pred_check
        %p174 = pneg %p101
      $region22: #{dense_block_forward.9} parent=11 // pred_check_branch
        %176 = sbr.rel (%p174) target = $region24
      $region23: #{dense_block_forward.9} parent=11 // pred_region
        _
      $region24: #{dense_block_forward.9} parent=11 // pred_fallthru
        _
    $region12: #{dense_block_forward.9} parent=5 // pred_fallthru
      _
    %p177 = scmp.lt.s32.totalorder %s12, 2
    // Predicated region
    $region25: #{dense_block_forward.9} parent=5 // pred_check
      %p178 = pneg %p177
    $region26: #{dense_block_forward.9} parent=5 // pred_check_branch
      %180 = sbr.rel (%p178) target = $region28
    $region27: #{dense_block_forward.9} parent=5 // pred_region
      // Predicated region
      $region29: #{dense_block_forward.9} parent=27 // pred_check
        %p181 = pneg %p32
      $region30: #{dense_block_forward.9} parent=27 // pred_check_branch
        %183 = sbr.rel (%p181) target = $region32
      $region31: #{dense_block_forward.9} parent=27 // pred_region
        %p184 = scmp.lt.s32.totalorder %s12, 1
        %s185 = scalar_select %p184, %s12, 1
        %s186 = smul.addr %s185, 32
        %s187 = smul.addr %s186, 8
        %s188 = scalar_lea.vmem %s0, %s187
      $region32: #{dense_block_forward.9} parent=27 // pred_fallthru
        _
    $region28: #{dense_block_forward.9} parent=5 // pred_fallthru
      _
    %p189 = scmp.le.s32.totalorder 1, %s12
    %p190 = scmp.lt.s32.totalorder %s12, 3
    %p191 = pnand %p189, %p190
    %p192 = pneg %p191
    // Predicated region
    $region33: #{dense_block_forward.9} parent=5 // pred_check
      _
    $region34: #{dense_block_forward.9} parent=5 // pred_check_branch
      %194 = sbr.rel (%p191) target = $region36
    $region35: #{dense_block_forward.9} parent=5 // pred_region
      %s195 = ssub.s32 %s12, 1
      %p196 = scmp.lt.s32.totalorder %s17, 1
      %s197 = scalar_select %p196, %s17, 1
      %s198 = smul.addr %s197, 32
      %s199 = smul.addr %s198, 8
      %s200 = scalar_lea.vmem %s0, %s199
      %p201 = pneg %p38
      %p202 = pneg %p35
      %p203 = pneg %p59
      %p204 = pneg %p56
      %p205 = pneg %p80
      %p206 = pneg %p77
      %p207 = pneg %p101
      %p208 = pneg %p98
      %p209 = pneg %p127
      %p210 = pneg %p124
      %p211 = scmp.lt.s32.totalorder %s17, 1
      %s212 = scalar_select %p211, %s17, 1
      %s213 = smul.addr %s212, 32
      %s214 = smul.addr %s213, 8
      %s215 = scalar_lea.vmem %s4, %s214
      %p216 = pneg %p153
      %p217 = pneg %p150
      %p218 = scmp.lt.s32.totalorder %s17, 1
      %s219 = scalar_select %p218, %s17, 1
      %s220 = smul.addr %s219, 2
      %s221 = scalar_lea.vmem %s5, %s220
      %p222 = scmp.lt.s32.totalorder %s17, 1
      %s223 = scalar_select %p222, %s17, 1
      %s224 = smul.addr %s223, 32
      %s225 = smul.addr %s224, 8
      %s226 = scalar_lea.vmem %s0, %s225
      %p227 = scmp.lt.s32.totalorder %s17, 1
      %s228 = scalar_select %p227, %s17, 1
      %s229 = smul.addr %s228, 32
      %s230 = smul.addr %s229, 8
      %s231 = scalar_lea.vmem %s4, %s230
      %p232 = scmp.lt.s32.totalorder %s17, 1
      %s233 = scalar_select %p232, %s17, 1
      %s234 = smul.addr %s233, 2
      %s235 = scalar_lea.vmem %s5, %s234
      %v237 = vld [vmem:[%s226] sm:$0xff]
      %v238 = vld [vmem:[%s226 + $0x8] sm:$0xff]
      %v239 = vld [vmem:[%s226 + $0x10] sm:$0xff]
      %v240 = vld [vmem:[%s226 + $0x18] sm:$0xff]
      %v241 = vld [vmem:[%s226 + $0x20] sm:$0xff]
      %v242 = vld [vmem:[%s226 + $0x28] sm:$0xff]
      %v243 = vld [vmem:[%s226 + $0x30] sm:$0xff]
      %v244 = vld [vmem:[%s226 + $0x38] sm:$0xff]
      %v245 = vld [vmem:[%s226 + $0x40] sm:$0xff]
      %v246 = vld [vmem:[%s226 + $0x48] sm:$0xff]
      %v247 = vld [vmem:[%s226 + $0x50] sm:$0xff]
      %v248 = vld [vmem:[%s226 + $0x58] sm:$0xff]
      %v249 = vld [vmem:[%s226 + $0x60] sm:$0xff]
      %v250 = vld [vmem:[%s226 + $0x68] sm:$0xff]
      %v251 = vld [vmem:[%s226 + $0x70] sm:$0xff]
      %v252 = vld [vmem:[%s226 + $0x78] sm:$0xff]
      %v253 = vld [vmem:[%s226 + $0x80] sm:$0xff]
      %v254 = vld [vmem:[%s226 + $0x88] sm:$0xff]
      %v255 = vld [vmem:[%s226 + $0x90] sm:$0xff]
      %v256 = vld [vmem:[%s226 + $0x98] sm:$0xff]
      %v257 = vld [vmem:[%s226 + $0xa0] sm:$0xff]
      %v258 = vld [vmem:[%s226 + $0xa8] sm:$0xff]
      %v259 = vld [vmem:[%s226 + $0xb0] sm:$0xff]
      %v260 = vld [vmem:[%s226 + $0xb8] sm:$0xff]
      %v261 = vld [vmem:[%s226 + $0xc0] sm:$0xff]
      %v262 = vld [vmem:[%s226 + $0xc8] sm:$0xff]
      %v263 = vld [vmem:[%s226 + $0xd0] sm:$0xff]
      %v264 = vld [vmem:[%s226 + $0xd8] sm:$0xff]
      %v265 = vld [vmem:[%s226 + $0xe0] sm:$0xff]
      %v266 = vld [vmem:[%s226 + $0xe8] sm:$0xff]
      %v267 = vld [vmem:[%s226 + $0xf0] sm:$0xff]
      %v268 = vld [vmem:[%s226 + $0xf8] sm:$0xff]
      %v269 = vld [vmem:[%s1] sm:$0x1]
      %v271 = vlaneseq
      %v272 = vshrl.u32 %v271, 7
      %v273 = vsub.s32 0, %v272
      %v274 = vrot.slane %v269, %v273
      %v276 = vmul.f32 %v237, %v274
      %v277 = vmul.f32 %v238, %v274
      %v278 = vmul.f32 %v239, %v274
      %v279 = vmul.f32 %v240, %v274
      %v280 = vmul.f32 %v241, %v274
      %v281 = vmul.f32 %v242, %v274
      %v282 = vmul.f32 %v243, %v274
      %v283 = vmul.f32 %v244, %v274
      %v284 = vmul.f32 %v245, %v274
      %v285 = vmul.f32 %v246, %v274
      %v286 = vmul.f32 %v247, %v274
      %v287 = vmul.f32 %v248, %v274
      %v288 = vmul.f32 %v249, %v274
      %v289 = vmul.f32 %v250, %v274
      %v290 = vmul.f32 %v251, %v274
      %v291 = vmul.f32 %v252, %v274
      %v292 = vmul.f32 %v253, %v274
      %v293 = vmul.f32 %v254, %v274
      %v294 = vmul.f32 %v255, %v274
      %v295 = vmul.f32 %v256, %v274
      %v296 = vmul.f32 %v257, %v274
      %v297 = vmul.f32 %v258, %v274
      %v298 = vmul.f32 %v259, %v274
      %v299 = vmul.f32 %v260, %v274
      %v300 = vmul.f32 %v261, %v274
      %v301 = vmul.f32 %v262, %v274
      %v302 = vmul.f32 %v263, %v274
      %v303 = vmul.f32 %v264, %v274
      %v304 = vmul.f32 %v265, %v274
      %v305 = vmul.f32 %v266, %v274
      %v306 = vmul.f32 %v267, %v274
      %v307 = vmul.f32 %v268, %v274
      %v308 = vld [vmem:[%s2] sm:$0x1]
      %v310 = vlaneseq
      %v311 = vshrl.u32 %v310, 7
      %v312 = vsub.s32 0, %v311
      %v313 = vrot.slane %v308, %v312
      %v315 = vadd.f32 %v276, %v313
      %v316 = vadd.f32 %v277, %v313
      %v317 = vadd.f32 %v278, %v313
      %v318 = vadd.f32 %v279, %v313
      %v319 = vadd.f32 %v280, %v313
      %v320 = vadd.f32 %v281, %v313
      %v321 = vadd.f32 %v282, %v313
      %v322 = vadd.f32 %v283, %v313
      %v323 = vadd.f32 %v284, %v313
      %v324 = vadd.f32 %v285, %v313
      %v325 = vadd.f32 %v286, %v313
      %v326 = vadd.f32 %v287, %v313
      %v327 = vadd.f32 %v288, %v313
      %v328 = vadd.f32 %v289, %v313
      %v329 = vadd.f32 %v290, %v313
      %v330 = vadd.f32 %v291, %v313
      %v331 = vadd.f32 %v292, %v313
      %v332 = vadd.f32 %v293, %v313
      %v333 = vadd.f32 %v294, %v313
      %v334 = vadd.f32 %v295, %v313
      %v335 = vadd.f32 %v296, %v313
      %v336 = vadd.f32 %v297, %v313
      %v337 = vadd.f32 %v298, %v313
      %v338 = vadd.f32 %v299, %v313
      %v339 = vadd.f32 %v300, %v313
      %v340 = vadd.f32 %v301, %v313
      %v341 = vadd.f32 %v302, %v313
      %v342 = vadd.f32 %v303, %v313
      %v343 = vadd.f32 %v304, %v313
      %v344 = vadd.f32 %v305, %v313
      %v345 = vadd.f32 %v306, %v313
      %v346 = vadd.f32 %v307, %v313
      %v347 = vmax.f32 %v315, 0.0
      %v348 = vmax.f32 %v316, 0.0
      %v349 = vmax.f32 %v317, 0.0
      %v350 = vmax.f32 %v318, 0.0
      %v351 = vmax.f32 %v319, 0.0
      %v352 = vmax.f32 %v320, 0.0
      %v353 = vmax.f32 %v321, 0.0
      %v354 = vmax.f32 %v322, 0.0
      %v355 = vmax.f32 %v323, 0.0
      %v356 = vmax.f32 %v324, 0.0
      %v357 = vmax.f32 %v325, 0.0
      %v358 = vmax.f32 %v326, 0.0
      %v359 = vmax.f32 %v327, 0.0
      %v360 = vmax.f32 %v328, 0.0
      %v361 = vmax.f32 %v329, 0.0
      %v362 = vmax.f32 %v330, 0.0
      %v363 = vmax.f32 %v331, 0.0
      %v364 = vmax.f32 %v332, 0.0
      %v365 = vmax.f32 %v333, 0.0
      %v366 = vmax.f32 %v334, 0.0
      %v367 = vmax.f32 %v335, 0.0
      %v368 = vmax.f32 %v336, 0.0
      %v369 = vmax.f32 %v337, 0.0
      %v370 = vmax.f32 %v338, 0.0
      %v371 = vmax.f32 %v339, 0.0
      %v372 = vmax.f32 %v340, 0.0
      %v373 = vmax.f32 %v341, 0.0
      %v374 = vmax.f32 %v342, 0.0
      %v375 = vmax.f32 %v343, 0.0
      %v376 = vmax.f32 %v344, 0.0
      %v377 = vmax.f32 %v345, 0.0
      %v378 = vmax.f32 %v346, 0.0
      %v379 = vlaneseq
      %v380 = vshrl.u32 %v379, 7
      %v381 = vadd.s32 %v380, 8
      %v382 = vadd.s32 %v380, 16
      %v383 = vadd.s32 %v380, 24
      %v384 = vadd.s32 %v380, 32
      %v385 = vadd.s32 %v380, 40
      %v386 = vadd.s32 %v380, 48
      %v387 = vadd.s32 %v380, 56
      %v388 = vadd.s32 %v380, 64
      %v389 = vadd.s32 %v380, 72
      %v390 = vadd.s32 %v380, 80
      %v391 = vadd.s32 %v380, 88
      %v392 = vadd.s32 %v380, 96
      %v393 = vadd.s32 %v380, 104
      %v394 = vadd.s32 %v380, 112
      %v395 = vadd.s32 %v380, 120
      %v396 = vadd.s32 %v380, 128
      %v397 = vadd.s32 %v380, 136
      %v398 = vadd.s32 %v380, 144
      %v399 = vadd.s32 %v380, 152
      %v400 = vadd.s32 %v380, 160
      %v401 = vadd.s32 %v380, 168
      %v402 = vadd.s32 %v380, 176
      %v403 = vadd.s32 %v380, 184
      %v404 = vadd.s32 %v380, 192
      %v405 = vadd.s32 %v380, 200
      %v406 = vadd.s32 %v380, 208
      %v407 = vadd.s32 %v380, 216
      %v408 = vadd.s32 %v380, 224
      %v409 = vadd.s32 %v380, 232
      %v410 = vadd.s32 %v380, 240
      %v411 = vadd.s32 %v380, 248
      %vm412 = vcmp.lt.s32.totalorder %v380, 0
      %v413 = vsub.s32 0, %v380
      %v414 = vsel %vm412, %v413, %v380
      %v415 = vshrl.u32 %v414, 4
      %v416 = vand.u32 %v414, 15
      %v417 = vsub.s32 0, %v416
      %v418 = vsel %vm412, %v417, %v416
      %vm419 = vcmp.lt.s32.totalorder %v381, 0
      %v420 = vsub.s32 0, %v381
      %v421 = vsel %vm419, %v420, %v381
      %v422 = vshrl.u32 %v421, 4
      %v423 = vand.u32 %v421, 15
      %v424 = vsub.s32 0, %v423
      %v425 = vsel %vm419, %v424, %v423
      %vm426 = vcmp.lt.s32.totalorder %v382, 0
      %v427 = vsub.s32 0, %v382
      %v428 = vsel %vm426, %v427, %v382
      %v429 = vshrl.u32 %v428, 4
      %v430 = vand.u32 %v428, 15
      %v431 = vsub.s32 0, %v430
      %v432 = vsel %vm426, %v431, %v430
      %vm433 = vcmp.lt.s32.totalorder %v383, 0
      %v434 = vsub.s32 0, %v383
      %v435 = vsel %vm433, %v434, %v383
      %v436 = vshrl.u32 %v435, 4
      %v437 = vand.u32 %v435, 15
      %v438 = vsub.s32 0, %v437
      %v439 = vsel %vm433, %v438, %v437
      %vm440 = vcmp.lt.s32.totalorder %v384, 0
      %v441 = vsub.s32 0, %v384
      %v442 = vsel %vm440, %v441, %v384
      %v443 = vshrl.u32 %v442, 4
      %v444 = vand.u32 %v442, 15
      %v445 = vsub.s32 0, %v444
      %v446 = vsel %vm440, %v445, %v444
      %vm447 = vcmp.lt.s32.totalorder %v385, 0
      %v448 = vsub.s32 0, %v385
      %v449 = vsel %vm447, %v448, %v385
      %v450 = vshrl.u32 %v449, 4
      %v451 = vand.u32 %v449, 15
      %v452 = vsub.s32 0, %v451
      %v453 = vsel %vm447, %v452, %v451
      %vm454 = vcmp.lt.s32.totalorder %v386, 0
      %v455 = vsub.s32 0, %v386
      %v456 = vsel %vm454, %v455, %v386
      %v457 = vshrl.u32 %v456, 4
      %v458 = vand.u32 %v456, 15
      %v459 = vsub.s32 0, %v458
      %v460 = vsel %vm454, %v459, %v458
      %vm461 = vcmp.lt.s32.totalorder %v387, 0
      %v462 = vsub.s32 0, %v387
      %v463 = vsel %vm461, %v462, %v387
      %v464 = vshrl.u32 %v463, 4
      %v465 = vand.u32 %v463, 15
      %v466 = vsub.s32 0, %v465
      %v467 = vsel %vm461, %v466, %v465
      %vm468 = vcmp.lt.s32.totalorder %v388, 0
      %v469 = vsub.s32 0, %v388
      %v470 = vsel %vm468, %v469, %v388
      %v471 = vshrl.u32 %v470, 4
      %v472 = vand.u32 %v470, 15
      %v473 = vsub.s32 0, %v472
      %v474 = vsel %vm468, %v473, %v472
      %vm475 = vcmp.lt.s32.totalorder %v389, 0
      %v476 = vsub.s32 0, %v389
      %v477 = vsel %vm475, %v476, %v389
      %v478 = vshrl.u32 %v477, 4
      %v479 = vand.u32 %v477, 15
      %v480 = vsub.s32 0, %v479
      %v481 = vsel %vm475, %v480, %v479
      %vm482 = vcmp.lt.s32.totalorder %v390, 0
      %v483 = vsub.s32 0, %v390
      %v484 = vsel %vm482, %v483, %v390
      %v485 = vshrl.u32 %v484, 4
      %v486 = vand.u32 %v484, 15
      %v487 = vsub.s32 0, %v486
      %v488 = vsel %vm482, %v487, %v486
      %vm489 = vcmp.lt.s32.totalorder %v391, 0
      %v490 = vsub.s32 0, %v391
      %v491 = vsel %vm489, %v490, %v391
      %v492 = vshrl.u32 %v491, 4
      %v493 = vand.u32 %v491, 15
      %v494 = vsub.s32 0, %v493
      %v495 = vsel %vm489, %v494, %v493
      %vm496 = vcmp.lt.s32.totalorder %v392, 0
      %v497 = vsub.s32 0, %v392
      %v498 = vsel %vm496, %v497, %v392
      %v499 = vshrl.u32 %v498, 4
      %v500 = vand.u32 %v498, 15
      %v501 = vsub.s32 0, %v500
      %v502 = vsel %vm496, %v501, %v500
      %vm503 = vcmp.lt.s32.totalorder %v393, 0
      %v504 = vsub.s32 0, %v393
      %v505 = vsel %vm503, %v504, %v393
      %v506 = vshrl.u32 %v505, 4
      %v507 = vand.u32 %v505, 15
      %v508 = vsub.s32 0, %v507
      %v509 = vsel %vm503, %v508, %v507
      %vm510 = vcmp.lt.s32.totalorder %v394, 0
      %v511 = vsub.s32 0, %v394
      %v512 = vsel %vm510, %v511, %v394
      %v513 = vshrl.u32 %v512, 4
      %v514 = vand.u32 %v512, 15
      %v515 = vsub.s32 0, %v514
      %v516 = vsel %vm510, %v515, %v514
      %vm517 = vcmp.lt.s32.totalorder %v395, 0
      %v518 = vsub.s32 0, %v395
      %v519 = vsel %vm517, %v518, %v395
      %v520 = vshrl.u32 %v519, 4
      %v521 = vand.u32 %v519, 15
      %v522 = vsub.s32 0, %v521
      %v523 = vsel %vm517, %v522, %v521
      %vm524 = vcmp.lt.s32.totalorder %v396, 0
      %v525 = vsub.s32 0, %v396
      %v526 = vsel %vm524, %v525, %v396
      %v527 = vshrl.u32 %v526, 4
      %v528 = vand.u32 %v526, 15
      %v529 = vsub.s32 0, %v528
      %v530 = vsel %vm524, %v529, %v528
      %vm531 = vcmp.lt.s32.totalorder %v397, 0
      %v532 = vsub.s32 0, %v397
      %v533 = vsel %vm531, %v532, %v397
      %v534 = vshrl.u32 %v533, 4
      %v535 = vand.u32 %v533, 15
      %v536 = vsub.s32 0, %v535
      %v537 = vsel %vm531, %v536, %v535
      %vm538 = vcmp.lt.s32.totalorder %v398, 0
      %v539 = vsub.s32 0, %v398
      %v540 = vsel %vm538, %v539, %v398
      %v541 = vshrl.u32 %v540, 4
      %v542 = vand.u32 %v540, 15
      %v543 = vsub.s32 0, %v542
      %v544 = vsel %vm538, %v543, %v542
      %vm545 = vcmp.lt.s32.totalorder %v399, 0
      %v546 = vsub.s32 0, %v399
      %v547 = vsel %vm545, %v546, %v399
      %v548 = vshrl.u32 %v547, 4
      %v549 = vand.u32 %v547, 15
      %v550 = vsub.s32 0, %v549
      %v551 = vsel %vm545, %v550, %v549
      %vm552 = vcmp.lt.s32.totalorder %v400, 0
      %v553 = vsub.s32 0, %v400
      %v554 = vsel %vm552, %v553, %v400
      %v555 = vshrl.u32 %v554, 4
      %v556 = vand.u32 %v554, 15
      %v557 = vsub.s32 0, %v556
      %v558 = vsel %vm552, %v557, %v556
      %vm559 = vcmp.lt.s32.totalorder %v401, 0
      %v560 = vsub.s32 0, %v401
      %v561 = vsel %vm559, %v560, %v401
      %v562 = vshrl.u32 %v561, 4
      %v563 = vand.u32 %v561, 15
      %v564 = vsub.s32 0, %v563
      %v565 = vsel %vm559, %v564, %v563
      %vm566 = vcmp.lt.s32.totalorder %v402, 0
      %v567 = vsub.s32 0, %v402
      %v568 = vsel %vm566, %v567, %v402
      %v569 = vshrl.u32 %v568, 4
      %v570 = vand.u32 %v568, 15
      %v571 = vsub.s32 0, %v570
      %v572 = vsel %vm566, %v571, %v570
      %vm573 = vcmp.lt.s32.totalorder %v403, 0
      %v574 = vsub.s32 0, %v403
      %v575 = vsel %vm573, %v574, %v403
      %v576 = vshrl.u32 %v575, 4
      %v577 = vand.u32 %v575, 15
      %v578 = vsub.s32 0, %v577
      %v579 = vsel %vm573, %v578, %v577
      %vm580 = vcmp.lt.s32.totalorder %v404, 0
      %v581 = vsub.s32 0, %v404
      %v582 = vsel %vm580, %v581, %v404
      %v583 = vshrl.u32 %v582, 4
      %v584 = vand.u32 %v582, 15
      %v585 = vsub.s32 0, %v584
      %v586 = vsel %vm580, %v585, %v584
      %vm587 = vcmp.lt.s32.totalorder %v405, 0
      %v588 = vsub.s32 0, %v405
      %v589 = vsel %vm587, %v588, %v405
      %v590 = vshrl.u32 %v589, 4
      %v591 = vand.u32 %v589, 15
      %v592 = vsub.s32 0, %v591
      %v593 = vsel %vm587, %v592, %v591
      %vm594 = vcmp.lt.s32.totalorder %v406, 0
      %v595 = vsub.s32 0, %v406
      %v596 = vsel %vm594, %v595, %v406
      %v597 = vshrl.u32 %v596, 4
      %v598 = vand.u32 %v596, 15
      %v599 = vsub.s32 0, %v598
      %v600 = vsel %vm594, %v599, %v598
      %vm601 = vcmp.lt.s32.totalorder %v407, 0
      %v602 = vsub.s32 0, %v407
      %v603 = vsel %vm601, %v602, %v407
      %v604 = vshrl.u32 %v603, 4
      %v605 = vand.u32 %v603, 15
      %v606 = vsub.s32 0, %v605
      %v607 = vsel %vm601, %v606, %v605
      %vm608 = vcmp.lt.s32.totalorder %v408, 0
      %v609 = vsub.s32 0, %v408
      %v610 = vsel %vm608, %v609, %v408
      %v611 = vshrl.u32 %v610, 4
      %v612 = vand.u32 %v610, 15
      %v613 = vsub.s32 0, %v612
      %v614 = vsel %vm608, %v613, %v612
      %vm615 = vcmp.lt.s32.totalorder %v409, 0
      %v616 = vsub.s32 0, %v409
      %v617 = vsel %vm615, %v616, %v409
      %v618 = vshrl.u32 %v617, 4
      %v619 = vand.u32 %v617, 15
      %v620 = vsub.s32 0, %v619
      %v621 = vsel %vm615, %v620, %v619
      %vm622 = vcmp.lt.s32.totalorder %v410, 0
      %v623 = vsub.s32 0, %v410
      %v624 = vsel %vm622, %v623, %v410
      %v625 = vshrl.u32 %v624, 4
      %v626 = vand.u32 %v624, 15
      %v627 = vsub.s32 0, %v626
      %v628 = vsel %vm622, %v627, %v626
      %vm629 = vcmp.lt.s32.totalorder %v411, 0
      %v630 = vsub.s32 0, %v411
      %v631 = vsel %vm629, %v630, %v411
      %v632 = vshrl.u32 %v631, 4
      %v633 = vand.u32 %v631, 15
      %v634 = vsub.s32 0, %v633
      %v635 = vsel %vm629, %v634, %v633
      %vm636 = vcmp.ne.s32.totalorder %v418, 0
      %vm637 = vcmp.ne.s32.totalorder %v425, 0
      %vm638 = vcmp.ne.s32.totalorder %v432, 0
      %vm639 = vcmp.ne.s32.totalorder %v439, 0
      %vm640 = vcmp.ne.s32.totalorder %v446, 0
      %vm641 = vcmp.ne.s32.totalorder %v453, 0
      %vm642 = vcmp.ne.s32.totalorder %v460, 0
      %vm643 = vcmp.ne.s32.totalorder %v467, 0
      %vm644 = vcmp.ne.s32.totalorder %v474, 0
      %vm645 = vcmp.ne.s32.totalorder %v481, 0
      %vm646 = vcmp.ne.s32.totalorder %v488, 0
      %vm647 = vcmp.ne.s32.totalorder %v495, 0
      %vm648 = vcmp.ne.s32.totalorder %v502, 0
      %vm649 = vcmp.ne.s32.totalorder %v509, 0
      %vm650 = vcmp.ne.s32.totalorder %v516, 0
      %vm651 = vcmp.ne.s32.totalorder %v523, 0
      %vm652 = vcmp.ne.s32.totalorder %v530, 0
      %vm653 = vcmp.ne.s32.totalorder %v537, 0
      %vm654 = vcmp.ne.s32.totalorder %v544, 0
      %vm655 = vcmp.ne.s32.totalorder %v551, 0
      %vm656 = vcmp.ne.s32.totalorder %v558, 0
      %vm657 = vcmp.ne.s32.totalorder %v565, 0
      %vm658 = vcmp.ne.s32.totalorder %v572, 0
      %vm659 = vcmp.ne.s32.totalorder %v579, 0
      %vm660 = vcmp.ne.s32.totalorder %v586, 0
      %vm661 = vcmp.ne.s32.totalorder %v593, 0
      %vm662 = vcmp.ne.s32.totalorder %v600, 0
      %vm663 = vcmp.ne.s32.totalorder %v607, 0
      %vm664 = vcmp.ne.s32.totalorder %v614, 0
      %vm665 = vcmp.ne.s32.totalorder %v621, 0
      %vm666 = vcmp.ne.s32.totalorder %v628, 0
      %vm667 = vcmp.ne.s32.totalorder %v635, 0
      %vm668 = vcmp.lt.s32.totalorder %v418, 0
      %vm669 = vcmp.lt.s32.totalorder %v425, 0
      %vm670 = vcmp.lt.s32.totalorder %v432, 0
      %vm671 = vcmp.lt.s32.totalorder %v439, 0
      %vm672 = vcmp.lt.s32.totalorder %v446, 0
      %vm673 = vcmp.lt.s32.totalorder %v453, 0
      %vm674 = vcmp.lt.s32.totalorder %v460, 0
      %vm675 = vcmp.lt.s32.totalorder %v467, 0
      %vm676 = vcmp.lt.s32.totalorder %v474, 0
      %vm677 = vcmp.lt.s32.totalorder %v481, 0
      %vm678 = vcmp.lt.s32.totalorder %v488, 0
      %vm679 = vcmp.lt.s32.totalorder %v495, 0
      %vm680 = vcmp.lt.s32.totalorder %v502, 0
      %vm681 = vcmp.lt.s32.totalorder %v509, 0
      %vm682 = vcmp.lt.s32.totalorder %v516, 0
      %vm683 = vcmp.lt.s32.totalorder %v523, 0
      %vm684 = vcmp.lt.s32.totalorder %v530, 0
      %vm685 = vcmp.lt.s32.totalorder %v537, 0
      %vm686 = vcmp.lt.s32.totalorder %v544, 0
      %vm687 = vcmp.lt.s32.totalorder %v551, 0
      %vm688 = vcmp.lt.s32.totalorder %v558, 0
      %vm689 = vcmp.lt.s32.totalorder %v565, 0
      %vm690 = vcmp.lt.s32.totalorder %v572, 0
      %vm691 = vcmp.lt.s32.totalorder %v579, 0
      %vm692 = vcmp.lt.s32.totalorder %v586, 0
      %vm693 = vcmp.lt.s32.totalorder %v593, 0
      %vm694 = vcmp.lt.s32.totalorder %v600, 0
      %vm695 = vcmp.lt.s32.totalorder %v607, 0
      %vm696 = vcmp.lt.s32.totalorder %v614, 0
      %vm697 = vcmp.lt.s32.totalorder %v621, 0
      %vm698 = vcmp.lt.s32.totalorder %v628, 0
      %vm699 = vcmp.lt.s32.totalorder %v635, 0
      %vm700 = vmand %vm668, %vm636
      %vm701 = vmand %vm669, %vm637
      %vm702 = vmand %vm670, %vm638
      %vm703 = vmand %vm671, %vm639
      %vm704 = vmand %vm672, %vm640
      %vm705 = vmand %vm673, %vm641
      %vm706 = vmand %vm674, %vm642
      %vm707 = vmand %vm675, %vm643
      %vm708 = vmand %vm676, %vm644
      %vm709 = vmand %vm677, %vm645
      %vm710 = vmand %vm678, %vm646
      %vm711 = vmand %vm679, %vm647
      %vm712 = vmand %vm680, %vm648
      %vm713 = vmand %vm681, %vm649
      %vm714 = vmand %vm682, %vm650
      %vm715 = vmand %vm683, %vm651
      %vm716 = vmand %vm684, %vm652
      %vm717 = vmand %vm685, %vm653
      %vm718 = vmand %vm686, %vm654
      %vm719 = vmand %vm687, %vm655
      %vm720 = vmand %vm688, %vm656
      %vm721 = vmand %vm689, %vm657
      %vm722 = vmand %vm690, %vm658
      %vm723 = vmand %vm691, %vm659
      %vm724 = vmand %vm692, %vm660
      %vm725 = vmand %vm693, %vm661
      %vm726 = vmand %vm694, %vm662
      %vm727 = vmand %vm695, %vm663
      %vm728 = vmand %vm696, %vm664
      %vm729 = vmand %vm697, %vm665
      %vm730 = vmand %vm698, %vm666
      %vm731 = vmand %vm699, %vm667
      %v732 = vadd.s32 %v418, 16
      %v733 = vadd.s32 %v425, 16
      %v734 = vadd.s32 %v432, 16
      %v735 = vadd.s32 %v439, 16
      %v736 = vadd.s32 %v446, 16
      %v737 = vadd.s32 %v453, 16
      %v738 = vadd.s32 %v460, 16
      %v739 = vadd.s32 %v467, 16
      %v740 = vadd.s32 %v474, 16
      %v741 = vadd.s32 %v481, 16
      %v742 = vadd.s32 %v488, 16
      %v743 = vadd.s32 %v495, 16
      %v744 = vadd.s32 %v502, 16
      %v745 = vadd.s32 %v509, 16
      %v746 = vadd.s32 %v516, 16
      %v747 = vadd.s32 %v523, 16
      %v748 = vadd.s32 %v530, 16
      %v749 = vadd.s32 %v537, 16
      %v750 = vadd.s32 %v544, 16
      %v751 = vadd.s32 %v551, 16
      %v752 = vadd.s32 %v558, 16
      %v753 = vadd.s32 %v565, 16
      %v754 = vadd.s32 %v572, 16
      %v755 = vadd.s32 %v579, 16
      %v756 = vadd.s32 %v586, 16
      %v757 = vadd.s32 %v593, 16
      %v758 = vadd.s32 %v600, 16
      %v759 = vadd.s32 %v607, 16
      %v760 = vadd.s32 %v614, 16
      %v761 = vadd.s32 %v621, 16
      %v762 = vadd.s32 %v628, 16
      %v763 = vadd.s32 %v635, 16
      %v764 = vsel %vm700, %v732, %v418
      %v765 = vsel %vm701, %v733, %v425
      %v766 = vsel %vm702, %v734, %v432
      %v767 = vsel %vm703, %v735, %v439
      %v768 = vsel %vm704, %v736, %v446
      %v769 = vsel %vm705, %v737, %v453
      %v770 = vsel %vm706, %v738, %v460
      %v771 = vsel %vm707, %v739, %v467
      %v772 = vsel %vm708, %v740, %v474
      %v773 = vsel %vm709, %v741, %v481
      %v774 = vsel %vm710, %v742, %v488
      %v775 = vsel %vm711, %v743, %v495
      %v776 = vsel %vm712, %v744, %v502
      %v777 = vsel %vm713, %v745, %v509
      %v778 = vsel %vm714, %v746, %v516
      %v779 = vsel %vm715, %v747, %v523
      %v780 = vsel %vm716, %v748, %v530
      %v781 = vsel %vm717, %v749, %v537
      %v782 = vsel %vm718, %v750, %v544
      %v783 = vsel %vm719, %v751, %v551
      %v784 = vsel %vm720, %v752, %v558
      %v785 = vsel %vm721, %v753, %v565
      %v786 = vsel %vm722, %v754, %v572
      %v787 = vsel %vm723, %v755, %v579
      %v788 = vsel %vm724, %v756, %v586
      %v789 = vsel %vm725, %v757, %v593
      %v790 = vsel %vm726, %v758, %v600
      %v791 = vsel %vm727, %v759, %v607
      %v792 = vsel %vm728, %v760, %v614
      %v793 = vsel %vm729, %v761, %v621
      %v794 = vsel %vm730, %v762, %v628
      %v795 = vsel %vm731, %v763, %v635
      %vm826 = vcmask 1040384
      %v827 = vrot.slane %v347, 7
      %v828 = vrot.slane %v348, 7
      %v829 = vsel %vm826, %v827, %v828
      %v830 = vrot.slane %v349, 7
      %v831 = vsel %vm826, %v828, %v830
      %v832 = vrot.slane %v350, 7
      %v833 = vsel %vm826, %v830, %v832
      %v834 = vrot.slane %v351, 7
      %v835 = vsel %vm826, %v832, %v834
      %v836 = vrot.slane %v352, 7
      %v837 = vsel %vm826, %v834, %v836
      %v838 = vrot.slane %v353, 7
      %v839 = vsel %vm826, %v836, %v838
      %v840 = vrot.slane %v354, 7
      %v841 = vsel %vm826, %v838, %v840
      %v842 = vrot.slane %v355, 7
      %v843 = vsel %vm826, %v840, %v842
      %v844 = vrot.slane %v356, 7
      %v845 = vsel %vm826, %v842, %v844
      %v846 = vrot.slane %v357, 7
      %v847 = vsel %vm826, %v844, %v846
      %v848 = vrot.slane %v358, 7
      %v849 = vsel %vm826, %v846, %v848
      %v850 = vrot.slane %v359, 7
      %v851 = vsel %vm826, %v848, %v850
      %v852 = vrot.slane %v360, 7
      %v853 = vsel %vm826, %v850, %v852
      %v854 = vrot.slane %v361, 7
      %v855 = vsel %vm826, %v852, %v854
      %v856 = vrot.slane %v362, 7
      %v857 = vsel %vm826, %v854, %v856
      %v858 = vrot.slane %v363, 7
      %v859 = vsel %vm826, %v856, %v858
      %v860 = vrot.slane %v364, 7
      %v861 = vsel %vm826, %v858, %v860
      %v862 = vrot.slane %v365, 7
      %v863 = vsel %vm826, %v860, %v862
      %v864 = vrot.slane %v366, 7
      %v865 = vsel %vm826, %v862, %v864
      %v866 = vrot.slane %v367, 7
      %v867 = vsel %vm826, %v864, %v866
      %v868 = vrot.slane %v368, 7
      %v869 = vsel %vm826, %v866, %v868
      %v870 = vrot.slane %v369, 7
      %v871 = vsel %vm826, %v868, %v870
      %v872 = vrot.slane %v370, 7
      %v873 = vsel %vm826, %v870, %v872
      %v874 = vrot.slane %v371, 7
      %v875 = vsel %vm826, %v872, %v874
      %v876 = vrot.slane %v372, 7
      %v877 = vsel %vm826, %v874, %v876
      %v878 = vrot.slane %v373, 7
      %v879 = vsel %vm826, %v876, %v878
      %v880 = vrot.slane %v374, 7
      %v881 = vsel %vm826, %v878, %v880
      %v882 = vrot.slane %v375, 7
      %v883 = vsel %vm826, %v880, %v882
      %v884 = vrot.slane %v376, 7
      %v885 = vsel %vm826, %v882, %v884
      %v916 = vsel %vm826, 0.0, %v827
      %v917 = vadd.s32 %v764, 4294967295
      %v918 = vadd.s32 %v765, 4294967295
      %v919 = vadd.s32 %v766, 4294967295
      %v920 = vadd.s32 %v767, 4294967295
      %v921 = vadd.s32 %v768, 4294967295
      %v922 = vadd.s32 %v769, 4294967295
      %v923 = vadd.s32 %v770, 4294967295
      %v924 = vadd.s32 %v771, 4294967295
      %v925 = vadd.s32 %v772, 4294967295
      %v926 = vadd.s32 %v773, 4294967295
      %v927 = vadd.s32 %v774, 4294967295
      %v928 = vadd.s32 %v775, 4294967295
      %v929 = vadd.s32 %v776, 4294967295
      %v930 = vadd.s32 %v777, 4294967295
      %v931 = vadd.s32 %v778, 4294967295
      %v932 = vadd.s32 %v779, 4294967295
      %v933 = vadd.s32 %v780, 4294967295
      %v934 = vadd.s32 %v781, 4294967295
      %v935 = vadd.s32 %v782, 4294967295
      %v936 = vadd.s32 %v783, 4294967295
      %v937 = vadd.s32 %v784, 4294967295
      %v938 = vadd.s32 %v785, 4294967295
      %v939 = vadd.s32 %v786, 4294967295
      %v940 = vadd.s32 %v787, 4294967295
      %v941 = vadd.s32 %v788, 4294967295
      %v942 = vadd.s32 %v789, 4294967295
      %v943 = vadd.s32 %v790, 4294967295
      %v944 = vadd.s32 %v791, 4294967295
      %v945 = vadd.s32 %v792, 4294967295
      %v946 = vadd.s32 %v793, 4294967295
      %v947 = vadd.s32 %v794, 4294967295
      %v948 = vadd.s32 %v795, 4294967295
      %vm949 = vcmp.ge.s32.totalorder %v917, 0
      %vm950 = vcmp.ge.s32.totalorder %v918, 0
      %vm951 = vcmp.ge.s32.totalorder %v919, 0
      %vm952 = vcmp.ge.s32.totalorder %v920, 0
      %vm953 = vcmp.ge.s32.totalorder %v921, 0
      %vm954 = vcmp.ge.s32.totalorder %v922, 0
      %vm955 = vcmp.ge.s32.totalorder %v923, 0
      %vm956 = vcmp.ge.s32.totalorder %v924, 0
      %vm957 = vcmp.ge.s32.totalorder %v925, 0
      %vm958 = vcmp.ge.s32.totalorder %v926, 0
      %vm959 = vcmp.ge.s32.totalorder %v927, 0
      %vm960 = vcmp.ge.s32.totalorder %v928, 0
      %vm961 = vcmp.ge.s32.totalorder %v929, 0
      %vm962 = vcmp.ge.s32.totalorder %v930, 0
      %vm963 = vcmp.ge.s32.totalorder %v931, 0
      %vm964 = vcmp.ge.s32.totalorder %v932, 0
      %vm965 = vcmp.ge.s32.totalorder %v933, 0
      %vm966 = vcmp.ge.s32.totalorder %v934, 0
      %vm967 = vcmp.ge.s32.totalorder %v935, 0
      %vm968 = vcmp.ge.s32.totalorder %v936, 0
      %vm969 = vcmp.ge.s32.totalorder %v937, 0
      %vm970 = vcmp.ge.s32.totalorder %v938, 0
      %vm971 = vcmp.ge.s32.totalorder %v939, 0
      %vm972 = vcmp.ge.s32.totalorder %v940, 0
      %vm973 = vcmp.ge.s32.totalorder %v941, 0
      %vm974 = vcmp.ge.s32.totalorder %v942, 0
      %vm975 = vcmp.ge.s32.totalorder %v943, 0
      %vm976 = vcmp.ge.s32.totalorder %v944, 0
      %vm977 = vcmp.ge.s32.totalorder %v945, 0
      %vm978 = vcmp.ge.s32.totalorder %v946, 0
      %vm979 = vcmp.ge.s32.totalorder %v947, 0
      %vm980 = vcmp.ge.s32.totalorder %v948, 0
      %vm981 = vcmp.lt.s32.totalorder %v917, 16
      %vm982 = vcmp.lt.s32.totalorder %v918, 16
      %vm983 = vcmp.lt.s32.totalorder %v919, 16
      %vm984 = vcmp.lt.s32.totalorder %v920, 16
      %vm985 = vcmp.lt.s32.totalorder %v921, 16
      %vm986 = vcmp.lt.s32.totalorder %v922, 16
      %vm987 = vcmp.lt.s32.totalorder %v923, 16
      %vm988 = vcmp.lt.s32.totalorder %v924, 16
      %vm989 = vcmp.lt.s32.totalorder %v925, 16
      %vm990 = vcmp.lt.s32.totalorder %v926, 16
      %vm991 = vcmp.lt.s32.totalorder %v927, 16
      %vm992 = vcmp.lt.s32.totalorder %v928, 16
      %vm993 = vcmp.lt.s32.totalorder %v929, 16
      %vm994 = vcmp.lt.s32.totalorder %v930, 16
      %vm995 = vcmp.lt.s32.totalorder %v931, 16
      %vm996 = vcmp.lt.s32.totalorder %v932, 16
      %vm997 = vcmp.lt.s32.totalorder %v933, 16
      %vm998 = vcmp.lt.s32.totalorder %v934, 16
      %vm999 = vcmp.lt.s32.totalorder %v935, 16
      %vm1000 = vcmp.lt.s32.totalorder %v936, 16
      %vm1001 = vcmp.lt.s32.totalorder %v937, 16
      %vm1002 = vcmp.lt.s32.totalorder %v938, 16
      %vm1003 = vcmp.lt.s32.totalorder %v939, 16
      %vm1004 = vcmp.lt.s32.totalorder %v940, 16
      %vm1005 = vcmp.lt.s32.totalorder %v941, 16
      %vm1006 = vcmp.lt.s32.totalorder %v942, 16
      %vm1007 = vcmp.lt.s32.totalorder %v943, 16
      %vm1008 = vcmp.lt.s32.totalorder %v944, 16
      %vm1009 = vcmp.lt.s32.totalorder %v945, 16
      %vm1010 = vcmp.lt.s32.totalorder %v946, 16
      %vm1011 = vcmp.lt.s32.totalorder %v947, 16
      %vm1012 = vcmp.lt.s32.totalorder %v948, 16
      %vm1013 = vmand %vm949, %vm981
      %vm1014 = vmand %vm950, %vm982
      %vm1015 = vmand %vm951, %vm983
      %vm1016 = vmand %vm952, %vm984
      %vm1017 = vmand %vm953, %vm985
      %vm1018 = vmand %vm954, %vm986
      %vm1019 = vmand %vm955, %vm987
      %vm1020 = vmand %vm956, %vm988
      %vm1021 = vmand %vm957, %vm989
      %vm1022 = vmand %vm958, %vm990
      %vm1023 = vmand %vm959, %vm991
      %vm1024 = vmand %vm960, %vm992
      %vm1025 = vmand %vm961, %vm993
      %vm1026 = vmand %vm962, %vm994
      %vm1027 = vmand %vm963, %vm995
      %vm1028 = vmand %vm964, %vm996
      %vm1029 = vmand %vm965, %vm997
      %vm1030 = vmand %vm966, %vm998
      %vm1031 = vmand %vm967, %vm999
      %vm1032 = vmand %vm968, %vm1000
      %vm1033 = vmand %vm969, %vm1001
      %vm1034 = vmand %vm970, %vm1002
      %vm1035 = vmand %vm971, %vm1003
      %vm1036 = vmand %vm972, %vm1004
      %vm1037 = vmand %vm973, %vm1005
      %vm1038 = vmand %vm974, %vm1006
      %vm1039 = vmand %vm975, %vm1007
      %vm1040 = vmand %vm976, %vm1008
      %vm1041 = vmand %vm977, %vm1009
      %vm1042 = vmand %vm978, %vm1010
      %vm1043 = vmand %vm979, %vm1011
      %vm1044 = vmand %vm980, %vm1012
      %v1045 = vsel %vm1013, 1, 0
      %v1046 = vsel %vm1014, 1, 0
      %v1047 = vsel %vm1015, 1, 0
      %v1048 = vsel %vm1016, 1, 0
      %v1049 = vsel %vm1017, 1, 0
      %v1050 = vsel %vm1018, 1, 0
      %v1051 = vsel %vm1019, 1, 0
      %v1052 = vsel %vm1020, 1, 0
      %v1053 = vsel %vm1021, 1, 0
      %v1054 = vsel %vm1022, 1, 0
      %v1055 = vsel %vm1023, 1, 0
      %v1056 = vsel %vm1024, 1, 0
      %v1057 = vsel %vm1025, 1, 0
      %v1058 = vsel %vm1026, 1, 0
      %v1059 = vsel %vm1027, 1, 0
      %v1060 = vsel %vm1028, 1, 0
      %v1061 = vsel %vm1029, 1, 0
      %v1062 = vsel %vm1030, 1, 0
      %v1063 = vsel %vm1031, 1, 0
      %v1064 = vsel %vm1032, 1, 0
      %v1065 = vsel %vm1033, 1, 0
      %v1066 = vsel %vm1034, 1, 0
      %v1067 = vsel %vm1035, 1, 0
      %v1068 = vsel %vm1036, 1, 0
      %v1069 = vsel %vm1037, 1, 0
      %v1070 = vsel %vm1038, 1, 0
      %v1071 = vsel %vm1039, 1, 0
      %v1072 = vsel %vm1040, 1, 0
      %v1073 = vsel %vm1041, 1, 0
      %v1074 = vsel %vm1042, 1, 0
      %v1075 = vsel %vm1043, 1, 0
      %v1076 = vsel %vm1044, 1, 0
      %vm1077 = vcmp.eq.s32.totalorder %v1045, 1
      %vm1078 = vcmp.eq.s32.totalorder %v1046, 1
      %vm1079 = vcmp.eq.s32.totalorder %v1047, 1
      %vm1080 = vcmp.eq.s32.totalorder %v1048, 1
      %vm1081 = vcmp.eq.s32.totalorder %v1049, 1
      %vm1082 = vcmp.eq.s32.totalorder %v1050, 1
      %vm1083 = vcmp.eq.s32.totalorder %v1051, 1
      %vm1084 = vcmp.eq.s32.totalorder %v1052, 1
      %vm1085 = vcmp.eq.s32.totalorder %v1053, 1
      %vm1086 = vcmp.eq.s32.totalorder %v1054, 1
      %vm1087 = vcmp.eq.s32.totalorder %v1055, 1
      %vm1088 = vcmp.eq.s32.totalorder %v1056, 1
      %vm1089 = vcmp.eq.s32.totalorder %v1057, 1
      %vm1090 = vcmp.eq.s32.totalorder %v1058, 1
      %vm1091 = vcmp.eq.s32.totalorder %v1059, 1
      %vm1092 = vcmp.eq.s32.totalorder %v1060, 1
      %vm1093 = vcmp.eq.s32.totalorder %v1061, 1
      %vm1094 = vcmp.eq.s32.totalorder %v1062, 1
      %vm1095 = vcmp.eq.s32.totalorder %v1063, 1
      %vm1096 = vcmp.eq.s32.totalorder %v1064, 1
      %vm1097 = vcmp.eq.s32.totalorder %v1065, 1
      %vm1098 = vcmp.eq.s32.totalorder %v1066, 1
      %vm1099 = vcmp.eq.s32.totalorder %v1067, 1
      %vm1100 = vcmp.eq.s32.totalorder %v1068, 1
      %vm1101 = vcmp.eq.s32.totalorder %v1069, 1
      %vm1102 = vcmp.eq.s32.totalorder %v1070, 1
      %vm1103 = vcmp.eq.s32.totalorder %v1071, 1
      %vm1104 = vcmp.eq.s32.totalorder %v1072, 1
      %vm1105 = vcmp.eq.s32.totalorder %v1073, 1
      %vm1106 = vcmp.eq.s32.totalorder %v1074, 1
      %vm1107 = vcmp.eq.s32.totalorder %v1075, 1
      %vm1108 = vcmp.eq.s32.totalorder %v1076, 1
      %v1109 = vsel %vm1079, %v916, 0.0
      %v1110 = vsel %vm1080, %v829, 0.0
      %v1111 = vsel %vm1081, %v831, 0.0
      %v1112 = vsel %vm1082, %v833, 0.0
      %v1113 = vsel %vm1083, %v835, 0.0
      %v1114 = vsel %vm1084, %v837, 0.0
      %v1115 = vsel %vm1085, %v839, 0.0
      %v1116 = vsel %vm1086, %v841, 0.0
      %v1117 = vsel %vm1087, %v843, 0.0
      %v1118 = vsel %vm1088, %v845, 0.0
      %v1119 = vsel %vm1089, %v847, 0.0
      %v1120 = vsel %vm1090, %v849, 0.0
      %v1121 = vsel %vm1091, %v851, 0.0
      %v1122 = vsel %vm1092, %v853, 0.0
      %v1123 = vsel %vm1093, %v855, 0.0
      %v1124 = vsel %vm1094, %v857, 0.0
      %v1125 = vsel %vm1095, %v859, 0.0
      %v1126 = vsel %vm1096, %v861, 0.0
      %v1127 = vsel %vm1097, %v863, 0.0
      %v1128 = vsel %vm1098, %v865, 0.0
      %v1129 = vsel %vm1099, %v867, 0.0
      %v1130 = vsel %vm1100, %v869, 0.0
      %v1131 = vsel %vm1101, %v871, 0.0
      %v1132 = vsel %vm1102, %v873, 0.0
      %v1133 = vsel %vm1103, %v875, 0.0
      %v1134 = vsel %vm1104, %v877, 0.0
      %v1135 = vsel %vm1105, %v879, 0.0
      %v1136 = vsel %vm1106, %v881, 0.0
      %v1137 = vsel %vm1107, %v883, 0.0
      %v1138 = vsel %vm1108, %v885, 0.0
      %v1139 = vpack.c.bf16 0.0, 0.0
      %v1140 = vpack.c.bf16 %v1110, %v1109
      %v1141 = vpack.c.bf16 %v1112, %v1111
      %v1142 = vpack.c.bf16 %v1114, %v1113
      %v1143 = vpack.c.bf16 %v1116, %v1115
      %v1144 = vpack.c.bf16 %v1118, %v1117
      %v1145 = vpack.c.bf16 %v1120, %v1119
      %v1146 = vpack.c.bf16 %v1122, %v1121
      %v1147 = vpack.c.bf16 %v1124, %v1123
      %v1148 = vpack.c.bf16 %v1126, %v1125
      %v1149 = vpack.c.bf16 %v1128, %v1127
      %v1150 = vpack.c.bf16 %v1130, %v1129
      %v1151 = vpack.c.bf16 %v1132, %v1131
      %v1152 = vpack.c.bf16 %v1134, %v1133
      %v1153 = vpack.c.bf16 %v1136, %v1135
      %v1154 = vpack.c.bf16 %v1138, %v1137
      %v1155 = vpack.c.bf16 %v348, %v347
      %v1156 = vpack.c.bf16 %v350, %v349
      %v1157 = vpack.c.bf16 %v352, %v351
      %v1158 = vpack.c.bf16 %v354, %v353
      %v1159 = vpack.c.bf16 %v356, %v355
      %v1160 = vpack.c.bf16 %v358, %v357
      %v1161 = vpack.c.bf16 %v360, %v359
      %v1162 = vpack.c.bf16 %v362, %v361
      %v1163 = vpack.c.bf16 %v364, %v363
      %v1164 = vpack.c.bf16 %v366, %v365
      %v1165 = vpack.c.bf16 %v368, %v367
      %v1166 = vpack.c.bf16 %v370, %v369
      %v1167 = vpack.c.bf16 %v372, %v371
      %v1168 = vpack.c.bf16 %v374, %v373
      %v1169 = vpack.c.bf16 %v376, %v375
      %vm1171 = vcmask 1046528
      %v1172 = vrot.slane %v347, 1
      %v1173 = vrot.slane %v348, 1
      %v1174 = vsel %vm1171, %v1172, %v1173
      %v1175 = vrot.slane %v349, 1
      %v1176 = vsel %vm1171, %v1173, %v1175
      %v1177 = vrot.slane %v350, 1
      %v1178 = vsel %vm1171, %v1175, %v1177
      %v1179 = vrot.slane %v351, 1
      %v1180 = vsel %vm1171, %v1177, %v1179
      %v1181 = vrot.slane %v352, 1
      %v1182 = vsel %vm1171, %v1179, %v1181
      %v1183 = vrot.slane %v353, 1
      %v1184 = vsel %vm1171, %v1181, %v1183
      %v1185 = vrot.slane %v354, 1
      %v1186 = vsel %vm1171, %v1183, %v1185
      %v1187 = vrot.slane %v355, 1
      %v1188 = vsel %vm1171, %v1185, %v1187
      %v1189 = vrot.slane %v356, 1
      %v1190 = vsel %vm1171, %v1187, %v1189
      %v1191 = vrot.slane %v357, 1
      %v1192 = vsel %vm1171, %v1189, %v1191
      %v1193 = vrot.slane %v358, 1
      %v1194 = vsel %vm1171, %v1191, %v1193
      %v1195 = vrot.slane %v359, 1
      %v1196 = vsel %vm1171, %v1193, %v1195
      %v1197 = vrot.slane %v360, 1
      %v1198 = vsel %vm1171, %v1195, %v1197
      %v1199 = vrot.slane %v361, 1
      %v1200 = vsel %vm1171, %v1197, %v1199
      %v1201 = vrot.slane %v362, 1
      %v1202 = vsel %vm1171, %v1199, %v1201
      %v1203 = vrot.slane %v363, 1
      %v1204 = vsel %vm1171, %v1201, %v1203
      %v1205 = vrot.slane %v364, 1
      %v1206 = vsel %vm1171, %v1203, %v1205
      %v1207 = vrot.slane %v365, 1
      %v1208 = vsel %vm1171, %v1205, %v1207
      %v1209 = vrot.slane %v366, 1
      %v1210 = vsel %vm1171, %v1207, %v1209
      %v1211 = vrot.slane %v367, 1
      %v1212 = vsel %vm1171, %v1209, %v1211
      %v1213 = vrot.slane %v368, 1
      %v1214 = vsel %vm1171, %v1211, %v1213
      %v1215 = vrot.slane %v369, 1
      %v1216 = vsel %vm1171, %v1213, %v1215
      %v1217 = vrot.slane %v370, 1
      %v1218 = vsel %vm1171, %v1215, %v1217
      %v1219 = vrot.slane %v371, 1
      %v1220 = vsel %vm1171, %v1217, %v1219
      %v1221 = vrot.slane %v372, 1
      %v1222 = vsel %vm1171, %v1219, %v1221
      %v1223 = vrot.slane %v373, 1
      %v1224 = vsel %vm1171, %v1221, %v1223
      %v1225 = vrot.slane %v374, 1
      %v1226 = vsel %vm1171, %v1223, %v1225
      %v1227 = vrot.slane %v375, 1
      %v1228 = vsel %vm1171, %v1225, %v1227
      %v1229 = vrot.slane %v376, 1
      %v1230 = vsel %vm1171, %v1227, %v1229
      %v1231 = vrot.slane %v377, 1
      %v1232 = vsel %vm1171, %v1229, %v1231
      %v1264 = vsel %vm1171, 0.0, %v1172
      %v1265 = vadd.s32 %v764, 1
      %v1266 = vadd.s32 %v765, 1
      %v1267 = vadd.s32 %v766, 1
      %v1268 = vadd.s32 %v767, 1
      %v1269 = vadd.s32 %v768, 1
      %v1270 = vadd.s32 %v769, 1
      %v1271 = vadd.s32 %v770, 1
      %v1272 = vadd.s32 %v771, 1
      %v1273 = vadd.s32 %v772, 1
      %v1274 = vadd.s32 %v773, 1
      %v1275 = vadd.s32 %v774, 1
      %v1276 = vadd.s32 %v775, 1
      %v1277 = vadd.s32 %v776, 1
      %v1278 = vadd.s32 %v777, 1
      %v1279 = vadd.s32 %v778, 1
      %v1280 = vadd.s32 %v779, 1
      %v1281 = vadd.s32 %v780, 1
      %v1282 = vadd.s32 %v781, 1
      %v1283 = vadd.s32 %v782, 1
      %v1284 = vadd.s32 %v783, 1
      %v1285 = vadd.s32 %v784, 1
      %v1286 = vadd.s32 %v785, 1
      %v1287 = vadd.s32 %v786, 1
      %v1288 = vadd.s32 %v787, 1
      %v1289 = vadd.s32 %v788, 1
      %v1290 = vadd.s32 %v789, 1
      %v1291 = vadd.s32 %v790, 1
      %v1292 = vadd.s32 %v791, 1
      %v1293 = vadd.s32 %v792, 1
      %v1294 = vadd.s32 %v793, 1
      %v1295 = vadd.s32 %v794, 1
      %v1296 = vadd.s32 %v795, 1
      %vm1297 = vcmp.ge.s32.totalorder %v1265, 0
      %vm1298 = vcmp.ge.s32.totalorder %v1266, 0
      %vm1299 = vcmp.ge.s32.totalorder %v1267, 0
      %vm1300 = vcmp.ge.s32.totalorder %v1268, 0
      %vm1301 = vcmp.ge.s32.totalorder %v1269, 0
      %vm1302 = vcmp.ge.s32.totalorder %v1270, 0
      %vm1303 = vcmp.ge.s32.totalorder %v1271, 0
      %vm1304 = vcmp.ge.s32.totalorder %v1272, 0
      %vm1305 = vcmp.ge.s32.totalorder %v1273, 0
      %vm1306 = vcmp.ge.s32.totalorder %v1274, 0
      %vm1307 = vcmp.ge.s32.totalorder %v1275, 0
      %vm1308 = vcmp.ge.s32.totalorder %v1276, 0
      %vm1309 = vcmp.ge.s32.totalorder %v1277, 0
      %vm1310 = vcmp.ge.s32.totalorder %v1278, 0
      %vm1311 = vcmp.ge.s32.totalorder %v1279, 0
      %vm1312 = vcmp.ge.s32.totalorder %v1280, 0
      %vm1313 = vcmp.ge.s32.totalorder %v1281, 0
      %vm1314 = vcmp.ge.s32.totalorder %v1282, 0
      %vm1315 = vcmp.ge.s32.totalorder %v1283, 0
      %vm1316 = vcmp.ge.s32.totalorder %v1284, 0
      %vm1317 = vcmp.ge.s32.totalorder %v1285, 0
      %vm1318 = vcmp.ge.s32.totalorder %v1286, 0
      %vm1319 = vcmp.ge.s32.totalorder %v1287, 0
      %vm1320 = vcmp.ge.s32.totalorder %v1288, 0
      %vm1321 = vcmp.ge.s32.totalorder %v1289, 0
      %vm1322 = vcmp.ge.s32.totalorder %v1290, 0
      %vm1323 = vcmp.ge.s32.totalorder %v1291, 0
      %vm1324 = vcmp.ge.s32.totalorder %v1292, 0
      %vm1325 = vcmp.ge.s32.totalorder %v1293, 0
      %vm1326 = vcmp.ge.s32.totalorder %v1294, 0
      %vm1327 = vcmp.ge.s32.totalorder %v1295, 0
      %vm1328 = vcmp.ge.s32.totalorder %v1296, 0
      %vm1329 = vcmp.lt.s32.totalorder %v1265, 16
      %vm1330 = vcmp.lt.s32.totalorder %v1266, 16
      %vm1331 = vcmp.lt.s32.totalorder %v1267, 16
      %vm1332 = vcmp.lt.s32.totalorder %v1268, 16
      %vm1333 = vcmp.lt.s32.totalorder %v1269, 16
      %vm1334 = vcmp.lt.s32.totalorder %v1270, 16
      %vm1335 = vcmp.lt.s32.totalorder %v1271, 16
      %vm1336 = vcmp.lt.s32.totalorder %v1272, 16
      %vm1337 = vcmp.lt.s32.totalorder %v1273, 16
      %vm1338 = vcmp.lt.s32.totalorder %v1274, 16
      %vm1339 = vcmp.lt.s32.totalorder %v1275, 16
      %vm1340 = vcmp.lt.s32.totalorder %v1276, 16
      %vm1341 = vcmp.lt.s32.totalorder %v1277, 16
      %vm1342 = vcmp.lt.s32.totalorder %v1278, 16
      %vm1343 = vcmp.lt.s32.totalorder %v1279, 16
      %vm1344 = vcmp.lt.s32.totalorder %v1280, 16
      %vm1345 = vcmp.lt.s32.totalorder %v1281, 16
      %vm1346 = vcmp.lt.s32.totalorder %v1282, 16
      %vm1347 = vcmp.lt.s32.totalorder %v1283, 16
      %vm1348 = vcmp.lt.s32.totalorder %v1284, 16
      %vm1349 = vcmp.lt.s32.totalorder %v1285, 16
      %vm1350 = vcmp.lt.s32.totalorder %v1286, 16
      %vm1351 = vcmp.lt.s32.totalorder %v1287, 16
      %vm1352 = vcmp.lt.s32.totalorder %v1288, 16
      %vm1353 = vcmp.lt.s32.totalorder %v1289, 16
      %vm1354 = vcmp.lt.s32.totalorder %v1290, 16
      %vm1355 = vcmp.lt.s32.totalorder %v1291, 16
      %vm1356 = vcmp.lt.s32.totalorder %v1292, 16
      %vm1357 = vcmp.lt.s32.totalorder %v1293, 16
      %vm1358 = vcmp.lt.s32.totalorder %v1294, 16
      %vm1359 = vcmp.lt.s32.totalorder %v1295, 16
      %vm1360 = vcmp.lt.s32.totalorder %v1296, 16
      %vm1361 = vmand %vm1297, %vm1329
      %vm1362 = vmand %vm1298, %vm1330
      %vm1363 = vmand %vm1299, %vm1331
      %vm1364 = vmand %vm1300, %vm1332
      %vm1365 = vmand %vm1301, %vm1333
      %vm1366 = vmand %vm1302, %vm1334
      %vm1367 = vmand %vm1303, %vm1335
      %vm1368 = vmand %vm1304, %vm1336
      %vm1369 = vmand %vm1305, %vm1337
      %vm1370 = vmand %vm1306, %vm1338
      %vm1371 = vmand %vm1307, %vm1339
      %vm1372 = vmand %vm1308, %vm1340
      %vm1373 = vmand %vm1309, %vm1341
      %vm1374 = vmand %vm1310, %vm1342
      %vm1375 = vmand %vm1311, %vm1343
      %vm1376 = vmand %vm1312, %vm1344
      %vm1377 = vmand %vm1313, %vm1345
      %vm1378 = vmand %vm1314, %vm1346
      %vm1379 = vmand %vm1315, %vm1347
      %vm1380 = vmand %vm1316, %vm1348
      %vm1381 = vmand %vm1317, %vm1349
      %vm1382 = vmand %vm1318, %vm1350
      %vm1383 = vmand %vm1319, %vm1351
      %vm1384 = vmand %vm1320, %vm1352
      %vm1385 = vmand %vm1321, %vm1353
      %vm1386 = vmand %vm1322, %vm1354
      %vm1387 = vmand %vm1323, %vm1355
      %vm1388 = vmand %vm1324, %vm1356
      %vm1389 = vmand %vm1325, %vm1357
      %vm1390 = vmand %vm1326, %vm1358
      %vm1391 = vmand %vm1327, %vm1359
      %vm1392 = vmand %vm1328, %vm1360
      %v1393 = vsel %vm1361, 1, 0
      %v1394 = vsel %vm1362, 1, 0
      %v1395 = vsel %vm1363, 1, 0
      %v1396 = vsel %vm1364, 1, 0
      %v1397 = vsel %vm1365, 1, 0
      %v1398 = vsel %vm1366, 1, 0
      %v1399 = vsel %vm1367, 1, 0
      %v1400 = vsel %vm1368, 1, 0
      %v1401 = vsel %vm1369, 1, 0
      %v1402 = vsel %vm1370, 1, 0
      %v1403 = vsel %vm1371, 1, 0
      %v1404 = vsel %vm1372, 1, 0
      %v1405 = vsel %vm1373, 1, 0
      %v1406 = vsel %vm1374, 1, 0
      %v1407 = vsel %vm1375, 1, 0
      %v1408 = vsel %vm1376, 1, 0
      %v1409 = vsel %vm1377, 1, 0
      %v1410 = vsel %vm1378, 1, 0
      %v1411 = vsel %vm1379, 1, 0
      %v1412 = vsel %vm1380, 1, 0
      %v1413 = vsel %vm1381, 1, 0
      %v1414 = vsel %vm1382, 1, 0
      %v1415 = vsel %vm1383, 1, 0
      %v1416 = vsel %vm1384, 1, 0
      %v1417 = vsel %vm1385, 1, 0
      %v1418 = vsel %vm1386, 1, 0
      %v1419 = vsel %vm1387, 1, 0
      %v1420 = vsel %vm1388, 1, 0
      %v1421 = vsel %vm1389, 1, 0
      %v1422 = vsel %vm1390, 1, 0
      %v1423 = vsel %vm1391, 1, 0
      %v1424 = vsel %vm1392, 1, 0
      %vm1425 = vcmp.eq.s32.totalorder %v1393, 1
      %vm1426 = vcmp.eq.s32.totalorder %v1394, 1
      %vm1427 = vcmp.eq.s32.totalorder %v1395, 1
      %vm1428 = vcmp.eq.s32.totalorder %v1396, 1
      %vm1429 = vcmp.eq.s32.totalorder %v1397, 1
      %vm1430 = vcmp.eq.s32.totalorder %v1398, 1
      %vm1431 = vcmp.eq.s32.totalorder %v1399, 1
      %vm1432 = vcmp.eq.s32.totalorder %v1400, 1
      %vm1433 = vcmp.eq.s32.totalorder %v1401, 1
      %vm1434 = vcmp.eq.s32.totalorder %v1402, 1
      %vm1435 = vcmp.eq.s32.totalorder %v1403, 1
      %vm1436 = vcmp.eq.s32.totalorder %v1404, 1
      %vm1437 = vcmp.eq.s32.totalorder %v1405, 1
      %vm1438 = vcmp.eq.s32.totalorder %v1406, 1
      %vm1439 = vcmp.eq.s32.totalorder %v1407, 1
      %vm1440 = vcmp.eq.s32.totalorder %v1408, 1
      %vm1441 = vcmp.eq.s32.totalorder %v1409, 1
      %vm1442 = vcmp.eq.s32.totalorder %v1410, 1
      %vm1443 = vcmp.eq.s32.totalorder %v1411, 1
      %vm1444 = vcmp.eq.s32.totalorder %v1412, 1
      %vm1445 = vcmp.eq.s32.totalorder %v1413, 1
      %vm1446 = vcmp.eq.s32.totalorder %v1414, 1
      %vm1447 = vcmp.eq.s32.totalorder %v1415, 1
      %vm1448 = vcmp.eq.s32.totalorder %v1416, 1
      %vm1449 = vcmp.eq.s32.totalorder %v1417, 1
      %vm1450 = vcmp.eq.s32.totalorder %v1418, 1
      %vm1451 = vcmp.eq.s32.totalorder %v1419, 1
      %vm1452 = vcmp.eq.s32.totalorder %v1420, 1
      %vm1453 = vcmp.eq.s32.totalorder %v1421, 1
      %vm1454 = vcmp.eq.s32.totalorder %v1422, 1
      %vm1455 = vcmp.eq.s32.totalorder %v1423, 1
      %vm1456 = vcmp.eq.s32.totalorder %v1424, 1
      %v1457 = vsel %vm1426, %v1264, 0.0
      %v1458 = vsel %vm1427, %v1174, 0.0
      %v1459 = vsel %vm1428, %v1176, 0.0
      %v1460 = vsel %vm1429, %v1178, 0.0
      %v1461 = vsel %vm1430, %v1180, 0.0
      %v1462 = vsel %vm1431, %v1182, 0.0
      %v1463 = vsel %vm1432, %v1184, 0.0
      %v1464 = vsel %vm1433, %v1186, 0.0
      %v1465 = vsel %vm1434, %v1188, 0.0
      %v1466 = vsel %vm1435, %v1190, 0.0
      %v1467 = vsel %vm1436, %v1192, 0.0
      %v1468 = vsel %vm1437, %v1194, 0.0
      %v1469 = vsel %vm1438, %v1196, 0.0
      %v1470 = vsel %vm1439, %v1198, 0.0
      %v1471 = vsel %vm1440, %v1200, 0.0
      %v1472 = vsel %vm1441, %v1202, 0.0
      %v1473 = vsel %vm1442, %v1204, 0.0
      %v1474 = vsel %vm1443, %v1206, 0.0
      %v1475 = vsel %vm1444, %v1208, 0.0
      %v1476 = vsel %vm1445, %v1210, 0.0
      %v1477 = vsel %vm1446, %v1212, 0.0
      %v1478 = vsel %vm1447, %v1214, 0.0
      %v1479 = vsel %vm1448, %v1216, 0.0
      %v1480 = vsel %vm1449, %v1218, 0.0
      %v1481 = vsel %vm1450, %v1220, 0.0
      %v1482 = vsel %vm1451, %v1222, 0.0
      %v1483 = vsel %vm1452, %v1224, 0.0
      %v1484 = vsel %vm1453, %v1226, 0.0
      %v1485 = vsel %vm1454, %v1228, 0.0
      %v1486 = vsel %vm1455, %v1230, 0.0
      %v1487 = vsel %vm1456, %v1232, 0.0
      %v1488 = vpack.c.bf16 %v1457, 0.0
      %v1489 = vpack.c.bf16 %v1459, %v1458
      %v1490 = vpack.c.bf16 %v1461, %v1460
      %v1491 = vpack.c.bf16 %v1463, %v1462
      %v1492 = vpack.c.bf16 %v1465, %v1464
      %v1493 = vpack.c.bf16 %v1467, %v1466
      %v1494 = vpack.c.bf16 %v1469, %v1468
      %v1495 = vpack.c.bf16 %v1471, %v1470
      %v1496 = vpack.c.bf16 %v1473, %v1472
      %v1497 = vpack.c.bf16 %v1475, %v1474
      %v1498 = vpack.c.bf16 %v1477, %v1476
      %v1499 = vpack.c.bf16 %v1479, %v1478
      %v1500 = vpack.c.bf16 %v1481, %v1480
      %v1501 = vpack.c.bf16 %v1483, %v1482
      %v1502 = vpack.c.bf16 %v1485, %v1484
      %v1503 = vpack.c.bf16 %v1487, %v1486
      %v1505 = vrot.slane %v377, 7
      %v1506 = vsel %vm826, %v884, %v1505
      %v1507 = vrot.slane %v378, 7
      %v1508 = vsel %vm826, %v1505, %v1507
      %v1511 = vsel %vm1077, %v916, 0.0
      %v1512 = vsel %vm1078, %v829, 0.0
      %v1513 = vsel %vm1079, %v831, 0.0
      %v1514 = vsel %vm1080, %v833, 0.0
      %v1515 = vsel %vm1081, %v835, 0.0
      %v1516 = vsel %vm1082, %v837, 0.0
      %v1517 = vsel %vm1083, %v839, 0.0
      %v1518 = vsel %vm1084, %v841, 0.0
      %v1519 = vsel %vm1085, %v843, 0.0
      %v1520 = vsel %vm1086, %v845, 0.0
      %v1521 = vsel %vm1087, %v847, 0.0
      %v1522 = vsel %vm1088, %v849, 0.0
      %v1523 = vsel %vm1089, %v851, 0.0
      %v1524 = vsel %vm1090, %v853, 0.0
      %v1525 = vsel %vm1091, %v855, 0.0
      %v1526 = vsel %vm1092, %v857, 0.0
      %v1527 = vsel %vm1093, %v859, 0.0
      %v1528 = vsel %vm1094, %v861, 0.0
      %v1529 = vsel %vm1095, %v863, 0.0
      %v1530 = vsel %vm1096, %v865, 0.0
      %v1531 = vsel %vm1097, %v867, 0.0
      %v1532 = vsel %vm1098, %v869, 0.0
      %v1533 = vsel %vm1099, %v871, 0.0
      %v1534 = vsel %vm1100, %v873, 0.0
      %v1535 = vsel %vm1101, %v875, 0.0
      %v1536 = vsel %vm1102, %v877, 0.0
      %v1537 = vsel %vm1103, %v879, 0.0
      %v1538 = vsel %vm1104, %v881, 0.0
      %v1539 = vsel %vm1105, %v883, 0.0
      %v1540 = vsel %vm1106, %v885, 0.0
      %v1541 = vsel %vm1107, %v1506, 0.0
      %v1542 = vsel %vm1108, %v1508, 0.0
      %v1543 = vpack.c.bf16 %v1512, %v1511
      %v1544 = vpack.c.bf16 %v1514, %v1513
      %v1545 = vpack.c.bf16 %v1516, %v1515
      %v1546 = vpack.c.bf16 %v1518, %v1517
      %v1547 = vpack.c.bf16 %v1520, %v1519
      %v1548 = vpack.c.bf16 %v1522, %v1521
      %v1549 = vpack.c.bf16 %v1524, %v1523
      %v1550 = vpack.c.bf16 %v1526, %v1525
      %v1551 = vpack.c.bf16 %v1528, %v1527
      %v1552 = vpack.c.bf16 %v1530, %v1529
      %v1553 = vpack.c.bf16 %v1532, %v1531
      %v1554 = vpack.c.bf16 %v1534, %v1533
      %v1555 = vpack.c.bf16 %v1536, %v1535
      %v1556 = vpack.c.bf16 %v1538, %v1537
      %v1557 = vpack.c.bf16 %v1540, %v1539
      %v1558 = vpack.c.bf16 %v1542, %v1541
      %v1559 = vpack.c.bf16 %v378, %v377
      %v1560 = vrot.slane %v378, 1
      %v1561 = vsel %vm1171, %v1231, %v1560
      %v1564 = vsel %vm1171, %v1560, 0.0
      %v1565 = vsel %vm1425, %v1174, 0.0
      %v1566 = vsel %vm1426, %v1176, 0.0
      %v1567 = vsel %vm1427, %v1178, 0.0
      %v1568 = vsel %vm1428, %v1180, 0.0
      %v1569 = vsel %vm1429, %v1182, 0.0
      %v1570 = vsel %vm1430, %v1184, 0.0
      %v1571 = vsel %vm1431, %v1186, 0.0
      %v1572 = vsel %vm1432, %v1188, 0.0
      %v1573 = vsel %vm1433, %v1190, 0.0
      %v1574 = vsel %vm1434, %v1192, 0.0
      %v1575 = vsel %vm1435, %v1194, 0.0
      %v1576 = vsel %vm1436, %v1196, 0.0
      %v1577 = vsel %vm1437, %v1198, 0.0
      %v1578 = vsel %vm1438, %v1200, 0.0
      %v1579 = vsel %vm1439, %v1202, 0.0
      %v1580 = vsel %vm1440, %v1204, 0.0
      %v1581 = vsel %vm1441, %v1206, 0.0
      %v1582 = vsel %vm1442, %v1208, 0.0
      %v1583 = vsel %vm1443, %v1210, 0.0
      %v1584 = vsel %vm1444, %v1212, 0.0
      %v1585 = vsel %vm1445, %v1214, 0.0
      %v1586 = vsel %vm1446, %v1216, 0.0
      %v1587 = vsel %vm1447, %v1218, 0.0
      %v1588 = vsel %vm1448, %v1220, 0.0
      %v1589 = vsel %vm1449, %v1222, 0.0
      %v1590 = vsel %vm1450, %v1224, 0.0
      %v1591 = vsel %vm1451, %v1226, 0.0
      %v1592 = vsel %vm1452, %v1228, 0.0
      %v1593 = vsel %vm1453, %v1230, 0.0
      %v1594 = vsel %vm1454, %v1232, 0.0
      %v1595 = vsel %vm1455, %v1561, 0.0
      %v1596 = vsel %vm1456, %v1564, 0.0
      %v1597 = vpack.c.bf16 %v1566, %v1565
      %v1598 = vpack.c.bf16 %v1568, %v1567
      %v1599 = vpack.c.bf16 %v1570, %v1569
      %v1600 = vpack.c.bf16 %v1572, %v1571
      %v1601 = vpack.c.bf16 %v1574, %v1573
      %v1602 = vpack.c.bf16 %v1576, %v1575
      %v1603 = vpack.c.bf16 %v1578, %v1577
      %v1604 = vpack.c.bf16 %v1580, %v1579
      %v1605 = vpack.c.bf16 %v1582, %v1581
      %v1606 = vpack.c.bf16 %v1584, %v1583
      %v1607 = vpack.c.bf16 %v1586, %v1585
      %v1608 = vpack.c.bf16 %v1588, %v1587
      %v1609 = vpack.c.bf16 %v1590, %v1589
      %v1610 = vpack.c.bf16 %v1592, %v1591
      %v1611 = vpack.c.bf16 %v1594, %v1593
      %v1612 = vpack.c.bf16 %v1596, %v1595
      %v1614 = vsel %vm826, %v1507, 0.0
      %v1615 = vsel %vm1077, %v831, 0.0
      %v1616 = vsel %vm1078, %v833, 0.0
      %v1617 = vsel %vm1079, %v835, 0.0
      %v1618 = vsel %vm1080, %v837, 0.0
      %v1619 = vsel %vm1081, %v839, 0.0
      %v1620 = vsel %vm1082, %v841, 0.0
      %v1621 = vsel %vm1083, %v843, 0.0
      %v1622 = vsel %vm1084, %v845, 0.0
      %v1623 = vsel %vm1085, %v847, 0.0
      %v1624 = vsel %vm1086, %v849, 0.0
      %v1625 = vsel %vm1087, %v851, 0.0
      %v1626 = vsel %vm1088, %v853, 0.0
      %v1627 = vsel %vm1089, %v855, 0.0
      %v1628 = vsel %vm1090, %v857, 0.0
      %v1629 = vsel %vm1091, %v859, 0.0
      %v1630 = vsel %vm1092, %v861, 0.0
      %v1631 = vsel %vm1093, %v863, 0.0
      %v1632 = vsel %vm1094, %v865, 0.0
      %v1633 = vsel %vm1095, %v867, 0.0
      %v1634 = vsel %vm1096, %v869, 0.0
      %v1635 = vsel %vm1097, %v871, 0.0
      %v1636 = vsel %vm1098, %v873, 0.0
      %v1637 = vsel %vm1099, %v875, 0.0
      %v1638 = vsel %vm1100, %v877, 0.0
      %v1639 = vsel %vm1101, %v879, 0.0
      %v1640 = vsel %vm1102, %v881, 0.0
      %v1641 = vsel %vm1103, %v883, 0.0
      %v1642 = vsel %vm1104, %v885, 0.0
      %v1643 = vsel %vm1105, %v1506, 0.0
      %v1644 = vsel %vm1106, %v1508, 0.0
      %v1645 = vsel %vm1107, %v1614, 0.0
      %v1646 = vpack.c.bf16 %v1616, %v1615
      %v1647 = vpack.c.bf16 %v1618, %v1617
      %v1648 = vpack.c.bf16 %v1620, %v1619
      %v1649 = vpack.c.bf16 %v1622, %v1621
      %v1650 = vpack.c.bf16 %v1624, %v1623
      %v1651 = vpack.c.bf16 %v1626, %v1625
      %v1652 = vpack.c.bf16 %v1628, %v1627
      %v1653 = vpack.c.bf16 %v1630, %v1629
      %v1654 = vpack.c.bf16 %v1632, %v1631
      %v1655 = vpack.c.bf16 %v1634, %v1633
      %v1656 = vpack.c.bf16 %v1636, %v1635
      %v1657 = vpack.c.bf16 %v1638, %v1637
      %v1658 = vpack.c.bf16 %v1640, %v1639
      %v1659 = vpack.c.bf16 %v1642, %v1641
      %v1660 = vpack.c.bf16 %v1644, %v1643
      %v1661 = vpack.c.bf16 0.0, %v1645
      %v1662 = vsel %vm1425, %v1178, 0.0
      %v1663 = vsel %vm1426, %v1180, 0.0
      %v1664 = vsel %vm1427, %v1182, 0.0
      %v1665 = vsel %vm1428, %v1184, 0.0
      %v1666 = vsel %vm1429, %v1186, 0.0
      %v1667 = vsel %vm1430, %v1188, 0.0
      %v1668 = vsel %vm1431, %v1190, 0.0
      %v1669 = vsel %vm1432, %v1192, 0.0
      %v1670 = vsel %vm1433, %v1194, 0.0
      %v1671 = vsel %vm1434, %v1196, 0.0
      %v1672 = vsel %vm1435, %v1198, 0.0
      %v1673 = vsel %vm1436, %v1200, 0.0
      %v1674 = vsel %vm1437, %v1202, 0.0
      %v1675 = vsel %vm1438, %v1204, 0.0
      %v1676 = vsel %vm1439, %v1206, 0.0
      %v1677 = vsel %vm1440, %v1208, 0.0
      %v1678 = vsel %vm1441, %v1210, 0.0
      %v1679 = vsel %vm1442, %v1212, 0.0
      %v1680 = vsel %vm1443, %v1214, 0.0
      %v1681 = vsel %vm1444, %v1216, 0.0
      %v1682 = vsel %vm1445, %v1218, 0.0
      %v1683 = vsel %vm1446, %v1220, 0.0
      %v1684 = vsel %vm1447, %v1222, 0.0
      %v1685 = vsel %vm1448, %v1224, 0.0
      %v1686 = vsel %vm1449, %v1226, 0.0
      %v1687 = vsel %vm1450, %v1228, 0.0
      %v1688 = vsel %vm1451, %v1230, 0.0
      %v1689 = vsel %vm1452, %v1232, 0.0
      %v1690 = vsel %vm1453, %v1561, 0.0
      %v1691 = vsel %vm1454, %v1564, 0.0
      %v1692 = vpack.c.bf16 %v1663, %v1662
      %v1693 = vpack.c.bf16 %v1665, %v1664
      %v1694 = vpack.c.bf16 %v1667, %v1666
      %v1695 = vpack.c.bf16 %v1669, %v1668
      %v1696 = vpack.c.bf16 %v1671, %v1670
      %v1697 = vpack.c.bf16 %v1673, %v1672
      %v1698 = vpack.c.bf16 %v1675, %v1674
      %v1699 = vpack.c.bf16 %v1677, %v1676
      %v1700 = vpack.c.bf16 %v1679, %v1678
      %v1701 = vpack.c.bf16 %v1681, %v1680
      %v1702 = vpack.c.bf16 %v1683, %v1682
      %v1703 = vpack.c.bf16 %v1685, %v1684
      %v1704 = vpack.c.bf16 %v1687, %v1686
      %v1705 = vpack.c.bf16 %v1689, %v1688
      %v1706 = vpack.c.bf16 %v1691, %v1690
      %v1707 = vld [vmem:[%s3] sm:$0xf]
      %v1708 = vld [vmem:[%s3 + $0x4] sm:$0xf]
      %v1709 = vld [vmem:[%s3 + $0x8] sm:$0xf]
      %v1710 = vld [vmem:[%s3 + $0xc] sm:$0xf]
      %v1711 = vld [vmem:[%s3 + $0x10] sm:$0xf]
      %v1712 = vld [vmem:[%s3 + $0x14] sm:$0xf]
      %v1713 = vld [vmem:[%s3 + $0x18] sm:$0xf]
      %v1714 = vld [vmem:[%s3 + $0x1c] sm:$0xf]
      %v1715 = vld [vmem:[%s3 + $0x20] sm:$0xf]
      %v1716 = vld [vmem:[%s3 + $0x24] sm:$0xf]
      %v1717 = vld [vmem:[%s3 + $0x28] sm:$0xf]
      %v1718 = vld [vmem:[%s3 + $0x2c] sm:$0xf]
      %v1719 = vld [vmem:[%s3 + $0x30] sm:$0xf]
      %v1720 = vld [vmem:[%s3 + $0x34] sm:$0xf]
      %v1721 = vld [vmem:[%s3 + $0x38] sm:$0xf]
      %v1722 = vld [vmem:[%s3 + $0x3c] sm:$0xf]
      %v1723 = vld [vmem:[%s3 + $0x40] sm:$0xf]
      %v1724 = vld [vmem:[%s3 + $0x44] sm:$0xf]
      %v1725 = vld [vmem:[%s3 + $0x48] sm:$0xf]
      %v1726 = vld [vmem:[%s3 + $0x4c] sm:$0xf]
      %v1727 = vld [vmem:[%s3 + $0x50] sm:$0xf]
      %v1728 = vld [vmem:[%s3 + $0x54] sm:$0xf]
      %v1729 = vld [vmem:[%s3 + $0x58] sm:$0xf]
      %v1730 = vld [vmem:[%s3 + $0x5c] sm:$0xf]
      %v1731 = vld [vmem:[%s3 + $0x60] sm:$0xf]
      %v1732 = vld [vmem:[%s3 + $0x64] sm:$0xf]
      %v1733 = vld [vmem:[%s3 + $0x68] sm:$0xf]
      %v1734 = vld [vmem:[%s3 + $0x6c] sm:$0xf]
      %v1735 = vld [vmem:[%s3 + $0x70] sm:$0xf]
      %v1736 = vld [vmem:[%s3 + $0x74] sm:$0xf]
      %v1737 = vld [vmem:[%s3 + $0x78] sm:$0xf]
      %v1738 = vld [vmem:[%s3 + $0x7c] sm:$0xf]
      %v1739 = vld [vmem:[%s3 + $0x80] sm:$0xf]
      %v1740 = vld [vmem:[%s3 + $0x84] sm:$0xf]
      %v1741 = vld [vmem:[%s3 + $0x88] sm:$0xf]
      %v1742 = vld [vmem:[%s3 + $0x8c] sm:$0xf]
      %v1743 = vld [vmem:[%s3 + $0x90] sm:$0xf]
      %v1744 = vld [vmem:[%s3 + $0x94] sm:$0xf]
      %v1745 = vld [vmem:[%s3 + $0x98] sm:$0xf]
      %v1746 = vld [vmem:[%s3 + $0x9c] sm:$0xf]
      %v1747 = vld [vmem:[%s3 + $0xa0] sm:$0xf]
      %v1748 = vld [vmem:[%s3 + $0xa4] sm:$0xf]
      %v1749 = vld [vmem:[%s3 + $0xa8] sm:$0xf]
      %v1750 = vld [vmem:[%s3 + $0xac] sm:$0xf]
      %v1751 = vld [vmem:[%s3 + $0xb0] sm:$0xf]
      %v1752 = vld [vmem:[%s3 + $0xb4] sm:$0xf]
      %v1753 = vld [vmem:[%s3 + $0xb8] sm:$0xf]
      %v1754 = vld [vmem:[%s3 + $0xbc] sm:$0xf]
      %v1755 = vld [vmem:[%s3 + $0xc0] sm:$0xf]
      %v1756 = vld [vmem:[%s3 + $0xc4] sm:$0xf]
      %v1757 = vld [vmem:[%s3 + $0xc8] sm:$0xf]
      %v1758 = vld [vmem:[%s3 + $0xcc] sm:$0xf]
      %v1759 = vld [vmem:[%s3 + $0xd0] sm:$0xf]
      %v1760 = vld [vmem:[%s3 + $0xd4] sm:$0xf]
      %v1761 = vld [vmem:[%s3 + $0xd8] sm:$0xf]
      %v1762 = vld [vmem:[%s3 + $0xdc] sm:$0xf]
      %v1763 = vld [vmem:[%s3 + $0xe0] sm:$0xf]
      %v1764 = vld [vmem:[%s3 + $0xe4] sm:$0xf]
      %v1765 = vld [vmem:[%s3 + $0xe8] sm:$0xf]
      %v1766 = vld [vmem:[%s3 + $0xec] sm:$0xf]
      %v1767 = vld [vmem:[%s3 + $0xf0] sm:$0xf]
      %v1768 = vld [vmem:[%s3 + $0xf4] sm:$0xf]
      %v1769 = vld [vmem:[%s3 + $0xf8] sm:$0xf]
      %v1770 = vld [vmem:[%s3 + $0xfc] sm:$0xf]
      %v1771 = vld [vmem:[%s3 + $0x100] sm:$0xf]
      %v1772 = vld [vmem:[%s3 + $0x104] sm:$0xf]
      %v1773 = vld [vmem:[%s3 + $0x108] sm:$0xf]
      %v1774 = vld [vmem:[%s3 + $0x10c] sm:$0xf]
      %v1775 = vld [vmem:[%s3 + $0x110] sm:$0xf]
      %v1776 = vld [vmem:[%s3 + $0x114] sm:$0xf]
      %v1777 = vld [vmem:[%s3 + $0x118] sm:$0xf]
      %v1778 = vld [vmem:[%s3 + $0x11c] sm:$0xf]
      %v1779 = vld [vmem:[%s3 + $0x120] sm:$0xf]
      %v1780 = vld [vmem:[%s3 + $0x124] sm:$0xf]
      %v1781 = vld [vmem:[%s3 + $0x128] sm:$0xf]
      %v1782 = vld [vmem:[%s3 + $0x12c] sm:$0xf]
      %v1783 = vld [vmem:[%s3 + $0x130] sm:$0xf]
      %v1784 = vld [vmem:[%s3 + $0x134] sm:$0xf]
      %v1785 = vld [vmem:[%s3 + $0x138] sm:$0xf]
      %v1786 = vld [vmem:[%s3 + $0x13c] sm:$0xf]
      %v1787 = vld [vmem:[%s3 + $0x140] sm:$0xf]
      %v1788 = vld [vmem:[%s3 + $0x144] sm:$0xf]
      %v1789 = vld [vmem:[%s3 + $0x148] sm:$0xf]
      %v1790 = vld [vmem:[%s3 + $0x14c] sm:$0xf]
      %v1791 = vld [vmem:[%s3 + $0x150] sm:$0xf]
      %v1792 = vld [vmem:[%s3 + $0x154] sm:$0xf]
      %v1793 = vld [vmem:[%s3 + $0x158] sm:$0xf]
      %v1794 = vld [vmem:[%s3 + $0x15c] sm:$0xf]
      %v1795 = vld [vmem:[%s3 + $0x160] sm:$0xf]
      %v1796 = vld [vmem:[%s3 + $0x164] sm:$0xf]
      %v1797 = vld [vmem:[%s3 + $0x168] sm:$0xf]
      %v1798 = vld [vmem:[%s3 + $0x16c] sm:$0xf]
      %v1799 = vld [vmem:[%s3 + $0x170] sm:$0xf]
      %v1800 = vld [vmem:[%s3 + $0x174] sm:$0xf]
      %v1801 = vld [vmem:[%s3 + $0x178] sm:$0xf]
      %v1802 = vld [vmem:[%s3 + $0x17c] sm:$0xf]
      %v1803 = vld [vmem:[%s3 + $0x180] sm:$0xf]
      %v1804 = vld [vmem:[%s3 + $0x184] sm:$0xf]
      %v1805 = vld [vmem:[%s3 + $0x188] sm:$0xf]
      %v1806 = vld [vmem:[%s3 + $0x18c] sm:$0xf]
      %v1807 = vld [vmem:[%s3 + $0x190] sm:$0xf]
      %v1808 = vld [vmem:[%s3 + $0x194] sm:$0xf]
      %v1809 = vld [vmem:[%s3 + $0x198] sm:$0xf]
      %v1810 = vld [vmem:[%s3 + $0x19c] sm:$0xf]
      %v1811 = vld [vmem:[%s3 + $0x1a0] sm:$0xf]
      %v1812 = vld [vmem:[%s3 + $0x1a4] sm:$0xf]
      %v1813 = vld [vmem:[%s3 + $0x1a8] sm:$0xf]
      %v1814 = vld [vmem:[%s3 + $0x1ac] sm:$0xf]
      %v1815 = vld [vmem:[%s3 + $0x1b0] sm:$0xf]
      %v1816 = vld [vmem:[%s3 + $0x1b4] sm:$0xf]
      %v1817 = vld [vmem:[%s3 + $0x1b8] sm:$0xf]
      %v1818 = vld [vmem:[%s3 + $0x1bc] sm:$0xf]
      %v1819 = vld [vmem:[%s3 + $0x1c0] sm:$0xf]
      %v1820 = vld [vmem:[%s3 + $0x1c4] sm:$0xf]
      %v1821 = vld [vmem:[%s3 + $0x1c8] sm:$0xf]
      %v1822 = vld [vmem:[%s3 + $0x1cc] sm:$0xf]
      %v1823 = vld [vmem:[%s3 + $0x1d0] sm:$0xf]
      %v1824 = vld [vmem:[%s3 + $0x1d4] sm:$0xf]
      %v1825 = vld [vmem:[%s3 + $0x1d8] sm:$0xf]
      %v1826 = vld [vmem:[%s3 + $0x1dc] sm:$0xf]
      %v1827 = vld [vmem:[%s3 + $0x1e0] sm:$0xf]
      %v1828 = vld [vmem:[%s3 + $0x1e4] sm:$0xf]
      %v1829 = vld [vmem:[%s3 + $0x1e8] sm:$0xf]
      %v1830 = vld [vmem:[%s3 + $0x1ec] sm:$0xf]
      %v1831 = vld [vmem:[%s3 + $0x1f0] sm:$0xf]
      %v1832 = vld [vmem:[%s3 + $0x1f4] sm:$0xf]
      %v1833 = vld [vmem:[%s3 + $0x1f8] sm:$0xf]
      %v1834 = vld [vmem:[%s3 + $0x1fc] sm:$0xf]
      %v1835 = vld [vmem:[%s3 + $0x200] sm:$0xf]
      %v1836 = vld [vmem:[%s3 + $0x204] sm:$0xf]
      %v1837 = vld [vmem:[%s3 + $0x208] sm:$0xf]
      %v1838 = vld [vmem:[%s3 + $0x20c] sm:$0xf]
      %v1839 = vld [vmem:[%s3 + $0x210] sm:$0xf]
      %v1840 = vld [vmem:[%s3 + $0x214] sm:$0xf]
      %v1841 = vld [vmem:[%s3 + $0x218] sm:$0xf]
      %v1842 = vld [vmem:[%s3 + $0x21c] sm:$0xf]
      %v1843 = vld [vmem:[%s3 + $0x220] sm:$0xf]
      %v1844 = vld [vmem:[%s3 + $0x224] sm:$0xf]
      %v1845 = vld [vmem:[%s3 + $0x228] sm:$0xf]
      %v1846 = vld [vmem:[%s3 + $0x22c] sm:$0xf]
      %v1847 = vld [vmem:[%s3 + $0x230] sm:$0xf]
      %v1848 = vld [vmem:[%s3 + $0x234] sm:$0xf]
      %v1849 = vld [vmem:[%s3 + $0x238] sm:$0xf]
      %v1850 = vld [vmem:[%s3 + $0x23c] sm:$0xf]
      %v1995 = vunpack.c.l.b16 %v1707
      %v1996 = vunpack.c.l.b16 %v1708
      %v1997 = vunpack.c.l.b16 %v1709
      %v1998 = vunpack.c.l.b16 %v1710
      %v1999 = vunpack.c.l.b16 %v1711
      %v2000 = vunpack.c.l.b16 %v1712
      %v2001 = vunpack.c.l.b16 %v1713
      %v2002 = vunpack.c.l.b16 %v1714
      %v2003 = vunpack.c.l.b16 %v1715
      %v2004 = vunpack.c.l.b16 %v1716
      %v2005 = vunpack.c.l.b16 %v1717
      %v2006 = vunpack.c.l.b16 %v1718
      %v2007 = vunpack.c.l.b16 %v1719
      %v2008 = vunpack.c.l.b16 %v1720
      %v2009 = vunpack.c.l.b16 %v1721
      %v2010 = vunpack.c.l.b16 %v1722
      %v2011 = vunpack.c.l.b16 %v1723
      %v2012 = vunpack.c.l.b16 %v1724
      %v2013 = vunpack.c.l.b16 %v1725
      %v2014 = vunpack.c.l.b16 %v1726
      %v2015 = vunpack.c.l.b16 %v1727
      %v2016 = vunpack.c.l.b16 %v1728
      %v2017 = vunpack.c.l.b16 %v1729
      %v2018 = vunpack.c.l.b16 %v1730
      %v2019 = vunpack.c.l.b16 %v1731
      %v2020 = vunpack.c.l.b16 %v1732
      %v2021 = vunpack.c.l.b16 %v1733
      %v2022 = vunpack.c.l.b16 %v1734
      %v2023 = vunpack.c.l.b16 %v1735
      %v2024 = vunpack.c.l.b16 %v1736
      %v2025 = vunpack.c.l.b16 %v1737
      %v2026 = vunpack.c.l.b16 %v1738
      %v2027 = vunpack.c.l.b16 %v1739
      %v2028 = vunpack.c.l.b16 %v1740
      %v2029 = vunpack.c.l.b16 %v1741
      %v2030 = vunpack.c.l.b16 %v1742
      %v2031 = vunpack.c.l.b16 %v1743
      %v2032 = vunpack.c.l.b16 %v1744
      %v2033 = vunpack.c.l.b16 %v1745
      %v2034 = vunpack.c.l.b16 %v1746
      %v2035 = vunpack.c.l.b16 %v1747
      %v2036 = vunpack.c.l.b16 %v1748
      %v2037 = vunpack.c.l.b16 %v1749
      %v2038 = vunpack.c.l.b16 %v1750
      %v2039 = vunpack.c.l.b16 %v1751
      %v2040 = vunpack.c.l.b16 %v1752
      %v2041 = vunpack.c.l.b16 %v1753
      %v2042 = vunpack.c.l.b16 %v1754
      %v2043 = vunpack.c.l.b16 %v1755
      %v2044 = vunpack.c.l.b16 %v1756
      %v2045 = vunpack.c.l.b16 %v1757
      %v2046 = vunpack.c.l.b16 %v1758
      %v2047 = vunpack.c.l.b16 %v1759
      %v2048 = vunpack.c.l.b16 %v1760
      %v2049 = vunpack.c.l.b16 %v1761
      %v2050 = vunpack.c.l.b16 %v1762
      %v2051 = vunpack.c.l.b16 %v1763
      %v2052 = vunpack.c.l.b16 %v1764
      %v2053 = vunpack.c.l.b16 %v1765
      %v2054 = vunpack.c.l.b16 %v1766
      %v2055 = vunpack.c.l.b16 %v1767
      %v2056 = vunpack.c.l.b16 %v1768
      %v2057 = vunpack.c.l.b16 %v1769
      %v2058 = vunpack.c.l.b16 %v1770
      %v2059 = vunpack.c.l.b16 %v1771
      %v2060 = vunpack.c.l.b16 %v1772
      %v2061 = vunpack.c.l.b16 %v1773
      %v2062 = vunpack.c.l.b16 %v1774
      %v2063 = vunpack.c.l.b16 %v1775
      %v2064 = vunpack.c.l.b16 %v1776
      %v2065 = vunpack.c.l.b16 %v1777
      %v2066 = vunpack.c.l.b16 %v1778
      %v2067 = vunpack.c.l.b16 %v1779
      %v2068 = vunpack.c.l.b16 %v1780
      %v2069 = vunpack.c.l.b16 %v1781
      %v2070 = vunpack.c.l.b16 %v1782
      %v2071 = vunpack.c.l.b16 %v1783
      %v2072 = vunpack.c.l.b16 %v1784
      %v2073 = vunpack.c.l.b16 %v1785
      %v2074 = vunpack.c.l.b16 %v1786
      %v2075 = vunpack.c.l.b16 %v1787
      %v2076 = vunpack.c.l.b16 %v1788
      %v2077 = vunpack.c.l.b16 %v1789
      %v2078 = vunpack.c.l.b16 %v1790
      %v2079 = vunpack.c.l.b16 %v1791
      %v2080 = vunpack.c.l.b16 %v1792
      %v2081 = vunpack.c.l.b16 %v1793
      %v2082 = vunpack.c.l.b16 %v1794
      %v2083 = vunpack.c.l.b16 %v1795
      %v2084 = vunpack.c.l.b16 %v1796
      %v2085 = vunpack.c.l.b16 %v1797
      %v2086 = vunpack.c.l.b16 %v1798
      %v2087 = vunpack.c.l.b16 %v1799
      %v2088 = vunpack.c.l.b16 %v1800
      %v2089 = vunpack.c.l.b16 %v1801
      %v2090 = vunpack.c.l.b16 %v1802
      %v2091 = vunpack.c.l.b16 %v1803
      %v2092 = vunpack.c.l.b16 %v1804
      %v2093 = vunpack.c.l.b16 %v1805
      %v2094 = vunpack.c.l.b16 %v1806
      %v2095 = vunpack.c.l.b16 %v1807
      %v2096 = vunpack.c.l.b16 %v1808
      %v2097 = vunpack.c.l.b16 %v1809
      %v2098 = vunpack.c.l.b16 %v1810
      %v2099 = vunpack.c.l.b16 %v1811
      %v2100 = vunpack.c.l.b16 %v1812
      %v2101 = vunpack.c.l.b16 %v1813
      %v2102 = vunpack.c.l.b16 %v1814
      %v2103 = vunpack.c.l.b16 %v1815
      %v2104 = vunpack.c.l.b16 %v1816
      %v2105 = vunpack.c.l.b16 %v1817
      %v2106 = vunpack.c.l.b16 %v1818
      %v2107 = vunpack.c.l.b16 %v1819
      %v2108 = vunpack.c.l.b16 %v1820
      %v2109 = vunpack.c.l.b16 %v1821
      %v2110 = vunpack.c.l.b16 %v1822
      %v2111 = vunpack.c.l.b16 %v1823
      %v2112 = vunpack.c.l.b16 %v1824
      %v2113 = vunpack.c.l.b16 %v1825
      %v2114 = vunpack.c.l.b16 %v1826
      %v2115 = vunpack.c.l.b16 %v1827
      %v2116 = vunpack.c.l.b16 %v1828
      %v2117 = vunpack.c.l.b16 %v1829
      %v2118 = vunpack.c.l.b16 %v1830
      %v2119 = vunpack.c.l.b16 %v1831
      %v2120 = vunpack.c.l.b16 %v1832
      %v2121 = vunpack.c.l.b16 %v1833
      %v2122 = vunpack.c.l.b16 %v1834
      %v2123 = vunpack.c.l.b16 %v1835
      %v2124 = vunpack.c.l.b16 %v1836
      %v2125 = vunpack.c.l.b16 %v1837
      %v2126 = vunpack.c.l.b16 %v1838
      %v2127 = vunpack.c.l.b16 %v1839
      %v2128 = vunpack.c.l.b16 %v1840
      %v2129 = vunpack.c.l.b16 %v1841
      %v2130 = vunpack.c.l.b16 %v1842
      %v2131 = vunpack.c.l.b16 %v1843
      %v2132 = vunpack.c.l.b16 %v1844
      %v2133 = vunpack.c.l.b16 %v1845
      %v2134 = vunpack.c.l.b16 %v1846
      %v2135 = vunpack.c.l.b16 %v1847
      %v2136 = vunpack.c.l.b16 %v1848
      %v2137 = vunpack.c.l.b16 %v1849
      %v2138 = vunpack.c.l.b16 %v1850
      %v2139 = vpack.c.b16 %v1996, %v1995
      %v2140 = vpack.c.b16 %v1998, %v1997
      %v2141 = vpack.c.b16 %v2000, %v1999
      %v2142 = vpack.c.b16 %v2002, %v2001
      %v2143 = vpack.c.b16 %v2004, %v2003
      %v2144 = vpack.c.b16 %v2006, %v2005
      %v2145 = vpack.c.b16 %v2008, %v2007
      %v2146 = vpack.c.b16 %v2010, %v2009
      %v2147 = vpack.c.b16 %v2012, %v2011
      %v2148 = vpack.c.b16 %v2014, %v2013
      %v2149 = vpack.c.b16 %v2016, %v2015
      %v2150 = vpack.c.b16 %v2018, %v2017
      %v2151 = vpack.c.b16 %v2020, %v2019
      %v2152 = vpack.c.b16 %v2022, %v2021
      %v2153 = vpack.c.b16 %v2024, %v2023
      %v2154 = vpack.c.b16 %v2026, %v2025
      %v2155 = vpack.c.b16 %v2028, %v2027
      %v2156 = vpack.c.b16 %v2030, %v2029
      %v2157 = vpack.c.b16 %v2032, %v2031
      %v2158 = vpack.c.b16 %v2034, %v2033
      %v2159 = vpack.c.b16 %v2036, %v2035
      %v2160 = vpack.c.b16 %v2038, %v2037
      %v2161 = vpack.c.b16 %v2040, %v2039
      %v2162 = vpack.c.b16 %v2042, %v2041
      %v2163 = vpack.c.b16 %v2044, %v2043
      %v2164 = vpack.c.b16 %v2046, %v2045
      %v2165 = vpack.c.b16 %v2048, %v2047
      %v2166 = vpack.c.b16 %v2050, %v2049
      %v2167 = vpack.c.b16 %v2052, %v2051
      %v2168 = vpack.c.b16 %v2054, %v2053
      %v2169 = vpack.c.b16 %v2056, %v2055
      %v2170 = vpack.c.b16 %v2058, %v2057
      %v2171 = vpack.c.b16 %v2060, %v2059
      %v2172 = vpack.c.b16 %v2062, %v2061
      %v2173 = vpack.c.b16 %v2064, %v2063
      %v2174 = vpack.c.b16 %v2066, %v2065
      %v2175 = vpack.c.b16 %v2068, %v2067
      %v2176 = vpack.c.b16 %v2070, %v2069
      %v2177 = vpack.c.b16 %v2072, %v2071
      %v2178 = vpack.c.b16 %v2074, %v2073
      %v2179 = vpack.c.b16 %v2076, %v2075
      %v2180 = vpack.c.b16 %v2078, %v2077
      %v2181 = vpack.c.b16 %v2080, %v2079
      %v2182 = vpack.c.b16 %v2082, %v2081
      %v2183 = vpack.c.b16 %v2084, %v2083
      %v2184 = vpack.c.b16 %v2086, %v2085
      %v2185 = vpack.c.b16 %v2088, %v2087
      %v2186 = vpack.c.b16 %v2090, %v2089
      %v2187 = vpack.c.b16 %v2092, %v2091
      %v2188 = vpack.c.b16 %v2094, %v2093
      %v2189 = vpack.c.b16 %v2096, %v2095
      %v2190 = vpack.c.b16 %v2098, %v2097
      %v2191 = vpack.c.b16 %v2100, %v2099
      %v2192 = vpack.c.b16 %v2102, %v2101
      %v2193 = vpack.c.b16 %v2104, %v2103
      %v2194 = vpack.c.b16 %v2106, %v2105
      %v2195 = vpack.c.b16 %v2108, %v2107
      %v2196 = vpack.c.b16 %v2110, %v2109
      %v2197 = vpack.c.b16 %v2112, %v2111
      %v2198 = vpack.c.b16 %v2114, %v2113
      %v2199 = vpack.c.b16 %v2116, %v2115
      %v2200 = vpack.c.b16 %v2118, %v2117
      %v2201 = vpack.c.b16 %v2120, %v2119
      %v2202 = vpack.c.b16 %v2122, %v2121
      %v2203 = vpack.c.b16 %v2124, %v2123
      %v2204 = vpack.c.b16 %v2126, %v2125
      %v2205 = vpack.c.b16 %v2128, %v2127
      %v2206 = vpack.c.b16 %v2130, %v2129
      %v2207 = vpack.c.b16 %v2132, %v2131
      %v2208 = vpack.c.b16 %v2134, %v2133
      %v2209 = vpack.c.b16 %v2136, %v2135
      %v2210 = vpack.c.b16 %v2138, %v2137
      %2283 = vmatprep.subr.bf16.mxu0 0
      %2284 = vmatpush1.bf16.msra.mxu0 %v2139
      %2285 = vmatprep.subr.bf16.mxu0 0
      %2286 = vmatpush1.bf16.msra.mxu0 %v2140
      %2287 = vmatprep.subr.bf16.mxu0 0
      %2288 = vmatpush1.bf16.msra.mxu0 %v2141
      %2289 = vmatprep.subr.bf16.mxu0 0
      %2290 = vmatpush1.bf16.msra.mxu0 %v2142
      %2291 = vmatprep.subr.bf16.mxu0 0
      %2292 = vmatpush1.bf16.msra.mxu0 %v2143
      %2293 = vmatprep.subr.bf16.mxu0 0
      %2294 = vmatpush1.bf16.msra.mxu0 %v2144
      %2295 = vmatprep.subr.bf16.mxu0 0
      %2296 = vmatpush1.bf16.msra.mxu0 %v2145
      %2297 = vmatprep.subr.bf16.mxu0 0
      %2298 = vmatpush1.bf16.msra.mxu0 %v2146
      %2299 = vmatprep.subr.bf16.mxu0 0
      %2300 = vmatpush1.bf16.msra.mxu0 %v2147
      %2301 = vmatprep.subr.bf16.mxu0 0
      %2302 = vmatpush1.bf16.msra.mxu0 %v2148
      %2303 = vmatprep.subr.bf16.mxu0 0
      %2304 = vmatpush1.bf16.msra.mxu0 %v2149
      %2305 = vmatprep.subr.bf16.mxu0 0
      %2306 = vmatpush1.bf16.msra.mxu0 %v2150
      %2307 = vmatprep.subr.bf16.mxu0 0
      %2308 = vmatpush1.bf16.msra.mxu0 %v2151
      %2309 = vmatprep.subr.bf16.mxu0 0
      %2310 = vmatpush1.bf16.msra.mxu0 %v2152
      %2311 = vmatprep.subr.bf16.mxu0 0
      %2312 = vmatpush1.bf16.msra.mxu0 %v2153
      %2313 = vmatprep.subr.bf16.mxu0 0
      %2314 = vmatpush1.bf16.msra.mxu0 %v2154
      %2315 = vmatprep.mubr.bf16.mxu0 %v1139
      %2316 = vmatmul.mubr.bf16.gmra.mrb[0].mxu0 %v1139
      %v2317 = vpop.f32.mrb[0].mxu0
      %v2318 = vadd.f32 0.0, %v2317
      %v2319 = vpop.f32.mrb[0].mxu0
      %v2320 = vpop.f32.mrb[0].mxu0
      %v2321 = vadd.f32 0.0, %v2320
      %v2322 = vpop.f32.mrb[0].mxu0
      %2323 = vmatprep.mubr.bf16.mxu0 %v1155
      %2324 = vmatmul.mubr.bf16.gmra.mrb[0].mxu0 %v1140
      %v2325 = vpop.f32.mrb[0].mxu0
      %v2326 = vadd.f32 0.0, %v2325
      %v2327 = vpop.f32.mrb[0].mxu0
      %v2328 = vpop.f32.mrb[0].mxu0
      %v2329 = vadd.f32 0.0, %v2328
      %v2330 = vpop.f32.mrb[0].mxu0
      %2331 = vmatprep.mubr.bf16.mxu0 %v1156
      %2332 = vmatmul.mubr.bf16.gmra.mrb[0].mxu0 %v1141
      %v2333 = vpop.f32.mrb[0].mxu0
      %v2334 = vadd.f32 0.0, %v2333
      %v2335 = vpop.f32.mrb[0].mxu0
      %v2336 = vpop.f32.mrb[0].mxu0
      %v2337 = vadd.f32 0.0, %v2336
      %v2338 = vpop.f32.mrb[0].mxu0
      %2339 = vmatprep.mubr.bf16.mxu0 %v1157
      %2340 = vmatmul.mubr.bf16.gmra.mrb[0].mxu0 %v1142
      %v2341 = vpop.f32.mrb[0].mxu0
      %v2342 = vadd.f32 0.0, %v2341
      %v2343 = vpop.f32.mrb[0].mxu0
      %v2344 = vpop.f32.mrb[0].mxu0
      %v2345 = vadd.f32 0.0, %v2344
      %v2346 = vpop.f32.mrb[0].mxu0
      %2347 = vmatprep.mubr.bf16.mxu0 %v1158
      %2348 = vmatmul.mubr.bf16.gmra.mrb[0].mxu0 %v1143
      %v2349 = vpop.f32.mrb[0].mxu0
      %v2350 = vadd.f32 0.0, %v2349
      %v2351 = vpop.f32.mrb[0].mxu0
      %v2352 = vpop.f32.mrb[0].mxu0
      %v2353 = vadd.f32 0.0, %v2352
      %v2354 = vpop.f32.mrb[0].mxu0
      %2355 = vmatprep.mubr.bf16.mxu0 %v1159
      %2356 = vmatmul.mubr.bf16.gmra.mrb[0].mxu0 %v1144
      %v2357 = vpop.f32.mrb[0].mxu0
      %v2358 = vadd.f32 0.0, %v2357
      %v2359 = vpop.f32.mrb[0].mxu0
      %v2360 = vpop.f32.mrb[0].mxu0
      %v2361 = vadd.f32 0.0, %v2360
      %v2362 = vpop.f32.mrb[0].mxu0
      %2363 = vmatprep.mubr.bf16.mxu0 %v1160
      %2364 = vmatmul.mubr.bf16.gmra.mrb[0].mxu0 %v1145
      %v2365 = vpop.f32.mrb[0].mxu0
      %v2366 = vadd.f32 0.0, %v2365
      %v2367 = vpop.f32.mrb[0].mxu0
      %v2368 = vpop.f32.mrb[0].mxu0
      %v2369 = vadd.f32 0.0, %v2368
      %v2370 = vpop.f32.mrb[0].mxu0
      %2371 = vmatprep.mubr.bf16.mxu0 %v1161
      %2372 = vmatmul.mubr.bf16.gmra.mrb[0].mxu0 %v1146
      %v2373 = vpop.f32.mrb[0].mxu0
      %v2374 = vadd.f32 0.0, %v2373
      %v2375 = vpop.f32.mrb[0].mxu0
      %v2376 = vpop.f32.mrb[0].mxu0
      %v2377 = vadd.f32 0.0, %v2376
      %v2378 = vpop.f32.mrb[0].mxu0
      %2379 = vmatprep.mubr.bf16.mxu0 %v1162
      %2380 = vmatmul.mubr.bf16.gmra.mrb[0].mxu0 %v1147
      %v2381 = vpop.f32.mrb[0].mxu0
      %v2382 = vadd.f32 0.0, %v2381
      %v2383 = vpop.f32.mrb[0].mxu0
      %v2384 = vpop.f32.mrb[0].mxu0
      %v2385 = vadd.f32 0.0, %v2384
      %v2386 = vpop.f32.mrb[0].mxu0
      %2387 = vmatprep.mubr.bf16.mxu0 %v1163
      %2388 = vmatmul.mubr.bf16.gmra.mrb[0].mxu0 %v1148
      %v2389 = vpop.f32.mrb[0].mxu0
      %v2390 = vadd.f32 0.0, %v2389
      %v2391 = vpop.f32.mrb[0].mxu0
      %v2392 = vpop.f32.mrb[0].mxu0
      %v2393 = vadd.f32 0.0, %v2392
      %v2394 = vpop.f32.mrb[0].mxu0
      %2395 = vmatprep.mubr.bf16.mxu0 %v1164
      %2396 = vmatmul.mubr.bf16.gmra.mrb[0].mxu0 %v1149
      %v2397 = vpop.f32.mrb[0].mxu0
      %v2398 = vadd.f32 0.0, %v2397
      %v2399 = vpop.f32.mrb[0].mxu0
      %v2400 = vpop.f32.mrb[0].mxu0
      %v2401 = vadd.f32 0.0, %v2400
      %v2402 = vpop.f32.mrb[0].mxu0
      %2403 = vmatprep.mubr.bf16.mxu0 %v1165
      %2404 = vmatmul.mubr.bf16.gmra.mrb[0].mxu0 %v1150
      %v2405 = vpop.f32.mrb[0].mxu0
      %v2406 = vadd.f32 0.0, %v2405
      %v2407 = vpop.f32.mrb[0].mxu0
      %v2408 = vpop.f32.mrb[0].mxu0
      %v2409 = vadd.f32 0.0, %v2408
      %v2410 = vpop.f32.mrb[0].mxu0
      %2411 = vmatprep.mubr.bf16.mxu0 %v1166
      %2412 = vmatmul.mubr.bf16.gmra.mrb[0].mxu0 %v1151
      %v2413 = vpop.f32.mrb[0].mxu0
      %v2414 = vadd.f32 0.0, %v2413
      %v2415 = vpop.f32.mrb[0].mxu0
      %v2416 = vpop.f32.mrb[0].mxu0
      %v2417 = vadd.f32 0.0, %v2416
      %v2418 = vpop.f32.mrb[0].mxu0
      %2419 = vmatprep.mubr.bf16.mxu0 %v1167
      %2420 = vmatmul.mubr.bf16.gmra.mrb[0].mxu0 %v1152
      %v2421 = vpop.f32.mrb[0].mxu0
      %v2422 = vadd.f32 0.0, %v2421
      %v2423 = vpop.f32.mrb[0].mxu0
      %v2424 = vpop.f32.mrb[0].mxu0
      %v2425 = vadd.f32 0.0, %v2424
      %v2426 = vpop.f32.mrb[0].mxu0
      %2427 = vmatprep.mubr.bf16.mxu0 %v1168
      %2428 = vmatmul.mubr.bf16.gmra.mrb[0].mxu0 %v1153
      %v2429 = vpop.f32.mrb[0].mxu0
      %v2430 = vadd.f32 0.0, %v2429
      %v2431 = vpop.f32.mrb[0].mxu0
      %v2432 = vpop.f32.mrb[0].mxu0
      %v2433 = vadd.f32 0.0, %v2432
      %v2434 = vpop.f32.mrb[0].mxu0
      %2435 = vmatprep.mubr.bf16.mxu0 %v1169
      %2436 = vmatmul.mubr.bf16.gmra.mrb[0].mxu0 %v1154
      %v2437 = vpop.f32.mrb[0].mxu0
      %v2438 = vadd.f32 0.0, %v2437
      %v2439 = vpop.f32.mrb[0].mxu0
      %v2440 = vpop.f32.mrb[0].mxu0
      %v2441 = vadd.f32 0.0, %v2440
      %v2442 = vpop.f32.mrb[0].mxu0
      %2443 = vdwg.mxu0
      %2444 = vmatprep.subr.bf16.mxu0 0
      %2445 = vmatpush1.bf16.msra.mxu0 %v2155
      %2446 = vmatprep.subr.bf16.mxu0 0
      %2447 = vmatpush1.bf16.msra.mxu0 %v2156
      %2448 = vmatprep.subr.bf16.mxu0 0
      %2449 = vmatpush1.bf16.msra.mxu0 %v2157
      %2450 = vmatprep.subr.bf16.mxu0 0
      %2451 = vmatpush1.bf16.msra.mxu0 %v2158
      %2452 = vmatprep.subr.bf16.mxu0 0
      %2453 = vmatpush1.bf16.msra.mxu0 %v2159
      %2454 = vmatprep.subr.bf16.mxu0 0
      %2455 = vmatpush1.bf16.msra.mxu0 %v2160
      %2456 = vmatprep.subr.bf16.mxu0 0
      %2457 = vmatpush1.bf16.msra.mxu0 %v2161
      %2458 = vmatprep.subr.bf16.mxu0 0
      %2459 = vmatpush1.bf16.msra.mxu0 %v2162
      %2460 = vmatprep.subr.bf16.mxu0 0
      %2461 = vmatpush1.bf16.msra.mxu0 %v2163
      %2462 = vmatprep.subr.bf16.mxu0 0
      %2463 = vmatpush1.bf16.msra.mxu0 %v2164
      %2464 = vmatprep.subr.bf16.mxu0 0
      %2465 = vmatpush1.bf16.msra.mxu0 %v2165
      %2466 = vmatprep.subr.bf16.mxu0 0
      %2467 = vmatpush1.bf16.msra.mxu0 %v2166
      %2468 = vmatprep.subr.bf16.mxu0 0
      %2469 = vmatpush1.bf16.msra.mxu0 %v2167
      %2470 = vmatprep.subr.bf16.mxu0 0
      %2471 = vmatpush1.bf16.msra.mxu0 %v2168
      %2472 = vmatprep.subr.bf16.mxu0 0
      %2473 = vmatpush1.bf16.msra.mxu0 %v2169
      %2474 = vmatprep.subr.bf16.mxu0 0
      %2475 = vmatpush1.bf16.msra.mxu0 %v2170
      %2476 = vmatprep.mubr.bf16.mxu0 %v1543
      %2477 = vmatmul.mubr.bf16.gmra.mrb[0].mxu0 %v1488
      %v2478 = vpop.f32.mrb[0].mxu0
      %v2479 = vadd.f32 %v2318, %v2478
      %v2480 = vpop.f32.mrb[0].mxu0
      %v2481 = vpop.f32.mrb[0].mxu0
      %v2482 = vadd.f32 %v2321, %v2481
      %v2483 = vpop.f32.mrb[0].mxu0
      %2484 = vmatprep.mubr.bf16.mxu0 %v1544
      %2485 = vmatmul.mubr.bf16.gmra.mrb[0].mxu0 %v1489
      %v2486 = vpop.f32.mrb[0].mxu0
      %v2487 = vadd.f32 %v2326, %v2486
      %v2488 = vpop.f32.mrb[0].mxu0
      %v2489 = vpop.f32.mrb[0].mxu0
      %v2490 = vadd.f32 %v2329, %v2489
      %v2491 = vpop.f32.mrb[0].mxu0
      %2492 = vmatprep.mubr.bf16.mxu0 %v1545
      %2493 = vmatmul.mubr.bf16.gmra.mrb[0].mxu0 %v1490
      %v2494 = vpop.f32.mrb[0].mxu0
      %v2495 = vadd.f32 %v2334, %v2494
      %v2496 = vpop.f32.mrb[0].mxu0
      %v2497 = vpop.f32.mrb[0].mxu0
      %v2498 = vadd.f32 %v2337, %v2497
      %v2499 = vpop.f32.mrb[0].mxu0
      %2500 = vmatprep.mubr.bf16.mxu0 %v1546
      %2501 = vmatmul.mubr.bf16.gmra.mrb[0].mxu0 %v1491
      %v2502 = vpop.f32.mrb[0].mxu0
      %v2503 = vadd.f32 %v2342, %v2502
      %v2504 = vpop.f32.mrb[0].mxu0
      %v2505 = vpop.f32.mrb[0].mxu0
      %v2506 = vadd.f32 %v2345, %v2505
      %v2507 = vpop.f32.mrb[0].mxu0
      %2508 = vmatprep.mubr.bf16.mxu0 %v1547
      %2509 = vmatmul.mubr.bf16.gmra.mrb[0].mxu0 %v1492
      %v2510 = vpop.f32.mrb[0].mxu0
      %v2511 = vadd.f32 %v2350, %v2510
      %v2512 = vpop.f32.mrb[0].mxu0
      %v2513 = vpop.f32.mrb[0].mxu0
      %v2514 = vadd.f32 %v2353, %v2513
      %v2515 = vpop.f32.mrb[0].mxu0
      %2516 = vmatprep.mubr.bf16.mxu0 %v1548
      %2517 = vmatmul.mubr.bf16.gmra.mrb[0].mxu0 %v1493
      %v2518 = vpop.f32.mrb[0].mxu0
      %v2519 = vadd.f32 %v2358, %v2518
      %v2520 = vpop.f32.mrb[0].mxu0
      %v2521 = vpop.f32.mrb[0].mxu0
      %v2522 = vadd.f32 %v2361, %v2521
      %v2523 = vpop.f32.mrb[0].mxu0
      %2524 = vmatprep.mubr.bf16.mxu0 %v1549
      %2525 = vmatmul.mubr.bf16.gmra.mrb[0].mxu0 %v1494
      %v2526 = vpop.f32.mrb[0].mxu0
      %v2527 = vadd.f32 %v2366, %v2526
      %v2528 = vpop.f32.mrb[0].mxu0
      %v2529 = vpop.f32.mrb[0].mxu0
      %v2530 = vadd.f32 %v2369, %v2529
      %v2531 = vpop.f32.mrb[0].mxu0
      %2532 = vmatprep.mubr.bf16.mxu0 %v1550
      %2533 = vmatmul.mubr.bf16.gmra.mrb[0].mxu0 %v1495
      %v2534 = vpop.f32.mrb[0].mxu0
      %v2535 = vadd.f32 %v2374, %v2534
      %v2536 = vpop.f32.mrb[0].mxu0
      %v2537 = vpop.f32.mrb[0].mxu0
      %v2538 = vadd.f32 %v2377, %v2537
      %v2539 = vpop.f32.mrb[0].mxu0
      %2540 = vmatprep.mubr.bf16.mxu0 %v1551
      %2541 = vmatmul.mubr.bf16.gmra.mrb[0].mxu0 %v1496
      %v2542 = vpop.f32.mrb[0].mxu0
      %v2543 = vadd.f32 %v2382, %v2542
      %v2544 = vpop.f32.mrb[0].mxu0
      %v2545 = vpop.f32.mrb[0].mxu0
      %v2546 = vadd.f32 %v2385, %v2545
      %v2547 = vpop.f32.mrb[0].mxu0
      %2548 = vmatprep.mubr.bf16.mxu0 %v1552
      %2549 = vmatmul.mubr.bf16.gmra.mrb[0].mxu0 %v1497
      %v2550 = vpop.f32.mrb[0].mxu0
      %v2551 = vadd.f32 %v2390, %v2550
      %v2552 = vpop.f32.mrb[0].mxu0
      %v2553 = vpop.f32.mrb[0].mxu0
      %v2554 = vadd.f32 %v2393, %v2553
      %v2555 = vpop.f32.mrb[0].mxu0
      %2556 = vmatprep.mubr.bf16.mxu0 %v1553
      %2557 = vmatmul.mubr.bf16.gmra.mrb[0].mxu0 %v1498
      %v2558 = vpop.f32.mrb[0].mxu0
      %v2559 = vadd.f32 %v2398, %v2558
      %v2560 = vpop.f32.mrb[0].mxu0
      %v2561 = vpop.f32.mrb[0].mxu0
      %v2562 = vadd.f32 %v2401, %v2561
      %v2563 = vpop.f32.mrb[0].mxu0
      %2564 = vmatprep.mubr.bf16.mxu0 %v1554
      %2565 = vmatmul.mubr.bf16.gmra.mrb[0].mxu0 %v1499
      %v2566 = vpop.f32.mrb[0].mxu0
      %v2567 = vadd.f32 %v2406, %v2566
      %v2568 = vpop.f32.mrb[0].mxu0
      %v2569 = vpop.f32.mrb[0].mxu0
      %v2570 = vadd.f32 %v2409, %v2569
      %v2571 = vpop.f32.mrb[0].mxu0
      %2572 = vmatprep.mubr.bf16.mxu0 %v1555
      %2573 = vmatmul.mubr.bf16.gmra.mrb[0].mxu0 %v1500
      %v2574 = vpop.f32.mrb[0].mxu0
      %v2575 = vadd.f32 %v2414, %v2574
      %v2576 = vpop.f32.mrb[0].mxu0
      %v2577 = vpop.f32.mrb[0].mxu0
      %v2578 = vadd.f32 %v2417, %v2577
      %v2579 = vpop.f32.mrb[0].mxu0
      %2580 = vmatprep.mubr.bf16.mxu0 %v1556
      %2581 = vmatmul.mubr.bf16.gmra.mrb[0].mxu0 %v1501
      %v2582 = vpop.f32.mrb[0].mxu0
      %v2583 = vadd.f32 %v2422, %v2582
      %v2584 = vpop.f32.mrb[0].mxu0
      %v2585 = vpop.f32.mrb[0].mxu0
      %v2586 = vadd.f32 %v2425, %v2585
      %v2587 = vpop.f32.mrb[0].mxu0
      %2588 = vmatprep.mubr.bf16.mxu0 %v1557
      %2589 = vmatmul.mubr.bf16.gmra.mrb[0].mxu0 %v1502
      %v2590 = vpop.f32.mrb[0].mxu0
      %v2591 = vadd.f32 %v2430, %v2590
      %v2592 = vpop.f32.mrb[0].mxu0
      %v2593 = vpop.f32.mrb[0].mxu0
      %v2594 = vadd.f32 %v2433, %v2593
      %v2595 = vpop.f32.mrb[0].mxu0
      %2596 = vmatprep.mubr.bf16.mxu0 %v1558
      %2597 = vmatmul.mubr.bf16.gmra.mrb[0].mxu0 %v1503
      %v2598 = vpop.f32.mrb[0].mxu0
      %v2599 = vadd.f32 %v2438, %v2598
      %v2600 = vpop.f32.mrb[0].mxu0
      %v2601 = vpop.f32.mrb[0].mxu0
      %v2602 = vadd.f32 %v2441, %v2601
      %v2603 = vpop.f32.mrb[0].mxu0
      %2604 = vdwg.mxu0
      %2605 = vmatprep.subr.bf16.mxu0 0
      %2606 = vmatpush1.bf16.msra.mxu0 %v2171
      %2607 = vmatprep.subr.bf16.mxu0 0
      %2608 = vmatpush1.bf16.msra.mxu0 %v2172
      %2609 = vmatprep.subr.bf16.mxu0 0
      %2610 = vmatpush1.bf16.msra.mxu0 %v2173
      %2611 = vmatprep.subr.bf16.mxu0 0
      %2612 = vmatpush1.bf16.msra.mxu0 %v2174
      %2613 = vmatprep.subr.bf16.mxu0 0
      %2614 = vmatpush1.bf16.msra.mxu0 %v2175
      %2615 = vmatprep.subr.bf16.mxu0 0
      %2616 = vmatpush1.bf16.msra.mxu0 %v2176
      %2617 = vmatprep.subr.bf16.mxu0 0
      %2618 = vmatpush1.bf16.msra.mxu0 %v2177
      %2619 = vmatprep.subr.bf16.mxu0 0
      %2620 = vmatpush1.bf16.msra.mxu0 %v2178
      %2621 = vmatprep.subr.bf16.mxu0 0
      %2622 = vmatpush1.bf16.msra.mxu0 %v2179
      %2623 = vmatprep.subr.bf16.mxu0 0
      %2624 = vmatpush1.bf16.msra.mxu0 %v2180
      %2625 = vmatprep.subr.bf16.mxu0 0
      %2626 = vmatpush1.bf16.msra.mxu0 %v2181
      %2627 = vmatprep.subr.bf16.mxu0 0
      %2628 = vmatpush1.bf16.msra.mxu0 %v2182
      %2629 = vmatprep.subr.bf16.mxu0 0
      %2630 = vmatpush1.bf16.msra.mxu0 %v2183
      %2631 = vmatprep.subr.bf16.mxu0 0
      %2632 = vmatpush1.bf16.msra.mxu0 %v2184
      %2633 = vmatprep.subr.bf16.mxu0 0
      %2634 = vmatpush1.bf16.msra.mxu0 %v2185
      %2635 = vmatprep.subr.bf16.mxu0 0
      %2636 = vmatpush1.bf16.msra.mxu0 %v2186
      %2637 = vmatprep.mubr.bf16.mxu0 %v1597
      %2638 = vmatmul.mubr.bf16.gmra.mrb[0].mxu0 %v1155
      %v2639 = vpop.f32.mrb[0].mxu0
      %v2640 = vadd.f32 %v2479, %v2639
      %v2641 = vpop.f32.mrb[0].mxu0
      %v2642 = vpop.f32.mrb[0].mxu0
      %v2643 = vadd.f32 %v2482, %v2642
      %v2644 = vpop.f32.mrb[0].mxu0
      %2645 = vmatprep.mubr.bf16.mxu0 %v1598
      %2646 = vmatmul.mubr.bf16.gmra.mrb[0].mxu0 %v1156
      %v2647 = vpop.f32.mrb[0].mxu0
      %v2648 = vadd.f32 %v2487, %v2647
      %v2649 = vpop.f32.mrb[0].mxu0
      %v2650 = vpop.f32.mrb[0].mxu0
      %v2651 = vadd.f32 %v2490, %v2650
      %v2652 = vpop.f32.mrb[0].mxu0
      %2653 = vmatprep.mubr.bf16.mxu0 %v1599
      %2654 = vmatmul.mubr.bf16.gmra.mrb[0].mxu0 %v1157
      %v2655 = vpop.f32.mrb[0].mxu0
      %v2656 = vadd.f32 %v2495, %v2655
      %v2657 = vpop.f32.mrb[0].mxu0
      %v2658 = vpop.f32.mrb[0].mxu0
      %v2659 = vadd.f32 %v2498, %v2658
      %v2660 = vpop.f32.mrb[0].mxu0
      %2661 = vmatprep.mubr.bf16.mxu0 %v1600
      %2662 = vmatmul.mubr.bf16.gmra.mrb[0].mxu0 %v1158
      %v2663 = vpop.f32.mrb[0].mxu0
      %v2664 = vadd.f32 %v2503, %v2663
      %v2665 = vpop.f32.mrb[0].mxu0
      %v2666 = vpop.f32.mrb[0].mxu0
      %v2667 = vadd.f32 %v2506, %v2666
      %v2668 = vpop.f32.mrb[0].mxu0
      %2669 = vmatprep.mubr.bf16.mxu0 %v1601
      %2670 = vmatmul.mubr.bf16.gmra.mrb[0].mxu0 %v1159
      %v2671 = vpop.f32.mrb[0].mxu0
      %v2672 = vadd.f32 %v2511, %v2671
      %v2673 = vpop.f32.mrb[0].mxu0
      %v2674 = vpop.f32.mrb[0].mxu0
      %v2675 = vadd.f32 %v2514, %v2674
      %v2676 = vpop.f32.mrb[0].mxu0
      %2677 = vmatprep.mubr.bf16.mxu0 %v1602
      %2678 = vmatmul.mubr.bf16.gmra.mrb[0].mxu0 %v1160
      %v2679 = vpop.f32.mrb[0].mxu0
      %v2680 = vadd.f32 %v2519, %v2679
      %v2681 = vpop.f32.mrb[0].mxu0
      %v2682 = vpop.f32.mrb[0].mxu0
      %v2683 = vadd.f32 %v2522, %v2682
      %v2684 = vpop.f32.mrb[0].mxu0
      %2685 = vmatprep.mubr.bf16.mxu0 %v1603
      %2686 = vmatmul.mubr.bf16.gmra.mrb[0].mxu0 %v1161
      %v2687 = vpop.f32.mrb[0].mxu0
      %v2688 = vadd.f32 %v2527, %v2687
      %v2689 = vpop.f32.mrb[0].mxu0
      %v2690 = vpop.f32.mrb[0].mxu0
      %v2691 = vadd.f32 %v2530, %v2690
      %v2692 = vpop.f32.mrb[0].mxu0
      %2693 = vmatprep.mubr.bf16.mxu0 %v1604
      %2694 = vmatmul.mubr.bf16.gmra.mrb[0].mxu0 %v1162
      %v2695 = vpop.f32.mrb[0].mxu0
      %v2696 = vadd.f32 %v2535, %v2695
      %v2697 = vpop.f32.mrb[0].mxu0
      %v2698 = vpop.f32.mrb[0].mxu0
      %v2699 = vadd.f32 %v2538, %v2698
      %v2700 = vpop.f32.mrb[0].mxu0
      %2701 = vmatprep.mubr.bf16.mxu0 %v1605
      %2702 = vmatmul.mubr.bf16.gmra.mrb[0].mxu0 %v1163
      %v2703 = vpop.f32.mrb[0].mxu0
      %v2704 = vadd.f32 %v2543, %v2703
      %v2705 = vpop.f32.mrb[0].mxu0
      %v2706 = vpop.f32.mrb[0].mxu0
      %v2707 = vadd.f32 %v2546, %v2706
      %v2708 = vpop.f32.mrb[0].mxu0
      %2709 = vmatprep.mubr.bf16.mxu0 %v1606
      %2710 = vmatmul.mubr.bf16.gmra.mrb[0].mxu0 %v1164
      %v2711 = vpop.f32.mrb[0].mxu0
      %v2712 = vadd.f32 %v2551, %v2711
      %v2713 = vpop.f32.mrb[0].mxu0
      %v2714 = vpop.f32.mrb[0].mxu0
      %v2715 = vadd.f32 %v2554, %v2714
      %v2716 = vpop.f32.mrb[0].mxu0
      %2717 = vmatprep.mubr.bf16.mxu0 %v1607
      %2718 = vmatmul.mubr.bf16.gmra.mrb[0].mxu0 %v1165
      %v2719 = vpop.f32.mrb[0].mxu0
      %v2720 = vadd.f32 %v2559, %v2719
      %v2721 = vpop.f32.mrb[0].mxu0
      %v2722 = vpop.f32.mrb[0].mxu0
      %v2723 = vadd.f32 %v2562, %v2722
      %v2724 = vpop.f32.mrb[0].mxu0
      %2725 = vmatprep.mubr.bf16.mxu0 %v1608
      %2726 = vmatmul.mubr.bf16.gmra.mrb[0].mxu0 %v1166
      %v2727 = vpop.f32.mrb[0].mxu0
      %v2728 = vadd.f32 %v2567, %v2727
      %v2729 = vpop.f32.mrb[0].mxu0
      %v2730 = vpop.f32.mrb[0].mxu0
      %v2731 = vadd.f32 %v2570, %v2730
      %v2732 = vpop.f32.mrb[0].mxu0
      %2733 = vmatprep.mubr.bf16.mxu0 %v1609
      %2734 = vmatmul.mubr.bf16.gmra.mrb[0].mxu0 %v1167
      %v2735 = vpop.f32.mrb[0].mxu0
      %v2736 = vadd.f32 %v2575, %v2735
      %v2737 = vpop.f32.mrb[0].mxu0
      %v2738 = vpop.f32.mrb[0].mxu0
      %v2739 = vadd.f32 %v2578, %v2738
      %v2740 = vpop.f32.mrb[0].mxu0
      %2741 = vmatprep.mubr.bf16.mxu0 %v1610
      %2742 = vmatmul.mubr.bf16.gmra.mrb[0].mxu0 %v1168
      %v2743 = vpop.f32.mrb[0].mxu0
      %v2744 = vadd.f32 %v2583, %v2743
      %v2745 = vpop.f32.mrb[0].mxu0
      %v2746 = vpop.f32.mrb[0].mxu0
      %v2747 = vadd.f32 %v2586, %v2746
      %v2748 = vpop.f32.mrb[0].mxu0
      %2749 = vmatprep.mubr.bf16.mxu0 %v1611
      %2750 = vmatmul.mubr.bf16.gmra.mrb[0].mxu0 %v1169
      %v2751 = vpop.f32.mrb[0].mxu0
      %v2752 = vadd.f32 %v2591, %v2751
      %v2753 = vpop.f32.mrb[0].mxu0
      %v2754 = vpop.f32.mrb[0].mxu0
      %v2755 = vadd.f32 %v2594, %v2754
      %v2756 = vpop.f32.mrb[0].mxu0
      %2757 = vmatprep.mubr.bf16.mxu0 %v1612
      %2758 = vmatmul.mubr.bf16.gmra.mrb[0].mxu0 %v1559
      %v2759 = vpop.f32.mrb[0].mxu0
      %v2760 = vadd.f32 %v2599, %v2759
      %v2761 = vpop.f32.mrb[0].mxu0
      %v2762 = vpop.f32.mrb[0].mxu0
      %v2763 = vadd.f32 %v2602, %v2762
      %v2764 = vpop.f32.mrb[0].mxu0
      %2765 = vdwg.mxu0
      %2766 = vmatprep.subr.bf16.mxu0 0
      %2767 = vmatpush1.bf16.msra.mxu0 %v2187
      %2768 = vmatprep.subr.bf16.mxu0 0
      %2769 = vmatpush1.bf16.msra.mxu0 %v2188
      %2770 = vmatprep.subr.bf16.mxu0 0
      %2771 = vmatpush1.bf16.msra.mxu0 %v2189
      %2772 = vmatprep.subr.bf16.mxu0 0
      %2773 = vmatpush1.bf16.msra.mxu0 %v2190
      %2774 = vmatprep.subr.bf16.mxu0 0
      %2775 = vmatpush1.bf16.msra.mxu0 %v2191
      %2776 = vmatprep.subr.bf16.mxu0 0
      %2777 = vmatpush1.bf16.msra.mxu0 %v2192
      %2778 = vmatprep.subr.bf16.mxu0 0
      %2779 = vmatpush1.bf16.msra.mxu0 %v2193
      %2780 = vmatprep.subr.bf16.mxu0 0
      %2781 = vmatpush1.bf16.msra.mxu0 %v2194
      %2782 = vmatprep.subr.bf16.mxu0 0
      %2783 = vmatpush1.bf16.msra.mxu0 %v2195
      %2784 = vmatprep.subr.bf16.mxu0 0
      %2785 = vmatpush1.bf16.msra.mxu0 %v2196
      %2786 = vmatprep.subr.bf16.mxu0 0
      %2787 = vmatpush1.bf16.msra.mxu0 %v2197
      %2788 = vmatprep.subr.bf16.mxu0 0
      %2789 = vmatpush1.bf16.msra.mxu0 %v2198
      %2790 = vmatprep.subr.bf16.mxu0 0
      %2791 = vmatpush1.bf16.msra.mxu0 %v2199
      %2792 = vmatprep.subr.bf16.mxu0 0
      %2793 = vmatpush1.bf16.msra.mxu0 %v2200
      %2794 = vmatprep.subr.bf16.mxu0 0
      %2795 = vmatpush1.bf16.msra.mxu0 %v2201
      %2796 = vmatprep.subr.bf16.mxu0 0
      %2797 = vmatpush1.bf16.msra.mxu0 %v2202
      %2798 = vmatprep.mubr.bf16.mxu0 %v1156
      %2799 = vmatmul.mubr.bf16.gmra.mrb[0].mxu0 %v1646
      %v2800 = vpop.f32.mrb[0].mxu0
      %v2801 = vadd.f32 %v2640, %v2800
      %v2802 = vpop.f32.mrb[0].mxu0
      %v2803 = vpop.f32.mrb[0].mxu0
      %v2804 = vadd.f32 %v2643, %v2803
      %v2805 = vpop.f32.mrb[0].mxu0
      %2806 = vmatprep.mubr.bf16.mxu0 %v1157
      %2807 = vmatmul.mubr.bf16.gmra.mrb[0].mxu0 %v1647
      %v2808 = vpop.f32.mrb[0].mxu0
      %v2809 = vadd.f32 %v2648, %v2808
      %v2810 = vpop.f32.mrb[0].mxu0
      %v2811 = vpop.f32.mrb[0].mxu0
      %v2812 = vadd.f32 %v2651, %v2811
      %v2813 = vpop.f32.mrb[0].mxu0
      %2814 = vmatprep.mubr.bf16.mxu0 %v1158
      %2815 = vmatmul.mubr.bf16.gmra.mrb[0].mxu0 %v1648
      %v2816 = vpop.f32.mrb[0].mxu0
      %v2817 = vadd.f32 %v2656, %v2816
      %v2818 = vpop.f32.mrb[0].mxu0
      %v2819 = vpop.f32.mrb[0].mxu0
      %v2820 = vadd.f32 %v2659, %v2819
      %v2821 = vpop.f32.mrb[0].mxu0
      %2822 = vmatprep.mubr.bf16.mxu0 %v1159
      %2823 = vmatmul.mubr.bf16.gmra.mrb[0].mxu0 %v1649
      %v2824 = vpop.f32.mrb[0].mxu0
      %v2825 = vadd.f32 %v2664, %v2824
      %v2826 = vpop.f32.mrb[0].mxu0
      %v2827 = vpop.f32.mrb[0].mxu0
      %v2828 = vadd.f32 %v2667, %v2827
      %v2829 = vpop.f32.mrb[0].mxu0
      %2830 = vmatprep.mubr.bf16.mxu0 %v1160
      %2831 = vmatmul.mubr.bf16.gmra.mrb[0].mxu0 %v1650
      %v2832 = vpop.f32.mrb[0].mxu0
      %v2833 = vadd.f32 %v2672, %v2832
      %v2834 = vpop.f32.mrb[0].mxu0
      %v2835 = vpop.f32.mrb[0].mxu0
      %v2836 = vadd.f32 %v2675, %v2835
      %v2837 = vpop.f32.mrb[0].mxu0
      %2838 = vmatprep.mubr.bf16.mxu0 %v1161
      %2839 = vmatmul.mubr.bf16.gmra.mrb[0].mxu0 %v1651
      %v2840 = vpop.f32.mrb[0].mxu0
      %v2841 = vadd.f32 %v2680, %v2840
      %v2842 = vpop.f32.mrb[0].mxu0
      %v2843 = vpop.f32.mrb[0].mxu0
      %v2844 = vadd.f32 %v2683, %v2843
      %v2845 = vpop.f32.mrb[0].mxu0
      %2846 = vmatprep.mubr.bf16.mxu0 %v1162
      %2847 = vmatmul.mubr.bf16.gmra.mrb[0].mxu0 %v1652
      %v2848 = vpop.f32.mrb[0].mxu0
      %v2849 = vadd.f32 %v2688, %v2848
      %v2850 = vpop.f32.mrb[0].mxu0
      %v2851 = vpop.f32.mrb[0].mxu0
      %v2852 = vadd.f32 %v2691, %v2851
      %v2853 = vpop.f32.mrb[0].mxu0
      %2854 = vmatprep.mubr.bf16.mxu0 %v1163
      %2855 = vmatmul.mubr.bf16.gmra.mrb[0].mxu0 %v1653
      %v2856 = vpop.f32.mrb[0].mxu0
      %v2857 = vadd.f32 %v2696, %v2856
      %v2858 = vpop.f32.mrb[0].mxu0
      %v2859 = vpop.f32.mrb[0].mxu0
      %v2860 = vadd.f32 %v2699, %v2859
      %v2861 = vpop.f32.mrb[0].mxu0
      %2862 = vmatprep.mubr.bf16.mxu0 %v1164
      %2863 = vmatmul.mubr.bf16.gmra.mrb[0].mxu0 %v1654
      %v2864 = vpop.f32.mrb[0].mxu0
      %v2865 = vadd.f32 %v2704, %v2864
      %v2866 = vpop.f32.mrb[0].mxu0
      %v2867 = vpop.f32.mrb[0].mxu0
      %v2868 = vadd.f32 %v2707, %v2867
      %v2869 = vpop.f32.mrb[0].mxu0
      %2870 = vmatprep.mubr.bf16.mxu0 %v1165
      %2871 = vmatmul.mubr.bf16.gmra.mrb[0].mxu0 %v1655
      %v2872 = vpop.f32.mrb[0].mxu0
      %v2873 = vadd.f32 %v2712, %v2872
      %v2874 = vpop.f32.mrb[0].mxu0
      %v2875 = vpop.f32.mrb[0].mxu0
      %v2876 = vadd.f32 %v2715, %v2875
      %v2877 = vpop.f32.mrb[0].mxu0
      %2878 = vmatprep.mubr.bf16.mxu0 %v1166
      %2879 = vmatmul.mubr.bf16.gmra.mrb[0].mxu0 %v1656
      %v2880 = vpop.f32.mrb[0].mxu0
      %v2881 = vadd.f32 %v2720, %v2880
      %v2882 = vpop.f32.mrb[0].mxu0
      %v2883 = vpop.f32.mrb[0].mxu0
      %v2884 = vadd.f32 %v2723, %v2883
      %v2885 = vpop.f32.mrb[0].mxu0
      %2886 = vmatprep.mubr.bf16.mxu0 %v1167
      %2887 = vmatmul.mubr.bf16.gmra.mrb[0].mxu0 %v1657
      %v2888 = vpop.f32.mrb[0].mxu0
      %v2889 = vadd.f32 %v2728, %v2888
      %v2890 = vpop.f32.mrb[0].mxu0
      %v2891 = vpop.f32.mrb[0].mxu0
      %v2892 = vadd.f32 %v2731, %v2891
      %v2893 = vpop.f32.mrb[0].mxu0
      %2894 = vmatprep.mubr.bf16.mxu0 %v1168
      %2895 = vmatmul.mubr.bf16.gmra.mrb[0].mxu0 %v1658
      %v2896 = vpop.f32.mrb[0].mxu0
      %v2897 = vadd.f32 %v2736, %v2896
      %v2898 = vpop.f32.mrb[0].mxu0
      %v2899 = vpop.f32.mrb[0].mxu0
      %v2900 = vadd.f32 %v2739, %v2899
      %v2901 = vpop.f32.mrb[0].mxu0
      %2902 = vmatprep.mubr.bf16.mxu0 %v1169
      %2903 = vmatmul.mubr.bf16.gmra.mrb[0].mxu0 %v1659
      %v2904 = vpop.f32.mrb[0].mxu0
      %v2905 = vadd.f32 %v2744, %v2904
      %v2906 = vpop.f32.mrb[0].mxu0
      %v2907 = vpop.f32.mrb[0].mxu0
      %v2908 = vadd.f32 %v2747, %v2907
      %v2909 = vpop.f32.mrb[0].mxu0
      %2910 = vmatprep.mubr.bf16.mxu0 %v1559
      %2911 = vmatmul.mubr.bf16.gmra.mrb[0].mxu0 %v1660
      %v2912 = vpop.f32.mrb[0].mxu0
      %v2913 = vadd.f32 %v2752, %v2912
      %v2914 = vpop.f32.mrb[0].mxu0
      %v2915 = vpop.f32.mrb[0].mxu0
      %v2916 = vadd.f32 %v2755, %v2915
      %v2917 = vpop.f32.mrb[0].mxu0
      %2918 = vmatprep.mubr.bf16.mxu0 %v1139
      %2919 = vmatmul.mubr.bf16.gmra.mrb[0].mxu0 %v1661
      %v2920 = vpop.f32.mrb[0].mxu0
      %v2921 = vadd.f32 %v2760, %v2920
      %v2922 = vpop.f32.mrb[0].mxu0
      %v2923 = vpop.f32.mrb[0].mxu0
      %v2924 = vadd.f32 %v2763, %v2923
      %v2925 = vpop.f32.mrb[0].mxu0
      %2926 = vdwg.mxu0
      %2927 = vmatprep.subr.bf16.mxu0 0
      %2928 = vmatpush1.bf16.msra.mxu0 %v2203
      %2929 = vmatprep.subr.bf16.mxu0 0
      %2930 = vmatpush1.bf16.msra.mxu0 %v2204
      %2931 = vmatprep.subr.bf16.mxu0 0
      %2932 = vmatpush1.bf16.msra.mxu0 %v2205
      %2933 = vmatprep.subr.bf16.mxu0 0
      %2934 = vmatpush1.bf16.msra.mxu0 %v2206
      %2935 = vmatprep.subr.bf16.mxu0 0
      %2936 = vmatpush1.bf16.msra.mxu0 %v2207
      %2937 = vmatprep.subr.bf16.mxu0 0
      %2938 = vmatpush1.bf16.msra.mxu0 %v2208
      %2939 = vmatprep.subr.bf16.mxu0 0
      %2940 = vmatpush1.bf16.msra.mxu0 %v2209
      %2941 = vmatprep.subr.bf16.mxu0 0
      %2942 = vmatpush1.bf16.msra.mxu0 %v2210
      %2943 = vmatprep.subr.bf16.mxu0 0
      %2944 = vmatpush1.bf16.msra.mxu0 0
      %2945 = vmatprep.subr.bf16.mxu0 0
      %2946 = vmatpush1.bf16.msra.mxu0 0
      %2947 = vmatprep.subr.bf16.mxu0 0
      %2948 = vmatpush1.bf16.msra.mxu0 0
      %2949 = vmatprep.subr.bf16.mxu0 0
      %2950 = vmatpush1.bf16.msra.mxu0 0
      %2951 = vmatprep.subr.bf16.mxu0 0
      %2952 = vmatpush1.bf16.msra.mxu0 0
      %2953 = vmatprep.subr.bf16.mxu0 0
      %2954 = vmatpush1.bf16.msra.mxu0 0
      %2955 = vmatprep.subr.bf16.mxu0 0
      %2956 = vmatpush1.bf16.msra.mxu0 0
      %2957 = vmatprep.subr.bf16.mxu0 0
      %2958 = vmatpush1.bf16.msra.mxu0 0
      %2959 = vmatprep.mubr.bf16.mxu0 0
      %2960 = vmatmul.mubr.bf16.gmra.mrb[0].mxu0 %v1692
      %v2961 = vpop.f32.mrb[0].mxu0
      %v2962 = vadd.f32 %v2801, %v2961
      %v2963 = vpop.f32.mrb[0].mxu0
      %v2964 = vpop.f32.mrb[0].mxu0
      %v2965 = vadd.f32 %v2804, %v2964
      %v2966 = vpop.f32.mrb[0].mxu0
      %2967 = vmatprep.mubr.bf16.mxu0 0
      %2968 = vmatmul.mubr.bf16.gmra.mrb[0].mxu0 %v1693
      %v2969 = vpop.f32.mrb[0].mxu0
      %v2970 = vadd.f32 %v2809, %v2969
      %v2971 = vpop.f32.mrb[0].mxu0
      %v2972 = vpop.f32.mrb[0].mxu0
      %v2973 = vadd.f32 %v2812, %v2972
      %v2974 = vpop.f32.mrb[0].mxu0
      %2975 = vmatprep.mubr.bf16.mxu0 0
      %2976 = vmatmul.mubr.bf16.gmra.mrb[0].mxu0 %v1694
      %v2977 = vpop.f32.mrb[0].mxu0
      %v2978 = vadd.f32 %v2817, %v2977
      %v2979 = vpop.f32.mrb[0].mxu0
      %v2980 = vpop.f32.mrb[0].mxu0
      %v2981 = vadd.f32 %v2820, %v2980
      %v2982 = vpop.f32.mrb[0].mxu0
      %2983 = vmatprep.mubr.bf16.mxu0 0
      %2984 = vmatmul.mubr.bf16.gmra.mrb[0].mxu0 %v1695
      %v2985 = vpop.f32.mrb[0].mxu0
      %v2986 = vadd.f32 %v2825, %v2985
      %v2987 = vpop.f32.mrb[0].mxu0
      %v2988 = vpop.f32.mrb[0].mxu0
      %v2989 = vadd.f32 %v2828, %v2988
      %v2990 = vpop.f32.mrb[0].mxu0
      %2991 = vmatprep.mubr.bf16.mxu0 0
      %2992 = vmatmul.mubr.bf16.gmra.mrb[0].mxu0 %v1696
      %v2993 = vpop.f32.mrb[0].mxu0
      %v2994 = vadd.f32 %v2833, %v2993
      %v2995 = vpop.f32.mrb[0].mxu0
      %v2996 = vpop.f32.mrb[0].mxu0
      %v2997 = vadd.f32 %v2836, %v2996
      %v2998 = vpop.f32.mrb[0].mxu0
      %2999 = vmatprep.mubr.bf16.mxu0 0
      %3000 = vmatmul.mubr.bf16.gmra.mrb[0].mxu0 %v1697
      %v3001 = vpop.f32.mrb[0].mxu0
      %v3002 = vadd.f32 %v2841, %v3001
      %v3003 = vpop.f32.mrb[0].mxu0
      %v3004 = vpop.f32.mrb[0].mxu0
      %v3005 = vadd.f32 %v2844, %v3004
      %v3006 = vpop.f32.mrb[0].mxu0
      %3007 = vmatprep.mubr.bf16.mxu0 0
      %3008 = vmatmul.mubr.bf16.gmra.mrb[0].mxu0 %v1698
      %v3009 = vpop.f32.mrb[0].mxu0
      %v3010 = vadd.f32 %v2849, %v3009
      %v3011 = vpop.f32.mrb[0].mxu0
      %v3012 = vpop.f32.mrb[0].mxu0
      %v3013 = vadd.f32 %v2852, %v3012
      %v3014 = vpop.f32.mrb[0].mxu0
      %3015 = vmatprep.mubr.bf16.mxu0 0
      %3016 = vmatmul.mubr.bf16.gmra.mrb[0].mxu0 %v1699
      %v3017 = vpop.f32.mrb[0].mxu0
      %v3018 = vadd.f32 %v2857, %v3017
      %v3019 = vpop.f32.mrb[0].mxu0
      %v3020 = vpop.f32.mrb[0].mxu0
      %v3021 = vadd.f32 %v2860, %v3020
      %v3022 = vpop.f32.mrb[0].mxu0
      %3023 = vmatprep.mubr.bf16.mxu0 0
      %3024 = vmatmul.mubr.bf16.gmra.mrb[0].mxu0 %v1700
      %v3025 = vpop.f32.mrb[0].mxu0
      %v3026 = vadd.f32 %v2865, %v3025
      %v3027 = vpop.f32.mrb[0].mxu0
      %v3028 = vpop.f32.mrb[0].mxu0
      %v3029 = vadd.f32 %v2868, %v3028
      %v3030 = vpop.f32.mrb[0].mxu0
      %3031 = vmatprep.mubr.bf16.mxu0 0
      %3032 = vmatmul.mubr.bf16.gmra.mrb[0].mxu0 %v1701
      %v3033 = vpop.f32.mrb[0].mxu0
      %v3034 = vadd.f32 %v2873, %v3033
      %v3035 = vpop.f32.mrb[0].mxu0
      %v3036 = vpop.f32.mrb[0].mxu0
      %v3037 = vadd.f32 %v2876, %v3036
      %v3038 = vpop.f32.mrb[0].mxu0
      %3039 = vmatprep.mubr.bf16.mxu0 0
      %3040 = vmatmul.mubr.bf16.gmra.mrb[0].mxu0 %v1702
      %v3041 = vpop.f32.mrb[0].mxu0
      %v3042 = vadd.f32 %v2881, %v3041
      %v3043 = vpop.f32.mrb[0].mxu0
      %v3044 = vpop.f32.mrb[0].mxu0
      %v3045 = vadd.f32 %v2884, %v3044
      %v3046 = vpop.f32.mrb[0].mxu0
      %3047 = vmatprep.mubr.bf16.mxu0 0
      %3048 = vmatmul.mubr.bf16.gmra.mrb[0].mxu0 %v1703
      %v3049 = vpop.f32.mrb[0].mxu0
      %v3050 = vadd.f32 %v2889, %v3049
      %v3051 = vpop.f32.mrb[0].mxu0
      %v3052 = vpop.f32.mrb[0].mxu0
      %v3053 = vadd.f32 %v2892, %v3052
      %v3054 = vpop.f32.mrb[0].mxu0
      %3055 = vmatprep.mubr.bf16.mxu0 0
      %3056 = vmatmul.mubr.bf16.gmra.mrb[0].mxu0 %v1704
      %v3057 = vpop.f32.mrb[0].mxu0
      %v3058 = vadd.f32 %v2897, %v3057
      %v3059 = vpop.f32.mrb[0].mxu0
      %v3060 = vpop.f32.mrb[0].mxu0
      %v3061 = vadd.f32 %v2900, %v3060
      %v3062 = vpop.f32.mrb[0].mxu0
      %3063 = vmatprep.mubr.bf16.mxu0 0
      %3064 = vmatmul.mubr.bf16.gmra.mrb[0].mxu0 %v1705
      %v3065 = vpop.f32.mrb[0].mxu0
      %v3066 = vadd.f32 %v2905, %v3065
      %v3067 = vpop.f32.mrb[0].mxu0
      %v3068 = vpop.f32.mrb[0].mxu0
      %v3069 = vadd.f32 %v2908, %v3068
      %v3070 = vpop.f32.mrb[0].mxu0
      %3071 = vmatprep.mubr.bf16.mxu0 0
      %3072 = vmatmul.mubr.bf16.gmra.mrb[0].mxu0 %v1706
      %v3073 = vpop.f32.mrb[0].mxu0
      %v3074 = vadd.f32 %v2913, %v3073
      %v3075 = vpop.f32.mrb[0].mxu0
      %v3076 = vpop.f32.mrb[0].mxu0
      %v3077 = vadd.f32 %v2916, %v3076
      %v3078 = vpop.f32.mrb[0].mxu0
      %3079 = vmatprep.mubr.bf16.mxu0 0
      %3080 = vmatmul.mubr.bf16.gmra.mrb[0].mxu0 %v1139
      %v3081 = vpop.f32.mrb[0].mxu0
      %v3082 = vadd.f32 %v2921, %v3081
      %v3083 = vpop.f32.mrb[0].mxu0
      %v3084 = vpop.f32.mrb[0].mxu0
      %v3085 = vadd.f32 %v2924, %v3084
      %v3086 = vpop.f32.mrb[0].mxu0
      %3087 = vdwg.mxu0
      %3088 = vst [vmem:[%s231] sm:$0xff] %v2962
      %3089 = vst [vmem:[%s231 + $0x8] sm:$0xff] %v2965
      %3090 = vst [vmem:[%s231 + $0x10] sm:$0xff] %v2970
      %3091 = vst [vmem:[%s231 + $0x18] sm:$0xff] %v2973
      %3092 = vst [vmem:[%s231 + $0x20] sm:$0xff] %v2978
      %3093 = vst [vmem:[%s231 + $0x28] sm:$0xff] %v2981
      %3094 = vst [vmem:[%s231 + $0x30] sm:$0xff] %v2986
      %3095 = vst [vmem:[%s231 + $0x38] sm:$0xff] %v2989
      %3096 = vst [vmem:[%s231 + $0x40] sm:$0xff] %v2994
      %3097 = vst [vmem:[%s231 + $0x48] sm:$0xff] %v2997
      %3098 = vst [vmem:[%s231 + $0x50] sm:$0xff] %v3002
      %3099 = vst [vmem:[%s231 + $0x58] sm:$0xff] %v3005
      %3100 = vst [vmem:[%s231 + $0x60] sm:$0xff] %v3010
      %3101 = vst [vmem:[%s231 + $0x68] sm:$0xff] %v3013
      %3102 = vst [vmem:[%s231 + $0x70] sm:$0xff] %v3018
      %3103 = vst [vmem:[%s231 + $0x78] sm:$0xff] %v3021
      %3104 = vst [vmem:[%s231 + $0x80] sm:$0xff] %v3026
      %3105 = vst [vmem:[%s231 + $0x88] sm:$0xff] %v3029
      %3106 = vst [vmem:[%s231 + $0x90] sm:$0xff] %v3034
      %3107 = vst [vmem:[%s231 + $0x98] sm:$0xff] %v3037
      %3108 = vst [vmem:[%s231 + $0xa0] sm:$0xff] %v3042
      %3109 = vst [vmem:[%s231 + $0xa8] sm:$0xff] %v3045
      %3110 = vst [vmem:[%s231 + $0xb0] sm:$0xff] %v3050
      %3111 = vst [vmem:[%s231 + $0xb8] sm:$0xff] %v3053
      %3112 = vst [vmem:[%s231 + $0xc0] sm:$0xff] %v3058
      %3113 = vst [vmem:[%s231 + $0xc8] sm:$0xff] %v3061
      %3114 = vst [vmem:[%s231 + $0xd0] sm:$0xff] %v3066
      %3115 = vst [vmem:[%s231 + $0xd8] sm:$0xff] %v3069
      %3116 = vst [vmem:[%s231 + $0xe0] sm:$0xff] %v3074
      %3117 = vst [vmem:[%s231 + $0xe8] sm:$0xff] %v3077
      %3118 = vst [vmem:[%s231 + $0xf0] sm:$0xff] %v3082
      %3119 = vst [vmem:[%s231 + $0xf8] sm:$0xff] %v3085
      %v3120 = vadd.f32 %v2962, %v2965
      %v3121 = vadd.f32 %v3120, %v2970
      %v3122 = vadd.f32 %v3121, %v2973
      %v3123 = vadd.f32 %v3122, %v2978
      %v3124 = vadd.f32 %v3123, %v2981
      %v3125 = vadd.f32 %v3124, %v2986
      %v3126 = vadd.f32 %v3125, %v2989
      %v3127 = vadd.f32 %v3126, %v2994
      %v3128 = vadd.f32 %v3127, %v2997
      %v3129 = vadd.f32 %v3128, %v3002
      %v3130 = vadd.f32 %v3129, %v3005
      %v3131 = vadd.f32 %v3130, %v3010
      %v3132 = vadd.f32 %v3131, %v3013
      %v3133 = vadd.f32 %v3132, %v3018
      %v3134 = vadd.f32 %v3133, %v3021
      %v3135 = vadd.f32 %v3134, %v3026
      %v3136 = vadd.f32 %v3135, %v3029
      %v3137 = vadd.f32 %v3136, %v3034
      %v3138 = vadd.f32 %v3137, %v3037
      %v3139 = vadd.f32 %v3138, %v3042
      %v3140 = vadd.f32 %v3139, %v3045
      %v3141 = vadd.f32 %v3140, %v3050
      %v3142 = vadd.f32 %v3141, %v3053
      %v3143 = vadd.f32 %v3142, %v3058
      %v3144 = vadd.f32 %v3143, %v3061
      %v3145 = vadd.f32 %v3144, %v3066
      %v3146 = vadd.f32 %v3145, %v3069
      %v3147 = vadd.f32 %v3146, %v3074
      %v3148 = vadd.f32 %v3147, %v3077
      %v3149 = vadd.f32 %v3148, %v3082
      %v3150 = vadd.f32 %v3149, %v3085
      %v3151 = vrot.slane %v3150, 4
      %v3152 = vadd.f32 %v3150, %v3151
      %v3153 = vrot.slane %v3152, 2
      %v3154 = vadd.f32 %v3152, %v3153
      %v3155 = vrot.slane %v3154, 1
      %v3156 = vadd.f32 %v3154, %v3155
      %v3157 = vmul.f32 %v2962, %v2962
      %v3158 = vmul.f32 %v2965, %v2965
      %v3159 = vmul.f32 %v2970, %v2970
      %v3160 = vmul.f32 %v2973, %v2973
      %v3161 = vmul.f32 %v2978, %v2978
      %v3162 = vmul.f32 %v2981, %v2981
      %v3163 = vmul.f32 %v2986, %v2986
      %v3164 = vmul.f32 %v2989, %v2989
      %v3165 = vmul.f32 %v2994, %v2994
      %v3166 = vmul.f32 %v2997, %v2997
      %v3167 = vmul.f32 %v3002, %v3002
      %v3168 = vmul.f32 %v3005, %v3005
      %v3169 = vmul.f32 %v3010, %v3010
      %v3170 = vmul.f32 %v3013, %v3013
      %v3171 = vmul.f32 %v3018, %v3018
      %v3172 = vmul.f32 %v3021, %v3021
      %v3173 = vmul.f32 %v3026, %v3026
      %v3174 = vmul.f32 %v3029, %v3029
      %v3175 = vmul.f32 %v3034, %v3034
      %v3176 = vmul.f32 %v3037, %v3037
      %v3177 = vmul.f32 %v3042, %v3042
      %v3178 = vmul.f32 %v3045, %v3045
      %v3179 = vmul.f32 %v3050, %v3050
      %v3180 = vmul.f32 %v3053, %v3053
      %v3181 = vmul.f32 %v3058, %v3058
      %v3182 = vmul.f32 %v3061, %v3061
      %v3183 = vmul.f32 %v3066, %v3066
      %v3184 = vmul.f32 %v3069, %v3069
      %v3185 = vmul.f32 %v3074, %v3074
      %v3186 = vmul.f32 %v3077, %v3077
      %v3187 = vmul.f32 %v3082, %v3082
      %v3188 = vmul.f32 %v3085, %v3085
      %v3189 = vadd.f32 %v3157, %v3158
      %v3190 = vadd.f32 %v3189, %v3159
      %v3191 = vadd.f32 %v3190, %v3160
      %v3192 = vadd.f32 %v3191, %v3161
      %v3193 = vadd.f32 %v3192, %v3162
      %v3194 = vadd.f32 %v3193, %v3163
      %v3195 = vadd.f32 %v3194, %v3164
      %v3196 = vadd.f32 %v3195, %v3165
      %v3197 = vadd.f32 %v3196, %v3166
      %v3198 = vadd.f32 %v3197, %v3167
      %v3199 = vadd.f32 %v3198, %v3168
      %v3200 = vadd.f32 %v3199, %v3169
      %v3201 = vadd.f32 %v3200, %v3170
      %v3202 = vadd.f32 %v3201, %v3171
      %v3203 = vadd.f32 %v3202, %v3172
      %v3204 = vadd.f32 %v3203, %v3173
      %v3205 = vadd.f32 %v3204, %v3174
      %v3206 = vadd.f32 %v3205, %v3175
      %v3207 = vadd.f32 %v3206, %v3176
      %v3208 = vadd.f32 %v3207, %v3177
      %v3209 = vadd.f32 %v3208, %v3178
      %v3210 = vadd.f32 %v3209, %v3179
      %v3211 = vadd.f32 %v3210, %v3180
      %v3212 = vadd.f32 %v3211, %v3181
      %v3213 = vadd.f32 %v3212, %v3182
      %v3214 = vadd.f32 %v3213, %v3183
      %v3215 = vadd.f32 %v3214, %v3184
      %v3216 = vadd.f32 %v3215, %v3185
      %v3217 = vadd.f32 %v3216, %v3186
      %v3218 = vadd.f32 %v3217, %v3187
      %v3219 = vadd.f32 %v3218, %v3188
      %v3220 = vrot.slane %v3219, 4
      %v3221 = vadd.f32 %v3219, %v3220
      %v3222 = vrot.slane %v3221, 2
      %v3223 = vadd.f32 %v3221, %v3222
      %v3224 = vrot.slane %v3223, 1
      %v3225 = vadd.f32 %v3223, %v3224
      %v3226 = vsel %vm826, %v3156, %v3225
      %3227 = vst [vmem:[%s235] sm:$0x3] %v3226
      %p3228 = scmp.lt.s32.totalorder %s17, 1
      %s3229 = scalar_select %p3228, %s17, 1
      %s3230 = smul.addr %s3229, 32
      %s3231 = smul.addr %s3230, 8
      %s3232 = scalar_lea.vmem %s4, %s3231
      %p3233 = scmp.lt.s32.totalorder %s17, 1
      %s3234 = scalar_select %p3233, %s17, 1
      %s3235 = smul.addr %s3234, 2
      %s3236 = scalar_lea.vmem %s5, %s3235
      // Predicated region
      $region37: #{dense_block_forward.9} parent=35 // pred_check
        %p3237 = pneg %p124
      $region38: #{dense_block_forward.9} parent=35 // pred_check_branch
        %3239 = sbr.rel (%p3237) target = $region40
      $region39: #{dense_block_forward.9} parent=35 // pred_region
        _
      $region40: #{dense_block_forward.9} parent=35 // pred_fallthru
        _
      // Predicated region
      $region41: #{dense_block_forward.9} parent=35 // pred_check
        %p3240 = pneg %p150
      $region42: #{dense_block_forward.9} parent=35 // pred_check_branch
        %3242 = sbr.rel (%p3240) target = $region44
      $region43: #{dense_block_forward.9} parent=35 // pred_region
        _
      $region44: #{dense_block_forward.9} parent=35 // pred_fallthru
        _
    $region36: #{dense_block_forward.9} parent=5 // pred_fallthru
      _
    %p3243 = scmp.le.s32.totalorder 2, %s12
    // Predicated region
    $region45: #{dense_block_forward.9} parent=5 // pred_check
      %p3244 = pneg %p3243
    $region46: #{dense_block_forward.9} parent=5 // pred_check_branch
      %3246 = sbr.rel (%p3244) target = $region48
    $region47: #{dense_block_forward.9} parent=5 // pred_region
      %s3247 = ssub.s32 %s12, 2
      // Predicated region
      $region49: #{dense_block_forward.9} parent=47 // pred_check
        %p3248 = pneg %p130
      $region50: #{dense_block_forward.9} parent=47 // pred_check_branch
        %3250 = sbr.rel (%p3248) target = $region52
      $region51: #{dense_block_forward.9} parent=47 // pred_region
        %p3251 = scmp.lt.s32.totalorder %s18, 1
        %s3252 = scalar_select %p3251, %s18, 1
        %s3253 = smul.addr %s3252, 32
        %s3254 = smul.addr %s3253, 8
        %s3255 = scalar_lea.vmem %s4, %s3254
      $region52: #{dense_block_forward.9} parent=47 // pred_fallthru
        _
      // Predicated region
      $region53: #{dense_block_forward.9} parent=47 // pred_check
        %p3256 = pneg %p156
      $region54: #{dense_block_forward.9} parent=47 // pred_check_branch
        %3258 = sbr.rel (%p3256) target = $region56
      $region55: #{dense_block_forward.9} parent=47 // pred_region
        %p3259 = scmp.lt.s32.totalorder %s18, 1
        %s3260 = scalar_select %p3259, %s18, 1
        %s3261 = smul.addr %s3260, 2
        %s3262 = scalar_lea.vmem %s5, %s3261
      $region56: #{dense_block_forward.9} parent=47 // pred_fallthru
        _
    $region48: #{dense_block_forward.9} parent=5 // pred_fallthru
      _
  $region6: #{dense_block_forward.9} parent=0 // loop_footer
    %s16 = sadd.s32 1, %s12
  $region7: #{dense_block_forward.9} parent=0 // loop_footer_branch
    %11 = sbr.rel target = $region3
  $region8: #{dense_block_forward.9} parent=0 // loop_exit
    _

// kernel: dense_block_forward.12
$region0: #{dense_block_forward.12}
  #allocation0 [shape = 'u32[]', space=smem, size = 0x4, offset = 0x4, fixed_abs, tag = 'smem constant byte address 0x4 - core index']
  #allocation1 [shape = 'u32[144,128]{1,0:T(1,128)}', space=vmem, size = 0x12000, scoped, tag = 'internal scratch']
  %s0 = inlined_call_operand.vmem [shape: f32[512,32], index: 0, kind: input, shape index: {}]
  %s1 = inlined_call_operand.vmem [shape: f32[1,32], index: 1, kind: input, shape index: {}]
  %s2 = inlined_call_operand.vmem [shape: f32[1,32], index: 2, kind: input, shape index: {}]
  %s3 = inlined_call_operand.vmem [shape: bf16[32,128], index: 3, kind: input, shape index: {}]
  %s4 = inlined_call_operand.vmem [shape: f32[512,128], index: 4, kind: output, shape index: {0}]
  %s5 = inlined_call_operand.vmem [shape: f32[1,2,128], index: 5, kind: output, shape index: {1}]
  %6 = xla_tuple %s4, %s5
  %s7 = sld [smem:[#allocation0]]
  $region34: #{dense_block_forward.12} parent=0
    _
  %s9 = ssub.s32 1, %s7
  %s10 = scalar_select 0, %s9, %s7
  // Predicated region
  $region2: #{dense_block_forward.12} parent=0 // pred_check
    _
  $region3: #{dense_block_forward.12} parent=0 // pred_check_branch
    %12 = sbr.rel (0) target = $region5
  $region4: #{dense_block_forward.12} parent=0 // pred_region
    _
  $region5: #{dense_block_forward.12} parent=0 // pred_fallthru
    _
  // Predicated region
  $region6: #{dense_block_forward.12} parent=0 // pred_check
    _
  $region7: #{dense_block_forward.12} parent=0 // pred_check_branch
    %14 = sbr.rel (0) target = $region9
  $region8: #{dense_block_forward.12} parent=0 // pred_region
    _
  $region9: #{dense_block_forward.12} parent=0 // pred_fallthru
    _
  // Predicated region
  $region10: #{dense_block_forward.12} parent=0 // pred_check
    _
  $region11: #{dense_block_forward.12} parent=0 // pred_check_branch
    %16 = sbr.rel (0) target = $region13
  $region12: #{dense_block_forward.12} parent=0 // pred_region
    _
  $region13: #{dense_block_forward.12} parent=0 // pred_fallthru
    _
  // Predicated region
  $region14: #{dense_block_forward.12} parent=0 // pred_check
    _
  $region15: #{dense_block_forward.12} parent=0 // pred_check_branch
    %18 = sbr.rel (0) target = $region17
  $region16: #{dense_block_forward.12} parent=0 // pred_region
    _
  $region17: #{dense_block_forward.12} parent=0 // pred_fallthru
    _
  %v20 = vld [vmem:[%s0] sm:$0xff]
  %v21 = vld [vmem:[%s0 + $0x8] sm:$0xff]
  %v22 = vld [vmem:[%s0 + $0x10] sm:$0xff]
  %v23 = vld [vmem:[%s0 + $0x18] sm:$0xff]
  %v24 = vld [vmem:[%s0 + $0x20] sm:$0xff]
  %v25 = vld [vmem:[%s0 + $0x28] sm:$0xff]
  %v26 = vld [vmem:[%s0 + $0x30] sm:$0xff]
  %v27 = vld [vmem:[%s0 + $0x38] sm:$0xff]
  %v28 = vld [vmem:[%s0 + $0x40] sm:$0xff]
  %v29 = vld [vmem:[%s0 + $0x48] sm:$0xff]
  %v30 = vld [vmem:[%s0 + $0x50] sm:$0xff]
  %v31 = vld [vmem:[%s0 + $0x58] sm:$0xff]
  %v32 = vld [vmem:[%s0 + $0x60] sm:$0xff]
  %v33 = vld [vmem:[%s0 + $0x68] sm:$0xff]
  %v34 = vld [vmem:[%s0 + $0x70] sm:$0xff]
  %v35 = vld [vmem:[%s0 + $0x78] sm:$0xff]
  %v36 = vld [vmem:[%s0 + $0x80] sm:$0xff]
  %v37 = vld [vmem:[%s0 + $0x88] sm:$0xff]
  %v38 = vld [vmem:[%s0 + $0x90] sm:$0xff]
  %v39 = vld [vmem:[%s0 + $0x98] sm:$0xff]
  %v40 = vld [vmem:[%s0 + $0xa0] sm:$0xff]
  %v41 = vld [vmem:[%s0 + $0xa8] sm:$0xff]
  %v42 = vld [vmem:[%s0 + $0xb0] sm:$0xff]
  %v43 = vld [vmem:[%s0 + $0xb8] sm:$0xff]
  %v44 = vld [vmem:[%s0 + $0xc0] sm:$0xff]
  %v45 = vld [vmem:[%s0 + $0xc8] sm:$0xff]
  %v46 = vld [vmem:[%s0 + $0xd0] sm:$0xff]
  %v47 = vld [vmem:[%s0 + $0xd8] sm:$0xff]
  %v48 = vld [vmem:[%s0 + $0xe0] sm:$0xff]
  %v49 = vld [vmem:[%s0 + $0xe8] sm:$0xff]
  %v50 = vld [vmem:[%s0 + $0xf0] sm:$0xff]
  %v51 = vld [vmem:[%s0 + $0xf8] sm:$0xff]
  %v52 = vld [vmem:[%s0 + $0x100] sm:$0xff]
  %v53 = vld [vmem:[%s0 + $0x108] sm:$0xff]
  %v54 = vld [vmem:[%s0 + $0x110] sm:$0xff]
  %v55 = vld [vmem:[%s0 + $0x118] sm:$0xff]
  %v56 = vld [vmem:[%s0 + $0x120] sm:$0xff]
  %v57 = vld [vmem:[%s0 + $0x128] sm:$0xff]
  %v58 = vld [vmem:[%s0 + $0x130] sm:$0xff]
  %v59 = vld [vmem:[%s0 + $0x138] sm:$0xff]
  %v60 = vld [vmem:[%s0 + $0x140] sm:$0xff]
  %v61 = vld [vmem:[%s0 + $0x148] sm:$0xff]
  %v62 = vld [vmem:[%s0 + $0x150] sm:$0xff]
  %v63 = vld [vmem:[%s0 + $0x158] sm:$0xff]
  %v64 = vld [vmem:[%s0 + $0x160] sm:$0xff]
  %v65 = vld [vmem:[%s0 + $0x168] sm:$0xff]
  %v66 = vld [vmem:[%s0 + $0x170] sm:$0xff]
  %v67 = vld [vmem:[%s0 + $0x178] sm:$0xff]
  %v68 = vld [vmem:[%s0 + $0x180] sm:$0xff]
  %v69 = vld [vmem:[%s0 + $0x188] sm:$0xff]
  %v70 = vld [vmem:[%s0 + $0x190] sm:$0xff]
  %v71 = vld [vmem:[%s0 + $0x198] sm:$0xff]
  %v72 = vld [vmem:[%s0 + $0x1a0] sm:$0xff]
  %v73 = vld [vmem:[%s0 + $0x1a8] sm:$0xff]
  %v74 = vld [vmem:[%s0 + $0x1b0] sm:$0xff]
  %v75 = vld [vmem:[%s0 + $0x1b8] sm:$0xff]
  %v76 = vld [vmem:[%s0 + $0x1c0] sm:$0xff]
  %v77 = vld [vmem:[%s0 + $0x1c8] sm:$0xff]
  %v78 = vld [vmem:[%s0 + $0x1d0] sm:$0xff]
  %v79 = vld [vmem:[%s0 + $0x1d8] sm:$0xff]
  %v80 = vld [vmem:[%s0 + $0x1e0] sm:$0xff]
  %v81 = vld [vmem:[%s0 + $0x1e8] sm:$0xff]
  %v82 = vld [vmem:[%s0 + $0x1f0] sm:$0xff]
  %v83 = vld [vmem:[%s0 + $0x1f8] sm:$0xff]
  %v84 = vld [vmem:[%s1] sm:$0x1]
  %v86 = vlaneseq
  %v87 = vshrl.u32 %v86, 7
  %v88 = vsub.s32 0, %v87
  %v89 = vrot.slane %v84, %v88
  %v91 = vmul.f32 %v20, %v89
  %v92 = vmul.f32 %v21, %v89
  %v93 = vmul.f32 %v22, %v89
  %v94 = vmul.f32 %v23, %v89
  %v95 = vmul.f32 %v24, %v89
  %v96 = vmul.f32 %v25, %v89
  %v97 = vmul.f32 %v26, %v89
  %v98 = vmul.f32 %v27, %v89
  %v99 = vmul.f32 %v28, %v89
  %v100 = vmul.f32 %v29, %v89
  %v101 = vmul.f32 %v30, %v89
  %v102 = vmul.f32 %v31, %v89
  %v103 = vmul.f32 %v32, %v89
  %v104 = vmul.f32 %v33, %v89
  %v105 = vmul.f32 %v34, %v89
  %v106 = vmul.f32 %v35, %v89
  %v107 = vmul.f32 %v36, %v89
  %v108 = vmul.f32 %v37, %v89
  %v109 = vmul.f32 %v38, %v89
  %v110 = vmul.f32 %v39, %v89
  %v111 = vmul.f32 %v40, %v89
  %v112 = vmul.f32 %v41, %v89
  %v113 = vmul.f32 %v42, %v89
  %v114 = vmul.f32 %v43, %v89
  %v115 = vmul.f32 %v44, %v89
  %v116 = vmul.f32 %v45, %v89
  %v117 = vmul.f32 %v46, %v89
  %v118 = vmul.f32 %v47, %v89
  %v119 = vmul.f32 %v48, %v89
  %v120 = vmul.f32 %v49, %v89
  %v121 = vmul.f32 %v50, %v89
  %v122 = vmul.f32 %v51, %v89
  %v123 = vmul.f32 %v52, %v89
  %v124 = vmul.f32 %v53, %v89
  %v125 = vmul.f32 %v54, %v89
  %v126 = vmul.f32 %v55, %v89
  %v127 = vmul.f32 %v56, %v89
  %v128 = vmul.f32 %v57, %v89
  %v129 = vmul.f32 %v58, %v89
  %v130 = vmul.f32 %v59, %v89
  %v131 = vmul.f32 %v60, %v89
  %v132 = vmul.f32 %v61, %v89
  %v133 = vmul.f32 %v62, %v89
  %v134 = vmul.f32 %v63, %v89
  %v135 = vmul.f32 %v64, %v89
  %v136 = vmul.f32 %v65, %v89
  %v137 = vmul.f32 %v66, %v89
  %v138 = vmul.f32 %v67, %v89
  %v139 = vmul.f32 %v68, %v89
  %v140 = vmul.f32 %v69, %v89
  %v141 = vmul.f32 %v70, %v89
  %v142 = vmul.f32 %v71, %v89
  %v143 = vmul.f32 %v72, %v89
  %v144 = vmul.f32 %v73, %v89
  %v145 = vmul.f32 %v74, %v89
  %v146 = vmul.f32 %v75, %v89
  %v147 = vmul.f32 %v76, %v89
  %v148 = vmul.f32 %v77, %v89
  %v149 = vmul.f32 %v78, %v89
  %v150 = vmul.f32 %v79, %v89
  %v151 = vmul.f32 %v80, %v89
  %v152 = vmul.f32 %v81, %v89
  %v153 = vmul.f32 %v82, %v89
  %v154 = vmul.f32 %v83, %v89
  %v155 = vld [vmem:[%s2] sm:$0x1]
  %v157 = vlaneseq
  %v158 = vshrl.u32 %v157, 7
  %v159 = vsub.s32 0, %v158
  %v160 = vrot.slane %v155, %v159
  %v162 = vadd.f32 %v91, %v160
  %v163 = vadd.f32 %v92, %v160
  %v164 = vadd.f32 %v93, %v160
  %v165 = vadd.f32 %v94, %v160
  %v166 = vadd.f32 %v95, %v160
  %v167 = vadd.f32 %v96, %v160
  %v168 = vadd.f32 %v97, %v160
  %v169 = vadd.f32 %v98, %v160
  %v170 = vadd.f32 %v99, %v160
  %v171 = vadd.f32 %v100, %v160
  %v172 = vadd.f32 %v101, %v160
  %v173 = vadd.f32 %v102, %v160
  %v174 = vadd.f32 %v103, %v160
  %v175 = vadd.f32 %v104, %v160
  %v176 = vadd.f32 %v105, %v160
  %v177 = vadd.f32 %v106, %v160
  %v178 = vadd.f32 %v107, %v160
  %v179 = vadd.f32 %v108, %v160
  %v180 = vadd.f32 %v109, %v160
  %v181 = vadd.f32 %v110, %v160
  %v182 = vadd.f32 %v111, %v160
  %v183 = vadd.f32 %v112, %v160
  %v184 = vadd.f32 %v113, %v160
  %v185 = vadd.f32 %v114, %v160
  %v186 = vadd.f32 %v115, %v160
  %v187 = vadd.f32 %v116, %v160
  %v188 = vadd.f32 %v117, %v160
  %v189 = vadd.f32 %v118, %v160
  %v190 = vadd.f32 %v119, %v160
  %v191 = vadd.f32 %v120, %v160
  %v192 = vadd.f32 %v121, %v160
  %v193 = vadd.f32 %v122, %v160
  %v194 = vadd.f32 %v123, %v160
  %v195 = vadd.f32 %v124, %v160
  %v196 = vadd.f32 %v125, %v160
  %v197 = vadd.f32 %v126, %v160
  %v198 = vadd.f32 %v127, %v160
  %v199 = vadd.f32 %v128, %v160
  %v200 = vadd.f32 %v129, %v160
  %v201 = vadd.f32 %v130, %v160
  %v202 = vadd.f32 %v131, %v160
  %v203 = vadd.f32 %v132, %v160
  %v204 = vadd.f32 %v133, %v160
  %v205 = vadd.f32 %v134, %v160
  %v206 = vadd.f32 %v135, %v160
  %v207 = vadd.f32 %v136, %v160
  %v208 = vadd.f32 %v137, %v160
  %v209 = vadd.f32 %v138, %v160
  %v210 = vadd.f32 %v139, %v160
  %v211 = vadd.f32 %v140, %v160
  %v212 = vadd.f32 %v141, %v160
  %v213 = vadd.f32 %v142, %v160
  %v214 = vadd.f32 %v143, %v160
  %v215 = vadd.f32 %v144, %v160
  %v216 = vadd.f32 %v145, %v160
  %v217 = vadd.f32 %v146, %v160
  %v218 = vadd.f32 %v147, %v160
  %v219 = vadd.f32 %v148, %v160
  %v220 = vadd.f32 %v149, %v160
  %v221 = vadd.f32 %v150, %v160
  %v222 = vadd.f32 %v151, %v160
  %v223 = vadd.f32 %v152, %v160
  %v224 = vadd.f32 %v153, %v160
  %v225 = vadd.f32 %v154, %v160
  %v226 = vmax.f32 %v162, 0.0
  %v227 = vmax.f32 %v163, 0.0
  %v228 = vmax.f32 %v164, 0.0
  %v229 = vmax.f32 %v165, 0.0
  %v230 = vmax.f32 %v166, 0.0
  %v231 = vmax.f32 %v167, 0.0
  %v232 = vmax.f32 %v168, 0.0
  %v233 = vmax.f32 %v169, 0.0
  %v234 = vmax.f32 %v170, 0.0
  %v235 = vmax.f32 %v171, 0.0
  %v236 = vmax.f32 %v172, 0.0
  %v237 = vmax.f32 %v173, 0.0
  %v238 = vmax.f32 %v174, 0.0
  %v239 = vmax.f32 %v175, 0.0
  %v240 = vmax.f32 %v176, 0.0
  %v241 = vmax.f32 %v177, 0.0
  %v242 = vmax.f32 %v178, 0.0
  %v243 = vmax.f32 %v179, 0.0
  %v244 = vmax.f32 %v180, 0.0
  %v245 = vmax.f32 %v181, 0.0
  %v246 = vmax.f32 %v182, 0.0
  %v247 = vmax.f32 %v183, 0.0
  %v248 = vmax.f32 %v184, 0.0
  %v249 = vmax.f32 %v185, 0.0
  %v250 = vmax.f32 %v186, 0.0
  %v251 = vmax.f32 %v187, 0.0
  %v252 = vmax.f32 %v188, 0.0
  %v253 = vmax.f32 %v189, 0.0
  %v254 = vmax.f32 %v190, 0.0
  %v255 = vmax.f32 %v191, 0.0
  %v256 = vmax.f32 %v192, 0.0
  %v257 = vmax.f32 %v193, 0.0
  %v258 = vmax.f32 %v194, 0.0
  %v259 = vmax.f32 %v195, 0.0
  %v260 = vmax.f32 %v196, 0.0
  %v261 = vmax.f32 %v197, 0.0
  %v262 = vmax.f32 %v198, 0.0
  %v263 = vmax.f32 %v199, 0.0
  %v264 = vmax.f32 %v200, 0.0
  %v265 = vmax.f32 %v201, 0.0
  %v266 = vmax.f32 %v202, 0.0
  %v267 = vmax.f32 %v203, 0.0
  %v268 = vmax.f32 %v204, 0.0
  %v269 = vmax.f32 %v205, 0.0
  %v270 = vmax.f32 %v206, 0.0
  %v271 = vmax.f32 %v207, 0.0
  %v272 = vmax.f32 %v208, 0.0
  %v273 = vmax.f32 %v209, 0.0
  %v274 = vmax.f32 %v210, 0.0
  %v275 = vmax.f32 %v211, 0.0
  %v276 = vmax.f32 %v212, 0.0
  %v277 = vmax.f32 %v213, 0.0
  %v278 = vmax.f32 %v214, 0.0
  %v279 = vmax.f32 %v215, 0.0
  %v280 = vmax.f32 %v216, 0.0
  %v281 = vmax.f32 %v217, 0.0
  %v282 = vmax.f32 %v218, 0.0
  %v283 = vmax.f32 %v219, 0.0
  %v284 = vmax.f32 %v220, 0.0
  %v285 = vmax.f32 %v221, 0.0
  %v286 = vmax.f32 %v222, 0.0
  %v287 = vmax.f32 %v223, 0.0
  %v288 = vmax.f32 %v224, 0.0
  %v289 = vmax.f32 %v225, 0.0
  %v290 = vpack.c.bf16 %v227, %v226
  %v291 = vpack.c.bf16 %v229, %v228
  %v292 = vpack.c.bf16 %v231, %v230
  %v293 = vpack.c.bf16 %v233, %v232
  %v294 = vpack.c.bf16 %v235, %v234
  %v295 = vpack.c.bf16 %v237, %v236
  %v296 = vpack.c.bf16 %v239, %v238
  %v297 = vpack.c.bf16 %v241, %v240
  %v298 = vpack.c.bf16 %v243, %v242
  %v299 = vpack.c.bf16 %v245, %v244
  %v300 = vpack.c.bf16 %v247, %v246
  %v301 = vpack.c.bf16 %v249, %v248
  %v302 = vpack.c.bf16 %v251, %v250
  %v303 = vpack.c.bf16 %v253, %v252
  %v304 = vpack.c.bf16 %v255, %v254
  %v305 = vpack.c.bf16 %v257, %v256
  %v306 = vpack.c.bf16 %v259, %v258
  %v307 = vpack.c.bf16 %v261, %v260
  %v308 = vpack.c.bf16 %v263, %v262
  %v309 = vpack.c.bf16 %v265, %v264
  %v310 = vpack.c.bf16 %v267, %v266
  %v311 = vpack.c.bf16 %v269, %v268
  %v312 = vpack.c.bf16 %v271, %v270
  %v313 = vpack.c.bf16 %v273, %v272
  %v314 = vpack.c.bf16 %v275, %v274
  %v315 = vpack.c.bf16 %v277, %v276
  %v316 = vpack.c.bf16 %v279, %v278
  %v317 = vpack.c.bf16 %v281, %v280
  %v318 = vpack.c.bf16 %v283, %v282
  %v319 = vpack.c.bf16 %v285, %v284
  %v320 = vpack.c.bf16 %v287, %v286
  %v321 = vpack.c.bf16 %v289, %v288
  %v322 = vld [vmem:[%s3] sm:$0xf]
  %v323 = vld [vmem:[%s3 + $0x4] sm:$0xf]
  %v324 = vld [vmem:[%s3 + $0x8] sm:$0xf]
  %v325 = vld [vmem:[%s3 + $0xc] sm:$0xf]
  %v330 = vunpack.c.l.b16 %v322
  %v331 = vunpack.c.l.b16 %v323
  %v332 = vunpack.c.l.b16 %v324
  %v333 = vunpack.c.l.b16 %v325
  %v334 = vpack.c.b16 %v331, %v330
  %v335 = vpack.c.b16 %v333, %v332
  %vm338 = vcmask 261120
  %v340 = vsel %vm338, %v290, 0
  %v343 = vsel %vm338, %v291, 0
  %v346 = vsel %vm338, %v292, 0
  %v349 = vsel %vm338, %v293, 0
  %v352 = vsel %vm338, %v294, 0
  %v355 = vsel %vm338, %v295, 0
  %v358 = vsel %vm338, %v296, 0
  %v361 = vsel %vm338, %v297, 0
  %v364 = vsel %vm338, %v298, 0
  %v367 = vsel %vm338, %v299, 0
  %v370 = vsel %vm338, %v300, 0
  %v373 = vsel %vm338, %v301, 0
  %v376 = vsel %vm338, %v302, 0
  %v379 = vsel %vm338, %v303, 0
  %v382 = vsel %vm338, %v304, 0
  %v385 = vsel %vm338, %v305, 0
  %v388 = vsel %vm338, %v306, 0
  %v391 = vsel %vm338, %v307, 0
  %v394 = vsel %vm338, %v308, 0
  %v397 = vsel %vm338, %v309, 0
  %v400 = vsel %vm338, %v310, 0
  %v403 = vsel %vm338, %v311, 0
  %v406 = vsel %vm338, %v312, 0
  %v409 = vsel %vm338, %v313, 0
  %v412 = vsel %vm338, %v314, 0
  %v415 = vsel %vm338, %v315, 0
  %v418 = vsel %vm338, %v316, 0
  %v421 = vsel %vm338, %v317, 0
  %v424 = vsel %vm338, %v318, 0
  %v427 = vsel %vm338, %v319, 0
  %v430 = vsel %vm338, %v320, 0
  %v433 = vsel %vm338, %v321, 0
  %435 = vmatprep.subr.bf16.mxu0 0
  %436 = vmatpush1.bf16.msra.mxu0 %v334
  %437 = vmatprep.subr.bf16.mxu0 0
  %438 = vmatpush1.bf16.msra.mxu0 %v335
  %439 = vmatprep.subr.bf16.mxu0 0
  %440 = vmatpush1.bf16.msra.mxu0 0
  %441 = vmatprep.subr.bf16.mxu0 0
  %442 = vmatpush1.bf16.msra.mxu0 0
  %443 = vmatprep.subr.bf16.mxu0 0
  %444 = vmatpush1.bf16.msra.mxu0 0
  %445 = vmatprep.subr.bf16.mxu0 0
  %446 = vmatpush1.bf16.msra.mxu0 0
  %447 = vmatprep.subr.bf16.mxu0 0
  %448 = vmatpush1.bf16.msra.mxu0 0
  %449 = vmatprep.subr.bf16.mxu0 0
  %450 = vmatpush1.bf16.msra.mxu0 0
  %451 = vmatprep.subr.bf16.mxu0 0
  %452 = vmatpush1.bf16.msra.mxu0 0
  %453 = vmatprep.subr.bf16.mxu0 0
  %454 = vmatpush1.bf16.msra.mxu0 0
  %455 = vmatprep.subr.bf16.mxu0 0
  %456 = vmatpush1.bf16.msra.mxu0 0
  %457 = vmatprep.subr.bf16.mxu0 0
  %458 = vmatpush1.bf16.msra.mxu0 0
  %459 = vmatprep.subr.bf16.mxu0 0
  %460 = vmatpush1.bf16.msra.mxu0 0
  %461 = vmatprep.subr.bf16.mxu0 0
  %462 = vmatpush1.bf16.msra.mxu0 0
  %463 = vmatprep.subr.bf16.mxu0 0
  %464 = vmatpush1.bf16.msra.mxu0 0
  %465 = vmatprep.subr.bf16.mxu0 0
  %466 = vmatpush1.bf16.msra.mxu0 0
  %467 = vmatprep.mubr.bf16.mxu0 0
  %468 = vmatmul.mubr.bf16.gmra.mrb[0].mxu0 %v340
  %v469 = vpop.f32.mrb[0].mxu0
  %v470 = vadd.f32 0.0, %v469
  %v471 = vpop.f32.mrb[0].mxu0
  %v472 = vpop.f32.mrb[0].mxu0
  %v473 = vadd.f32 0.0, %v472
  %v474 = vpop.f32.mrb[0].mxu0
  %475 = vmatprep.mubr.bf16.mxu0 0
  %476 = vmatmul.mubr.bf16.gmra.mrb[0].mxu0 %v343
  %v477 = vpop.f32.mrb[0].mxu0
  %v478 = vadd.f32 0.0, %v477
  %v479 = vpop.f32.mrb[0].mxu0
  %v480 = vpop.f32.mrb[0].mxu0
  %v481 = vadd.f32 0.0, %v480
  %v482 = vpop.f32.mrb[0].mxu0
  %483 = vmatprep.mubr.bf16.mxu0 0
  %484 = vmatmul.mubr.bf16.gmra.mrb[0].mxu0 %v346
  %v485 = vpop.f32.mrb[0].mxu0
  %v486 = vadd.f32 0.0, %v485
  %v487 = vpop.f32.mrb[0].mxu0
  %v488 = vpop.f32.mrb[0].mxu0
  %v489 = vadd.f32 0.0, %v488
  %v490 = vpop.f32.mrb[0].mxu0
  %491 = vmatprep.mubr.bf16.mxu0 0
  %492 = vmatmul.mubr.bf16.gmra.mrb[0].mxu0 %v349
  %v493 = vpop.f32.mrb[0].mxu0
  %v494 = vadd.f32 0.0, %v493
  %v495 = vpop.f32.mrb[0].mxu0
  %v496 = vpop.f32.mrb[0].mxu0
  %v497 = vadd.f32 0.0, %v496
  %v498 = vpop.f32.mrb[0].mxu0
  %499 = vmatprep.mubr.bf16.mxu0 0
  %500 = vmatmul.mubr.bf16.gmra.mrb[0].mxu0 %v352
  %v501 = vpop.f32.mrb[0].mxu0
  %v502 = vadd.f32 0.0, %v501
  %v503 = vpop.f32.mrb[0].mxu0
  %v504 = vpop.f32.mrb[0].mxu0
  %v505 = vadd.f32 0.0, %v504
  %v506 = vpop.f32.mrb[0].mxu0
  %507 = vmatprep.mubr.bf16.mxu0 0
  %508 = vmatmul.mubr.bf16.gmra.mrb[0].mxu0 %v355
  %v509 = vpop.f32.mrb[0].mxu0
  %v510 = vadd.f32 0.0, %v509
  %v511 = vpop.f32.mrb[0].mxu0
  %v512 = vpop.f32.mrb[0].mxu0
  %v513 = vadd.f32 0.0, %v512
  %v514 = vpop.f32.mrb[0].mxu0
  %515 = vmatprep.mubr.bf16.mxu0 0
  %516 = vmatmul.mubr.bf16.gmra.mrb[0].mxu0 %v358
  %v517 = vpop.f32.mrb[0].mxu0
  %v518 = vadd.f32 0.0, %v517
  %v519 = vpop.f32.mrb[0].mxu0
  %v520 = vpop.f32.mrb[0].mxu0
  %v521 = vadd.f32 0.0, %v520
  %v522 = vpop.f32.mrb[0].mxu0
  %523 = vmatprep.mubr.bf16.mxu0 0
  %524 = vmatmul.mubr.bf16.gmra.mrb[0].mxu0 %v361
  %v525 = vpop.f32.mrb[0].mxu0
  %v526 = vadd.f32 0.0, %v525
  %v527 = vpop.f32.mrb[0].mxu0
  %v528 = vpop.f32.mrb[0].mxu0
  %v529 = vadd.f32 0.0, %v528
  %v530 = vpop.f32.mrb[0].mxu0
  %531 = vmatprep.mubr.bf16.mxu0 0
  %532 = vmatmul.mubr.bf16.gmra.mrb[0].mxu0 %v364
  %v533 = vpop.f32.mrb[0].mxu0
  %v534 = vadd.f32 0.0, %v533
  %v535 = vpop.f32.mrb[0].mxu0
  %v536 = vpop.f32.mrb[0].mxu0
  %v537 = vadd.f32 0.0, %v536
  %v538 = vpop.f32.mrb[0].mxu0
  %539 = vmatprep.mubr.bf16.mxu0 0
  %540 = vmatmul.mubr.bf16.gmra.mrb[0].mxu0 %v367
  %v541 = vpop.f32.mrb[0].mxu0
  %v542 = vadd.f32 0.0, %v541
  %v543 = vpop.f32.mrb[0].mxu0
  %v544 = vpop.f32.mrb[0].mxu0
  %v545 = vadd.f32 0.0, %v544
  %v546 = vpop.f32.mrb[0].mxu0
  %547 = vmatprep.mubr.bf16.mxu0 0
  %548 = vmatmul.mubr.bf16.gmra.mrb[0].mxu0 %v370
  %v549 = vpop.f32.mrb[0].mxu0
  %v550 = vadd.f32 0.0, %v549
  %v551 = vpop.f32.mrb[0].mxu0
  %v552 = vpop.f32.mrb[0].mxu0
  %v553 = vadd.f32 0.0, %v552
  %v554 = vpop.f32.mrb[0].mxu0
  %555 = vmatprep.mubr.bf16.mxu0 0
  %556 = vmatmul.mubr.bf16.gmra.mrb[0].mxu0 %v373
  %v557 = vpop.f32.mrb[0].mxu0
  %v558 = vadd.f32 0.0, %v557
  %v559 = vpop.f32.mrb[0].mxu0
  %v560 = vpop.f32.mrb[0].mxu0
  %v561 = vadd.f32 0.0, %v560
  %v562 = vpop.f32.mrb[0].mxu0
  %563 = vmatprep.mubr.bf16.mxu0 0
  %564 = vmatmul.mubr.bf16.gmra.mrb[0].mxu0 %v376
  %v565 = vpop.f32.mrb[0].mxu0
  %v566 = vadd.f32 0.0, %v565
  %v567 = vpop.f32.mrb[0].mxu0
  %v568 = vpop.f32.mrb[0].mxu0
  %v569 = vadd.f32 0.0, %v568
  %v570 = vpop.f32.mrb[0].mxu0
  %571 = vmatprep.mubr.bf16.mxu0 0
  %572 = vmatmul.mubr.bf16.gmra.mrb[0].mxu0 %v379
  %v573 = vpop.f32.mrb[0].mxu0
  %v574 = vadd.f32 0.0, %v573
  %v575 = vpop.f32.mrb[0].mxu0
  %v576 = vpop.f32.mrb[0].mxu0
  %v577 = vadd.f32 0.0, %v576
  %v578 = vpop.f32.mrb[0].mxu0
  %579 = vmatprep.mubr.bf16.mxu0 0
  %580 = vmatmul.mubr.bf16.gmra.mrb[0].mxu0 %v382
  %v581 = vpop.f32.mrb[0].mxu0
  %v582 = vadd.f32 0.0, %v581
  %v583 = vpop.f32.mrb[0].mxu0
  %v584 = vpop.f32.mrb[0].mxu0
  %v585 = vadd.f32 0.0, %v584
  %v586 = vpop.f32.mrb[0].mxu0
  %587 = vmatprep.mubr.bf16.mxu0 0
  %588 = vmatmul.mubr.bf16.gmra.mrb[0].mxu0 %v385
  %v589 = vpop.f32.mrb[0].mxu0
  %v590 = vadd.f32 0.0, %v589
  %v591 = vpop.f32.mrb[0].mxu0
  %v592 = vpop.f32.mrb[0].mxu0
  %v593 = vadd.f32 0.0, %v592
  %v594 = vpop.f32.mrb[0].mxu0
  %595 = vmatprep.mubr.bf16.mxu0 0
  %596 = vmatmul.mubr.bf16.gmra.mrb[0].mxu0 %v388
  %v597 = vpop.f32.mrb[0].mxu0
  %v598 = vadd.f32 0.0, %v597
  %v599 = vpop.f32.mrb[0].mxu0
  %v600 = vpop.f32.mrb[0].mxu0
  %v601 = vadd.f32 0.0, %v600
  %v602 = vpop.f32.mrb[0].mxu0
  %603 = vmatprep.mubr.bf16.mxu0 0
  %604 = vmatmul.mubr.bf16.gmra.mrb[0].mxu0 %v391
  %v605 = vpop.f32.mrb[0].mxu0
  %v606 = vadd.f32 0.0, %v605
  %v607 = vpop.f32.mrb[0].mxu0
  %v608 = vpop.f32.mrb[0].mxu0
  %v609 = vadd.f32 0.0, %v608
  %v610 = vpop.f32.mrb[0].mxu0
  %611 = vmatprep.mubr.bf16.mxu0 0
  %612 = vmatmul.mubr.bf16.gmra.mrb[0].mxu0 %v394
  %v613 = vpop.f32.mrb[0].mxu0
  %v614 = vadd.f32 0.0, %v613
  %v615 = vpop.f32.mrb[0].mxu0
  %v616 = vpop.f32.mrb[0].mxu0
  %v617 = vadd.f32 0.0, %v616
  %v618 = vpop.f32.mrb[0].mxu0
  %619 = vmatprep.mubr.bf16.mxu0 0
  %620 = vmatmul.mubr.bf16.gmra.mrb[0].mxu0 %v397
  %v621 = vpop.f32.mrb[0].mxu0
  %v622 = vadd.f32 0.0, %v621
  %v623 = vpop.f32.mrb[0].mxu0
  %v624 = vpop.f32.mrb[0].mxu0
  %v625 = vadd.f32 0.0, %v624
  %v626 = vpop.f32.mrb[0].mxu0
  %627 = vmatprep.mubr.bf16.mxu0 0
  %628 = vmatmul.mubr.bf16.gmra.mrb[0].mxu0 %v400
  %v629 = vpop.f32.mrb[0].mxu0
  %v630 = vadd.f32 0.0, %v629
  %v631 = vpop.f32.mrb[0].mxu0
  %v632 = vpop.f32.mrb[0].mxu0
  %v633 = vadd.f32 0.0, %v632
  %v634 = vpop.f32.mrb[0].mxu0
  %635 = vmatprep.mubr.bf16.mxu0 0
  %636 = vmatmul.mubr.bf16.gmra.mrb[0].mxu0 %v403
  %v637 = vpop.f32.mrb[0].mxu0
  %v638 = vadd.f32 0.0, %v637
  %v639 = vpop.f32.mrb[0].mxu0
  %v640 = vpop.f32.mrb[0].mxu0
  %v641 = vadd.f32 0.0, %v640
  %v642 = vpop.f32.mrb[0].mxu0
  %643 = vmatprep.mubr.bf16.mxu0 0
  %644 = vmatmul.mubr.bf16.gmra.mrb[0].mxu0 %v406
  %v645 = vpop.f32.mrb[0].mxu0
  %v646 = vadd.f32 0.0, %v645
  %v647 = vpop.f32.mrb[0].mxu0
  %v648 = vpop.f32.mrb[0].mxu0
  %v649 = vadd.f32 0.0, %v648
  %v650 = vpop.f32.mrb[0].mxu0
  %651 = vmatprep.mubr.bf16.mxu0 0
  %652 = vmatmul.mubr.bf16.gmra.mrb[0].mxu0 %v409
  %v653 = vpop.f32.mrb[0].mxu0
  %v654 = vadd.f32 0.0, %v653
  %v655 = vpop.f32.mrb[0].mxu0
  %v656 = vpop.f32.mrb[0].mxu0
  %v657 = vadd.f32 0.0, %v656
  %v658 = vpop.f32.mrb[0].mxu0
  %659 = vmatprep.mubr.bf16.mxu0 0
  %660 = vmatmul.mubr.bf16.gmra.mrb[0].mxu0 %v412
  %v661 = vpop.f32.mrb[0].mxu0
  %v662 = vadd.f32 0.0, %v661
  %v663 = vpop.f32.mrb[0].mxu0
  %v664 = vpop.f32.mrb[0].mxu0
  %v665 = vadd.f32 0.0, %v664
  %v666 = vpop.f32.mrb[0].mxu0
  %667 = vmatprep.mubr.bf16.mxu0 0
  %668 = vmatmul.mubr.bf16.gmra.mrb[0].mxu0 %v415
  %v669 = vpop.f32.mrb[0].mxu0
  %v670 = vadd.f32 0.0, %v669
  %v671 = vpop.f32.mrb[0].mxu0
  %v672 = vpop.f32.mrb[0].mxu0
  %v673 = vadd.f32 0.0, %v672
  %v674 = vpop.f32.mrb[0].mxu0
  %675 = vmatprep.mubr.bf16.mxu0 0
  %676 = vmatmul.mubr.bf16.gmra.mrb[0].mxu0 %v418
  %v677 = vpop.f32.mrb[0].mxu0
  %v678 = vadd.f32 0.0, %v677
  %v679 = vpop.f32.mrb[0].mxu0
  %v680 = vpop.f32.mrb[0].mxu0
  %v681 = vadd.f32 0.0, %v680
  %v682 = vpop.f32.mrb[0].mxu0
  %683 = vmatprep.mubr.bf16.mxu0 0
  %684 = vmatmul.mubr.bf16.gmra.mrb[0].mxu0 %v421
  %v685 = vpop.f32.mrb[0].mxu0
  %v686 = vadd.f32 0.0, %v685
  %v687 = vpop.f32.mrb[0].mxu0
  %v688 = vpop.f32.mrb[0].mxu0
  %v689 = vadd.f32 0.0, %v688
  %v690 = vpop.f32.mrb[0].mxu0
  %691 = vmatprep.mubr.bf16.mxu0 0
  %692 = vmatmul.mubr.bf16.gmra.mrb[0].mxu0 %v424
  %v693 = vpop.f32.mrb[0].mxu0
  %v694 = vadd.f32 0.0, %v693
  %v695 = vpop.f32.mrb[0].mxu0
  %v696 = vpop.f32.mrb[0].mxu0
  %v697 = vadd.f32 0.0, %v696
  %v698 = vpop.f32.mrb[0].mxu0
  %699 = vmatprep.mubr.bf16.mxu0 0
  %700 = vmatmul.mubr.bf16.gmra.mrb[0].mxu0 %v427
  %v701 = vpop.f32.mrb[0].mxu0
  %v702 = vadd.f32 0.0, %v701
  %v703 = vpop.f32.mrb[0].mxu0
  %v704 = vpop.f32.mrb[0].mxu0
  %v705 = vadd.f32 0.0, %v704
  %v706 = vpop.f32.mrb[0].mxu0
  %707 = vmatprep.mubr.bf16.mxu0 0
  %708 = vmatmul.mubr.bf16.gmra.mrb[0].mxu0 %v430
  %v709 = vpop.f32.mrb[0].mxu0
  %v710 = vadd.f32 0.0, %v709
  %v711 = vpop.f32.mrb[0].mxu0
  %v712 = vpop.f32.mrb[0].mxu0
  %v713 = vadd.f32 0.0, %v712
  %v714 = vpop.f32.mrb[0].mxu0
  %715 = vmatprep.mubr.bf16.mxu0 0
  %716 = vmatmul.mubr.bf16.gmra.mrb[0].mxu0 %v433
  %v717 = vpop.f32.mrb[0].mxu0
  %v718 = vadd.f32 0.0, %v717
  %v719 = vpop.f32.mrb[0].mxu0
  %v720 = vpop.f32.mrb[0].mxu0
  %v721 = vadd.f32 0.0, %v720
  %v722 = vpop.f32.mrb[0].mxu0
  %723 = vdwg.mxu0
  %724 = vst [vmem:[%s4] sm:$0xff] %v470
  %725 = vst [vmem:[%s4 + $0x8] sm:$0xff] %v473
  %726 = vst [vmem:[%s4 + $0x10] sm:$0xff] %v478
  %727 = vst [vmem:[%s4 + $0x18] sm:$0xff] %v481
  %728 = vst [vmem:[%s4 + $0x20] sm:$0xff] %v486
  %729 = vst [vmem:[%s4 + $0x28] sm:$0xff] %v489
  %730 = vst [vmem:[%s4 + $0x30] sm:$0xff] %v494
  %731 = vst [vmem:[%s4 + $0x38] sm:$0xff] %v497
  %732 = vst [vmem:[%s4 + $0x40] sm:$0xff] %v502
  %733 = vst [vmem:[%s4 + $0x48] sm:$0xff] %v505
  %734 = vst [vmem:[%s4 + $0x50] sm:$0xff] %v510
  %735 = vst [vmem:[%s4 + $0x58] sm:$0xff] %v513
  %736 = vst [vmem:[%s4 + $0x60] sm:$0xff] %v518
  %737 = vst [vmem:[%s4 + $0x68] sm:$0xff] %v521
  %738 = vst [vmem:[%s4 + $0x70] sm:$0xff] %v526
  %739 = vst [vmem:[%s4 + $0x78] sm:$0xff] %v529
  %740 = vst [vmem:[%s4 + $0x80] sm:$0xff] %v534
  %741 = vst [vmem:[%s4 + $0x88] sm:$0xff] %v537
  %742 = vst [vmem:[%s4 + $0x90] sm:$0xff] %v542
  %743 = vst [vmem:[%s4 + $0x98] sm:$0xff] %v545
  %744 = vst [vmem:[%s4 + $0xa0] sm:$0xff] %v550
  %745 = vst [vmem:[%s4 + $0xa8] sm:$0xff] %v553
  %746 = vst [vmem:[%s4 + $0xb0] sm:$0xff] %v558
  %747 = vst [vmem:[%s4 + $0xb8] sm:$0xff] %v561
  %748 = vst [vmem:[%s4 + $0xc0] sm:$0xff] %v566
  %749 = vst [vmem:[%s4 + $0xc8] sm:$0xff] %v569
  %750 = vst [vmem:[%s4 + $0xd0] sm:$0xff] %v574
  %751 = vst [vmem:[%s4 + $0xd8] sm:$0xff] %v577
  %752 = vst [vmem:[%s4 + $0xe0] sm:$0xff] %v582
  %753 = vst [vmem:[%s4 + $0xe8] sm:$0xff] %v585
  %754 = vst [vmem:[%s4 + $0xf0] sm:$0xff] %v590
  %755 = vst [vmem:[%s4 + $0xf8] sm:$0xff] %v593
  %756 = vst [vmem:[%s4 + $0x100] sm:$0xff] %v598
  %757 = vst [vmem:[%s4 + $0x108] sm:$0xff] %v601
  %758 = vst [vmem:[%s4 + $0x110] sm:$0xff] %v606
  %759 = vst [vmem:[%s4 + $0x118] sm:$0xff] %v609
  %760 = vst [vmem:[%s4 + $0x120] sm:$0xff] %v614
  %761 = vst [vmem:[%s4 + $0x128] sm:$0xff] %v617
  %762 = vst [vmem:[%s4 + $0x130] sm:$0xff] %v622
  %763 = vst [vmem:[%s4 + $0x138] sm:$0xff] %v625
  %764 = vst [vmem:[%s4 + $0x140] sm:$0xff] %v630
  %765 = vst [vmem:[%s4 + $0x148] sm:$0xff] %v633
  %766 = vst [vmem:[%s4 + $0x150] sm:$0xff] %v638
  %767 = vst [vmem:[%s4 + $0x158] sm:$0xff] %v641
  %768 = vst [vmem:[%s4 + $0x160] sm:$0xff] %v646
  %769 = vst [vmem:[%s4 + $0x168] sm:$0xff] %v649
  %770 = vst [vmem:[%s4 + $0x170] sm:$0xff] %v654
  %771 = vst [vmem:[%s4 + $0x178] sm:$0xff] %v657
  %772 = vst [vmem:[%s4 + $0x180] sm:$0xff] %v662
  %773 = vst [vmem:[%s4 + $0x188] sm:$0xff] %v665
  %774 = vst [vmem:[%s4 + $0x190] sm:$0xff] %v670
  %775 = vst [vmem:[%s4 + $0x198] sm:$0xff] %v673
  %776 = vst [vmem:[%s4 + $0x1a0] sm:$0xff] %v678
  %777 = vst [vmem:[%s4 + $0x1a8] sm:$0xff] %v681
  %778 = vst [vmem:[%s4 + $0x1b0] sm:$0xff] %v686
  %779 = vst [vmem:[%s4 + $0x1b8] sm:$0xff] %v689
  %780 = vst [vmem:[%s4 + $0x1c0] sm:$0xff] %v694
  %781 = vst [vmem:[%s4 + $0x1c8] sm:$0xff] %v697
  %782 = vst [vmem:[%s4 + $0x1d0] sm:$0xff] %v702
  %783 = vst [vmem:[%s4 + $0x1d8] sm:$0xff] %v705
  %784 = vst [vmem:[%s4 + $0x1e0] sm:$0xff] %v710
  %785 = vst [vmem:[%s4 + $0x1e8] sm:$0xff] %v713
  %786 = vst [vmem:[%s4 + $0x1f0] sm:$0xff] %v718
  %787 = vst [vmem:[%s4 + $0x1f8] sm:$0xff] %v721
  %v788 = vadd.f32 %v470, %v473
  %v789 = vadd.f32 %v788, %v478
  %v790 = vadd.f32 %v789, %v481
  %v791 = vadd.f32 %v790, %v486
  %v792 = vadd.f32 %v791, %v489
  %v793 = vadd.f32 %v792, %v494
  %v794 = vadd.f32 %v793, %v497
  %v795 = vadd.f32 %v794, %v502
  %v796 = vadd.f32 %v795, %v505
  %v797 = vadd.f32 %v796, %v510
  %v798 = vadd.f32 %v797, %v513
  %v799 = vadd.f32 %v798, %v518
  %v800 = vadd.f32 %v799, %v521
  %v801 = vadd.f32 %v800, %v526
  %v802 = vadd.f32 %v801, %v529
  %v803 = vadd.f32 %v802, %v534
  %v804 = vadd.f32 %v803, %v537
  %v805 = vadd.f32 %v804, %v542
  %v806 = vadd.f32 %v805, %v545
  %v807 = vadd.f32 %v806, %v550
  %v808 = vadd.f32 %v807, %v553
  %v809 = vadd.f32 %v808, %v558
  %v810 = vadd.f32 %v809, %v561
  %v811 = vadd.f32 %v810, %v566
  %v812 = vadd.f32 %v811, %v569
  %v813 = vadd.f32 %v812, %v574
  %v814 = vadd.f32 %v813, %v577
  %v815 = vadd.f32 %v814, %v582
  %v816 = vadd.f32 %v815, %v585
  %v817 = vadd.f32 %v816, %v590
  %v818 = vadd.f32 %v817, %v593
  %v819 = vadd.f32 %v818, %v598
  %v820 = vadd.f32 %v819, %v601
  %v821 = vadd.f32 %v820, %v606
  %v822 = vadd.f32 %v821, %v609
  %v823 = vadd.f32 %v822, %v614
  %v824 = vadd.f32 %v823, %v617
  %v825 = vadd.f32 %v824, %v622
  %v826 = vadd.f32 %v825, %v625
  %v827 = vadd.f32 %v826, %v630
  %v828 = vadd.f32 %v827, %v633
  %v829 = vadd.f32 %v828, %v638
  %v830 = vadd.f32 %v829, %v641
  %v831 = vadd.f32 %v830, %v646
  %v832 = vadd.f32 %v831, %v649
  %v833 = vadd.f32 %v832, %v654
  %v834 = vadd.f32 %v833, %v657
  %v835 = vadd.f32 %v834, %v662
  %v836 = vadd.f32 %v835, %v665
  %v837 = vadd.f32 %v836, %v670
  %v838 = vadd.f32 %v837, %v673
  %v839 = vadd.f32 %v838, %v678
  %v840 = vadd.f32 %v839, %v681
  %v841 = vadd.f32 %v840, %v686
  %v842 = vadd.f32 %v841, %v689
  %v843 = vadd.f32 %v842, %v694
  %v844 = vadd.f32 %v843, %v697
  %v845 = vadd.f32 %v844, %v702
  %v846 = vadd.f32 %v845, %v705
  %v847 = vadd.f32 %v846, %v710
  %v848 = vadd.f32 %v847, %v713
  %v849 = vadd.f32 %v848, %v718
  %v850 = vadd.f32 %v849, %v721
  %v851 = vrot.slane %v850, 4
  %v852 = vadd.f32 %v850, %v851
  %v853 = vrot.slane %v852, 2
  %v854 = vadd.f32 %v852, %v853
  %v855 = vrot.slane %v854, 1
  %v856 = vadd.f32 %v854, %v855
  %v857 = vmul.f32 %v470, %v470
  %v858 = vmul.f32 %v473, %v473
  %v859 = vmul.f32 %v478, %v478
  %v860 = vmul.f32 %v481, %v481
  %v861 = vmul.f32 %v486, %v486
  %v862 = vmul.f32 %v489, %v489
  %v863 = vmul.f32 %v494, %v494
  %v864 = vmul.f32 %v497, %v497
  %v865 = vmul.f32 %v502, %v502
  %v866 = vmul.f32 %v505, %v505
  %v867 = vmul.f32 %v510, %v510
  %v868 = vmul.f32 %v513, %v513
  %v869 = vmul.f32 %v518, %v518
  %v870 = vmul.f32 %v521, %v521
  %v871 = vmul.f32 %v526, %v526
  %v872 = vmul.f32 %v529, %v529
  %v873 = vmul.f32 %v534, %v534
  %v874 = vmul.f32 %v537, %v537
  %v875 = vmul.f32 %v542, %v542
  %v876 = vmul.f32 %v545, %v545
  %v877 = vmul.f32 %v550, %v550
  %v878 = vmul.f32 %v553, %v553
  %v879 = vmul.f32 %v558, %v558
  %v880 = vmul.f32 %v561, %v561
  %v881 = vmul.f32 %v566, %v566
  %v882 = vmul.f32 %v569, %v569
  %v883 = vmul.f32 %v574, %v574
  %v884 = vmul.f32 %v577, %v577
  %v885 = vmul.f32 %v582, %v582
  %v886 = vmul.f32 %v585, %v585
  %v887 = vmul.f32 %v590, %v590
  %v888 = vmul.f32 %v593, %v593
  %v889 = vmul.f32 %v598, %v598
  %v890 = vmul.f32 %v601, %v601
  %v891 = vmul.f32 %v606, %v606
  %v892 = vmul.f32 %v609, %v609
  %v893 = vmul.f32 %v614, %v614
  %v894 = vmul.f32 %v617, %v617
  %v895 = vmul.f32 %v622, %v622
  %v896 = vmul.f32 %v625, %v625
  %v897 = vmul.f32 %v630, %v630
  %v898 = vmul.f32 %v633, %v633
  %v899 = vmul.f32 %v638, %v638
  %v900 = vmul.f32 %v641, %v641
  %v901 = vmul.f32 %v646, %v646
  %v902 = vmul.f32 %v649, %v649
  %v903 = vmul.f32 %v654, %v654
  %v904 = vmul.f32 %v657, %v657
  %v905 = vmul.f32 %v662, %v662
  %v906 = vmul.f32 %v665, %v665
  %v907 = vmul.f32 %v670, %v670
  %v908 = vmul.f32 %v673, %v673
  %v909 = vmul.f32 %v678, %v678
  %v910 = vmul.f32 %v681, %v681
  %v911 = vmul.f32 %v686, %v686
  %v912 = vmul.f32 %v689, %v689
  %v913 = vmul.f32 %v694, %v694
  %v914 = vmul.f32 %v697, %v697
  %v915 = vmul.f32 %v702, %v702
  %v916 = vmul.f32 %v705, %v705
  %v917 = vmul.f32 %v710, %v710
  %v918 = vmul.f32 %v713, %v713
  %v919 = vmul.f32 %v718, %v718
  %v920 = vmul.f32 %v721, %v721
  %v921 = vadd.f32 %v857, %v858
  %v922 = vadd.f32 %v921, %v859
  %v923 = vadd.f32 %v922, %v860
  %v924 = vadd.f32 %v923, %v861
  %v925 = vadd.f32 %v924, %v862
  %v926 = vadd.f32 %v925, %v863
  %v927 = vadd.f32 %v926, %v864
  %v928 = vadd.f32 %v927, %v865
  %v929 = vadd.f32 %v928, %v866
  %v930 = vadd.f32 %v929, %v867
  %v931 = vadd.f32 %v930, %v868
  %v932 = vadd.f32 %v931, %v869
  %v933 = vadd.f32 %v932, %v870
  %v934 = vadd.f32 %v933, %v871
  %v935 = vadd.f32 %v934, %v872
  %v936 = vadd.f32 %v935, %v873
  %v937 = vadd.f32 %v936, %v874
  %v938 = vadd.f32 %v937, %v875
  %v939 = vadd.f32 %v938, %v876
  %v940 = vadd.f32 %v939, %v877
  %v941 = vadd.f32 %v940, %v878
  %v942 = vadd.f32 %v941, %v879
  %v943 = vadd.f32 %v942, %v880
  %v944 = vadd.f32 %v943, %v881
  %v945 = vadd.f32 %v944, %v882
  %v946 = vadd.f32 %v945, %v883
  %v947 = vadd.f32 %v946, %v884
  %v948 = vadd.f32 %v947, %v885
  %v949 = vadd.f32 %v948, %v886
  %v950 = vadd.f32 %v949, %v887
  %v951 = vadd.f32 %v950, %v888
  %v952 = vadd.f32 %v951, %v889
  %v953 = vadd.f32 %v952, %v890
  %v954 = vadd.f32 %v953, %v891
  %v955 = vadd.f32 %v954, %v892
  %v956 = vadd.f32 %v955, %v893
  %v957 = vadd.f32 %v956, %v894
  %v958 = vadd.f32 %v957, %v895
  %v959 = vadd.f32 %v958, %v896
  %v960 = vadd.f32 %v959, %v897
  %v961 = vadd.f32 %v960, %v898
  %v962 = vadd.f32 %v961, %v899
  %v963 = vadd.f32 %v962, %v900
  %v964 = vadd.f32 %v963, %v901
  %v965 = vadd.f32 %v964, %v902
  %v966 = vadd.f32 %v965, %v903
  %v967 = vadd.f32 %v966, %v904
  %v968 = vadd.f32 %v967, %v905
  %v969 = vadd.f32 %v968, %v906
  %v970 = vadd.f32 %v969, %v907
  %v971 = vadd.f32 %v970, %v908
  %v972 = vadd.f32 %v971, %v909
  %v973 = vadd.f32 %v972, %v910
  %v974 = vadd.f32 %v973, %v911
  %v975 = vadd.f32 %v974, %v912
  %v976 = vadd.f32 %v975, %v913
  %v977 = vadd.f32 %v976, %v914
  %v978 = vadd.f32 %v977, %v915
  %v979 = vadd.f32 %v978, %v916
  %v980 = vadd.f32 %v979, %v917
  %v981 = vadd.f32 %v980, %v918
  %v982 = vadd.f32 %v981, %v919
  %v983 = vadd.f32 %v982, %v920
  %v984 = vrot.slane %v983, 4
  %v985 = vadd.f32 %v983, %v984
  %v986 = vrot.slane %v985, 2
  %v987 = vadd.f32 %v985, %v986
  %v988 = vrot.slane %v987, 1
  %v989 = vadd.f32 %v987, %v988
  %vm990 = vcmask 1040384
  %v991 = vsel %vm990, %v856, %v989
  %992 = vst [vmem:[%s5] sm:$0x3] %v991
  // Predicated region
  $region18: #{dense_block_forward.12} parent=0 // pred_check
    _
  $region19: #{dense_block_forward.12} parent=0 // pred_check_branch
    %994 = sbr.rel (0) target = $region21
  $region20: #{dense_block_forward.12} parent=0 // pred_region
    _
  $region21: #{dense_block_forward.12} parent=0 // pred_fallthru
    _
  // Predicated region
  $region22: #{dense_block_forward.12} parent=0 // pred_check
    _
  $region23: #{dense_block_forward.12} parent=0 // pred_check_branch
    %996 = sbr.rel (0) target = $region25
  $region24: #{dense_block_forward.12} parent=0 // pred_region
    _
  $region25: #{dense_block_forward.12} parent=0 // pred_fallthru
    _
  // Predicated region
  $region26: #{dense_block_forward.12} parent=0 // pred_check
    _
  $region27: #{dense_block_forward.12} parent=0 // pred_check_branch
    %998 = sbr.rel (0) target = $region29
  $region28: #{dense_block_forward.12} parent=0 // pred_region
    _
  $region29: #{dense_block_forward.12} parent=0 // pred_fallthru
    _
  // Predicated region
  $region30: #{dense_block_forward.12} parent=0 // pred_check
    _
  $region31: #{dense_block_forward.12} parent=0 // pred_check_branch
    %1000 = sbr.rel (0) target = $region33
  $region32: #{dense_block_forward.12} parent=0 // pred_region
    _
  $region33: #{dense_block_forward.12} parent=0 // pred_fallthru
    _

// kernel: dense_block_forward.13
$region0: #{dense_block_forward.13}
  #allocation0 [shape = 'u32[]', space=smem, size = 0x4, offset = 0x4, fixed_abs, tag = 'smem constant byte address 0x4 - core index']
  #allocation1 [shape = 'u32[144,128]{1,0:T(1,128)}', space=vmem, size = 0x12000, scoped, tag = 'internal scratch']
  %s0 = inlined_call_operand.vmem [shape: f32[2,256,128], index: 0, kind: input, shape index: {}]
  %s1 = inlined_call_operand.vmem [shape: f32[1,128], index: 1, kind: input, shape index: {}]
  %s2 = inlined_call_operand.vmem [shape: f32[1,128], index: 2, kind: input, shape index: {}]
  %s3 = inlined_call_operand.vmem [shape: bf16[1152,128], index: 3, kind: input, shape index: {}]
  %s4 = inlined_call_operand.vmem [shape: f32[2,256,128], index: 4, kind: output, shape index: {0}]
  %s5 = inlined_call_operand.hbm [shape: f32[2,2,128], index: 5, kind: output, shape index: {1}]
  %6 = xla_tuple %s4, %s5
  %s7 = sld [smem:[#allocation0]]
  $region57: #{dense_block_forward.13} parent=0
    _
  %s9 = ssub.s32 1, %s7
  %s10 = scalar_select 0, %s9, %s7
  $region1: #{dense_block_forward.13} parent=0
    #allocation2 [shape = 'u8[2048]{0}', space=vmem, size = 0x800, scoped, tag = 'output window, operand 1']
    #allocation3 [shape = 's32[2]{0}', space=sflag, size = 0x8, scoped, tag = 'scoped memory for dense_block_forward.13']
    %11 = vsyncpa [#allocation3], 0
    %s12 = scalar_lea.sflag [#allocation3], 1
    %13 = vsyncpa %s12, 0
    loop: start=0, step=1, limit=4
    $region2: #{dense_block_forward.13} parent=1 // loop_pre_header
      _
    $region3: #{dense_block_forward.13} parent=1 // loop_header
      %s15 = sphi 0, %s19
      %p16 = scmp.ge.s32.totalorder %s15, 4
      %s25 = sphi 0, %s27
      %s28 = sphi 0, %s25
      %s29 = sphi 0, %s28
      %s45 = sphi 0, %s29
      %s49 = sphi 0, %s49
      %s51 = sphi 0, %s49
      %s52 = sphi 0, %s51
      %s66 = sphi 0, %s52
      %s70 = sphi 0, %s70
      %s72 = sphi 0, %s70
      %s73 = sphi 0, %s72
      %s87 = sphi 0, %s73
      %s91 = sphi 0, %s91
      %s93 = sphi 0, %s91
      %s94 = sphi 0, %s93
      %s108 = sphi 0, %s94
      %s114 = sphi 0, %s116
      %s117 = sphi 0, %s114
      %s118 = sphi 0, %s117
      %s134 = sphi 0, %s118
      %s140 = sphi 0, %s142
      %s143 = sphi 0, %s140
      %s144 = sphi 0, %s143
      %s160 = sphi 0, %s144
    $region4: #{dense_block_forward.13} parent=1 // loop_header_branch
      %18 = sbr.rel (%p16) target = $region8
    $region5: #{dense_block_forward.13} parent=1 // loop_body
      %s20 = ssub.s32 %s15, 1
      %s21 = ssub.s32 %s15, 2
      %s22 = sadd.s32 %s15, 1
      %s23 = ssub.s32 %s15, %s22
      %p24 = scmp.eq.s32.totalorder %s23, 0
      %s26 = sadd.s32 %s25, 1
      %s27 = scalar_select %p24, %s25, %s26
      %p30 = pneg %p24
      %p31 = scmp.eq.s32.totalorder %s15, 1
      %p32 = por %p30, %p31
      %p33 = scmp.ne.s32.totalorder %s25, %s28
      %p34 = scmp.eq.s32.totalorder %s15, 0
      %p35 = por %p33, %p34
      %p36 = scmp.ne.s32.totalorder %s25, %s28
      %p37 = scmp.eq.s32.totalorder %s20, 1
      %p38 = por %p36, %p37
      %p39 = scmp.ne.s32.totalorder %s28, %s29
      %p40 = scmp.eq.s32.totalorder %s20, 0
      %p41 = por %p39, %p40
      %p42 = scmp.ne.s32.totalorder %s28, %s29
      %p43 = scmp.eq.s32.totalorder %s21, 1
      %p44 = por %p42, %p43
      %p46 = scmp.ne.s32.totalorder %s29, %s45
      %p47 = scmp.eq.s32.totalorder %s21, 0
      %p48 = por %p46, %p47
      %s50 = sadd.s32 %s49, 1
      %p53 = scmp.eq.s32.totalorder %s15, 1
      %p54 = scmp.ne.s32.totalorder %s49, %s51
      %p55 = scmp.eq.s32.totalorder %s15, 0
      %p56 = por %p54, %p55
      %p57 = scmp.ne.s32.totalorder %s49, %s51
      %p58 = scmp.eq.s32.totalorder %s20, 1
      %p59 = por %p57, %p58
      %p60 = scmp.ne.s32.totalorder %s51, %s52
      %p61 = scmp.eq.s32.totalorder %s20, 0
      %p62 = por %p60, %p61
      %p63 = scmp.ne.s32.totalorder %s51, %s52
      %p64 = scmp.eq.s32.totalorder %s21, 1
      %p65 = por %p63, %p64
      %p67 = scmp.ne.s32.totalorder %s52, %s66
      %p68 = scmp.eq.s32.totalorder %s21, 0
      %p69 = por %p67, %p68
      %s71 = sadd.s32 %s70, 1
      %p74 = scmp.eq.s32.totalorder %s15, 1
      %p75 = scmp.ne.s32.totalorder %s70, %s72
      %p76 = scmp.eq.s32.totalorder %s15, 0
      %p77 = por %p75, %p76
      %p78 = scmp.ne.s32.totalorder %s70, %s72
      %p79 = scmp.eq.s32.totalorder %s20, 1
      %p80 = por %p78, %p79
      %p81 = scmp.ne.s32.totalorder %s72, %s73
      %p82 = scmp.eq.s32.totalorder %s20, 0
      %p83 = por %p81, %p82
      %p84 = scmp.ne.s32.totalorder %s72, %s73
      %p85 = scmp.eq.s32.totalorder %s21, 1
      %p86 = por %p84, %p85
      %p88 = scmp.ne.s32.totalorder %s73, %s87
      %p89 = scmp.eq.s32.totalorder %s21, 0
      %p90 = por %p88, %p89
      %s92 = sadd.s32 %s91, 1
      %p95 = scmp.eq.s32.totalorder %s15, 1
      %p96 = scmp.ne.s32.totalorder %s91, %s93
      %p97 = scmp.eq.s32.totalorder %s15, 0
      %p98 = por %p96, %p97
      %p99 = scmp.ne.s32.totalorder %s91, %s93
      %p100 = scmp.eq.s32.totalorder %s20, 1
      %p101 = por %p99, %p100
      %p102 = scmp.ne.s32.totalorder %s93, %s94
      %p103 = scmp.eq.s32.totalorder %s20, 0
      %p104 = por %p102, %p103
      %p105 = scmp.ne.s32.totalorder %s93, %s94
      %p106 = scmp.eq.s32.totalorder %s21, 1
      %p107 = por %p105, %p106
      %p109 = scmp.ne.s32.totalorder %s94, %s108
      %p110 = scmp.eq.s32.totalorder %s21, 0
      %p111 = por %p109, %p110
      %s112 = ssub.s32 %s15, %s22
      %p113 = scmp.eq.s32.totalorder %s112, 0
      %s115 = sadd.s32 %s114, 1
      %s116 = scalar_select %p113, %s114, %s115
      %p119 = pneg %p113
      %p120 = scmp.eq.s32.totalorder %s15, 1
      %p121 = por %p119, %p120
      %p122 = scmp.ne.s32.totalorder %s114, %s117
      %p123 = scmp.eq.s32.totalorder %s15, 0
      %p124 = por %p122, %p123
      %p125 = scmp.ne.s32.totalorder %s114, %s117
      %p126 = scmp.eq.s32.totalorder %s20, 1
      %p127 = por %p125, %p126
      %p128 = scmp.ne.s32.totalorder %s117, %s118
      %p129 = scmp.eq.s32.totalorder %s20, 0
      %p130 = por %p128, %p129
      %p131 = scmp.ne.s32.totalorder %s117, %s118
      %p132 = scmp.eq.s32.totalorder %s21, 1
      %p133 = por %p131, %p132
      %p135 = scmp.ne.s32.totalorder %s118, %s134
      %p136 = scmp.eq.s32.totalorder %s21, 0
      %p137 = por %p135, %p136
      %s138 = ssub.s32 %s15, %s22
      %p139 = scmp.eq.s32.totalorder %s138, 0
      %s141 = sadd.s32 %s140, 1
      %s142 = scalar_select %p139, %s140, %s141
      %p145 = pneg %p139
      %p146 = scmp.eq.s32.totalorder %s15, 1
      %p147 = por %p145, %p146
      %p148 = scmp.ne.s32.totalorder %s140, %s143
      %p149 = scmp.eq.s32.totalorder %s15, 0
      %p150 = por %p148, %p149
      %p151 = scmp.ne.s32.totalorder %s140, %s143
      %p152 = scmp.eq.s32.totalorder %s20, 1
      %p153 = por %p151, %p152
      %p154 = scmp.ne.s32.totalorder %s143, %s144
      %p155 = scmp.eq.s32.totalorder %s20, 0
      %p156 = por %p154, %p155
      %p157 = scmp.ne.s32.totalorder %s143, %s144
      %p158 = scmp.eq.s32.totalorder %s21, 1
      %p159 = por %p157, %p158
      %p161 = scmp.ne.s32.totalorder %s144, %s160
      %p162 = scmp.eq.s32.totalorder %s21, 0
      %p163 = por %p161, %p162
      %p164 = scmp.le.s32.totalorder 1, %s15
      %p165 = scmp.lt.s32.totalorder %s15, 3
      %p166 = pnand %p164, %p165
      %p167 = pneg %p166
      // Predicated region
      $region9: #{dense_block_forward.13} parent=5 // pred_check
        _
      $region10: #{dense_block_forward.13} parent=5 // pred_check_branch
        %169 = sbr.rel (%p166) target = $region12
      $region11: #{dense_block_forward.13} parent=5 // pred_region
        %s170 = ssub.s32 %s15, 1
        // Predicated region
        $region13: #{dense_block_forward.13} parent=11 // pred_check
          %p171 = pneg %p62
        $region14: #{dense_block_forward.13} parent=11 // pred_check_branch
          %173 = sbr.rel (%p171) target = $region16
        $region15: #{dense_block_forward.13} parent=11 // pred_region
          _
        $region16: #{dense_block_forward.13} parent=11 // pred_fallthru
          _
        // Predicated region
        $region17: #{dense_block_forward.13} parent=11 // pred_check
          %p174 = pneg %p83
        $region18: #{dense_block_forward.13} parent=11 // pred_check_branch
          %176 = sbr.rel (%p174) target = $region20
        $region19: #{dense_block_forward.13} parent=11 // pred_region
          _
        $region20: #{dense_block_forward.13} parent=11 // pred_fallthru
          _
        // Predicated region
        $region21: #{dense_block_forward.13} parent=11 // pred_check
          %p177 = pneg %p104
        $region22: #{dense_block_forward.13} parent=11 // pred_check_branch
          %179 = sbr.rel (%p177) target = $region24
        $region23: #{dense_block_forward.13} parent=11 // pred_region
          _
        $region24: #{dense_block_forward.13} parent=11 // pred_fallthru
          _
      $region12: #{dense_block_forward.13} parent=5 // pred_fallthru
        _
      %p180 = scmp.lt.s32.totalorder %s15, 2
      // Predicated region
      $region25: #{dense_block_forward.13} parent=5 // pred_check
        %p181 = pneg %p180
      $region26: #{dense_block_forward.13} parent=5 // pred_check_branch
        %183 = sbr.rel (%p181) target = $region28
      $region27: #{dense_block_forward.13} parent=5 // pred_region
        // Predicated region
        $region29: #{dense_block_forward.13} parent=27 // pred_check
          %p184 = pneg %p35
        $region30: #{dense_block_forward.13} parent=27 // pred_check_branch
          %186 = sbr.rel (%p184) target = $region32
        $region31: #{dense_block_forward.13} parent=27 // pred_region
          %p187 = scmp.lt.s32.totalorder %s15, 1
          %s188 = scalar_select %p187, %s15, 1
          %s189 = smul.addr %s188, 32
          %s190 = smul.addr %s189, 8
          %s191 = scalar_lea.vmem %s0, %s190
        $region32: #{dense_block_forward.13} parent=27 // pred_fallthru
          _
      $region28: #{dense_block_forward.13} parent=5 // pred_fallthru
        _
      %p192 = scmp.le.s32.totalorder 1, %s15
      %p193 = scmp.lt.s32.totalorder %s15, 3
      %p194 = pnand %p192, %p193
      %p195 = pneg %p194
      // Predicated region
      $region33: #{dense_block_forward.13} parent=5 // pred_check
        _
      $region34: #{dense_block_forward.13} parent=5 // pred_check_branch
        %197 = sbr.rel (%p194) target = $region36
      $region35: #{dense_block_forward.13} parent=5 // pred_region
        %s198 = ssub.s32 %s15, 1
        %p199 = scmp.lt.s32.totalorder %s20, 1
        %s200 = scalar_select %p199, %s20, 1
        %s201 = smul.addr %s200, 32
        %s202 = smul.addr %s201, 8
        %s203 = scalar_lea.vmem %s0, %s202
        %p204 = pneg %p41
        %p205 = pneg %p38
        %p206 = pneg %p62
        %p207 = pneg %p59
        %p208 = pneg %p83
        %p209 = pneg %p80
        %p210 = pneg %p104
        %p211 = pneg %p101
        %p212 = pneg %p130
        %p213 = pneg %p127
        %p214 = scmp.lt.s32.totalorder %s20, 1
        %s215 = scalar_select %p214, %s20, 1
        %s216 = smul.addr %s215, 32
        %s217 = smul.addr %s216, 8
        %s218 = scalar_lea.vmem %s4, %s217
        %p219 = pneg %p156
        %p220 = pneg %p153
        %s221 = sand.u32 %s143, 1
        %s222 = scalar_lea.sflag [#allocation3], %s221
        %s223 = sand.u32 %s143, 1
        %s224 = smul.addr %s223, 2
        %s225 = scalar_lea.vmem [#allocation2], %s224
        %p226 = scmp.lt.s32.totalorder %s20, 1
        %s227 = scalar_select %p226, %s20, 1
        %s228 = smul.addr %s227, 32
        %s229 = smul.addr %s228, 8
        %s230 = scalar_lea.vmem %s0, %s229
        %p231 = scmp.lt.s32.totalorder %s20, 1
        %s232 = scalar_select %p231, %s20, 1
        %s233 = smul.addr %s232, 32
        %s234 = smul.addr %s233, 8
        %s235 = scalar_lea.vmem %s4, %s234
        %v237 = vld [vmem:[%s230] sm:$0xff]
        %v238 = vld [vmem:[%s230 + $0x8] sm:$0xff]
        %v239 = vld [vmem:[%s230 + $0x10] sm:$0xff]
        %v240 = vld [vmem:[%s230 + $0x18] sm:$0xff]
        %v241 = vld [vmem:[%s230 + $0x20] sm:$0xff]
        %v242 = vld [vmem:[%s230 + $0x28] sm:$0xff]
        %v243 = vld [vmem:[%s230 + $0x30] sm:$0xff]
        %v244 = vld [vmem:[%s230 + $0x38] sm:$0xff]
        %v245 = vld [vmem:[%s230 + $0x40] sm:$0xff]
        %v246 = vld [vmem:[%s230 + $0x48] sm:$0xff]
        %v247 = vld [vmem:[%s230 + $0x50] sm:$0xff]
        %v248 = vld [vmem:[%s230 + $0x58] sm:$0xff]
        %v249 = vld [vmem:[%s230 + $0x60] sm:$0xff]
        %v250 = vld [vmem:[%s230 + $0x68] sm:$0xff]
        %v251 = vld [vmem:[%s230 + $0x70] sm:$0xff]
        %v252 = vld [vmem:[%s230 + $0x78] sm:$0xff]
        %v253 = vld [vmem:[%s230 + $0x80] sm:$0xff]
        %v254 = vld [vmem:[%s230 + $0x88] sm:$0xff]
        %v255 = vld [vmem:[%s230 + $0x90] sm:$0xff]
        %v256 = vld [vmem:[%s230 + $0x98] sm:$0xff]
        %v257 = vld [vmem:[%s230 + $0xa0] sm:$0xff]
        %v258 = vld [vmem:[%s230 + $0xa8] sm:$0xff]
        %v259 = vld [vmem:[%s230 + $0xb0] sm:$0xff]
        %v260 = vld [vmem:[%s230 + $0xb8] sm:$0xff]
        %v261 = vld [vmem:[%s230 + $0xc0] sm:$0xff]
        %v262 = vld [vmem:[%s230 + $0xc8] sm:$0xff]
        %v263 = vld [vmem:[%s230 + $0xd0] sm:$0xff]
        %v264 = vld [vmem:[%s230 + $0xd8] sm:$0xff]
        %v265 = vld [vmem:[%s230 + $0xe0] sm:$0xff]
        %v266 = vld [vmem:[%s230 + $0xe8] sm:$0xff]
        %v267 = vld [vmem:[%s230 + $0xf0] sm:$0xff]
        %v268 = vld [vmem:[%s230 + $0xf8] sm:$0xff]
        %v269 = vld [vmem:[%s1] sm:$0x1]
        %v271 = vlaneseq
        %v272 = vshrl.u32 %v271, 7
        %v273 = vsub.s32 0, %v272
        %v274 = vrot.slane %v269, %v273
        %v276 = vmul.f32 %v237, %v274
        %v277 = vmul.f32 %v238, %v274
        %v278 = vmul.f32 %v239, %v274
        %v279 = vmul.f32 %v240, %v274
        %v280 = vmul.f32 %v241, %v274
        %v281 = vmul.f32 %v242, %v274
        %v282 = vmul.f32 %v243, %v274
        %v283 = vmul.f32 %v244, %v274
        %v284 = vmul.f32 %v245, %v274
        %v285 = vmul.f32 %v246, %v274
        %v286 = vmul.f32 %v247, %v274
        %v287 = vmul.f32 %v248, %v274
        %v288 = vmul.f32 %v249, %v274
        %v289 = vmul.f32 %v250, %v274
        %v290 = vmul.f32 %v251, %v274
        %v291 = vmul.f32 %v252, %v274
        %v292 = vmul.f32 %v253, %v274
        %v293 = vmul.f32 %v254, %v274
        %v294 = vmul.f32 %v255, %v274
        %v295 = vmul.f32 %v256, %v274
        %v296 = vmul.f32 %v257, %v274
        %v297 = vmul.f32 %v258, %v274
        %v298 = vmul.f32 %v259, %v274
        %v299 = vmul.f32 %v260, %v274
        %v300 = vmul.f32 %v261, %v274
        %v301 = vmul.f32 %v262, %v274
        %v302 = vmul.f32 %v263, %v274
        %v303 = vmul.f32 %v264, %v274
        %v304 = vmul.f32 %v265, %v274
        %v305 = vmul.f32 %v266, %v274
        %v306 = vmul.f32 %v267, %v274
        %v307 = vmul.f32 %v268, %v274
        %v308 = vld [vmem:[%s2] sm:$0x1]
        %v310 = vlaneseq
        %v311 = vshrl.u32 %v310, 7
        %v312 = vsub.s32 0, %v311
        %v313 = vrot.slane %v308, %v312
        %v315 = vadd.f32 %v276, %v313
        %v316 = vadd.f32 %v277, %v313
        %v317 = vadd.f32 %v278, %v313
        %v318 = vadd.f32 %v279, %v313
        %v319 = vadd.f32 %v280, %v313
        %v320 = vadd.f32 %v281, %v313
        %v321 = vadd.f32 %v282, %v313
        %v322 = vadd.f32 %v283, %v313
        %v323 = vadd.f32 %v284, %v313
        %v324 = vadd.f32 %v285, %v313
        %v325 = vadd.f32 %v286, %v313
        %v326 = vadd.f32 %v287, %v313
        %v327 = vadd.f32 %v288, %v313
        %v328 = vadd.f32 %v289, %v313
        %v329 = vadd.f32 %v290, %v313
        %v330 = vadd.f32 %v291, %v313
        %v331 = vadd.f32 %v292, %v313
        %v332 = vadd.f32 %v293, %v313
        %v333 = vadd.f32 %v294, %v313
        %v334 = vadd.f32 %v295, %v313
        %v335 = vadd.f32 %v296, %v313
        %v336 = vadd.f32 %v297, %v313
        %v337 = vadd.f32 %v298, %v313
        %v338 = vadd.f32 %v299, %v313
        %v339 = vadd.f32 %v300, %v313
        %v340 = vadd.f32 %v301, %v313
        %v341 = vadd.f32 %v302, %v313
        %v342 = vadd.f32 %v303, %v313
        %v343 = vadd.f32 %v304, %v313
        %v344 = vadd.f32 %v305, %v313
        %v345 = vadd.f32 %v306, %v313
        %v346 = vadd.f32 %v307, %v313
        %v347 = vmax.f32 %v315, 0.0
        %v348 = vmax.f32 %v316, 0.0
        %v349 = vmax.f32 %v317, 0.0
        %v350 = vmax.f32 %v318, 0.0
        %v351 = vmax.f32 %v319, 0.0
        %v352 = vmax.f32 %v320, 0.0
        %v353 = vmax.f32 %v321, 0.0
        %v354 = vmax.f32 %v322, 0.0
        %v355 = vmax.f32 %v323, 0.0
        %v356 = vmax.f32 %v324, 0.0
        %v357 = vmax.f32 %v325, 0.0
        %v358 = vmax.f32 %v326, 0.0
        %v359 = vmax.f32 %v327, 0.0
        %v360 = vmax.f32 %v328, 0.0
        %v361 = vmax.f32 %v329, 0.0
        %v362 = vmax.f32 %v330, 0.0
        %v363 = vmax.f32 %v331, 0.0
        %v364 = vmax.f32 %v332, 0.0
        %v365 = vmax.f32 %v333, 0.0
        %v366 = vmax.f32 %v334, 0.0
        %v367 = vmax.f32 %v335, 0.0
        %v368 = vmax.f32 %v336, 0.0
        %v369 = vmax.f32 %v337, 0.0
        %v370 = vmax.f32 %v338, 0.0
        %v371 = vmax.f32 %v339, 0.0
        %v372 = vmax.f32 %v340, 0.0
        %v373 = vmax.f32 %v341, 0.0
        %v374 = vmax.f32 %v342, 0.0
        %v375 = vmax.f32 %v343, 0.0
        %v376 = vmax.f32 %v344, 0.0
        %v377 = vmax.f32 %v345, 0.0
        %v378 = vmax.f32 %v346, 0.0
        %v379 = vlaneseq
        %v380 = vshrl.u32 %v379, 7
        %v381 = vadd.s32 %v380, 8
        %v382 = vadd.s32 %v380, 16
        %v383 = vadd.s32 %v380, 24
        %v384 = vadd.s32 %v380, 32
        %v385 = vadd.s32 %v380, 40
        %v386 = vadd.s32 %v380, 48
        %v387 = vadd.s32 %v380, 56
        %v388 = vadd.s32 %v380, 64
        %v389 = vadd.s32 %v380, 72
        %v390 = vadd.s32 %v380, 80
        %v391 = vadd.s32 %v380, 88
        %v392 = vadd.s32 %v380, 96
        %v393 = vadd.s32 %v380, 104
        %v394 = vadd.s32 %v380, 112
        %v395 = vadd.s32 %v380, 120
        %v396 = vadd.s32 %v380, 128
        %v397 = vadd.s32 %v380, 136
        %v398 = vadd.s32 %v380, 144
        %v399 = vadd.s32 %v380, 152
        %v400 = vadd.s32 %v380, 160
        %v401 = vadd.s32 %v380, 168
        %v402 = vadd.s32 %v380, 176
        %v403 = vadd.s32 %v380, 184
        %v404 = vadd.s32 %v380, 192
        %v405 = vadd.s32 %v380, 200
        %v406 = vadd.s32 %v380, 208
        %v407 = vadd.s32 %v380, 216
        %v408 = vadd.s32 %v380, 224
        %v409 = vadd.s32 %v380, 232
        %v410 = vadd.s32 %v380, 240
        %v411 = vadd.s32 %v380, 248
        %vm412 = vcmp.lt.s32.totalorder %v380, 0
        %v413 = vsub.s32 0, %v380
        %v414 = vsel %vm412, %v413, %v380
        %v415 = vshrl.u32 %v414, 4
        %v416 = vand.u32 %v414, 15
        %v417 = vsub.s32 0, %v416
        %v418 = vsel %vm412, %v417, %v416
        %vm419 = vcmp.lt.s32.totalorder %v381, 0
        %v420 = vsub.s32 0, %v381
        %v421 = vsel %vm419, %v420, %v381
        %v422 = vshrl.u32 %v421, 4
        %v423 = vand.u32 %v421, 15
        %v424 = vsub.s32 0, %v423
        %v425 = vsel %vm419, %v424, %v423
        %vm426 = vcmp.lt.s32.totalorder %v382, 0
        %v427 = vsub.s32 0, %v382
        %v428 = vsel %vm426, %v427, %v382
        %v429 = vshrl.u32 %v428, 4
        %v430 = vand.u32 %v428, 15
        %v431 = vsub.s32 0, %v430
        %v432 = vsel %vm426, %v431, %v430
        %vm433 = vcmp.lt.s32.totalorder %v383, 0
        %v434 = vsub.s32 0, %v383
        %v435 = vsel %vm433, %v434, %v383
        %v436 = vshrl.u32 %v435, 4
        %v437 = vand.u32 %v435, 15
        %v438 = vsub.s32 0, %v437
        %v439 = vsel %vm433, %v438, %v437
        %vm440 = vcmp.lt.s32.totalorder %v384, 0
        %v441 = vsub.s32 0, %v384
        %v442 = vsel %vm440, %v441, %v384
        %v443 = vshrl.u32 %v442, 4
        %v444 = vand.u32 %v442, 15
        %v445 = vsub.s32 0, %v444
        %v446 = vsel %vm440, %v445, %v444
        %vm447 = vcmp.lt.s32.totalorder %v385, 0
        %v448 = vsub.s32 0, %v385
        %v449 = vsel %vm447, %v448, %v385
        %v450 = vshrl.u32 %v449, 4
        %v451 = vand.u32 %v449, 15
        %v452 = vsub.s32 0, %v451
        %v453 = vsel %vm447, %v452, %v451
        %vm454 = vcmp.lt.s32.totalorder %v386, 0
        %v455 = vsub.s32 0, %v386
        %v456 = vsel %vm454, %v455, %v386
        %v457 = vshrl.u32 %v456, 4
        %v458 = vand.u32 %v456, 15
        %v459 = vsub.s32 0, %v458
        %v460 = vsel %vm454, %v459, %v458
        %vm461 = vcmp.lt.s32.totalorder %v387, 0
        %v462 = vsub.s32 0, %v387
        %v463 = vsel %vm461, %v462, %v387
        %v464 = vshrl.u32 %v463, 4
        %v465 = vand.u32 %v463, 15
        %v466 = vsub.s32 0, %v465
        %v467 = vsel %vm461, %v466, %v465
        %vm468 = vcmp.lt.s32.totalorder %v388, 0
        %v469 = vsub.s32 0, %v388
        %v470 = vsel %vm468, %v469, %v388
        %v471 = vshrl.u32 %v470, 4
        %v472 = vand.u32 %v470, 15
        %v473 = vsub.s32 0, %v472
        %v474 = vsel %vm468, %v473, %v472
        %vm475 = vcmp.lt.s32.totalorder %v389, 0
        %v476 = vsub.s32 0, %v389
        %v477 = vsel %vm475, %v476, %v389
        %v478 = vshrl.u32 %v477, 4
        %v479 = vand.u32 %v477, 15
        %v480 = vsub.s32 0, %v479
        %v481 = vsel %vm475, %v480, %v479
        %vm482 = vcmp.lt.s32.totalorder %v390, 0
        %v483 = vsub.s32 0, %v390
        %v484 = vsel %vm482, %v483, %v390
        %v485 = vshrl.u32 %v484, 4
        %v486 = vand.u32 %v484, 15
        %v487 = vsub.s32 0, %v486
        %v488 = vsel %vm482, %v487, %v486
        %vm489 = vcmp.lt.s32.totalorder %v391, 0
        %v490 = vsub.s32 0, %v391
        %v491 = vsel %vm489, %v490, %v391
        %v492 = vshrl.u32 %v491, 4
        %v493 = vand.u32 %v491, 15
        %v494 = vsub.s32 0, %v493
        %v495 = vsel %vm489, %v494, %v493
        %vm496 = vcmp.lt.s32.totalorder %v392, 0
        %v497 = vsub.s32 0, %v392
        %v498 = vsel %vm496, %v497, %v392
        %v499 = vshrl.u32 %v498, 4
        %v500 = vand.u32 %v498, 15
        %v501 = vsub.s32 0, %v500
        %v502 = vsel %vm496, %v501, %v500
        %vm503 = vcmp.lt.s32.totalorder %v393, 0
        %v504 = vsub.s32 0, %v393
        %v505 = vsel %vm503, %v504, %v393
        %v506 = vshrl.u32 %v505, 4
        %v507 = vand.u32 %v505, 15
        %v508 = vsub.s32 0, %v507
        %v509 = vsel %vm503, %v508, %v507
        %vm510 = vcmp.lt.s32.totalorder %v394, 0
        %v511 = vsub.s32 0, %v394
        %v512 = vsel %vm510, %v511, %v394
        %v513 = vshrl.u32 %v512, 4
        %v514 = vand.u32 %v512, 15
        %v515 = vsub.s32 0, %v514
        %v516 = vsel %vm510, %v515, %v514
        %vm517 = vcmp.lt.s32.totalorder %v395, 0
        %v518 = vsub.s32 0, %v395
        %v519 = vsel %vm517, %v518, %v395
        %v520 = vshrl.u32 %v519, 4
        %v521 = vand.u32 %v519, 15
        %v522 = vsub.s32 0, %v521
        %v523 = vsel %vm517, %v522, %v521
        %vm524 = vcmp.lt.s32.totalorder %v396, 0
        %v525 = vsub.s32 0, %v396
        %v526 = vsel %vm524, %v525, %v396
        %v527 = vshrl.u32 %v526, 4
        %v528 = vand.u32 %v526, 15
        %v529 = vsub.s32 0, %v528
        %v530 = vsel %vm524, %v529, %v528
        %vm531 = vcmp.lt.s32.totalorder %v397, 0
        %v532 = vsub.s32 0, %v397
        %v533 = vsel %vm531, %v532, %v397
        %v534 = vshrl.u32 %v533, 4
        %v535 = vand.u32 %v533, 15
        %v536 = vsub.s32 0, %v535
        %v537 = vsel %vm531, %v536, %v535
        %vm538 = vcmp.lt.s32.totalorder %v398, 0
        %v539 = vsub.s32 0, %v398
        %v540 = vsel %vm538, %v539, %v398
        %v541 = vshrl.u32 %v540, 4
        %v542 = vand.u32 %v540, 15
        %v543 = vsub.s32 0, %v542
        %v544 = vsel %vm538, %v543, %v542
        %vm545 = vcmp.lt.s32.totalorder %v399, 0
        %v546 = vsub.s32 0, %v399
        %v547 = vsel %vm545, %v546, %v399
        %v548 = vshrl.u32 %v547, 4
        %v549 = vand.u32 %v547, 15
        %v550 = vsub.s32 0, %v549
        %v551 = vsel %vm545, %v550, %v549
        %vm552 = vcmp.lt.s32.totalorder %v400, 0
        %v553 = vsub.s32 0, %v400
        %v554 = vsel %vm552, %v553, %v400
        %v555 = vshrl.u32 %v554, 4
        %v556 = vand.u32 %v554, 15
        %v557 = vsub.s32 0, %v556
        %v558 = vsel %vm552, %v557, %v556
        %vm559 = vcmp.lt.s32.totalorder %v401, 0
        %v560 = vsub.s32 0, %v401
        %v561 = vsel %vm559, %v560, %v401
        %v562 = vshrl.u32 %v561, 4
        %v563 = vand.u32 %v561, 15
        %v564 = vsub.s32 0, %v563
        %v565 = vsel %vm559, %v564, %v563
        %vm566 = vcmp.lt.s32.totalorder %v402, 0
        %v567 = vsub.s32 0, %v402
        %v568 = vsel %vm566, %v567, %v402
        %v569 = vshrl.u32 %v568, 4
        %v570 = vand.u32 %v568, 15
        %v571 = vsub.s32 0, %v570
        %v572 = vsel %vm566, %v571, %v570
        %vm573 = vcmp.lt.s32.totalorder %v403, 0
        %v574 = vsub.s32 0, %v403
        %v575 = vsel %vm573, %v574, %v403
        %v576 = vshrl.u32 %v575, 4
        %v577 = vand.u32 %v575, 15
        %v578 = vsub.s32 0, %v577
        %v579 = vsel %vm573, %v578, %v577
        %vm580 = vcmp.lt.s32.totalorder %v404, 0
        %v581 = vsub.s32 0, %v404
        %v582 = vsel %vm580, %v581, %v404
        %v583 = vshrl.u32 %v582, 4
        %v584 = vand.u32 %v582, 15
        %v585 = vsub.s32 0, %v584
        %v586 = vsel %vm580, %v585, %v584
        %vm587 = vcmp.lt.s32.totalorder %v405, 0
        %v588 = vsub.s32 0, %v405
        %v589 = vsel %vm587, %v588, %v405
        %v590 = vshrl.u32 %v589, 4
        %v591 = vand.u32 %v589, 15
        %v592 = vsub.s32 0, %v591
        %v593 = vsel %vm587, %v592, %v591
        %vm594 = vcmp.lt.s32.totalorder %v406, 0
        %v595 = vsub.s32 0, %v406
        %v596 = vsel %vm594, %v595, %v406
        %v597 = vshrl.u32 %v596, 4
        %v598 = vand.u32 %v596, 15
        %v599 = vsub.s32 0, %v598
        %v600 = vsel %vm594, %v599, %v598
        %vm601 = vcmp.lt.s32.totalorder %v407, 0
        %v602 = vsub.s32 0, %v407
        %v603 = vsel %vm601, %v602, %v407
        %v604 = vshrl.u32 %v603, 4
        %v605 = vand.u32 %v603, 15
        %v606 = vsub.s32 0, %v605
        %v607 = vsel %vm601, %v606, %v605
        %vm608 = vcmp.lt.s32.totalorder %v408, 0
        %v609 = vsub.s32 0, %v408
        %v610 = vsel %vm608, %v609, %v408
        %v611 = vshrl.u32 %v610, 4
        %v612 = vand.u32 %v610, 15
        %v613 = vsub.s32 0, %v612
        %v614 = vsel %vm608, %v613, %v612
        %vm615 = vcmp.lt.s32.totalorder %v409, 0
        %v616 = vsub.s32 0, %v409
        %v617 = vsel %vm615, %v616, %v409
        %v618 = vshrl.u32 %v617, 4
        %v619 = vand.u32 %v617, 15
        %v620 = vsub.s32 0, %v619
        %v621 = vsel %vm615, %v620, %v619
        %vm622 = vcmp.lt.s32.totalorder %v410, 0
        %v623 = vsub.s32 0, %v410
        %v624 = vsel %vm622, %v623, %v410
        %v625 = vshrl.u32 %v624, 4
        %v626 = vand.u32 %v624, 15
        %v627 = vsub.s32 0, %v626
        %v628 = vsel %vm622, %v627, %v626
        %vm629 = vcmp.lt.s32.totalorder %v411, 0
        %v630 = vsub.s32 0, %v411
        %v631 = vsel %vm629, %v630, %v411
        %v632 = vshrl.u32 %v631, 4
        %v633 = vand.u32 %v631, 15
        %v634 = vsub.s32 0, %v633
        %v635 = vsel %vm629, %v634, %v633
        %vm636 = vcmp.ne.s32.totalorder %v418, 0
        %vm637 = vcmp.ne.s32.totalorder %v425, 0
        %vm638 = vcmp.ne.s32.totalorder %v432, 0
        %vm639 = vcmp.ne.s32.totalorder %v439, 0
        %vm640 = vcmp.ne.s32.totalorder %v446, 0
        %vm641 = vcmp.ne.s32.totalorder %v453, 0
        %vm642 = vcmp.ne.s32.totalorder %v460, 0
        %vm643 = vcmp.ne.s32.totalorder %v467, 0
        %vm644 = vcmp.ne.s32.totalorder %v474, 0
        %vm645 = vcmp.ne.s32.totalorder %v481, 0
        %vm646 = vcmp.ne.s32.totalorder %v488, 0
        %vm647 = vcmp.ne.s32.totalorder %v495, 0
        %vm648 = vcmp.ne.s32.totalorder %v502, 0
        %vm649 = vcmp.ne.s32.totalorder %v509, 0
        %vm650 = vcmp.ne.s32.totalorder %v516, 0
        %vm651 = vcmp.ne.s32.totalorder %v523, 0
        %vm652 = vcmp.ne.s32.totalorder %v530, 0
        %vm653 = vcmp.ne.s32.totalorder %v537, 0
        %vm654 = vcmp.ne.s32.totalorder %v544, 0
        %vm655 = vcmp.ne.s32.totalorder %v551, 0
        %vm656 = vcmp.ne.s32.totalorder %v558, 0
        %vm657 = vcmp.ne.s32.totalorder %v565, 0
        %vm658 = vcmp.ne.s32.totalorder %v572, 0
        %vm659 = vcmp.ne.s32.totalorder %v579, 0
        %vm660 = vcmp.ne.s32.totalorder %v586, 0
        %vm661 = vcmp.ne.s32.totalorder %v593, 0
        %vm662 = vcmp.ne.s32.totalorder %v600, 0
        %vm663 = vcmp.ne.s32.totalorder %v607, 0
        %vm664 = vcmp.ne.s32.totalorder %v614, 0
        %vm665 = vcmp.ne.s32.totalorder %v621, 0
        %vm666 = vcmp.ne.s32.totalorder %v628, 0
        %vm667 = vcmp.ne.s32.totalorder %v635, 0
        %vm668 = vcmp.lt.s32.totalorder %v418, 0
        %vm669 = vcmp.lt.s32.totalorder %v425, 0
        %vm670 = vcmp.lt.s32.totalorder %v432, 0
        %vm671 = vcmp.lt.s32.totalorder %v439, 0
        %vm672 = vcmp.lt.s32.totalorder %v446, 0
        %vm673 = vcmp.lt.s32.totalorder %v453, 0
        %vm674 = vcmp.lt.s32.totalorder %v460, 0
        %vm675 = vcmp.lt.s32.totalorder %v467, 0
        %vm676 = vcmp.lt.s32.totalorder %v474, 0
        %vm677 = vcmp.lt.s32.totalorder %v481, 0
        %vm678 = vcmp.lt.s32.totalorder %v488, 0
        %vm679 = vcmp.lt.s32.totalorder %v495, 0
        %vm680 = vcmp.lt.s32.totalorder %v502, 0
        %vm681 = vcmp.lt.s32.totalorder %v509, 0
        %vm682 = vcmp.lt.s32.totalorder %v516, 0
        %vm683 = vcmp.lt.s32.totalorder %v523, 0
        %vm684 = vcmp.lt.s32.totalorder %v530, 0
        %vm685 = vcmp.lt.s32.totalorder %v537, 0
        %vm686 = vcmp.lt.s32.totalorder %v544, 0
        %vm687 = vcmp.lt.s32.totalorder %v551, 0
        %vm688 = vcmp.lt.s32.totalorder %v558, 0
        %vm689 = vcmp.lt.s32.totalorder %v565, 0
        %vm690 = vcmp.lt.s32.totalorder %v572, 0
        %vm691 = vcmp.lt.s32.totalorder %v579, 0
        %vm692 = vcmp.lt.s32.totalorder %v586, 0
        %vm693 = vcmp.lt.s32.totalorder %v593, 0
        %vm694 = vcmp.lt.s32.totalorder %v600, 0
        %vm695 = vcmp.lt.s32.totalorder %v607, 0
        %vm696 = vcmp.lt.s32.totalorder %v614, 0
        %vm697 = vcmp.lt.s32.totalorder %v621, 0
        %vm698 = vcmp.lt.s32.totalorder %v628, 0
        %vm699 = vcmp.lt.s32.totalorder %v635, 0
        %vm700 = vmand %vm668, %vm636
        %vm701 = vmand %vm669, %vm637
        %vm702 = vmand %vm670, %vm638
        %vm703 = vmand %vm671, %vm639
        %vm704 = vmand %vm672, %vm640
        %vm705 = vmand %vm673, %vm641
        %vm706 = vmand %vm674, %vm642
        %vm707 = vmand %vm675, %vm643
        %vm708 = vmand %vm676, %vm644
        %vm709 = vmand %vm677, %vm645
        %vm710 = vmand %vm678, %vm646
        %vm711 = vmand %vm679, %vm647
        %vm712 = vmand %vm680, %vm648
        %vm713 = vmand %vm681, %vm649
        %vm714 = vmand %vm682, %vm650
        %vm715 = vmand %vm683, %vm651
        %vm716 = vmand %vm684, %vm652
        %vm717 = vmand %vm685, %vm653
        %vm718 = vmand %vm686, %vm654
        %vm719 = vmand %vm687, %vm655
        %vm720 = vmand %vm688, %vm656
        %vm721 = vmand %vm689, %vm657
        %vm722 = vmand %vm690, %vm658
        %vm723 = vmand %vm691, %vm659
        %vm724 = vmand %vm692, %vm660
        %vm725 = vmand %vm693, %vm661
        %vm726 = vmand %vm694, %vm662
        %vm727 = vmand %vm695, %vm663
        %vm728 = vmand %vm696, %vm664
        %vm729 = vmand %vm697, %vm665
        %vm730 = vmand %vm698, %vm666
        %vm731 = vmand %vm699, %vm667
        %v732 = vadd.s32 %v418, 16
        %v733 = vadd.s32 %v425, 16
        %v734 = vadd.s32 %v432, 16
        %v735 = vadd.s32 %v439, 16
        %v736 = vadd.s32 %v446, 16
        %v737 = vadd.s32 %v453, 16
        %v738 = vadd.s32 %v460, 16
        %v739 = vadd.s32 %v467, 16
        %v740 = vadd.s32 %v474, 16
        %v741 = vadd.s32 %v481, 16
        %v742 = vadd.s32 %v488, 16
        %v743 = vadd.s32 %v495, 16
        %v744 = vadd.s32 %v502, 16
        %v745 = vadd.s32 %v509, 16
        %v746 = vadd.s32 %v516, 16
        %v747 = vadd.s32 %v523, 16
        %v748 = vadd.s32 %v530, 16
        %v749 = vadd.s32 %v537, 16
        %v750 = vadd.s32 %v544, 16
        %v751 = vadd.s32 %v551, 16
        %v752 = vadd.s32 %v558, 16
        %v753 = vadd.s32 %v565, 16
        %v754 = vadd.s32 %v572, 16
        %v755 = vadd.s32 %v579, 16
        %v756 = vadd.s32 %v586, 16
        %v757 = vadd.s32 %v593, 16
        %v758 = vadd.s32 %v600, 16
        %v759 = vadd.s32 %v607, 16
        %v760 = vadd.s32 %v614, 16
        %v761 = vadd.s32 %v621, 16
        %v762 = vadd.s32 %v628, 16
        %v763 = vadd.s32 %v635, 16
        %v764 = vsel %vm700, %v732, %v418
        %v765 = vsel %vm701, %v733, %v425
        %v766 = vsel %vm702, %v734, %v432
        %v767 = vsel %vm703, %v735, %v439
        %v768 = vsel %vm704, %v736, %v446
        %v769 = vsel %vm705, %v737, %v453
        %v770 = vsel %vm706, %v738, %v460
        %v771 = vsel %vm707, %v739, %v467
        %v772 = vsel %vm708, %v740, %v474
        %v773 = vsel %vm709, %v741, %v481
        %v774 = vsel %vm710, %v742, %v488
        %v775 = vsel %vm711, %v743, %v495
        %v776 = vsel %vm712, %v744, %v502
        %v777 = vsel %vm713, %v745, %v509
        %v778 = vsel %vm714, %v746, %v516
        %v779 = vsel %vm715, %v747, %v523
        %v780 = vsel %vm716, %v748, %v530
        %v781 = vsel %vm717, %v749, %v537
        %v782 = vsel %vm718, %v750, %v544
        %v783 = vsel %vm719, %v751, %v551
        %v784 = vsel %vm720, %v752, %v558
        %v785 = vsel %vm721, %v753, %v565
        %v786 = vsel %vm722, %v754, %v572
        %v787 = vsel %vm723, %v755, %v579
        %v788 = vsel %vm724, %v756, %v586
        %v789 = vsel %vm725, %v757, %v593
        %v790 = vsel %vm726, %v758, %v600
        %v791 = vsel %vm727, %v759, %v607
        %v792 = vsel %vm728, %v760, %v614
        %v793 = vsel %vm729, %v761, %v621
        %v794 = vsel %vm730, %v762, %v628
        %v795 = vsel %vm731, %v763, %v635
        %vm826 = vcmask 1040384
        %v827 = vrot.slane %v347, 7
        %v828 = vrot.slane %v348, 7
        %v829 = vsel %vm826, %v827, %v828
        %v830 = vrot.slane %v349, 7
        %v831 = vsel %vm826, %v828, %v830
        %v832 = vrot.slane %v350, 7
        %v833 = vsel %vm826, %v830, %v832
        %v834 = vrot.slane %v351, 7
        %v835 = vsel %vm826, %v832, %v834
        %v836 = vrot.slane %v352, 7
        %v837 = vsel %vm826, %v834, %v836
        %v838 = vrot.slane %v353, 7
        %v839 = vsel %vm826, %v836, %v838
        %v840 = vrot.slane %v354, 7
        %v841 = vsel %vm826, %v838, %v840
        %v842 = vrot.slane %v355, 7
        %v843 = vsel %vm826, %v840, %v842
        %v844 = vrot.slane %v356, 7
        %v845 = vsel %vm826, %v842, %v844
        %v846 = vrot.slane %v357, 7
        %v847 = vsel %vm826, %v844, %v846
        %v848 = vrot.slane %v358, 7
        %v849 = vsel %vm826, %v846, %v848
        %v850 = vrot.slane %v359, 7
        %v851 = vsel %vm826, %v848, %v850
        %v852 = vrot.slane %v360, 7
        %v853 = vsel %vm826, %v850, %v852
        %v854 = vrot.slane %v361, 7
        %v855 = vsel %vm826, %v852, %v854
        %v856 = vrot.slane %v362, 7
        %v857 = vsel %vm826, %v854, %v856
        %v858 = vrot.slane %v363, 7
        %v859 = vsel %vm826, %v856, %v858
        %v860 = vrot.slane %v364, 7
        %v861 = vsel %vm826, %v858, %v860
        %v862 = vrot.slane %v365, 7
        %v863 = vsel %vm826, %v860, %v862
        %v864 = vrot.slane %v366, 7
        %v865 = vsel %vm826, %v862, %v864
        %v866 = vrot.slane %v367, 7
        %v867 = vsel %vm826, %v864, %v866
        %v868 = vrot.slane %v368, 7
        %v869 = vsel %vm826, %v866, %v868
        %v870 = vrot.slane %v369, 7
        %v871 = vsel %vm826, %v868, %v870
        %v872 = vrot.slane %v370, 7
        %v873 = vsel %vm826, %v870, %v872
        %v874 = vrot.slane %v371, 7
        %v875 = vsel %vm826, %v872, %v874
        %v876 = vrot.slane %v372, 7
        %v877 = vsel %vm826, %v874, %v876
        %v878 = vrot.slane %v373, 7
        %v879 = vsel %vm826, %v876, %v878
        %v880 = vrot.slane %v374, 7
        %v881 = vsel %vm826, %v878, %v880
        %v882 = vrot.slane %v375, 7
        %v883 = vsel %vm826, %v880, %v882
        %v884 = vrot.slane %v376, 7
        %v885 = vsel %vm826, %v882, %v884
        %v916 = vsel %vm826, 0.0, %v827
        %v917 = vadd.s32 %v764, 4294967295
        %v918 = vadd.s32 %v765, 4294967295
        %v919 = vadd.s32 %v766, 4294967295
        %v920 = vadd.s32 %v767, 4294967295
        %v921 = vadd.s32 %v768, 4294967295
        %v922 = vadd.s32 %v769, 4294967295
        %v923 = vadd.s32 %v770, 4294967295
        %v924 = vadd.s32 %v771, 4294967295
        %v925 = vadd.s32 %v772, 4294967295
        %v926 = vadd.s32 %v773, 4294967295
        %v927 = vadd.s32 %v774, 4294967295
        %v928 = vadd.s32 %v775, 4294967295
        %v929 = vadd.s32 %v776, 4294967295
        %v930 = vadd.s32 %v777, 4294967295
        %v931 = vadd.s32 %v778, 4294967295
        %v932 = vadd.s32 %v779, 4294967295
        %v933 = vadd.s32 %v780, 4294967295
        %v934 = vadd.s32 %v781, 4294967295
        %v935 = vadd.s32 %v782, 4294967295
        %v936 = vadd.s32 %v783, 4294967295
        %v937 = vadd.s32 %v784, 4294967295
        %v938 = vadd.s32 %v785, 4294967295
        %v939 = vadd.s32 %v786, 4294967295
        %v940 = vadd.s32 %v787, 4294967295
        %v941 = vadd.s32 %v788, 4294967295
        %v942 = vadd.s32 %v789, 4294967295
        %v943 = vadd.s32 %v790, 4294967295
        %v944 = vadd.s32 %v791, 4294967295
        %v945 = vadd.s32 %v792, 4294967295
        %v946 = vadd.s32 %v793, 4294967295
        %v947 = vadd.s32 %v794, 4294967295
        %v948 = vadd.s32 %v795, 4294967295
        %vm949 = vcmp.ge.s32.totalorder %v917, 0
        %vm950 = vcmp.ge.s32.totalorder %v918, 0
        %vm951 = vcmp.ge.s32.totalorder %v919, 0
        %vm952 = vcmp.ge.s32.totalorder %v920, 0
        %vm953 = vcmp.ge.s32.totalorder %v921, 0
        %vm954 = vcmp.ge.s32.totalorder %v922, 0
        %vm955 = vcmp.ge.s32.totalorder %v923, 0
        %vm956 = vcmp.ge.s32.totalorder %v924, 0
        %vm957 = vcmp.ge.s32.totalorder %v925, 0
        %vm958 = vcmp.ge.s32.totalorder %v926, 0
        %vm959 = vcmp.ge.s32.totalorder %v927, 0
        %vm960 = vcmp.ge.s32.totalorder %v928, 0
        %vm961 = vcmp.ge.s32.totalorder %v929, 0
        %vm962 = vcmp.ge.s32.totalorder %v930, 0
        %vm963 = vcmp.ge.s32.totalorder %v931, 0
        %vm964 = vcmp.ge.s32.totalorder %v932, 0
        %vm965 = vcmp.ge.s32.totalorder %v933, 0
        %vm966 = vcmp.ge.s32.totalorder %v934, 0
        %vm967 = vcmp.ge.s32.totalorder %v935, 0
        %vm968 = vcmp.ge.s32.totalorder %v936, 0
        %vm969 = vcmp.ge.s32.totalorder %v937, 0
        %vm970 = vcmp.ge.s32.totalorder %v938, 0
        %vm971 = vcmp.ge.s32.totalorder %v939, 0
        %vm972 = vcmp.ge.s32.totalorder %v940, 0
        %vm973 = vcmp.ge.s32.totalorder %v941, 0
        %vm974 = vcmp.ge.s32.totalorder %v942, 0
        %vm975 = vcmp.ge.s32.totalorder %v943, 0
        %vm976 = vcmp.ge.s32.totalorder %v944, 0
        %vm977 = vcmp.ge.s32.totalorder %v945, 0
        %vm978 = vcmp.ge.s32.totalorder %v946, 0
        %vm979 = vcmp.ge.s32.totalorder %v947, 0
        %vm980 = vcmp.ge.s32.totalorder %v948, 0
        %vm981 = vcmp.lt.s32.totalorder %v917, 16
        %vm982 = vcmp.lt.s32.totalorder %v918, 16
        %vm983 = vcmp.lt.s32.totalorder %v919, 16
        %vm984 = vcmp.lt.s32.totalorder %v920, 16
        %vm985 = vcmp.lt.s32.totalorder %v921, 16
        %vm986 = vcmp.lt.s32.totalorder %v922, 16
        %vm987 = vcmp.lt.s32.totalorder %v923, 16
        %vm988 = vcmp.lt.s32.totalorder %v924, 16
        %vm989 = vcmp.lt.s32.totalorder %v925, 16
        %vm990 = vcmp.lt.s32.totalorder %v926, 16
        %vm991 = vcmp.lt.s32.totalorder %v927, 16
        %vm992 = vcmp.lt.s32.totalorder %v928, 16
        %vm993 = vcmp.lt.s32.totalorder %v929, 16
        %vm994 = vcmp.lt.s32.totalorder %v930, 16
        %vm995 = vcmp.lt.s32.totalorder %v931, 16
        %vm996 = vcmp.lt.s32.totalorder %v932, 16
        %vm997 = vcmp.lt.s32.totalorder %v933, 16
        %vm998 = vcmp.lt.s32.totalorder %v934, 16
        %vm999 = vcmp.lt.s32.totalorder %v935, 16
        %vm1000 = vcmp.lt.s32.totalorder %v936, 16
        %vm1001 = vcmp.lt.s32.totalorder %v937, 16
        %vm1002 = vcmp.lt.s32.totalorder %v938, 16
        %vm1003 = vcmp.lt.s32.totalorder %v939, 16
        %vm1004 = vcmp.lt.s32.totalorder %v940, 16
        %vm1005 = vcmp.lt.s32.totalorder %v941, 16
        %vm1006 = vcmp.lt.s32.totalorder %v942, 16
        %vm1007 = vcmp.lt.s32.totalorder %v943, 16
        %vm1008 = vcmp.lt.s32.totalorder %v944, 16
        %vm1009 = vcmp.lt.s32.totalorder %v945, 16
        %vm1010 = vcmp.lt.s32.totalorder %v946, 16
        %vm1011 = vcmp.lt.s32.totalorder %v947, 16
        %vm1012 = vcmp.lt.s32.totalorder %v948, 16
        %vm1013 = vmand %vm949, %vm981
        %vm1014 = vmand %vm950, %vm982
        %vm1015 = vmand %vm951, %vm983
        %vm1016 = vmand %vm952, %vm984
        %vm1017 = vmand %vm953, %vm985
        %vm1018 = vmand %vm954, %vm986
        %vm1019 = vmand %vm955, %vm987
        %vm1020 = vmand %vm956, %vm988
        %vm1021 = vmand %vm957, %vm989
        %vm1022 = vmand %vm958, %vm990
        %vm1023 = vmand %vm959, %vm991
        %vm1024 = vmand %vm960, %vm992
        %vm1025 = vmand %vm961, %vm993
        %vm1026 = vmand %vm962, %vm994
        %vm1027 = vmand %vm963, %vm995
        %vm1028 = vmand %vm964, %vm996
        %vm1029 = vmand %vm965, %vm997
        %vm1030 = vmand %vm966, %vm998
        %vm1031 = vmand %vm967, %vm999
        %vm1032 = vmand %vm968, %vm1000
        %vm1033 = vmand %vm969, %vm1001
        %vm1034 = vmand %vm970, %vm1002
        %vm1035 = vmand %vm971, %vm1003
        %vm1036 = vmand %vm972, %vm1004
        %vm1037 = vmand %vm973, %vm1005
        %vm1038 = vmand %vm974, %vm1006
        %vm1039 = vmand %vm975, %vm1007
        %vm1040 = vmand %vm976, %vm1008
        %vm1041 = vmand %vm977, %vm1009
        %vm1042 = vmand %vm978, %vm1010
        %vm1043 = vmand %vm979, %vm1011
        %vm1044 = vmand %vm980, %vm1012
        %v1045 = vsel %vm1013, 1, 0
        %v1046 = vsel %vm1014, 1, 0
        %v1047 = vsel %vm1015, 1, 0
        %v1048 = vsel %vm1016, 1, 0
        %v1049 = vsel %vm1017, 1, 0
        %v1050 = vsel %vm1018, 1, 0
        %v1051 = vsel %vm1019, 1, 0
        %v1052 = vsel %vm1020, 1, 0
        %v1053 = vsel %vm1021, 1, 0
        %v1054 = vsel %vm1022, 1, 0
        %v1055 = vsel %vm1023, 1, 0
        %v1056 = vsel %vm1024, 1, 0
        %v1057 = vsel %vm1025, 1, 0
        %v1058 = vsel %vm1026, 1, 0
        %v1059 = vsel %vm1027, 1, 0
        %v1060 = vsel %vm1028, 1, 0
        %v1061 = vsel %vm1029, 1, 0
        %v1062 = vsel %vm1030, 1, 0
        %v1063 = vsel %vm1031, 1, 0
        %v1064 = vsel %vm1032, 1, 0
        %v1065 = vsel %vm1033, 1, 0
        %v1066 = vsel %vm1034, 1, 0
        %v1067 = vsel %vm1035, 1, 0
        %v1068 = vsel %vm1036, 1, 0
        %v1069 = vsel %vm1037, 1, 0
        %v1070 = vsel %vm1038, 1, 0
        %v1071 = vsel %vm1039, 1, 0
        %v1072 = vsel %vm1040, 1, 0
        %v1073 = vsel %vm1041, 1, 0
        %v1074 = vsel %vm1042, 1, 0
        %v1075 = vsel %vm1043, 1, 0
        %v1076 = vsel %vm1044, 1, 0
        %vm1077 = vcmp.eq.s32.totalorder %v1045, 1
        %vm1078 = vcmp.eq.s32.totalorder %v1046, 1
        %vm1079 = vcmp.eq.s32.totalorder %v1047, 1
        %vm1080 = vcmp.eq.s32.totalorder %v1048, 1
        %vm1081 = vcmp.eq.s32.totalorder %v1049, 1
        %vm1082 = vcmp.eq.s32.totalorder %v1050, 1
        %vm1083 = vcmp.eq.s32.totalorder %v1051, 1
        %vm1084 = vcmp.eq.s32.totalorder %v1052, 1
        %vm1085 = vcmp.eq.s32.totalorder %v1053, 1
        %vm1086 = vcmp.eq.s32.totalorder %v1054, 1
        %vm1087 = vcmp.eq.s32.totalorder %v1055, 1
        %vm1088 = vcmp.eq.s32.totalorder %v1056, 1
        %vm1089 = vcmp.eq.s32.totalorder %v1057, 1
        %vm1090 = vcmp.eq.s32.totalorder %v1058, 1
        %vm1091 = vcmp.eq.s32.totalorder %v1059, 1
        %vm1092 = vcmp.eq.s32.totalorder %v1060, 1
        %vm1093 = vcmp.eq.s32.totalorder %v1061, 1
        %vm1094 = vcmp.eq.s32.totalorder %v1062, 1
        %vm1095 = vcmp.eq.s32.totalorder %v1063, 1
        %vm1096 = vcmp.eq.s32.totalorder %v1064, 1
        %vm1097 = vcmp.eq.s32.totalorder %v1065, 1
        %vm1098 = vcmp.eq.s32.totalorder %v1066, 1
        %vm1099 = vcmp.eq.s32.totalorder %v1067, 1
        %vm1100 = vcmp.eq.s32.totalorder %v1068, 1
        %vm1101 = vcmp.eq.s32.totalorder %v1069, 1
        %vm1102 = vcmp.eq.s32.totalorder %v1070, 1
        %vm1103 = vcmp.eq.s32.totalorder %v1071, 1
        %vm1104 = vcmp.eq.s32.totalorder %v1072, 1
        %vm1105 = vcmp.eq.s32.totalorder %v1073, 1
        %vm1106 = vcmp.eq.s32.totalorder %v1074, 1
        %vm1107 = vcmp.eq.s32.totalorder %v1075, 1
        %vm1108 = vcmp.eq.s32.totalorder %v1076, 1
        %v1109 = vsel %vm1079, %v916, 0.0
        %v1110 = vsel %vm1080, %v829, 0.0
        %v1111 = vsel %vm1081, %v831, 0.0
        %v1112 = vsel %vm1082, %v833, 0.0
        %v1113 = vsel %vm1083, %v835, 0.0
        %v1114 = vsel %vm1084, %v837, 0.0
        %v1115 = vsel %vm1085, %v839, 0.0
        %v1116 = vsel %vm1086, %v841, 0.0
        %v1117 = vsel %vm1087, %v843, 0.0
        %v1118 = vsel %vm1088, %v845, 0.0
        %v1119 = vsel %vm1089, %v847, 0.0
        %v1120 = vsel %vm1090, %v849, 0.0
        %v1121 = vsel %vm1091, %v851, 0.0
        %v1122 = vsel %vm1092, %v853, 0.0
        %v1123 = vsel %vm1093, %v855, 0.0
        %v1124 = vsel %vm1094, %v857, 0.0
        %v1125 = vsel %vm1095, %v859, 0.0
        %v1126 = vsel %vm1096, %v861, 0.0
        %v1127 = vsel %vm1097, %v863, 0.0
        %v1128 = vsel %vm1098, %v865, 0.0
        %v1129 = vsel %vm1099, %v867, 0.0
        %v1130 = vsel %vm1100, %v869, 0.0
        %v1131 = vsel %vm1101, %v871, 0.0
        %v1132 = vsel %vm1102, %v873, 0.0
        %v1133 = vsel %vm1103, %v875, 0.0
        %v1134 = vsel %vm1104, %v877, 0.0
        %v1135 = vsel %vm1105, %v879, 0.0
        %v1136 = vsel %vm1106, %v881, 0.0
        %v1137 = vsel %vm1107, %v883, 0.0
        %v1138 = vsel %vm1108, %v885, 0.0
        %v1139 = vpack.c.bf16 0.0, 0.0
        %v1140 = vpack.c.bf16 %v1110, %v1109
        %v1141 = vpack.c.bf16 %v1112, %v1111
        %v1142 = vpack.c.bf16 %v1114, %v1113
        %v1143 = vpack.c.bf16 %v1116, %v1115
        %v1144 = vpack.c.bf16 %v1118, %v1117
        %v1145 = vpack.c.bf16 %v1120, %v1119
        %v1146 = vpack.c.bf16 %v1122, %v1121
        %v1147 = vpack.c.bf16 %v1124, %v1123
        %v1148 = vpack.c.bf16 %v1126, %v1125
        %v1149 = vpack.c.bf16 %v1128, %v1127
        %v1150 = vpack.c.bf16 %v1130, %v1129
        %v1151 = vpack.c.bf16 %v1132, %v1131
        %v1152 = vpack.c.bf16 %v1134, %v1133
        %v1153 = vpack.c.bf16 %v1136, %v1135
        %v1154 = vpack.c.bf16 %v1138, %v1137
        %v1155 = vpack.c.bf16 %v348, %v347
        %v1156 = vpack.c.bf16 %v350, %v349
        %v1157 = vpack.c.bf16 %v352, %v351
        %v1158 = vpack.c.bf16 %v354, %v353
        %v1159 = vpack.c.bf16 %v356, %v355
        %v1160 = vpack.c.bf16 %v358, %v357
        %v1161 = vpack.c.bf16 %v360, %v359
        %v1162 = vpack.c.bf16 %v362, %v361
        %v1163 = vpack.c.bf16 %v364, %v363
        %v1164 = vpack.c.bf16 %v366, %v365
        %v1165 = vpack.c.bf16 %v368, %v367
        %v1166 = vpack.c.bf16 %v370, %v369
        %v1167 = vpack.c.bf16 %v372, %v371
        %v1168 = vpack.c.bf16 %v374, %v373
        %v1169 = vpack.c.bf16 %v376, %v375
        %vm1171 = vcmask 1046528
        %v1172 = vrot.slane %v347, 1
        %v1173 = vrot.slane %v348, 1
        %v1174 = vsel %vm1171, %v1172, %v1173
        %v1175 = vrot.slane %v349, 1
        %v1176 = vsel %vm1171, %v1173, %v1175
        %v1177 = vrot.slane %v350, 1
        %v1178 = vsel %vm1171, %v1175, %v1177
        %v1179 = vrot.slane %v351, 1
        %v1180 = vsel %vm1171, %v1177, %v1179
        %v1181 = vrot.slane %v352, 1
        %v1182 = vsel %vm1171, %v1179, %v1181
        %v1183 = vrot.slane %v353, 1
        %v1184 = vsel %vm1171, %v1181, %v1183
        %v1185 = vrot.slane %v354, 1
        %v1186 = vsel %vm1171, %v1183, %v1185
        %v1187 = vrot.slane %v355, 1
        %v1188 = vsel %vm1171, %v1185, %v1187
        %v1189 = vrot.slane %v356, 1
        %v1190 = vsel %vm1171, %v1187, %v1189
        %v1191 = vrot.slane %v357, 1
        %v1192 = vsel %vm1171, %v1189, %v1191
        %v1193 = vrot.slane %v358, 1
        %v1194 = vsel %vm1171, %v1191, %v1193
        %v1195 = vrot.slane %v359, 1
        %v1196 = vsel %vm1171, %v1193, %v1195
        %v1197 = vrot.slane %v360, 1
        %v1198 = vsel %vm1171, %v1195, %v1197
        %v1199 = vrot.slane %v361, 1
        %v1200 = vsel %vm1171, %v1197, %v1199
        %v1201 = vrot.slane %v362, 1
        %v1202 = vsel %vm1171, %v1199, %v1201
        %v1203 = vrot.slane %v363, 1
        %v1204 = vsel %vm1171, %v1201, %v1203
        %v1205 = vrot.slane %v364, 1
        %v1206 = vsel %vm1171, %v1203, %v1205
        %v1207 = vrot.slane %v365, 1
        %v1208 = vsel %vm1171, %v1205, %v1207
        %v1209 = vrot.slane %v366, 1
        %v1210 = vsel %vm1171, %v1207, %v1209
        %v1211 = vrot.slane %v367, 1
        %v1212 = vsel %vm1171, %v1209, %v1211
        %v1213 = vrot.slane %v368, 1
        %v1214 = vsel %vm1171, %v1211, %v1213
        %v1215 = vrot.slane %v369, 1
        %v1216 = vsel %vm1171, %v1213, %v1215
        %v1217 = vrot.slane %v370, 1
        %v1218 = vsel %vm1171, %v1215, %v1217
        %v1219 = vrot.slane %v371, 1
        %v1220 = vsel %vm1171, %v1217, %v1219
        %v1221 = vrot.slane %v372, 1
        %v1222 = vsel %vm1171, %v1219, %v1221
        %v1223 = vrot.slane %v373, 1
        %v1224 = vsel %vm1171, %v1221, %v1223
        %v1225 = vrot.slane %v374, 1
        %v1226 = vsel %vm1171, %v1223, %v1225
        %v1227 = vrot.slane %v375, 1
        %v1228 = vsel %vm1171, %v1225, %v1227
        %v1229 = vrot.slane %v376, 1
        %v1230 = vsel %vm1171, %v1227, %v1229
        %v1231 = vrot.slane %v377, 1
        %v1232 = vsel %vm1171, %v1229, %v1231
        %v1264 = vsel %vm1171, 0.0, %v1172
        %v1265 = vadd.s32 %v764, 1
        %v1266 = vadd.s32 %v765, 1
        %v1267 = vadd.s32 %v766, 1
        %v1268 = vadd.s32 %v767, 1
        %v1269 = vadd.s32 %v768, 1
        %v1270 = vadd.s32 %v769, 1
        %v1271 = vadd.s32 %v770, 1
        %v1272 = vadd.s32 %v771, 1
        %v1273 = vadd.s32 %v772, 1
        %v1274 = vadd.s32 %v773, 1
        %v1275 = vadd.s32 %v774, 1
        %v1276 = vadd.s32 %v775, 1
        %v1277 = vadd.s32 %v776, 1
        %v1278 = vadd.s32 %v777, 1
        %v1279 = vadd.s32 %v778, 1
        %v1280 = vadd.s32 %v779, 1
        %v1281 = vadd.s32 %v780, 1
        %v1282 = vadd.s32 %v781, 1
        %v1283 = vadd.s32 %v782, 1
        %v1284 = vadd.s32 %v783, 1
        %v1285 = vadd.s32 %v784, 1
        %v1286 = vadd.s32 %v785, 1
        %v1287 = vadd.s32 %v786, 1
        %v1288 = vadd.s32 %v787, 1
        %v1289 = vadd.s32 %v788, 1
        %v1290 = vadd.s32 %v789, 1
        %v1291 = vadd.s32 %v790, 1
        %v1292 = vadd.s32 %v791, 1
        %v1293 = vadd.s32 %v792, 1
        %v1294 = vadd.s32 %v793, 1
        %v1295 = vadd.s32 %v794, 1
        %v1296 = vadd.s32 %v795, 1
        %vm1297 = vcmp.ge.s32.totalorder %v1265, 0
        %vm1298 = vcmp.ge.s32.totalorder %v1266, 0
        %vm1299 = vcmp.ge.s32.totalorder %v1267, 0
        %vm1300 = vcmp.ge.s32.totalorder %v1268, 0
        %vm1301 = vcmp.ge.s32.totalorder %v1269, 0
        %vm1302 = vcmp.ge.s32.totalorder %v1270, 0
        %vm1303 = vcmp.ge.s32.totalorder %v1271, 0
        %vm1304 = vcmp.ge.s32.totalorder %v1272, 0
        %vm1305 = vcmp.ge.s32.totalorder %v1273, 0
        %vm1306 = vcmp.ge.s32.totalorder %v1274, 0
        %vm1307 = vcmp.ge.s32.totalorder %v1275, 0
        %vm1308 = vcmp.ge.s32.totalorder %v1276, 0
        %vm1309 = vcmp.ge.s32.totalorder %v1277, 0
        %vm1310 = vcmp.ge.s32.totalorder %v1278, 0
        %vm1311 = vcmp.ge.s32.totalorder %v1279, 0
        %vm1312 = vcmp.ge.s32.totalorder %v1280, 0
        %vm1313 = vcmp.ge.s32.totalorder %v1281, 0
        %vm1314 = vcmp.ge.s32.totalorder %v1282, 0
        %vm1315 = vcmp.ge.s32.totalorder %v1283, 0
        %vm1316 = vcmp.ge.s32.totalorder %v1284, 0
        %vm1317 = vcmp.ge.s32.totalorder %v1285, 0
        %vm1318 = vcmp.ge.s32.totalorder %v1286, 0
        %vm1319 = vcmp.ge.s32.totalorder %v1287, 0
        %vm1320 = vcmp.ge.s32.totalorder %v1288, 0
        %vm1321 = vcmp.ge.s32.totalorder %v1289, 0
        %vm1322 = vcmp.ge.s32.totalorder %v1290, 0
        %vm1323 = vcmp.ge.s32.totalorder %v1291, 0
        %vm1324 = vcmp.ge.s32.totalorder %v1292, 0
        %vm1325 = vcmp.ge.s32.totalorder %v1293, 0
        %vm1326 = vcmp.ge.s32.totalorder %v1294, 0
        %vm1327 = vcmp.ge.s32.totalorder %v1295, 0
        %vm1328 = vcmp.ge.s32.totalorder %v1296, 0
        %vm1329 = vcmp.lt.s32.totalorder %v1265, 16
        %vm1330 = vcmp.lt.s32.totalorder %v1266, 16
        %vm1331 = vcmp.lt.s32.totalorder %v1267, 16
        %vm1332 = vcmp.lt.s32.totalorder %v1268, 16
        %vm1333 = vcmp.lt.s32.totalorder %v1269, 16
        %vm1334 = vcmp.lt.s32.totalorder %v1270, 16
        %vm1335 = vcmp.lt.s32.totalorder %v1271, 16
        %vm1336 = vcmp.lt.s32.totalorder %v1272, 16
        %vm1337 = vcmp.lt.s32.totalorder %v1273, 16
        %vm1338 = vcmp.lt.s32.totalorder %v1274, 16
        %vm1339 = vcmp.lt.s32.totalorder %v1275, 16
        %vm1340 = vcmp.lt.s32.totalorder %v1276, 16
        %vm1341 = vcmp.lt.s32.totalorder %v1277, 16
        %vm1342 = vcmp.lt.s32.totalorder %v1278, 16
        %vm1343 = vcmp.lt.s32.totalorder %v1279, 16
        %vm1344 = vcmp.lt.s32.totalorder %v1280, 16
        %vm1345 = vcmp.lt.s32.totalorder %v1281, 16
        %vm1346 = vcmp.lt.s32.totalorder %v1282, 16
        %vm1347 = vcmp.lt.s32.totalorder %v1283, 16
        %vm1348 = vcmp.lt.s32.totalorder %v1284, 16
        %vm1349 = vcmp.lt.s32.totalorder %v1285, 16
        %vm1350 = vcmp.lt.s32.totalorder %v1286, 16
        %vm1351 = vcmp.lt.s32.totalorder %v1287, 16
        %vm1352 = vcmp.lt.s32.totalorder %v1288, 16
        %vm1353 = vcmp.lt.s32.totalorder %v1289, 16
        %vm1354 = vcmp.lt.s32.totalorder %v1290, 16
        %vm1355 = vcmp.lt.s32.totalorder %v1291, 16
        %vm1356 = vcmp.lt.s32.totalorder %v1292, 16
        %vm1357 = vcmp.lt.s32.totalorder %v1293, 16
        %vm1358 = vcmp.lt.s32.totalorder %v1294, 16
        %vm1359 = vcmp.lt.s32.totalorder %v1295, 16
        %vm1360 = vcmp.lt.s32.totalorder %v1296, 16
        %vm1361 = vmand %vm1297, %vm1329
        %vm1362 = vmand %vm1298, %vm1330
        %vm1363 = vmand %vm1299, %vm1331
        %vm1364 = vmand %vm1300, %vm1332
        %vm1365 = vmand %vm1301, %vm1333
        %vm1366 = vmand %vm1302, %vm1334
        %vm1367 = vmand %vm1303, %vm1335
        %vm1368 = vmand %vm1304, %vm1336
        %vm1369 = vmand %vm1305, %vm1337
        %vm1370 = vmand %vm1306, %vm1338
        %vm1371 = vmand %vm1307, %vm1339
        %vm1372 = vmand %vm1308, %vm1340
        %vm1373 = vmand %vm1309, %vm1341
        %vm1374 = vmand %vm1310, %vm1342
        %vm1375 = vmand %vm1311, %vm1343
        %vm1376 = vmand %vm1312, %vm1344
        %vm1377 = vmand %vm1313, %vm1345
        %vm1378 = vmand %vm1314, %vm1346
        %vm1379 = vmand %vm1315, %vm1347
        %vm1380 = vmand %vm1316, %vm1348
        %vm1381 = vmand %vm1317, %vm1349
        %vm1382 = vmand %vm1318, %vm1350
        %vm1383 = vmand %vm1319, %vm1351
        %vm1384 = vmand %vm1320, %vm1352
        %vm1385 = vmand %vm1321, %vm1353
        %vm1386 = vmand %vm1322, %vm1354
        %vm1387 = vmand %vm1323, %vm1355
        %vm1388 = vmand %vm1324, %vm1356
        %vm1389 = vmand %vm1325, %vm1357
        %vm1390 = vmand %vm1326, %vm1358
        %vm1391 = vmand %vm1327, %vm1359
        %vm1392 = vmand %vm1328, %vm1360
        %v1393 = vsel %vm1361, 1, 0
        %v1394 = vsel %vm1362, 1, 0
        %v1395 = vsel %vm1363, 1, 0
        %v1396 = vsel %vm1364, 1, 0
        %v1397 = vsel %vm1365, 1, 0
        %v1398 = vsel %vm1366, 1, 0
        %v1399 = vsel %vm1367, 1, 0
        %v1400 = vsel %vm1368, 1, 0
        %v1401 = vsel %vm1369, 1, 0
        %v1402 = vsel %vm1370, 1, 0
        %v1403 = vsel %vm1371, 1, 0
        %v1404 = vsel %vm1372, 1, 0
        %v1405 = vsel %vm1373, 1, 0
        %v1406 = vsel %vm1374, 1, 0
        %v1407 = vsel %vm1375, 1, 0
        %v1408 = vsel %vm1376, 1, 0
        %v1409 = vsel %vm1377, 1, 0
        %v1410 = vsel %vm1378, 1, 0
        %v1411 = vsel %vm1379, 1, 0
        %v1412 = vsel %vm1380, 1, 0
        %v1413 = vsel %vm1381, 1, 0
        %v1414 = vsel %vm1382, 1, 0
        %v1415 = vsel %vm1383, 1, 0
        %v1416 = vsel %vm1384, 1, 0
        %v1417 = vsel %vm1385, 1, 0
        %v1418 = vsel %vm1386, 1, 0
        %v1419 = vsel %vm1387, 1, 0
        %v1420 = vsel %vm1388, 1, 0
        %v1421 = vsel %vm1389, 1, 0
        %v1422 = vsel %vm1390, 1, 0
        %v1423 = vsel %vm1391, 1, 0
        %v1424 = vsel %vm1392, 1, 0
        %vm1425 = vcmp.eq.s32.totalorder %v1393, 1
        %vm1426 = vcmp.eq.s32.totalorder %v1394, 1
        %vm1427 = vcmp.eq.s32.totalorder %v1395, 1
        %vm1428 = vcmp.eq.s32.totalorder %v1396, 1
        %vm1429 = vcmp.eq.s32.totalorder %v1397, 1
        %vm1430 = vcmp.eq.s32.totalorder %v1398, 1
        %vm1431 = vcmp.eq.s32.totalorder %v1399, 1
        %vm1432 = vcmp.eq.s32.totalorder %v1400, 1
        %vm1433 = vcmp.eq.s32.totalorder %v1401, 1
        %vm1434 = vcmp.eq.s32.totalorder %v1402, 1
        %vm1435 = vcmp.eq.s32.totalorder %v1403, 1
        %vm1436 = vcmp.eq.s32.totalorder %v1404, 1
        %vm1437 = vcmp.eq.s32.totalorder %v1405, 1
        %vm1438 = vcmp.eq.s32.totalorder %v1406, 1
        %vm1439 = vcmp.eq.s32.totalorder %v1407, 1
        %vm1440 = vcmp.eq.s32.totalorder %v1408, 1
        %vm1441 = vcmp.eq.s32.totalorder %v1409, 1
        %vm1442 = vcmp.eq.s32.totalorder %v1410, 1
        %vm1443 = vcmp.eq.s32.totalorder %v1411, 1
        %vm1444 = vcmp.eq.s32.totalorder %v1412, 1
        %vm1445 = vcmp.eq.s32.totalorder %v1413, 1
        %vm1446 = vcmp.eq.s32.totalorder %v1414, 1
        %vm1447 = vcmp.eq.s32.totalorder %v1415, 1
        %vm1448 = vcmp.eq.s32.totalorder %v1416, 1
        %vm1449 = vcmp.eq.s32.totalorder %v1417, 1
        %vm1450 = vcmp.eq.s32.totalorder %v1418, 1
        %vm1451 = vcmp.eq.s32.totalorder %v1419, 1
        %vm1452 = vcmp.eq.s32.totalorder %v1420, 1
        %vm1453 = vcmp.eq.s32.totalorder %v1421, 1
        %vm1454 = vcmp.eq.s32.totalorder %v1422, 1
        %vm1455 = vcmp.eq.s32.totalorder %v1423, 1
        %vm1456 = vcmp.eq.s32.totalorder %v1424, 1
        %v1457 = vsel %vm1426, %v1264, 0.0
        %v1458 = vsel %vm1427, %v1174, 0.0
        %v1459 = vsel %vm1428, %v1176, 0.0
        %v1460 = vsel %vm1429, %v1178, 0.0
        %v1461 = vsel %vm1430, %v1180, 0.0
        %v1462 = vsel %vm1431, %v1182, 0.0
        %v1463 = vsel %vm1432, %v1184, 0.0
        %v1464 = vsel %vm1433, %v1186, 0.0
        %v1465 = vsel %vm1434, %v1188, 0.0
        %v1466 = vsel %vm1435, %v1190, 0.0
        %v1467 = vsel %vm1436, %v1192, 0.0
        %v1468 = vsel %vm1437, %v1194, 0.0
        %v1469 = vsel %vm1438, %v1196, 0.0
        %v1470 = vsel %vm1439, %v1198, 0.0
        %v1471 = vsel %vm1440, %v1200, 0.0
        %v1472 = vsel %vm1441, %v1202, 0.0
        %v1473 = vsel %vm1442, %v1204, 0.0
        %v1474 = vsel %vm1443, %v1206, 0.0
        %v1475 = vsel %vm1444, %v1208, 0.0
        %v1476 = vsel %vm1445, %v1210, 0.0
        %v1477 = vsel %vm1446, %v1212, 0.0
        %v1478 = vsel %vm1447, %v1214, 0.0
        %v1479 = vsel %vm1448, %v1216, 0.0
        %v1480 = vsel %vm1449, %v1218, 0.0
        %v1481 = vsel %vm1450, %v1220, 0.0
        %v1482 = vsel %vm1451, %v1222, 0.0
        %v1483 = vsel %vm1452, %v1224, 0.0
        %v1484 = vsel %vm1453, %v1226, 0.0
        %v1485 = vsel %vm1454, %v1228, 0.0
        %v1486 = vsel %vm1455, %v1230, 0.0
        %v1487 = vsel %vm1456, %v1232, 0.0
        %v1488 = vpack.c.bf16 %v1457, 0.0
        %v1489 = vpack.c.bf16 %v1459, %v1458
        %v1490 = vpack.c.bf16 %v1461, %v1460
        %v1491 = vpack.c.bf16 %v1463, %v1462
        %v1492 = vpack.c.bf16 %v1465, %v1464
        %v1493 = vpack.c.bf16 %v1467, %v1466
        %v1494 = vpack.c.bf16 %v1469, %v1468
        %v1495 = vpack.c.bf16 %v1471, %v1470
        %v1496 = vpack.c.bf16 %v1473, %v1472
        %v1497 = vpack.c.bf16 %v1475, %v1474
        %v1498 = vpack.c.bf16 %v1477, %v1476
        %v1499 = vpack.c.bf16 %v1479, %v1478
        %v1500 = vpack.c.bf16 %v1481, %v1480
        %v1501 = vpack.c.bf16 %v1483, %v1482
        %v1502 = vpack.c.bf16 %v1485, %v1484
        %v1503 = vpack.c.bf16 %v1487, %v1486
        %v1505 = vrot.slane %v377, 7
        %v1506 = vsel %vm826, %v884, %v1505
        %v1507 = vrot.slane %v378, 7
        %v1508 = vsel %vm826, %v1505, %v1507
        %v1511 = vsel %vm1077, %v916, 0.0
        %v1512 = vsel %vm1078, %v829, 0.0
        %v1513 = vsel %vm1079, %v831, 0.0
        %v1514 = vsel %vm1080, %v833, 0.0
        %v1515 = vsel %vm1081, %v835, 0.0
        %v1516 = vsel %vm1082, %v837, 0.0
        %v1517 = vsel %vm1083, %v839, 0.0
        %v1518 = vsel %vm1084, %v841, 0.0
        %v1519 = vsel %vm1085, %v843, 0.0
        %v1520 = vsel %vm1086, %v845, 0.0
        %v1521 = vsel %vm1087, %v847, 0.0
        %v1522 = vsel %vm1088, %v849, 0.0
        %v1523 = vsel %vm1089, %v851, 0.0
        %v1524 = vsel %vm1090, %v853, 0.0
        %v1525 = vsel %vm1091, %v855, 0.0
        %v1526 = vsel %vm1092, %v857, 0.0
        %v1527 = vsel %vm1093, %v859, 0.0
        %v1528 = vsel %vm1094, %v861, 0.0
        %v1529 = vsel %vm1095, %v863, 0.0
        %v1530 = vsel %vm1096, %v865, 0.0
        %v1531 = vsel %vm1097, %v867, 0.0
        %v1532 = vsel %vm1098, %v869, 0.0
        %v1533 = vsel %vm1099, %v871, 0.0
        %v1534 = vsel %vm1100, %v873, 0.0
        %v1535 = vsel %vm1101, %v875, 0.0
        %v1536 = vsel %vm1102, %v877, 0.0
        %v1537 = vsel %vm1103, %v879, 0.0
        %v1538 = vsel %vm1104, %v881, 0.0
        %v1539 = vsel %vm1105, %v883, 0.0
        %v1540 = vsel %vm1106, %v885, 0.0
        %v1541 = vsel %vm1107, %v1506, 0.0
        %v1542 = vsel %vm1108, %v1508, 0.0
        %v1543 = vpack.c.bf16 %v1512, %v1511
        %v1544 = vpack.c.bf16 %v1514, %v1513
        %v1545 = vpack.c.bf16 %v1516, %v1515
        %v1546 = vpack.c.bf16 %v1518, %v1517
        %v1547 = vpack.c.bf16 %v1520, %v1519
        %v1548 = vpack.c.bf16 %v1522, %v1521
        %v1549 = vpack.c.bf16 %v1524, %v1523
        %v1550 = vpack.c.bf16 %v1526, %v1525
        %v1551 = vpack.c.bf16 %v1528, %v1527
        %v1552 = vpack.c.bf16 %v1530, %v1529
        %v1553 = vpack.c.bf16 %v1532, %v1531
        %v1554 = vpack.c.bf16 %v1534, %v1533
        %v1555 = vpack.c.bf16 %v1536, %v1535
        %v1556 = vpack.c.bf16 %v1538, %v1537
        %v1557 = vpack.c.bf16 %v1540, %v1539
        %v1558 = vpack.c.bf16 %v1542, %v1541
        %v1559 = vpack.c.bf16 %v378, %v377
        %v1560 = vrot.slane %v378, 1
        %v1561 = vsel %vm1171, %v1231, %v1560
        %v1564 = vsel %vm1171, %v1560, 0.0
        %v1565 = vsel %vm1425, %v1174, 0.0
        %v1566 = vsel %vm1426, %v1176, 0.0
        %v1567 = vsel %vm1427, %v1178, 0.0
        %v1568 = vsel %vm1428, %v1180, 0.0
        %v1569 = vsel %vm1429, %v1182, 0.0
        %v1570 = vsel %vm1430, %v1184, 0.0
        %v1571 = vsel %vm1431, %v1186, 0.0
        %v1572 = vsel %vm1432, %v1188, 0.0
        %v1573 = vsel %vm1433, %v1190, 0.0
        %v1574 = vsel %vm1434, %v1192, 0.0
        %v1575 = vsel %vm1435, %v1194, 0.0
        %v1576 = vsel %vm1436, %v1196, 0.0
        %v1577 = vsel %vm1437, %v1198, 0.0
        %v1578 = vsel %vm1438, %v1200, 0.0
        %v1579 = vsel %vm1439, %v1202, 0.0
        %v1580 = vsel %vm1440, %v1204, 0.0
        %v1581 = vsel %vm1441, %v1206, 0.0
        %v1582 = vsel %vm1442, %v1208, 0.0
        %v1583 = vsel %vm1443, %v1210, 0.0
        %v1584 = vsel %vm1444, %v1212, 0.0
        %v1585 = vsel %vm1445, %v1214, 0.0
        %v1586 = vsel %vm1446, %v1216, 0.0
        %v1587 = vsel %vm1447, %v1218, 0.0
        %v1588 = vsel %vm1448, %v1220, 0.0
        %v1589 = vsel %vm1449, %v1222, 0.0
        %v1590 = vsel %vm1450, %v1224, 0.0
        %v1591 = vsel %vm1451, %v1226, 0.0
        %v1592 = vsel %vm1452, %v1228, 0.0
        %v1593 = vsel %vm1453, %v1230, 0.0
        %v1594 = vsel %vm1454, %v1232, 0.0
        %v1595 = vsel %vm1455, %v1561, 0.0
        %v1596 = vsel %vm1456, %v1564, 0.0
        %v1597 = vpack.c.bf16 %v1566, %v1565
        %v1598 = vpack.c.bf16 %v1568, %v1567
        %v1599 = vpack.c.bf16 %v1570, %v1569
        %v1600 = vpack.c.bf16 %v1572, %v1571
        %v1601 = vpack.c.bf16 %v1574, %v1573
        %v1602 = vpack.c.bf16 %v1576, %v1575
        %v1603 = vpack.c.bf16 %v1578, %v1577
        %v1604 = vpack.c.bf16 %v1580, %v1579
        %v1605 = vpack.c.bf16 %v1582, %v1581
        %v1606 = vpack.c.bf16 %v1584, %v1583
        %v1607 = vpack.c.bf16 %v1586, %v1585
        %v1608 = vpack.c.bf16 %v1588, %v1587
        %v1609 = vpack.c.bf16 %v1590, %v1589
        %v1610 = vpack.c.bf16 %v1592, %v1591
        %v1611 = vpack.c.bf16 %v1594, %v1593
        %v1612 = vpack.c.bf16 %v1596, %v1595
        %v1614 = vsel %vm826, %v1507, 0.0
        %v1615 = vsel %vm1077, %v831, 0.0
        %v1616 = vsel %vm1078, %v833, 0.0
        %v1617 = vsel %vm1079, %v835, 0.0
        %v1618 = vsel %vm1080, %v837, 0.0
        %v1619 = vsel %vm1081, %v839, 0.0
        %v1620 = vsel %vm1082, %v841, 0.0
        %v1621 = vsel %vm1083, %v843, 0.0
        %v1622 = vsel %vm1084, %v845, 0.0
        %v1623 = vsel %vm1085, %v847, 0.0
        %v1624 = vsel %vm1086, %v849, 0.0
        %v1625 = vsel %vm1087, %v851, 0.0
        %v1626 = vsel %vm1088, %v853, 0.0
        %v1627 = vsel %vm1089, %v855, 0.0
        %v1628 = vsel %vm1090, %v857, 0.0
        %v1629 = vsel %vm1091, %v859, 0.0
        %v1630 = vsel %vm1092, %v861, 0.0
        %v1631 = vsel %vm1093, %v863, 0.0
        %v1632 = vsel %vm1094, %v865, 0.0
        %v1633 = vsel %vm1095, %v867, 0.0
        %v1634 = vsel %vm1096, %v869, 0.0
        %v1635 = vsel %vm1097, %v871, 0.0
        %v1636 = vsel %vm1098, %v873, 0.0
        %v1637 = vsel %vm1099, %v875, 0.0
        %v1638 = vsel %vm1100, %v877, 0.0
        %v1639 = vsel %vm1101, %v879, 0.0
        %v1640 = vsel %vm1102, %v881, 0.0
        %v1641 = vsel %vm1103, %v883, 0.0
        %v1642 = vsel %vm1104, %v885, 0.0
        %v1643 = vsel %vm1105, %v1506, 0.0
        %v1644 = vsel %vm1106, %v1508, 0.0
        %v1645 = vsel %vm1107, %v1614, 0.0
        %v1646 = vpack.c.bf16 %v1616, %v1615
        %v1647 = vpack.c.bf16 %v1618, %v1617
        %v1648 = vpack.c.bf16 %v1620, %v1619
        %v1649 = vpack.c.bf16 %v1622, %v1621
        %v1650 = vpack.c.bf16 %v1624, %v1623
        %v1651 = vpack.c.bf16 %v1626, %v1625
        %v1652 = vpack.c.bf16 %v1628, %v1627
        %v1653 = vpack.c.bf16 %v1630, %v1629
        %v1654 = vpack.c.bf16 %v1632, %v1631
        %v1655 = vpack.c.bf16 %v1634, %v1633
        %v1656 = vpack.c.bf16 %v1636, %v1635
        %v1657 = vpack.c.bf16 %v1638, %v1637
        %v1658 = vpack.c.bf16 %v1640, %v1639
        %v1659 = vpack.c.bf16 %v1642, %v1641
        %v1660 = vpack.c.bf16 %v1644, %v1643
        %v1661 = vpack.c.bf16 0.0, %v1645
        %v1662 = vsel %vm1425, %v1178, 0.0
        %v1663 = vsel %vm1426, %v1180, 0.0
        %v1664 = vsel %vm1427, %v1182, 0.0
        %v1665 = vsel %vm1428, %v1184, 0.0
        %v1666 = vsel %vm1429, %v1186, 0.0
        %v1667 = vsel %vm1430, %v1188, 0.0
        %v1668 = vsel %vm1431, %v1190, 0.0
        %v1669 = vsel %vm1432, %v1192, 0.0
        %v1670 = vsel %vm1433, %v1194, 0.0
        %v1671 = vsel %vm1434, %v1196, 0.0
        %v1672 = vsel %vm1435, %v1198, 0.0
        %v1673 = vsel %vm1436, %v1200, 0.0
        %v1674 = vsel %vm1437, %v1202, 0.0
        %v1675 = vsel %vm1438, %v1204, 0.0
        %v1676 = vsel %vm1439, %v1206, 0.0
        %v1677 = vsel %vm1440, %v1208, 0.0
        %v1678 = vsel %vm1441, %v1210, 0.0
        %v1679 = vsel %vm1442, %v1212, 0.0
        %v1680 = vsel %vm1443, %v1214, 0.0
        %v1681 = vsel %vm1444, %v1216, 0.0
        %v1682 = vsel %vm1445, %v1218, 0.0
        %v1683 = vsel %vm1446, %v1220, 0.0
        %v1684 = vsel %vm1447, %v1222, 0.0
        %v1685 = vsel %vm1448, %v1224, 0.0
        %v1686 = vsel %vm1449, %v1226, 0.0
        %v1687 = vsel %vm1450, %v1228, 0.0
        %v1688 = vsel %vm1451, %v1230, 0.0
        %v1689 = vsel %vm1452, %v1232, 0.0
        %v1690 = vsel %vm1453, %v1561, 0.0
        %v1691 = vsel %vm1454, %v1564, 0.0
        %v1692 = vpack.c.bf16 %v1663, %v1662
        %v1693 = vpack.c.bf16 %v1665, %v1664
        %v1694 = vpack.c.bf16 %v1667, %v1666
        %v1695 = vpack.c.bf16 %v1669, %v1668
        %v1696 = vpack.c.bf16 %v1671, %v1670
        %v1697 = vpack.c.bf16 %v1673, %v1672
        %v1698 = vpack.c.bf16 %v1675, %v1674
        %v1699 = vpack.c.bf16 %v1677, %v1676
        %v1700 = vpack.c.bf16 %v1679, %v1678
        %v1701 = vpack.c.bf16 %v1681, %v1680
        %v1702 = vpack.c.bf16 %v1683, %v1682
        %v1703 = vpack.c.bf16 %v1685, %v1684
        %v1704 = vpack.c.bf16 %v1687, %v1686
        %v1705 = vpack.c.bf16 %v1689, %v1688
        %v1706 = vpack.c.bf16 %v1691, %v1690
        %v1707 = vld [vmem:[%s3] sm:$0xf]
        %v1708 = vld [vmem:[%s3 + $0x4] sm:$0xf]
        %v1709 = vld [vmem:[%s3 + $0x8] sm:$0xf]
        %v1710 = vld [vmem:[%s3 + $0xc] sm:$0xf]
        %v1711 = vld [vmem:[%s3 + $0x10] sm:$0xf]
        %v1712 = vld [vmem:[%s3 + $0x14] sm:$0xf]
        %v1713 = vld [vmem:[%s3 + $0x18] sm:$0xf]
        %v1714 = vld [vmem:[%s3 + $0x1c] sm:$0xf]
        %v1715 = vld [vmem:[%s3 + $0x20] sm:$0xf]
        %v1716 = vld [vmem:[%s3 + $0x24] sm:$0xf]
        %v1717 = vld [vmem:[%s3 + $0x28] sm:$0xf]
        %v1718 = vld [vmem:[%s3 + $0x2c] sm:$0xf]
        %v1719 = vld [vmem:[%s3 + $0x30] sm:$0xf]
        %v1720 = vld [vmem:[%s3 + $0x34] sm:$0xf]
        %v1721 = vld [vmem:[%s3 + $0x38] sm:$0xf]
        %v1722 = vld [vmem:[%s3 + $0x3c] sm:$0xf]
        %v1723 = vld [vmem:[%s3 + $0x40] sm:$0xf]
        %v1724 = vld [vmem:[%s3 + $0x44] sm:$0xf]
        %v1725 = vld [vmem:[%s3 + $0x48] sm:$0xf]
        %v1726 = vld [vmem:[%s3 + $0x4c] sm:$0xf]
        %v1727 = vld [vmem:[%s3 + $0x50] sm:$0xf]
        %v1728 = vld [vmem:[%s3 + $0x54] sm:$0xf]
        %v1729 = vld [vmem:[%s3 + $0x58] sm:$0xf]
        %v1730 = vld [vmem:[%s3 + $0x5c] sm:$0xf]
        %v1731 = vld [vmem:[%s3 + $0x60] sm:$0xf]
        %v1732 = vld [vmem:[%s3 + $0x64] sm:$0xf]
        %v1733 = vld [vmem:[%s3 + $0x68] sm:$0xf]
        %v1734 = vld [vmem:[%s3 + $0x6c] sm:$0xf]
        %v1735 = vld [vmem:[%s3 + $0x70] sm:$0xf]
        %v1736 = vld [vmem:[%s3 + $0x74] sm:$0xf]
        %v1737 = vld [vmem:[%s3 + $0x78] sm:$0xf]
        %v1738 = vld [vmem:[%s3 + $0x7c] sm:$0xf]
        %v1739 = vld [vmem:[%s3 + $0x80] sm:$0xf]
        %v1740 = vld [vmem:[%s3 + $0x84] sm:$0xf]
        %v1741 = vld [vmem:[%s3 + $0x88] sm:$0xf]
        %v1742 = vld [vmem:[%s3 + $0x8c] sm:$0xf]
        %v1743 = vld [vmem:[%s3 + $0x90] sm:$0xf]
        %v1744 = vld [vmem:[%s3 + $0x94] sm:$0xf]
        %v1745 = vld [vmem:[%s3 + $0x98] sm:$0xf]
        %v1746 = vld [vmem:[%s3 + $0x9c] sm:$0xf]
        %v1747 = vld [vmem:[%s3 + $0xa0] sm:$0xf]
        %v1748 = vld [vmem:[%s3 + $0xa4] sm:$0xf]
        %v1749 = vld [vmem:[%s3 + $0xa8] sm:$0xf]
        %v1750 = vld [vmem:[%s3 + $0xac] sm:$0xf]
        %v1751 = vld [vmem:[%s3 + $0xb0] sm:$0xf]
        %v1752 = vld [vmem:[%s3 + $0xb4] sm:$0xf]
        %v1753 = vld [vmem:[%s3 + $0xb8] sm:$0xf]
        %v1754 = vld [vmem:[%s3 + $0xbc] sm:$0xf]
        %v1755 = vld [vmem:[%s3 + $0xc0] sm:$0xf]
        %v1756 = vld [vmem:[%s3 + $0xc4] sm:$0xf]
        %v1757 = vld [vmem:[%s3 + $0xc8] sm:$0xf]
        %v1758 = vld [vmem:[%s3 + $0xcc] sm:$0xf]
        %v1759 = vld [vmem:[%s3 + $0xd0] sm:$0xf]
        %v1760 = vld [vmem:[%s3 + $0xd4] sm:$0xf]
        %v1761 = vld [vmem:[%s3 + $0xd8] sm:$0xf]
        %v1762 = vld [vmem:[%s3 + $0xdc] sm:$0xf]
        %v1763 = vld [vmem:[%s3 + $0xe0] sm:$0xf]
        %v1764 = vld [vmem:[%s3 + $0xe4] sm:$0xf]
        %v1765 = vld [vmem:[%s3 + $0xe8] sm:$0xf]
        %v1766 = vld [vmem:[%s3 + $0xec] sm:$0xf]
        %v1767 = vld [vmem:[%s3 + $0xf0] sm:$0xf]
        %v1768 = vld [vmem:[%s3 + $0xf4] sm:$0xf]
        %v1769 = vld [vmem:[%s3 + $0xf8] sm:$0xf]
        %v1770 = vld [vmem:[%s3 + $0xfc] sm:$0xf]
        %v1771 = vld [vmem:[%s3 + $0x100] sm:$0xf]
        %v1772 = vld [vmem:[%s3 + $0x104] sm:$0xf]
        %v1773 = vld [vmem:[%s3 + $0x108] sm:$0xf]
        %v1774 = vld [vmem:[%s3 + $0x10c] sm:$0xf]
        %v1775 = vld [vmem:[%s3 + $0x110] sm:$0xf]
        %v1776 = vld [vmem:[%s3 + $0x114] sm:$0xf]
        %v1777 = vld [vmem:[%s3 + $0x118] sm:$0xf]
        %v1778 = vld [vmem:[%s3 + $0x11c] sm:$0xf]
        %v1779 = vld [vmem:[%s3 + $0x120] sm:$0xf]
        %v1780 = vld [vmem:[%s3 + $0x124] sm:$0xf]
        %v1781 = vld [vmem:[%s3 + $0x128] sm:$0xf]
        %v1782 = vld [vmem:[%s3 + $0x12c] sm:$0xf]
        %v1783 = vld [vmem:[%s3 + $0x130] sm:$0xf]
        %v1784 = vld [vmem:[%s3 + $0x134] sm:$0xf]
        %v1785 = vld [vmem:[%s3 + $0x138] sm:$0xf]
        %v1786 = vld [vmem:[%s3 + $0x13c] sm:$0xf]
        %v1787 = vld [vmem:[%s3 + $0x140] sm:$0xf]
        %v1788 = vld [vmem:[%s3 + $0x144] sm:$0xf]
        %v1789 = vld [vmem:[%s3 + $0x148] sm:$0xf]
        %v1790 = vld [vmem:[%s3 + $0x14c] sm:$0xf]
        %v1791 = vld [vmem:[%s3 + $0x150] sm:$0xf]
        %v1792 = vld [vmem:[%s3 + $0x154] sm:$0xf]
        %v1793 = vld [vmem:[%s3 + $0x158] sm:$0xf]
        %v1794 = vld [vmem:[%s3 + $0x15c] sm:$0xf]
        %v1795 = vld [vmem:[%s3 + $0x160] sm:$0xf]
        %v1796 = vld [vmem:[%s3 + $0x164] sm:$0xf]
        %v1797 = vld [vmem:[%s3 + $0x168] sm:$0xf]
        %v1798 = vld [vmem:[%s3 + $0x16c] sm:$0xf]
        %v1799 = vld [vmem:[%s3 + $0x170] sm:$0xf]
        %v1800 = vld [vmem:[%s3 + $0x174] sm:$0xf]
        %v1801 = vld [vmem:[%s3 + $0x178] sm:$0xf]
        %v1802 = vld [vmem:[%s3 + $0x17c] sm:$0xf]
        %v1803 = vld [vmem:[%s3 + $0x180] sm:$0xf]
        %v1804 = vld [vmem:[%s3 + $0x184] sm:$0xf]
        %v1805 = vld [vmem:[%s3 + $0x188] sm:$0xf]
        %v1806 = vld [vmem:[%s3 + $0x18c] sm:$0xf]
        %v1807 = vld [vmem:[%s3 + $0x190] sm:$0xf]
        %v1808 = vld [vmem:[%s3 + $0x194] sm:$0xf]
        %v1809 = vld [vmem:[%s3 + $0x198] sm:$0xf]
        %v1810 = vld [vmem:[%s3 + $0x19c] sm:$0xf]
        %v1811 = vld [vmem:[%s3 + $0x1a0] sm:$0xf]
        %v1812 = vld [vmem:[%s3 + $0x1a4] sm:$0xf]
        %v1813 = vld [vmem:[%s3 + $0x1a8] sm:$0xf]
        %v1814 = vld [vmem:[%s3 + $0x1ac] sm:$0xf]
        %v1815 = vld [vmem:[%s3 + $0x1b0] sm:$0xf]
        %v1816 = vld [vmem:[%s3 + $0x1b4] sm:$0xf]
        %v1817 = vld [vmem:[%s3 + $0x1b8] sm:$0xf]
        %v1818 = vld [vmem:[%s3 + $0x1bc] sm:$0xf]
        %v1819 = vld [vmem:[%s3 + $0x1c0] sm:$0xf]
        %v1820 = vld [vmem:[%s3 + $0x1c4] sm:$0xf]
        %v1821 = vld [vmem:[%s3 + $0x1c8] sm:$0xf]
        %v1822 = vld [vmem:[%s3 + $0x1cc] sm:$0xf]
        %v1823 = vld [vmem:[%s3 + $0x1d0] sm:$0xf]
        %v1824 = vld [vmem:[%s3 + $0x1d4] sm:$0xf]
        %v1825 = vld [vmem:[%s3 + $0x1d8] sm:$0xf]
        %v1826 = vld [vmem:[%s3 + $0x1dc] sm:$0xf]
        %v1827 = vld [vmem:[%s3 + $0x1e0] sm:$0xf]
        %v1828 = vld [vmem:[%s3 + $0x1e4] sm:$0xf]
        %v1829 = vld [vmem:[%s3 + $0x1e8] sm:$0xf]
        %v1830 = vld [vmem:[%s3 + $0x1ec] sm:$0xf]
        %v1831 = vld [vmem:[%s3 + $0x1f0] sm:$0xf]
        %v1832 = vld [vmem:[%s3 + $0x1f4] sm:$0xf]
        %v1833 = vld [vmem:[%s3 + $0x1f8] sm:$0xf]
        %v1834 = vld [vmem:[%s3 + $0x1fc] sm:$0xf]
        %v1835 = vld [vmem:[%s3 + $0x200] sm:$0xf]
        %v1836 = vld [vmem:[%s3 + $0x204] sm:$0xf]
        %v1837 = vld [vmem:[%s3 + $0x208] sm:$0xf]
        %v1838 = vld [vmem:[%s3 + $0x20c] sm:$0xf]
        %v1839 = vld [vmem:[%s3 + $0x210] sm:$0xf]
        %v1840 = vld [vmem:[%s3 + $0x214] sm:$0xf]
        %v1841 = vld [vmem:[%s3 + $0x218] sm:$0xf]
        %v1842 = vld [vmem:[%s3 + $0x21c] sm:$0xf]
        %v1843 = vld [vmem:[%s3 + $0x220] sm:$0xf]
        %v1844 = vld [vmem:[%s3 + $0x224] sm:$0xf]
        %v1845 = vld [vmem:[%s3 + $0x228] sm:$0xf]
        %v1846 = vld [vmem:[%s3 + $0x22c] sm:$0xf]
        %v1847 = vld [vmem:[%s3 + $0x230] sm:$0xf]
        %v1848 = vld [vmem:[%s3 + $0x234] sm:$0xf]
        %v1849 = vld [vmem:[%s3 + $0x238] sm:$0xf]
        %v1850 = vld [vmem:[%s3 + $0x23c] sm:$0xf]
        %v1995 = vunpack.c.l.b16 %v1707
        %v1996 = vunpack.c.l.b16 %v1708
        %v1997 = vunpack.c.l.b16 %v1709
        %v1998 = vunpack.c.l.b16 %v1710
        %v1999 = vunpack.c.l.b16 %v1711
        %v2000 = vunpack.c.l.b16 %v1712
        %v2001 = vunpack.c.l.b16 %v1713
        %v2002 = vunpack.c.l.b16 %v1714
        %v2003 = vunpack.c.l.b16 %v1715
        %v2004 = vunpack.c.l.b16 %v1716
        %v2005 = vunpack.c.l.b16 %v1717
        %v2006 = vunpack.c.l.b16 %v1718
        %v2007 = vunpack.c.l.b16 %v1719
        %v2008 = vunpack.c.l.b16 %v1720
        %v2009 = vunpack.c.l.b16 %v1721
        %v2010 = vunpack.c.l.b16 %v1722
        %v2011 = vunpack.c.l.b16 %v1723
        %v2012 = vunpack.c.l.b16 %v1724
        %v2013 = vunpack.c.l.b16 %v1725
        %v2014 = vunpack.c.l.b16 %v1726
        %v2015 = vunpack.c.l.b16 %v1727
        %v2016 = vunpack.c.l.b16 %v1728
        %v2017 = vunpack.c.l.b16 %v1729
        %v2018 = vunpack.c.l.b16 %v1730
        %v2019 = vunpack.c.l.b16 %v1731
        %v2020 = vunpack.c.l.b16 %v1732
        %v2021 = vunpack.c.l.b16 %v1733
        %v2022 = vunpack.c.l.b16 %v1734
        %v2023 = vunpack.c.l.b16 %v1735
        %v2024 = vunpack.c.l.b16 %v1736
        %v2025 = vunpack.c.l.b16 %v1737
        %v2026 = vunpack.c.l.b16 %v1738
        %v2027 = vunpack.c.l.b16 %v1739
        %v2028 = vunpack.c.l.b16 %v1740
        %v2029 = vunpack.c.l.b16 %v1741
        %v2030 = vunpack.c.l.b16 %v1742
        %v2031 = vunpack.c.l.b16 %v1743
        %v2032 = vunpack.c.l.b16 %v1744
        %v2033 = vunpack.c.l.b16 %v1745
        %v2034 = vunpack.c.l.b16 %v1746
        %v2035 = vunpack.c.l.b16 %v1747
        %v2036 = vunpack.c.l.b16 %v1748
        %v2037 = vunpack.c.l.b16 %v1749
        %v2038 = vunpack.c.l.b16 %v1750
        %v2039 = vunpack.c.l.b16 %v1751
        %v2040 = vunpack.c.l.b16 %v1752
        %v2041 = vunpack.c.l.b16 %v1753
        %v2042 = vunpack.c.l.b16 %v1754
        %v2043 = vunpack.c.l.b16 %v1755
        %v2044 = vunpack.c.l.b16 %v1756
        %v2045 = vunpack.c.l.b16 %v1757
        %v2046 = vunpack.c.l.b16 %v1758
        %v2047 = vunpack.c.l.b16 %v1759
        %v2048 = vunpack.c.l.b16 %v1760
        %v2049 = vunpack.c.l.b16 %v1761
        %v2050 = vunpack.c.l.b16 %v1762
        %v2051 = vunpack.c.l.b16 %v1763
        %v2052 = vunpack.c.l.b16 %v1764
        %v2053 = vunpack.c.l.b16 %v1765
        %v2054 = vunpack.c.l.b16 %v1766
        %v2055 = vunpack.c.l.b16 %v1767
        %v2056 = vunpack.c.l.b16 %v1768
        %v2057 = vunpack.c.l.b16 %v1769
        %v2058 = vunpack.c.l.b16 %v1770
        %v2059 = vunpack.c.l.b16 %v1771
        %v2060 = vunpack.c.l.b16 %v1772
        %v2061 = vunpack.c.l.b16 %v1773
        %v2062 = vunpack.c.l.b16 %v1774
        %v2063 = vunpack.c.l.b16 %v1775
        %v2064 = vunpack.c.l.b16 %v1776
        %v2065 = vunpack.c.l.b16 %v1777
        %v2066 = vunpack.c.l.b16 %v1778
        %v2067 = vunpack.c.l.b16 %v1779
        %v2068 = vunpack.c.l.b16 %v1780
        %v2069 = vunpack.c.l.b16 %v1781
        %v2070 = vunpack.c.l.b16 %v1782
        %v2071 = vunpack.c.l.b16 %v1783
        %v2072 = vunpack.c.l.b16 %v1784
        %v2073 = vunpack.c.l.b16 %v1785
        %v2074 = vunpack.c.l.b16 %v1786
        %v2075 = vunpack.c.l.b16 %v1787
        %v2076 = vunpack.c.l.b16 %v1788
        %v2077 = vunpack.c.l.b16 %v1789
        %v2078 = vunpack.c.l.b16 %v1790
        %v2079 = vunpack.c.l.b16 %v1791
        %v2080 = vunpack.c.l.b16 %v1792
        %v2081 = vunpack.c.l.b16 %v1793
        %v2082 = vunpack.c.l.b16 %v1794
        %v2083 = vunpack.c.l.b16 %v1795
        %v2084 = vunpack.c.l.b16 %v1796
        %v2085 = vunpack.c.l.b16 %v1797
        %v2086 = vunpack.c.l.b16 %v1798
        %v2087 = vunpack.c.l.b16 %v1799
        %v2088 = vunpack.c.l.b16 %v1800
        %v2089 = vunpack.c.l.b16 %v1801
        %v2090 = vunpack.c.l.b16 %v1802
        %v2091 = vunpack.c.l.b16 %v1803
        %v2092 = vunpack.c.l.b16 %v1804
        %v2093 = vunpack.c.l.b16 %v1805
        %v2094 = vunpack.c.l.b16 %v1806
        %v2095 = vunpack.c.l.b16 %v1807
        %v2096 = vunpack.c.l.b16 %v1808
        %v2097 = vunpack.c.l.b16 %v1809
        %v2098 = vunpack.c.l.b16 %v1810
        %v2099 = vunpack.c.l.b16 %v1811
        %v2100 = vunpack.c.l.b16 %v1812
        %v2101 = vunpack.c.l.b16 %v1813
        %v2102 = vunpack.c.l.b16 %v1814
        %v2103 = vunpack.c.l.b16 %v1815
        %v2104 = vunpack.c.l.b16 %v1816
        %v2105 = vunpack.c.l.b16 %v1817
        %v2106 = vunpack.c.l.b16 %v1818
        %v2107 = vunpack.c.l.b16 %v1819
        %v2108 = vunpack.c.l.b16 %v1820
        %v2109 = vunpack.c.l.b16 %v1821
        %v2110 = vunpack.c.l.b16 %v1822
        %v2111 = vunpack.c.l.b16 %v1823
        %v2112 = vunpack.c.l.b16 %v1824
        %v2113 = vunpack.c.l.b16 %v1825
        %v2114 = vunpack.c.l.b16 %v1826
        %v2115 = vunpack.c.l.b16 %v1827
        %v2116 = vunpack.c.l.b16 %v1828
        %v2117 = vunpack.c.l.b16 %v1829
        %v2118 = vunpack.c.l.b16 %v1830
        %v2119 = vunpack.c.l.b16 %v1831
        %v2120 = vunpack.c.l.b16 %v1832
        %v2121 = vunpack.c.l.b16 %v1833
        %v2122 = vunpack.c.l.b16 %v1834
        %v2123 = vunpack.c.l.b16 %v1835
        %v2124 = vunpack.c.l.b16 %v1836
        %v2125 = vunpack.c.l.b16 %v1837
        %v2126 = vunpack.c.l.b16 %v1838
        %v2127 = vunpack.c.l.b16 %v1839
        %v2128 = vunpack.c.l.b16 %v1840
        %v2129 = vunpack.c.l.b16 %v1841
        %v2130 = vunpack.c.l.b16 %v1842
        %v2131 = vunpack.c.l.b16 %v1843
        %v2132 = vunpack.c.l.b16 %v1844
        %v2133 = vunpack.c.l.b16 %v1845
        %v2134 = vunpack.c.l.b16 %v1846
        %v2135 = vunpack.c.l.b16 %v1847
        %v2136 = vunpack.c.l.b16 %v1848
        %v2137 = vunpack.c.l.b16 %v1849
        %v2138 = vunpack.c.l.b16 %v1850
        %v2139 = vpack.c.b16 %v1996, %v1995
        %v2140 = vpack.c.b16 %v1998, %v1997
        %v2141 = vpack.c.b16 %v2000, %v1999
        %v2142 = vpack.c.b16 %v2002, %v2001
        %v2143 = vpack.c.b16 %v2004, %v2003
        %v2144 = vpack.c.b16 %v2006, %v2005
        %v2145 = vpack.c.b16 %v2008, %v2007
        %v2146 = vpack.c.b16 %v2010, %v2009
        %v2147 = vpack.c.b16 %v2012, %v2011
        %v2148 = vpack.c.b16 %v2014, %v2013
        %v2149 = vpack.c.b16 %v2016, %v2015
        %v2150 = vpack.c.b16 %v2018, %v2017
        %v2151 = vpack.c.b16 %v2020, %v2019
        %v2152 = vpack.c.b16 %v2022, %v2021
        %v2153 = vpack.c.b16 %v2024, %v2023
        %v2154 = vpack.c.b16 %v2026, %v2025
        %v2155 = vpack.c.b16 %v2028, %v2027
        %v2156 = vpack.c.b16 %v2030, %v2029
        %v2157 = vpack.c.b16 %v2032, %v2031
        %v2158 = vpack.c.b16 %v2034, %v2033
        %v2159 = vpack.c.b16 %v2036, %v2035
        %v2160 = vpack.c.b16 %v2038, %v2037
        %v2161 = vpack.c.b16 %v2040, %v2039
        %v2162 = vpack.c.b16 %v2042, %v2041
        %v2163 = vpack.c.b16 %v2044, %v2043
        %v2164 = vpack.c.b16 %v2046, %v2045
        %v2165 = vpack.c.b16 %v2048, %v2047
        %v2166 = vpack.c.b16 %v2050, %v2049
        %v2167 = vpack.c.b16 %v2052, %v2051
        %v2168 = vpack.c.b16 %v2054, %v2053
        %v2169 = vpack.c.b16 %v2056, %v2055
        %v2170 = vpack.c.b16 %v2058, %v2057
        %v2171 = vpack.c.b16 %v2060, %v2059
        %v2172 = vpack.c.b16 %v2062, %v2061
        %v2173 = vpack.c.b16 %v2064, %v2063
        %v2174 = vpack.c.b16 %v2066, %v2065
        %v2175 = vpack.c.b16 %v2068, %v2067
        %v2176 = vpack.c.b16 %v2070, %v2069
        %v2177 = vpack.c.b16 %v2072, %v2071
        %v2178 = vpack.c.b16 %v2074, %v2073
        %v2179 = vpack.c.b16 %v2076, %v2075
        %v2180 = vpack.c.b16 %v2078, %v2077
        %v2181 = vpack.c.b16 %v2080, %v2079
        %v2182 = vpack.c.b16 %v2082, %v2081
        %v2183 = vpack.c.b16 %v2084, %v2083
        %v2184 = vpack.c.b16 %v2086, %v2085
        %v2185 = vpack.c.b16 %v2088, %v2087
        %v2186 = vpack.c.b16 %v2090, %v2089
        %v2187 = vpack.c.b16 %v2092, %v2091
        %v2188 = vpack.c.b16 %v2094, %v2093
        %v2189 = vpack.c.b16 %v2096, %v2095
        %v2190 = vpack.c.b16 %v2098, %v2097
        %v2191 = vpack.c.b16 %v2100, %v2099
        %v2192 = vpack.c.b16 %v2102, %v2101
        %v2193 = vpack.c.b16 %v2104, %v2103
        %v2194 = vpack.c.b16 %v2106, %v2105
        %v2195 = vpack.c.b16 %v2108, %v2107
        %v2196 = vpack.c.b16 %v2110, %v2109
        %v2197 = vpack.c.b16 %v2112, %v2111
        %v2198 = vpack.c.b16 %v2114, %v2113
        %v2199 = vpack.c.b16 %v2116, %v2115
        %v2200 = vpack.c.b16 %v2118, %v2117
        %v2201 = vpack.c.b16 %v2120, %v2119
        %v2202 = vpack.c.b16 %v2122, %v2121
        %v2203 = vpack.c.b16 %v2124, %v2123
        %v2204 = vpack.c.b16 %v2126, %v2125
        %v2205 = vpack.c.b16 %v2128, %v2127
        %v2206 = vpack.c.b16 %v2130, %v2129
        %v2207 = vpack.c.b16 %v2132, %v2131
        %v2208 = vpack.c.b16 %v2134, %v2133
        %v2209 = vpack.c.b16 %v2136, %v2135
        %v2210 = vpack.c.b16 %v2138, %v2137
        %2283 = vmatprep.subr.bf16.mxu0 0
        %2284 = vmatpush1.bf16.msra.mxu0 %v2139
        %2285 = vmatprep.subr.bf16.mxu0 0
        %2286 = vmatpush1.bf16.msra.mxu0 %v2140
        %2287 = vmatprep.subr.bf16.mxu0 0
        %2288 = vmatpush1.bf16.msra.mxu0 %v2141
        %2289 = vmatprep.subr.bf16.mxu0 0
        %2290 = vmatpush1.bf16.msra.mxu0 %v2142
        %2291 = vmatprep.subr.bf16.mxu0 0
        %2292 = vmatpush1.bf16.msra.mxu0 %v2143
        %2293 = vmatprep.subr.bf16.mxu0 0
        %2294 = vmatpush1.bf16.msra.mxu0 %v2144
        %2295 = vmatprep.subr.bf16.mxu0 0
        %2296 = vmatpush1.bf16.msra.mxu0 %v2145
        %2297 = vmatprep.subr.bf16.mxu0 0
        %2298 = vmatpush1.bf16.msra.mxu0 %v2146
        %2299 = vmatprep.subr.bf16.mxu0 0
        %2300 = vmatpush1.bf16.msra.mxu0 %v2147
        %2301 = vmatprep.subr.bf16.mxu0 0
        %2302 = vmatpush1.bf16.msra.mxu0 %v2148
        %2303 = vmatprep.subr.bf16.mxu0 0
        %2304 = vmatpush1.bf16.msra.mxu0 %v2149
        %2305 = vmatprep.subr.bf16.mxu0 0
        %2306 = vmatpush1.bf16.msra.mxu0 %v2150
        %2307 = vmatprep.subr.bf16.mxu0 0
        %2308 = vmatpush1.bf16.msra.mxu0 %v2151
        %2309 = vmatprep.subr.bf16.mxu0 0
        %2310 = vmatpush1.bf16.msra.mxu0 %v2152
        %2311 = vmatprep.subr.bf16.mxu0 0
        %2312 = vmatpush1.bf16.msra.mxu0 %v2153
        %2313 = vmatprep.subr.bf16.mxu0 0
        %2314 = vmatpush1.bf16.msra.mxu0 %v2154
        %2315 = vmatprep.mubr.bf16.mxu0 %v1139
        %2316 = vmatmul.mubr.bf16.gmra.mrb[0].mxu0 %v1139
        %v2317 = vpop.f32.mrb[0].mxu0
        %v2318 = vadd.f32 0.0, %v2317
        %v2319 = vpop.f32.mrb[0].mxu0
        %v2320 = vpop.f32.mrb[0].mxu0
        %v2321 = vadd.f32 0.0, %v2320
        %v2322 = vpop.f32.mrb[0].mxu0
        %2323 = vmatprep.mubr.bf16.mxu0 %v1155
        %2324 = vmatmul.mubr.bf16.gmra.mrb[0].mxu0 %v1140
        %v2325 = vpop.f32.mrb[0].mxu0
        %v2326 = vadd.f32 0.0, %v2325
        %v2327 = vpop.f32.mrb[0].mxu0
        %v2328 = vpop.f32.mrb[0].mxu0
        %v2329 = vadd.f32 0.0, %v2328
        %v2330 = vpop.f32.mrb[0].mxu0
        %2331 = vmatprep.mubr.bf16.mxu0 %v1156
        %2332 = vmatmul.mubr.bf16.gmra.mrb[0].mxu0 %v1141
        %v2333 = vpop.f32.mrb[0].mxu0
        %v2334 = vadd.f32 0.0, %v2333
        %v2335 = vpop.f32.mrb[0].mxu0
        %v2336 = vpop.f32.mrb[0].mxu0
        %v2337 = vadd.f32 0.0, %v2336
        %v2338 = vpop.f32.mrb[0].mxu0
        %2339 = vmatprep.mubr.bf16.mxu0 %v1157
        %2340 = vmatmul.mubr.bf16.gmra.mrb[0].mxu0 %v1142
        %v2341 = vpop.f32.mrb[0].mxu0
        %v2342 = vadd.f32 0.0, %v2341
        %v2343 = vpop.f32.mrb[0].mxu0
        %v2344 = vpop.f32.mrb[0].mxu0
        %v2345 = vadd.f32 0.0, %v2344
        %v2346 = vpop.f32.mrb[0].mxu0
        %2347 = vmatprep.mubr.bf16.mxu0 %v1158
        %2348 = vmatmul.mubr.bf16.gmra.mrb[0].mxu0 %v1143
        %v2349 = vpop.f32.mrb[0].mxu0
        %v2350 = vadd.f32 0.0, %v2349
        %v2351 = vpop.f32.mrb[0].mxu0
        %v2352 = vpop.f32.mrb[0].mxu0
        %v2353 = vadd.f32 0.0, %v2352
        %v2354 = vpop.f32.mrb[0].mxu0
        %2355 = vmatprep.mubr.bf16.mxu0 %v1159
        %2356 = vmatmul.mubr.bf16.gmra.mrb[0].mxu0 %v1144
        %v2357 = vpop.f32.mrb[0].mxu0
        %v2358 = vadd.f32 0.0, %v2357
        %v2359 = vpop.f32.mrb[0].mxu0
        %v2360 = vpop.f32.mrb[0].mxu0
        %v2361 = vadd.f32 0.0, %v2360
        %v2362 = vpop.f32.mrb[0].mxu0
        %2363 = vmatprep.mubr.bf16.mxu0 %v1160
        %2364 = vmatmul.mubr.bf16.gmra.mrb[0].mxu0 %v1145
        %v2365 = vpop.f32.mrb[0].mxu0
        %v2366 = vadd.f32 0.0, %v2365
        %v2367 = vpop.f32.mrb[0].mxu0
        %v2368 = vpop.f32.mrb[0].mxu0
        %v2369 = vadd.f32 0.0, %v2368
        %v2370 = vpop.f32.mrb[0].mxu0
        %2371 = vmatprep.mubr.bf16.mxu0 %v1161
        %2372 = vmatmul.mubr.bf16.gmra.mrb[0].mxu0 %v1146
        %v2373 = vpop.f32.mrb[0].mxu0
        %v2374 = vadd.f32 0.0, %v2373
        %v2375 = vpop.f32.mrb[0].mxu0
        %v2376 = vpop.f32.mrb[0].mxu0
        %v2377 = vadd.f32 0.0, %v2376
        %v2378 = vpop.f32.mrb[0].mxu0
        %2379 = vmatprep.mubr.bf16.mxu0 %v1162
        %2380 = vmatmul.mubr.bf16.gmra.mrb[0].mxu0 %v1147
        %v2381 = vpop.f32.mrb[0].mxu0
        %v2382 = vadd.f32 0.0, %v2381
        %v2383 = vpop.f32.mrb[0].mxu0
        %v2384 = vpop.f32.mrb[0].mxu0
        %v2385 = vadd.f32 0.0, %v2384
        %v2386 = vpop.f32.mrb[0].mxu0
        %2387 = vmatprep.mubr.bf16.mxu0 %v1163
        %2388 = vmatmul.mubr.bf16.gmra.mrb[0].mxu0 %v1148
        %v2389 = vpop.f32.mrb[0].mxu0
        %v2390 = vadd.f32 0.0, %v2389
        %v2391 = vpop.f32.mrb[0].mxu0
        %v2392 = vpop.f32.mrb[0].mxu0
        %v2393 = vadd.f32 0.0, %v2392
        %v2394 = vpop.f32.mrb[0].mxu0
        %2395 = vmatprep.mubr.bf16.mxu0 %v1164
        %2396 = vmatmul.mubr.bf16.gmra.mrb[0].mxu0 %v1149
        %v2397 = vpop.f32.mrb[0].mxu0
        %v2398 = vadd.f32 0.0, %v2397
        %v2399 = vpop.f32.mrb[0].mxu0
        %v2400 = vpop.f32.mrb[0].mxu0
        %v2401 = vadd.f32 0.0, %v2400
        %v2402 = vpop.f32.mrb[0].mxu0
        %2403 = vmatprep.mubr.bf16.mxu0 %v1165
        %2404 = vmatmul.mubr.bf16.gmra.mrb[0].mxu0 %v1150
        %v2405 = vpop.f32.mrb[0].mxu0
        %v2406 = vadd.f32 0.0, %v2405
        %v2407 = vpop.f32.mrb[0].mxu0
        %v2408 = vpop.f32.mrb[0].mxu0
        %v2409 = vadd.f32 0.0, %v2408
        %v2410 = vpop.f32.mrb[0].mxu0
        %2411 = vmatprep.mubr.bf16.mxu0 %v1166
        %2412 = vmatmul.mubr.bf16.gmra.mrb[0].mxu0 %v1151
        %v2413 = vpop.f32.mrb[0].mxu0
        %v2414 = vadd.f32 0.0, %v2413
        %v2415 = vpop.f32.mrb[0].mxu0
        %v2416 = vpop.f32.mrb[0].mxu0
        %v2417 = vadd.f32 0.0, %v2416
        %v2418 = vpop.f32.mrb[0].mxu0
        %2419 = vmatprep.mubr.bf16.mxu0 %v1167
        %2420 = vmatmul.mubr.bf16.gmra.mrb[0].mxu0 %v1152
        %v2421 = vpop.f32.mrb[0].mxu0
        %v2422 = vadd.f32 0.0, %v2421
        %v2423 = vpop.f32.mrb[0].mxu0
        %v2424 = vpop.f32.mrb[0].mxu0
        %v2425 = vadd.f32 0.0, %v2424
        %v2426 = vpop.f32.mrb[0].mxu0
        %2427 = vmatprep.mubr.bf16.mxu0 %v1168
        %2428 = vmatmul.mubr.bf16.gmra.mrb[0].mxu0 %v1153
        %v2429 = vpop.f32.mrb[0].mxu0
        %v2430 = vadd.f32 0.0, %v2429
        %v2431 = vpop.f32.mrb[0].mxu0
        %v2432 = vpop.f32.mrb[0].mxu0
        %v2433 = vadd.f32 0.0, %v2432
        %v2434 = vpop.f32.mrb[0].mxu0
        %2435 = vmatprep.mubr.bf16.mxu0 %v1169
        %2436 = vmatmul.mubr.bf16.gmra.mrb[0].mxu0 %v1154
        %v2437 = vpop.f32.mrb[0].mxu0
        %v2438 = vadd.f32 0.0, %v2437
        %v2439 = vpop.f32.mrb[0].mxu0
        %v2440 = vpop.f32.mrb[0].mxu0
        %v2441 = vadd.f32 0.0, %v2440
        %v2442 = vpop.f32.mrb[0].mxu0
        %2443 = vdwg.mxu0
        %2444 = vmatprep.subr.bf16.mxu0 0
        %2445 = vmatpush1.bf16.msra.mxu0 %v2155
        %2446 = vmatprep.subr.bf16.mxu0 0
        %2447 = vmatpush1.bf16.msra.mxu0 %v2156
        %2448 = vmatprep.subr.bf16.mxu0 0
        %2449 = vmatpush1.bf16.msra.mxu0 %v2157
        %2450 = vmatprep.subr.bf16.mxu0 0
        %2451 = vmatpush1.bf16.msra.mxu0 %v2158
        %2452 = vmatprep.subr.bf16.mxu0 0
        %2453 = vmatpush1.bf16.msra.mxu0 %v2159
        %2454 = vmatprep.subr.bf16.mxu0 0
        %2455 = vmatpush1.bf16.msra.mxu0 %v2160
        %2456 = vmatprep.subr.bf16.mxu0 0
        %2457 = vmatpush1.bf16.msra.mxu0 %v2161
        %2458 = vmatprep.subr.bf16.mxu0 0
        %2459 = vmatpush1.bf16.msra.mxu0 %v2162
        %2460 = vmatprep.subr.bf16.mxu0 0
        %2461 = vmatpush1.bf16.msra.mxu0 %v2163
        %2462 = vmatprep.subr.bf16.mxu0 0
        %2463 = vmatpush1.bf16.msra.mxu0 %v2164
        %2464 = vmatprep.subr.bf16.mxu0 0
        %2465 = vmatpush1.bf16.msra.mxu0 %v2165
        %2466 = vmatprep.subr.bf16.mxu0 0
        %2467 = vmatpush1.bf16.msra.mxu0 %v2166
        %2468 = vmatprep.subr.bf16.mxu0 0
        %2469 = vmatpush1.bf16.msra.mxu0 %v2167
        %2470 = vmatprep.subr.bf16.mxu0 0
        %2471 = vmatpush1.bf16.msra.mxu0 %v2168
        %2472 = vmatprep.subr.bf16.mxu0 0
        %2473 = vmatpush1.bf16.msra.mxu0 %v2169
        %2474 = vmatprep.subr.bf16.mxu0 0
        %2475 = vmatpush1.bf16.msra.mxu0 %v2170
        %2476 = vmatprep.mubr.bf16.mxu0 %v1543
        %2477 = vmatmul.mubr.bf16.gmra.mrb[0].mxu0 %v1488
        %v2478 = vpop.f32.mrb[0].mxu0
        %v2479 = vadd.f32 %v2318, %v2478
        %v2480 = vpop.f32.mrb[0].mxu0
        %v2481 = vpop.f32.mrb[0].mxu0
        %v2482 = vadd.f32 %v2321, %v2481
        %v2483 = vpop.f32.mrb[0].mxu0
        %2484 = vmatprep.mubr.bf16.mxu0 %v1544
        %2485 = vmatmul.mubr.bf16.gmra.mrb[0].mxu0 %v1489
        %v2486 = vpop.f32.mrb[0].mxu0
        %v2487 = vadd.f32 %v2326, %v2486
        %v2488 = vpop.f32.mrb[0].mxu0
        %v2489 = vpop.f32.mrb[0].mxu0
        %v2490 = vadd.f32 %v2329, %v2489
        %v2491 = vpop.f32.mrb[0].mxu0
        %2492 = vmatprep.mubr.bf16.mxu0 %v1545
        %2493 = vmatmul.mubr.bf16.gmra.mrb[0].mxu0 %v1490
        %v2494 = vpop.f32.mrb[0].mxu0
        %v2495 = vadd.f32 %v2334, %v2494
        %v2496 = vpop.f32.mrb[0].mxu0
        %v2497 = vpop.f32.mrb[0].mxu0
        %v2498 = vadd.f32 %v2337, %v2497
        %v2499 = vpop.f32.mrb[0].mxu0
        %2500 = vmatprep.mubr.bf16.mxu0 %v1546
        %2501 = vmatmul.mubr.bf16.gmra.mrb[0].mxu0 %v1491
        %v2502 = vpop.f32.mrb[0].mxu0
        %v2503 = vadd.f32 %v2342, %v2502
        %v2504 = vpop.f32.mrb[0].mxu0
        %v2505 = vpop.f32.mrb[0].mxu0
        %v2506 = vadd.f32 %v2345, %v2505
        %v2507 = vpop.f32.mrb[0].mxu0
        %2508 = vmatprep.mubr.bf16.mxu0 %v1547
        %2509 = vmatmul.mubr.bf16.gmra.mrb[0].mxu0 %v1492
        %v2510 = vpop.f32.mrb[0].mxu0
        %v2511 = vadd.f32 %v2350, %v2510
        %v2512 = vpop.f32.mrb[0].mxu0
        %v2513 = vpop.f32.mrb[0].mxu0
        %v2514 = vadd.f32 %v2353, %v2513
        %v2515 = vpop.f32.mrb[0].mxu0
        %2516 = vmatprep.mubr.bf16.mxu0 %v1548
        %2517 = vmatmul.mubr.bf16.gmra.mrb[0].mxu0 %v1493
        %v2518 = vpop.f32.mrb[0].mxu0
        %v2519 = vadd.f32 %v2358, %v2518
        %v2520 = vpop.f32.mrb[0].mxu0
        %v2521 = vpop.f32.mrb[0].mxu0
        %v2522 = vadd.f32 %v2361, %v2521
        %v2523 = vpop.f32.mrb[0].mxu0
        %2524 = vmatprep.mubr.bf16.mxu0 %v1549
        %2525 = vmatmul.mubr.bf16.gmra.mrb[0].mxu0 %v1494
        %v2526 = vpop.f32.mrb[0].mxu0
        %v2527 = vadd.f32 %v2366, %v2526
        %v2528 = vpop.f32.mrb[0].mxu0
        %v2529 = vpop.f32.mrb[0].mxu0
        %v2530 = vadd.f32 %v2369, %v2529
        %v2531 = vpop.f32.mrb[0].mxu0
        %2532 = vmatprep.mubr.bf16.mxu0 %v1550
        %2533 = vmatmul.mubr.bf16.gmra.mrb[0].mxu0 %v1495
        %v2534 = vpop.f32.mrb[0].mxu0
        %v2535 = vadd.f32 %v2374, %v2534
        %v2536 = vpop.f32.mrb[0].mxu0
        %v2537 = vpop.f32.mrb[0].mxu0
        %v2538 = vadd.f32 %v2377, %v2537
        %v2539 = vpop.f32.mrb[0].mxu0
        %2540 = vmatprep.mubr.bf16.mxu0 %v1551
        %2541 = vmatmul.mubr.bf16.gmra.mrb[0].mxu0 %v1496
        %v2542 = vpop.f32.mrb[0].mxu0
        %v2543 = vadd.f32 %v2382, %v2542
        %v2544 = vpop.f32.mrb[0].mxu0
        %v2545 = vpop.f32.mrb[0].mxu0
        %v2546 = vadd.f32 %v2385, %v2545
        %v2547 = vpop.f32.mrb[0].mxu0
        %2548 = vmatprep.mubr.bf16.mxu0 %v1552
        %2549 = vmatmul.mubr.bf16.gmra.mrb[0].mxu0 %v1497
        %v2550 = vpop.f32.mrb[0].mxu0
        %v2551 = vadd.f32 %v2390, %v2550
        %v2552 = vpop.f32.mrb[0].mxu0
        %v2553 = vpop.f32.mrb[0].mxu0
        %v2554 = vadd.f32 %v2393, %v2553
        %v2555 = vpop.f32.mrb[0].mxu0
        %2556 = vmatprep.mubr.bf16.mxu0 %v1553
        %2557 = vmatmul.mubr.bf16.gmra.mrb[0].mxu0 %v1498
        %v2558 = vpop.f32.mrb[0].mxu0
        %v2559 = vadd.f32 %v2398, %v2558
        %v2560 = vpop.f32.mrb[0].mxu0
        %v2561 = vpop.f32.mrb[0].mxu0
        %v2562 = vadd.f32 %v2401, %v2561
        %v2563 = vpop.f32.mrb[0].mxu0
        %2564 = vmatprep.mubr.bf16.mxu0 %v1554
        %2565 = vmatmul.mubr.bf16.gmra.mrb[0].mxu0 %v1499
        %v2566 = vpop.f32.mrb[0].mxu0
        %v2567 = vadd.f32 %v2406, %v2566
        %v2568 = vpop.f32.mrb[0].mxu0
        %v2569 = vpop.f32.mrb[0].mxu0
        %v2570 = vadd.f32 %v2409, %v2569
        %v2571 = vpop.f32.mrb[0].mxu0
        %2572 = vmatprep.mubr.bf16.mxu0 %v1555
        %2573 = vmatmul.mubr.bf16.gmra.mrb[0].mxu0 %v1500
        %v2574 = vpop.f32.mrb[0].mxu0
        %v2575 = vadd.f32 %v2414, %v2574
        %v2576 = vpop.f32.mrb[0].mxu0
        %v2577 = vpop.f32.mrb[0].mxu0
        %v2578 = vadd.f32 %v2417, %v2577
        %v2579 = vpop.f32.mrb[0].mxu0
        %2580 = vmatprep.mubr.bf16.mxu0 %v1556
        %2581 = vmatmul.mubr.bf16.gmra.mrb[0].mxu0 %v1501
        %v2582 = vpop.f32.mrb[0].mxu0
        %v2583 = vadd.f32 %v2422, %v2582
        %v2584 = vpop.f32.mrb[0].mxu0
        %v2585 = vpop.f32.mrb[0].mxu0
        %v2586 = vadd.f32 %v2425, %v2585
        %v2587 = vpop.f32.mrb[0].mxu0
        %2588 = vmatprep.mubr.bf16.mxu0 %v1557
        %2589 = vmatmul.mubr.bf16.gmra.mrb[0].mxu0 %v1502
        %v2590 = vpop.f32.mrb[0].mxu0
        %v2591 = vadd.f32 %v2430, %v2590
        %v2592 = vpop.f32.mrb[0].mxu0
        %v2593 = vpop.f32.mrb[0].mxu0
        %v2594 = vadd.f32 %v2433, %v2593
        %v2595 = vpop.f32.mrb[0].mxu0
        %2596 = vmatprep.mubr.bf16.mxu0 %v1558
        %2597 = vmatmul.mubr.bf16.gmra.mrb[0].mxu0 %v1503
        %v2598 = vpop.f32.mrb[0].mxu0
        %v2599 = vadd.f32 %v2438, %v2598
        %v2600 = vpop.f32.mrb[0].mxu0
        %v2601 = vpop.f32.mrb[0].mxu0
        %v2602 = vadd.f32 %v2441, %v2601
        %v2603 = vpop.f32.mrb[0].mxu0
        %2604 = vdwg.mxu0
        %2605 = vmatprep.subr.bf16.mxu0 0
        %2606 = vmatpush1.bf16.msra.mxu0 %v2171
        %2607 = vmatprep.subr.bf16.mxu0 0
        %2608 = vmatpush1.bf16.msra.mxu0 %v2172
        %2609 = vmatprep.subr.bf16.mxu0 0
        %2610 = vmatpush1.bf16.msra.mxu0 %v2173
        %2611 = vmatprep.subr.bf16.mxu0 0
        %2612 = vmatpush1.bf16.msra.mxu0 %v2174
        %2613 = vmatprep.subr.bf16.mxu0 0
        %2614 = vmatpush1.bf16.msra.mxu0 %v2175
        %2615 = vmatprep.subr.bf16.mxu0 0
        %2616 = vmatpush1.bf16.msra.mxu0 %v2176
        %2617 = vmatprep.subr.bf16.mxu0 0
        %2618 = vmatpush1.bf16.msra.mxu0 %v2177
        %2619 = vmatprep.subr.bf16.mxu0 0
        %2620 = vmatpush1.bf16.msra.mxu0 %v2178
        %2621 = vmatprep.subr.bf16.mxu0 0
        %2622 = vmatpush1.bf16.msra.mxu0 %v2179
        %2623 = vmatprep.subr.bf16.mxu0 0
        %2624 = vmatpush1.bf16.msra.mxu0 %v2180
        %2625 = vmatprep.subr.bf16.mxu0 0
        %2626 = vmatpush1.bf16.msra.mxu0 %v2181
        %2627 = vmatprep.subr.bf16.mxu0 0
        %2628 = vmatpush1.bf16.msra.mxu0 %v2182
        %2629 = vmatprep.subr.bf16.mxu0 0
        %2630 = vmatpush1.bf16.msra.mxu0 %v2183
        %2631 = vmatprep.subr.bf16.mxu0 0
        %2632 = vmatpush1.bf16.msra.mxu0 %v2184
        %2633 = vmatprep.subr.bf16.mxu0 0
        %2634 = vmatpush1.bf16.msra.mxu0 %v2185
        %2635 = vmatprep.subr.bf16.mxu0 0
        %2636 = vmatpush1.bf16.msra.mxu0 %v2186
        %2637 = vmatprep.mubr.bf16.mxu0 %v1597
        %2638 = vmatmul.mubr.bf16.gmra.mrb[0].mxu0 %v1155
        %v2639 = vpop.f32.mrb[0].mxu0
        %v2640 = vadd.f32 %v2479, %v2639
        %v2641 = vpop.f32.mrb[0].mxu0
        %v2642 = vpop.f32.mrb[0].mxu0
        %v2643 = vadd.f32 %v2482, %v2642
        %v2644 = vpop.f32.mrb[0].mxu0
        %2645 = vmatprep.mubr.bf16.mxu0 %v1598
        %2646 = vmatmul.mubr.bf16.gmra.mrb[0].mxu0 %v1156
        %v2647 = vpop.f32.mrb[0].mxu0
        %v2648 = vadd.f32 %v2487, %v2647
        %v2649 = vpop.f32.mrb[0].mxu0
        %v2650 = vpop.f32.mrb[0].mxu0
        %v2651 = vadd.f32 %v2490, %v2650
        %v2652 = vpop.f32.mrb[0].mxu0
        %2653 = vmatprep.mubr.bf16.mxu0 %v1599
        %2654 = vmatmul.mubr.bf16.gmra.mrb[0].mxu0 %v1157
        %v2655 = vpop.f32.mrb[0].mxu0
        %v2656 = vadd.f32 %v2495, %v2655
        %v2657 = vpop.f32.mrb[0].mxu0
        %v2658 = vpop.f32.mrb[0].mxu0
        %v2659 = vadd.f32 %v2498, %v2658
        %v2660 = vpop.f32.mrb[0].mxu0
        %2661 = vmatprep.mubr.bf16.mxu0 %v1600
        %2662 = vmatmul.mubr.bf16.gmra.mrb[0].mxu0 %v1158
        %v2663 = vpop.f32.mrb[0].mxu0
        %v2664 = vadd.f32 %v2503, %v2663
        %v2665 = vpop.f32.mrb[0].mxu0
        %v2666 = vpop.f32.mrb[0].mxu0
        %v2667 = vadd.f32 %v2506, %v2666
        %v2668 = vpop.f32.mrb[0].mxu0
        %2669 = vmatprep.mubr.bf16.mxu0 %v1601
        %2670 = vmatmul.mubr.bf16.gmra.mrb[0].mxu0 %v1159
        %v2671 = vpop.f32.mrb[0].mxu0
        %v2672 = vadd.f32 %v2511, %v2671
        %v2673 = vpop.f32.mrb[0].mxu0
        %v2674 = vpop.f32.mrb[0].mxu0
        %v2675 = vadd.f32 %v2514, %v2674
        %v2676 = vpop.f32.mrb[0].mxu0
        %2677 = vmatprep.mubr.bf16.mxu0 %v1602
        %2678 = vmatmul.mubr.bf16.gmra.mrb[0].mxu0 %v1160
        %v2679 = vpop.f32.mrb[0].mxu0
        %v2680 = vadd.f32 %v2519, %v2679
        %v2681 = vpop.f32.mrb[0].mxu0
        %v2682 = vpop.f32.mrb[0].mxu0
        %v2683 = vadd.f32 %v2522, %v2682
        %v2684 = vpop.f32.mrb[0].mxu0
        %2685 = vmatprep.mubr.bf16.mxu0 %v1603
        %2686 = vmatmul.mubr.bf16.gmra.mrb[0].mxu0 %v1161
        %v2687 = vpop.f32.mrb[0].mxu0
        %v2688 = vadd.f32 %v2527, %v2687
        %v2689 = vpop.f32.mrb[0].mxu0
        %v2690 = vpop.f32.mrb[0].mxu0
        %v2691 = vadd.f32 %v2530, %v2690
        %v2692 = vpop.f32.mrb[0].mxu0
        %2693 = vmatprep.mubr.bf16.mxu0 %v1604
        %2694 = vmatmul.mubr.bf16.gmra.mrb[0].mxu0 %v1162
        %v2695 = vpop.f32.mrb[0].mxu0
        %v2696 = vadd.f32 %v2535, %v2695
        %v2697 = vpop.f32.mrb[0].mxu0
        %v2698 = vpop.f32.mrb[0].mxu0
        %v2699 = vadd.f32 %v2538, %v2698
        %v2700 = vpop.f32.mrb[0].mxu0
        %2701 = vmatprep.mubr.bf16.mxu0 %v1605
        %2702 = vmatmul.mubr.bf16.gmra.mrb[0].mxu0 %v1163
        %v2703 = vpop.f32.mrb[0].mxu0
        %v2704 = vadd.f32 %v2543, %v2703
        %v2705 = vpop.f32.mrb[0].mxu0
        %v2706 = vpop.f32.mrb[0].mxu0
        %v2707 = vadd.f32 %v2546, %v2706
        %v2708 = vpop.f32.mrb[0].mxu0
        %2709 = vmatprep.mubr.bf16.mxu0 %v1606
        %2710 = vmatmul.mubr.bf16.gmra.mrb[0].mxu0 %v1164
        %v2711 = vpop.f32.mrb[0].mxu0
        %v2712 = vadd.f32 %v2551, %v2711
        %v2713 = vpop.f32.mrb[0].mxu0
        %v2714 = vpop.f32.mrb[0].mxu0
        %v2715 = vadd.f32 %v2554, %v2714
        %v2716 = vpop.f32.mrb[0].mxu0
        %2717 = vmatprep.mubr.bf16.mxu0 %v1607
        %2718 = vmatmul.mubr.bf16.gmra.mrb[0].mxu0 %v1165
        %v2719 = vpop.f32.mrb[0].mxu0
        %v2720 = vadd.f32 %v2559, %v2719
        %v2721 = vpop.f32.mrb[0].mxu0
        %v2722 = vpop.f32.mrb[0].mxu0
        %v2723 = vadd.f32 %v2562, %v2722
        %v2724 = vpop.f32.mrb[0].mxu0
        %2725 = vmatprep.mubr.bf16.mxu0 %v1608
        %2726 = vmatmul.mubr.bf16.gmra.mrb[0].mxu0 %v1166
        %v2727 = vpop.f32.mrb[0].mxu0
        %v2728 = vadd.f32 %v2567, %v2727
        %v2729 = vpop.f32.mrb[0].mxu0
        %v2730 = vpop.f32.mrb[0].mxu0
        %v2731 = vadd.f32 %v2570, %v2730
        %v2732 = vpop.f32.mrb[0].mxu0
        %2733 = vmatprep.mubr.bf16.mxu0 %v1609
        %2734 = vmatmul.mubr.bf16.gmra.mrb[0].mxu0 %v1167
        %v2735 = vpop.f32.mrb[0].mxu0
        %v2736 = vadd.f32 %v2575, %v2735
        %v2737 = vpop.f32.mrb[0].mxu0
        %v2738 = vpop.f32.mrb[0].mxu0
        %v2739 = vadd.f32 %v2578, %v2738
        %v2740 = vpop.f32.mrb[0].mxu0
        %2741 = vmatprep.mubr.bf16.mxu0 %v1610
        %2742 = vmatmul.mubr.bf16.gmra.mrb[0].mxu0 %v1168
        %v2743 = vpop.f32.mrb[0].mxu0
        %v2744 = vadd.f32 %v2583, %v2743
        %v2745 = vpop.f32.mrb[0].mxu0
        %v2746 = vpop.f32.mrb[0].mxu0
        %v2747 = vadd.f32 %v2586, %v2746
        %v2748 = vpop.f32.mrb[0].mxu0
        %2749 = vmatprep.mubr.bf16.mxu0 %v1611
        %2750 = vmatmul.mubr.bf16.gmra.mrb[0].mxu0 %v1169
        %v2751 = vpop.f32.mrb[0].mxu0
        %v2752 = vadd.f32 %v2591, %v2751
        %v2753 = vpop.f32.mrb[0].mxu0
        %v2754 = vpop.f32.mrb[0].mxu0
        %v2755 = vadd.f32 %v2594, %v2754
        %v2756 = vpop.f32.mrb[0].mxu0
        %2757 = vmatprep.mubr.bf16.mxu0 %v1612
        %2758 = vmatmul.mubr.bf16.gmra.mrb[0].mxu0 %v1559
        %v2759 = vpop.f32.mrb[0].mxu0
        %v2760 = vadd.f32 %v2599, %v2759
        %v2761 = vpop.f32.mrb[0].mxu0
        %v2762 = vpop.f32.mrb[0].mxu0
        %v2763 = vadd.f32 %v2602, %v2762
        %v2764 = vpop.f32.mrb[0].mxu0
        %2765 = vdwg.mxu0
        %2766 = vmatprep.subr.bf16.mxu0 0
        %2767 = vmatpush1.bf16.msra.mxu0 %v2187
        %2768 = vmatprep.subr.bf16.mxu0 0
        %2769 = vmatpush1.bf16.msra.mxu0 %v2188
        %2770 = vmatprep.subr.bf16.mxu0 0
        %2771 = vmatpush1.bf16.msra.mxu0 %v2189
        %2772 = vmatprep.subr.bf16.mxu0 0
        %2773 = vmatpush1.bf16.msra.mxu0 %v2190
        %2774 = vmatprep.subr.bf16.mxu0 0
        %2775 = vmatpush1.bf16.msra.mxu0 %v2191
        %2776 = vmatprep.subr.bf16.mxu0 0
        %2777 = vmatpush1.bf16.msra.mxu0 %v2192
        %2778 = vmatprep.subr.bf16.mxu0 0
        %2779 = vmatpush1.bf16.msra.mxu0 %v2193
        %2780 = vmatprep.subr.bf16.mxu0 0
        %2781 = vmatpush1.bf16.msra.mxu0 %v2194
        %2782 = vmatprep.subr.bf16.mxu0 0
        %2783 = vmatpush1.bf16.msra.mxu0 %v2195
        %2784 = vmatprep.subr.bf16.mxu0 0
        %2785 = vmatpush1.bf16.msra.mxu0 %v2196
        %2786 = vmatprep.subr.bf16.mxu0 0
        %2787 = vmatpush1.bf16.msra.mxu0 %v2197
        %2788 = vmatprep.subr.bf16.mxu0 0
        %2789 = vmatpush1.bf16.msra.mxu0 %v2198
        %2790 = vmatprep.subr.bf16.mxu0 0
        %2791 = vmatpush1.bf16.msra.mxu0 %v2199
        %2792 = vmatprep.subr.bf16.mxu0 0
        %2793 = vmatpush1.bf16.msra.mxu0 %v2200
        %2794 = vmatprep.subr.bf16.mxu0 0
        %2795 = vmatpush1.bf16.msra.mxu0 %v2201
        %2796 = vmatprep.subr.bf16.mxu0 0
        %2797 = vmatpush1.bf16.msra.mxu0 %v2202
        %2798 = vmatprep.mubr.bf16.mxu0 %v1156
        %2799 = vmatmul.mubr.bf16.gmra.mrb[0].mxu0 %v1646
        %v2800 = vpop.f32.mrb[0].mxu0
        %v2801 = vadd.f32 %v2640, %v2800
        %v2802 = vpop.f32.mrb[0].mxu0
        %v2803 = vpop.f32.mrb[0].mxu0
        %v2804 = vadd.f32 %v2643, %v2803
        %v2805 = vpop.f32.mrb[0].mxu0
        %2806 = vmatprep.mubr.bf16.mxu0 %v1157
        %2807 = vmatmul.mubr.bf16.gmra.mrb[0].mxu0 %v1647
        %v2808 = vpop.f32.mrb[0].mxu0
        %v2809 = vadd.f32 %v2648, %v2808
        %v2810 = vpop.f32.mrb[0].mxu0
        %v2811 = vpop.f32.mrb[0].mxu0
        %v2812 = vadd.f32 %v2651, %v2811
        %v2813 = vpop.f32.mrb[0].mxu0
        %2814 = vmatprep.mubr.bf16.mxu0 %v1158
        %2815 = vmatmul.mubr.bf16.gmra.mrb[0].mxu0 %v1648
        %v2816 = vpop.f32.mrb[0].mxu0
        %v2817 = vadd.f32 %v2656, %v2816
        %v2818 = vpop.f32.mrb[0].mxu0
        %v2819 = vpop.f32.mrb[0].mxu0
        %v2820 = vadd.f32 %v2659, %v2819
        %v2821 = vpop.f32.mrb[0].mxu0
        %2822 = vmatprep.mubr.bf16.mxu0 %v1159
        %2823 = vmatmul.mubr.bf16.gmra.mrb[0].mxu0 %v1649
        %v2824 = vpop.f32.mrb[0].mxu0
        %v2825 = vadd.f32 %v2664, %v2824
        %v2826 = vpop.f32.mrb[0].mxu0
        %v2827 = vpop.f32.mrb[0].mxu0
        %v2828 = vadd.f32 %v2667, %v2827
        %v2829 = vpop.f32.mrb[0].mxu0
        %2830 = vmatprep.mubr.bf16.mxu0 %v1160
        %2831 = vmatmul.mubr.bf16.gmra.mrb[0].mxu0 %v1650
        %v2832 = vpop.f32.mrb[0].mxu0
        %v2833 = vadd.f32 %v2672, %v2832
        %v2834 = vpop.f32.mrb[0].mxu0
        %v2835 = vpop.f32.mrb[0].mxu0
        %v2836 = vadd.f32 %v2675, %v2835
        %v2837 = vpop.f32.mrb[0].mxu0
        %2838 = vmatprep.mubr.bf16.mxu0 %v1161
        %2839 = vmatmul.mubr.bf16.gmra.mrb[0].mxu0 %v1651
        %v2840 = vpop.f32.mrb[0].mxu0
        %v2841 = vadd.f32 %v2680, %v2840
        %v2842 = vpop.f32.mrb[0].mxu0
        %v2843 = vpop.f32.mrb[0].mxu0
        %v2844 = vadd.f32 %v2683, %v2843
        %v2845 = vpop.f32.mrb[0].mxu0
        %2846 = vmatprep.mubr.bf16.mxu0 %v1162
        %2847 = vmatmul.mubr.bf16.gmra.mrb[0].mxu0 %v1652
        %v2848 = vpop.f32.mrb[0].mxu0
        %v2849 = vadd.f32 %v2688, %v2848
        %v2850 = vpop.f32.mrb[0].mxu0
        %v2851 = vpop.f32.mrb[0].mxu0
        %v2852 = vadd.f32 %v2691, %v2851
        %v2853 = vpop.f32.mrb[0].mxu0
        %2854 = vmatprep.mubr.bf16.mxu0 %v1163
        %2855 = vmatmul.mubr.bf16.gmra.mrb[0].mxu0 %v1653
        %v2856 = vpop.f32.mrb[0].mxu0
        %v2857 = vadd.f32 %v2696, %v2856
        %v2858 = vpop.f32.mrb[0].mxu0
        %v2859 = vpop.f32.mrb[0].mxu0
        %v2860 = vadd.f32 %v2699, %v2859
        %v2861 = vpop.f32.mrb[0].mxu0
        %2862 = vmatprep.mubr.bf16.mxu0 %v1164
        %2863 = vmatmul.mubr.bf16.gmra.mrb[0].mxu0 %v1654
        %v2864 = vpop.f32.mrb[0].mxu0
        %v2865 = vadd.f32 %v2704, %v2864
        %v2866 = vpop.f32.mrb[0].mxu0
        %v2867 = vpop.f32.mrb[0].mxu0
        %v2868 = vadd.f32 %v2707, %v2867
        %v2869 = vpop.f32.mrb[0].mxu0
        %2870 = vmatprep.mubr.bf16.mxu0 %v1165
        %2871 = vmatmul.mubr.bf16.gmra.mrb[0].mxu0 %v1655
        %v2872 = vpop.f32.mrb[0].mxu0
        %v2873 = vadd.f32 %v2712, %v2872
        %v2874 = vpop.f32.mrb[0].mxu0
        %v2875 = vpop.f32.mrb[0].mxu0
        %v2876 = vadd.f32 %v2715, %v2875
        %v2877 = vpop.f32.mrb[0].mxu0
        %2878 = vmatprep.mubr.bf16.mxu0 %v1166
        %2879 = vmatmul.mubr.bf16.gmra.mrb[0].mxu0 %v1656
        %v2880 = vpop.f32.mrb[0].mxu0
        %v2881 = vadd.f32 %v2720, %v2880
        %v2882 = vpop.f32.mrb[0].mxu0
        %v2883 = vpop.f32.mrb[0].mxu0
        %v2884 = vadd.f32 %v2723, %v2883
        %v2885 = vpop.f32.mrb[0].mxu0
        %2886 = vmatprep.mubr.bf16.mxu0 %v1167
        %2887 = vmatmul.mubr.bf16.gmra.mrb[0].mxu0 %v1657
        %v2888 = vpop.f32.mrb[0].mxu0
        %v2889 = vadd.f32 %v2728, %v2888
        %v2890 = vpop.f32.mrb[0].mxu0
        %v2891 = vpop.f32.mrb[0].mxu0
        %v2892 = vadd.f32 %v2731, %v2891
        %v2893 = vpop.f32.mrb[0].mxu0
        %2894 = vmatprep.mubr.bf16.mxu0 %v1168
        %2895 = vmatmul.mubr.bf16.gmra.mrb[0].mxu0 %v1658
        %v2896 = vpop.f32.mrb[0].mxu0
        %v2897 = vadd.f32 %v2736, %v2896
        %v2898 = vpop.f32.mrb[0].mxu0
        %v2899 = vpop.f32.mrb[0].mxu0
        %v2900 = vadd.f32 %v2739, %v2899
        %v2901 = vpop.f32.mrb[0].mxu0
        %2902 = vmatprep.mubr.bf16.mxu0 %v1169
        %2903 = vmatmul.mubr.bf16.gmra.mrb[0].mxu0 %v1659
        %v2904 = vpop.f32.mrb[0].mxu0
        %v2905 = vadd.f32 %v2744, %v2904
        %v2906 = vpop.f32.mrb[0].mxu0
        %v2907 = vpop.f32.mrb[0].mxu0
        %v2908 = vadd.f32 %v2747, %v2907
        %v2909 = vpop.f32.mrb[0].mxu0
        %2910 = vmatprep.mubr.bf16.mxu0 %v1559
        %2911 = vmatmul.mubr.bf16.gmra.mrb[0].mxu0 %v1660
        %v2912 = vpop.f32.mrb[0].mxu0
        %v2913 = vadd.f32 %v2752, %v2912
        %v2914 = vpop.f32.mrb[0].mxu0
        %v2915 = vpop.f32.mrb[0].mxu0
        %v2916 = vadd.f32 %v2755, %v2915
        %v2917 = vpop.f32.mrb[0].mxu0
        %2918 = vmatprep.mubr.bf16.mxu0 %v1139
        %2919 = vmatmul.mubr.bf16.gmra.mrb[0].mxu0 %v1661
        %v2920 = vpop.f32.mrb[0].mxu0
        %v2921 = vadd.f32 %v2760, %v2920
        %v2922 = vpop.f32.mrb[0].mxu0
        %v2923 = vpop.f32.mrb[0].mxu0
        %v2924 = vadd.f32 %v2763, %v2923
        %v2925 = vpop.f32.mrb[0].mxu0
        %2926 = vdwg.mxu0
        %2927 = vmatprep.subr.bf16.mxu0 0
        %2928 = vmatpush1.bf16.msra.mxu0 %v2203
        %2929 = vmatprep.subr.bf16.mxu0 0
        %2930 = vmatpush1.bf16.msra.mxu0 %v2204
        %2931 = vmatprep.subr.bf16.mxu0 0
        %2932 = vmatpush1.bf16.msra.mxu0 %v2205
        %2933 = vmatprep.subr.bf16.mxu0 0
        %2934 = vmatpush1.bf16.msra.mxu0 %v2206
        %2935 = vmatprep.subr.bf16.mxu0 0
        %2936 = vmatpush1.bf16.msra.mxu0 %v2207
        %2937 = vmatprep.subr.bf16.mxu0 0
        %2938 = vmatpush1.bf16.msra.mxu0 %v2208
        %2939 = vmatprep.subr.bf16.mxu0 0
        %2940 = vmatpush1.bf16.msra.mxu0 %v2209
        %2941 = vmatprep.subr.bf16.mxu0 0
        %2942 = vmatpush1.bf16.msra.mxu0 %v2210
        %2943 = vmatprep.subr.bf16.mxu0 0
        %2944 = vmatpush1.bf16.msra.mxu0 0
        %2945 = vmatprep.subr.bf16.mxu0 0
        %2946 = vmatpush1.bf16.msra.mxu0 0
        %2947 = vmatprep.subr.bf16.mxu0 0
        %2948 = vmatpush1.bf16.msra.mxu0 0
        %2949 = vmatprep.subr.bf16.mxu0 0
        %2950 = vmatpush1.bf16.msra.mxu0 0
        %2951 = vmatprep.subr.bf16.mxu0 0
        %2952 = vmatpush1.bf16.msra.mxu0 0
        %2953 = vmatprep.subr.bf16.mxu0 0
        %2954 = vmatpush1.bf16.msra.mxu0 0
        %2955 = vmatprep.subr.bf16.mxu0 0
        %2956 = vmatpush1.bf16.msra.mxu0 0
        %2957 = vmatprep.subr.bf16.mxu0 0
        %2958 = vmatpush1.bf16.msra.mxu0 0
        %2959 = vmatprep.mubr.bf16.mxu0 0
        %2960 = vmatmul.mubr.bf16.gmra.mrb[0].mxu0 %v1692
        %v2961 = vpop.f32.mrb[0].mxu0
        %v2962 = vadd.f32 %v2801, %v2961
        %v2963 = vpop.f32.mrb[0].mxu0
        %v2964 = vpop.f32.mrb[0].mxu0
        %v2965 = vadd.f32 %v2804, %v2964
        %v2966 = vpop.f32.mrb[0].mxu0
        %2967 = vmatprep.mubr.bf16.mxu0 0
        %2968 = vmatmul.mubr.bf16.gmra.mrb[0].mxu0 %v1693
        %v2969 = vpop.f32.mrb[0].mxu0
        %v2970 = vadd.f32 %v2809, %v2969
        %v2971 = vpop.f32.mrb[0].mxu0
        %v2972 = vpop.f32.mrb[0].mxu0
        %v2973 = vadd.f32 %v2812, %v2972
        %v2974 = vpop.f32.mrb[0].mxu0
        %2975 = vmatprep.mubr.bf16.mxu0 0
        %2976 = vmatmul.mubr.bf16.gmra.mrb[0].mxu0 %v1694
        %v2977 = vpop.f32.mrb[0].mxu0
        %v2978 = vadd.f32 %v2817, %v2977
        %v2979 = vpop.f32.mrb[0].mxu0
        %v2980 = vpop.f32.mrb[0].mxu0
        %v2981 = vadd.f32 %v2820, %v2980
        %v2982 = vpop.f32.mrb[0].mxu0
        %2983 = vmatprep.mubr.bf16.mxu0 0
        %2984 = vmatmul.mubr.bf16.gmra.mrb[0].mxu0 %v1695
        %v2985 = vpop.f32.mrb[0].mxu0
        %v2986 = vadd.f32 %v2825, %v2985
        %v2987 = vpop.f32.mrb[0].mxu0
        %v2988 = vpop.f32.mrb[0].mxu0
        %v2989 = vadd.f32 %v2828, %v2988
        %v2990 = vpop.f32.mrb[0].mxu0
        %2991 = vmatprep.mubr.bf16.mxu0 0
        %2992 = vmatmul.mubr.bf16.gmra.mrb[0].mxu0 %v1696
        %v2993 = vpop.f32.mrb[0].mxu0
        %v2994 = vadd.f32 %v2833, %v2993
        %v2995 = vpop.f32.mrb[0].mxu0
        %v2996 = vpop.f32.mrb[0].mxu0
        %v2997 = vadd.f32 %v2836, %v2996
        %v2998 = vpop.f32.mrb[0].mxu0
        %2999 = vmatprep.mubr.bf16.mxu0 0
        %3000 = vmatmul.mubr.bf16.gmra.mrb[0].mxu0 %v1697
        %v3001 = vpop.f32.mrb[0].mxu0
        %v3002 = vadd.f32 %v2841, %v3001
        %v3003 = vpop.f32.mrb[0].mxu0
        %v3004 = vpop.f32.mrb[0].mxu0
        %v3005 = vadd.f32 %v2844, %v3004
        %v3006 = vpop.f32.mrb[0].mxu0
        %3007 = vmatprep.mubr.bf16.mxu0 0
        %3008 = vmatmul.mubr.bf16.gmra.mrb[0].mxu0 %v1698
        %v3009 = vpop.f32.mrb[0].mxu0
        %v3010 = vadd.f32 %v2849, %v3009
        %v3011 = vpop.f32.mrb[0].mxu0
        %v3012 = vpop.f32.mrb[0].mxu0
        %v3013 = vadd.f32 %v2852, %v3012
        %v3014 = vpop.f32.mrb[0].mxu0
        %3015 = vmatprep.mubr.bf16.mxu0 0
        %3016 = vmatmul.mubr.bf16.gmra.mrb[0].mxu0 %v1699
        %v3017 = vpop.f32.mrb[0].mxu0
        %v3018 = vadd.f32 %v2857, %v3017
        %v3019 = vpop.f32.mrb[0].mxu0
        %v3020 = vpop.f32.mrb[0].mxu0
        %v3021 = vadd.f32 %v2860, %v3020
        %v3022 = vpop.f32.mrb[0].mxu0
        %3023 = vmatprep.mubr.bf16.mxu0 0
        %3024 = vmatmul.mubr.bf16.gmra.mrb[0].mxu0 %v1700
        %v3025 = vpop.f32.mrb[0].mxu0
        %v3026 = vadd.f32 %v2865, %v3025
        %v3027 = vpop.f32.mrb[0].mxu0
        %v3028 = vpop.f32.mrb[0].mxu0
        %v3029 = vadd.f32 %v2868, %v3028
        %v3030 = vpop.f32.mrb[0].mxu0
        %3031 = vmatprep.mubr.bf16.mxu0 0
        %3032 = vmatmul.mubr.bf16.gmra.mrb[0].mxu0 %v1701
        %v3033 = vpop.f32.mrb[0].mxu0
        %v3034 = vadd.f32 %v2873, %v3033
        %v3035 = vpop.f32.mrb[0].mxu0
        %v3036 = vpop.f32.mrb[0].mxu0
        %v3037 = vadd.f32 %v2876, %v3036
        %v3038 = vpop.f32.mrb[0].mxu0
        %3039 = vmatprep.mubr.bf16.mxu0 0
        %3040 = vmatmul.mubr.bf16.gmra.mrb[0].mxu0 %v1702
        %v3041 = vpop.f32.mrb[0].mxu0
        %v3042 = vadd.f32 %v2881, %v3041
        %v3043 = vpop.f32.mrb[0].mxu0
        %v3044 = vpop.f32.mrb[0].mxu0
        %v3045 = vadd.f32 %v2884, %v3044
        %v3046 = vpop.f32.mrb[0].mxu0
        %3047 = vmatprep.mubr.bf16.mxu0 0
        %3048 = vmatmul.mubr.bf16.gmra.mrb[0].mxu0 %v1703
        %v3049 = vpop.f32.mrb[0].mxu0
        %v3050 = vadd.f32 %v2889, %v3049
        %v3051 = vpop.f32.mrb[0].mxu0
        %v3052 = vpop.f32.mrb[0].mxu0
        %v3053 = vadd.f32 %v2892, %v3052
        %v3054 = vpop.f32.mrb[0].mxu0
        %3055 = vmatprep.mubr.bf16.mxu0 0
        %3056 = vmatmul.mubr.bf16.gmra.mrb[0].mxu0 %v1704
        %v3057 = vpop.f32.mrb[0].mxu0
        %v3058 = vadd.f32 %v2897, %v3057
        %v3059 = vpop.f32.mrb[0].mxu0
        %v3060 = vpop.f32.mrb[0].mxu0
        %v3061 = vadd.f32 %v2900, %v3060
        %v3062 = vpop.f32.mrb[0].mxu0
        %3063 = vmatprep.mubr.bf16.mxu0 0
        %3064 = vmatmul.mubr.bf16.gmra.mrb[0].mxu0 %v1705
        %v3065 = vpop.f32.mrb[0].mxu0
        %v3066 = vadd.f32 %v2905, %v3065
        %v3067 = vpop.f32.mrb[0].mxu0
        %v3068 = vpop.f32.mrb[0].mxu0
        %v3069 = vadd.f32 %v2908, %v3068
        %v3070 = vpop.f32.mrb[0].mxu0
        %3071 = vmatprep.mubr.bf16.mxu0 0
        %3072 = vmatmul.mubr.bf16.gmra.mrb[0].mxu0 %v1706
        %v3073 = vpop.f32.mrb[0].mxu0
        %v3074 = vadd.f32 %v2913, %v3073
        %v3075 = vpop.f32.mrb[0].mxu0
        %v3076 = vpop.f32.mrb[0].mxu0
        %v3077 = vadd.f32 %v2916, %v3076
        %v3078 = vpop.f32.mrb[0].mxu0
        %3079 = vmatprep.mubr.bf16.mxu0 0
        %3080 = vmatmul.mubr.bf16.gmra.mrb[0].mxu0 %v1139
        %v3081 = vpop.f32.mrb[0].mxu0
        %v3082 = vadd.f32 %v2921, %v3081
        %v3083 = vpop.f32.mrb[0].mxu0
        %v3084 = vpop.f32.mrb[0].mxu0
        %v3085 = vadd.f32 %v2924, %v3084
        %v3086 = vpop.f32.mrb[0].mxu0
        %3087 = vdwg.mxu0
        %3088 = vst [vmem:[%s235] sm:$0xff] %v2962
        %3089 = vst [vmem:[%s235 + $0x8] sm:$0xff] %v2965
        %3090 = vst [vmem:[%s235 + $0x10] sm:$0xff] %v2970
        %3091 = vst [vmem:[%s235 + $0x18] sm:$0xff] %v2973
        %3092 = vst [vmem:[%s235 + $0x20] sm:$0xff] %v2978
        %3093 = vst [vmem:[%s235 + $0x28] sm:$0xff] %v2981
        %3094 = vst [vmem:[%s235 + $0x30] sm:$0xff] %v2986
        %3095 = vst [vmem:[%s235 + $0x38] sm:$0xff] %v2989
        %3096 = vst [vmem:[%s235 + $0x40] sm:$0xff] %v2994
        %3097 = vst [vmem:[%s235 + $0x48] sm:$0xff] %v2997
        %3098 = vst [vmem:[%s235 + $0x50] sm:$0xff] %v3002
        %3099 = vst [vmem:[%s235 + $0x58] sm:$0xff] %v3005
        %3100 = vst [vmem:[%s235 + $0x60] sm:$0xff] %v3010
        %3101 = vst [vmem:[%s235 + $0x68] sm:$0xff] %v3013
        %3102 = vst [vmem:[%s235 + $0x70] sm:$0xff] %v3018
        %3103 = vst [vmem:[%s235 + $0x78] sm:$0xff] %v3021
        %3104 = vst [vmem:[%s235 + $0x80] sm:$0xff] %v3026
        %3105 = vst [vmem:[%s235 + $0x88] sm:$0xff] %v3029
        %3106 = vst [vmem:[%s235 + $0x90] sm:$0xff] %v3034
        %3107 = vst [vmem:[%s235 + $0x98] sm:$0xff] %v3037
        %3108 = vst [vmem:[%s235 + $0xa0] sm:$0xff] %v3042
        %3109 = vst [vmem:[%s235 + $0xa8] sm:$0xff] %v3045
        %3110 = vst [vmem:[%s235 + $0xb0] sm:$0xff] %v3050
        %3111 = vst [vmem:[%s235 + $0xb8] sm:$0xff] %v3053
        %3112 = vst [vmem:[%s235 + $0xc0] sm:$0xff] %v3058
        %3113 = vst [vmem:[%s235 + $0xc8] sm:$0xff] %v3061
        %3114 = vst [vmem:[%s235 + $0xd0] sm:$0xff] %v3066
        %3115 = vst [vmem:[%s235 + $0xd8] sm:$0xff] %v3069
        %3116 = vst [vmem:[%s235 + $0xe0] sm:$0xff] %v3074
        %3117 = vst [vmem:[%s235 + $0xe8] sm:$0xff] %v3077
        %3118 = vst [vmem:[%s235 + $0xf0] sm:$0xff] %v3082
        %3119 = vst [vmem:[%s235 + $0xf8] sm:$0xff] %v3085
        %v3120 = vadd.f32 %v2962, %v2965
        %v3121 = vadd.f32 %v3120, %v2970
        %v3122 = vadd.f32 %v3121, %v2973
        %v3123 = vadd.f32 %v3122, %v2978
        %v3124 = vadd.f32 %v3123, %v2981
        %v3125 = vadd.f32 %v3124, %v2986
        %v3126 = vadd.f32 %v3125, %v2989
        %v3127 = vadd.f32 %v3126, %v2994
        %v3128 = vadd.f32 %v3127, %v2997
        %v3129 = vadd.f32 %v3128, %v3002
        %v3130 = vadd.f32 %v3129, %v3005
        %v3131 = vadd.f32 %v3130, %v3010
        %v3132 = vadd.f32 %v3131, %v3013
        %v3133 = vadd.f32 %v3132, %v3018
        %v3134 = vadd.f32 %v3133, %v3021
        %v3135 = vadd.f32 %v3134, %v3026
        %v3136 = vadd.f32 %v3135, %v3029
        %v3137 = vadd.f32 %v3136, %v3034
        %v3138 = vadd.f32 %v3137, %v3037
        %v3139 = vadd.f32 %v3138, %v3042
        %v3140 = vadd.f32 %v3139, %v3045
        %v3141 = vadd.f32 %v3140, %v3050
        %v3142 = vadd.f32 %v3141, %v3053
        %v3143 = vadd.f32 %v3142, %v3058
        %v3144 = vadd.f32 %v3143, %v3061
        %v3145 = vadd.f32 %v3144, %v3066
        %v3146 = vadd.f32 %v3145, %v3069
        %v3147 = vadd.f32 %v3146, %v3074
        %v3148 = vadd.f32 %v3147, %v3077
        %v3149 = vadd.f32 %v3148, %v3082
        %v3150 = vadd.f32 %v3149, %v3085
        %v3151 = vrot.slane %v3150, 4
        %v3152 = vadd.f32 %v3150, %v3151
        %v3153 = vrot.slane %v3152, 2
        %v3154 = vadd.f32 %v3152, %v3153
        %v3155 = vrot.slane %v3154, 1
        %v3156 = vadd.f32 %v3154, %v3155
        %v3157 = vmul.f32 %v2962, %v2962
        %v3158 = vmul.f32 %v2965, %v2965
        %v3159 = vmul.f32 %v2970, %v2970
        %v3160 = vmul.f32 %v2973, %v2973
        %v3161 = vmul.f32 %v2978, %v2978
        %v3162 = vmul.f32 %v2981, %v2981
        %v3163 = vmul.f32 %v2986, %v2986
        %v3164 = vmul.f32 %v2989, %v2989
        %v3165 = vmul.f32 %v2994, %v2994
        %v3166 = vmul.f32 %v2997, %v2997
        %v3167 = vmul.f32 %v3002, %v3002
        %v3168 = vmul.f32 %v3005, %v3005
        %v3169 = vmul.f32 %v3010, %v3010
        %v3170 = vmul.f32 %v3013, %v3013
        %v3171 = vmul.f32 %v3018, %v3018
        %v3172 = vmul.f32 %v3021, %v3021
        %v3173 = vmul.f32 %v3026, %v3026
        %v3174 = vmul.f32 %v3029, %v3029
        %v3175 = vmul.f32 %v3034, %v3034
        %v3176 = vmul.f32 %v3037, %v3037
        %v3177 = vmul.f32 %v3042, %v3042
        %v3178 = vmul.f32 %v3045, %v3045
        %v3179 = vmul.f32 %v3050, %v3050
        %v3180 = vmul.f32 %v3053, %v3053
        %v3181 = vmul.f32 %v3058, %v3058
        %v3182 = vmul.f32 %v3061, %v3061
        %v3183 = vmul.f32 %v3066, %v3066
        %v3184 = vmul.f32 %v3069, %v3069
        %v3185 = vmul.f32 %v3074, %v3074
        %v3186 = vmul.f32 %v3077, %v3077
        %v3187 = vmul.f32 %v3082, %v3082
        %v3188 = vmul.f32 %v3085, %v3085
        %v3189 = vadd.f32 %v3157, %v3158
        %v3190 = vadd.f32 %v3189, %v3159
        %v3191 = vadd.f32 %v3190, %v3160
        %v3192 = vadd.f32 %v3191, %v3161
        %v3193 = vadd.f32 %v3192, %v3162
        %v3194 = vadd.f32 %v3193, %v3163
        %v3195 = vadd.f32 %v3194, %v3164
        %v3196 = vadd.f32 %v3195, %v3165
        %v3197 = vadd.f32 %v3196, %v3166
        %v3198 = vadd.f32 %v3197, %v3167
        %v3199 = vadd.f32 %v3198, %v3168
        %v3200 = vadd.f32 %v3199, %v3169
        %v3201 = vadd.f32 %v3200, %v3170
        %v3202 = vadd.f32 %v3201, %v3171
        %v3203 = vadd.f32 %v3202, %v3172
        %v3204 = vadd.f32 %v3203, %v3173
        %v3205 = vadd.f32 %v3204, %v3174
        %v3206 = vadd.f32 %v3205, %v3175
        %v3207 = vadd.f32 %v3206, %v3176
        %v3208 = vadd.f32 %v3207, %v3177
        %v3209 = vadd.f32 %v3208, %v3178
        %v3210 = vadd.f32 %v3209, %v3179
        %v3211 = vadd.f32 %v3210, %v3180
        %v3212 = vadd.f32 %v3211, %v3181
        %v3213 = vadd.f32 %v3212, %v3182
        %v3214 = vadd.f32 %v3213, %v3183
        %v3215 = vadd.f32 %v3214, %v3184
        %v3216 = vadd.f32 %v3215, %v3185
        %v3217 = vadd.f32 %v3216, %v3186
        %v3218 = vadd.f32 %v3217, %v3187
        %v3219 = vadd.f32 %v3218, %v3188
        %v3220 = vrot.slane %v3219, 4
        %v3221 = vadd.f32 %v3219, %v3220
        %v3222 = vrot.slane %v3221, 2
        %v3223 = vadd.f32 %v3221, %v3222
        %v3224 = vrot.slane %v3223, 1
        %v3225 = vadd.f32 %v3223, %v3224
        %v3226 = vsel %vm826, %v3156, %v3225
        %3227 = vst [vmem:[%s225] sm:$0x3] %v3226
        %p3228 = scmp.lt.s32.totalorder %s20, 1
        %s3229 = scalar_select %p3228, %s20, 1
        %s3230 = smul.addr %s3229, 32
        %s3231 = smul.addr %s3230, 8
        %s3232 = scalar_lea.vmem %s4, %s3231
        %s3233 = sand.u32 %s143, 1
        %s3234 = scalar_lea.sflag [#allocation3], %s3233
        %s3235 = sand.u32 %s143, 1
        %s3236 = smul.addr %s3235, 2
        %s3237 = scalar_lea.vmem [#allocation2], %s3236
        // Predicated region
        $region37: #{dense_block_forward.13} parent=35 // pred_check
          %p3238 = pneg %p127
        $region38: #{dense_block_forward.13} parent=35 // pred_check_branch
          %3240 = sbr.rel (%p3238) target = $region40
        $region39: #{dense_block_forward.13} parent=35 // pred_region
          _
        $region40: #{dense_block_forward.13} parent=35 // pred_fallthru
          _
        // Predicated region
        $region41: #{dense_block_forward.13} parent=35 // pred_check
          %p3241 = pneg %p153
        $region42: #{dense_block_forward.13} parent=35 // pred_check_branch
          %3243 = sbr.rel (%p3241) target = $region44
        $region43: #{dense_block_forward.13} parent=35 // pred_region
          %s3245 = ssub.s32 32, 32
          %3246 = vsyncadd %s3234, %s3245
          %s3247 = smul.addr %s20, 32
          %s3248 = scalar_lea.hbm %s5, %s3247
          %s3250 = sshll.u32 %s3237, 4
          %s3251 = int_to_ptr.vmem [resolvable:$true] %s3250
          %3253 = dma.vmem_to_hbm [thread:$0]  %s3251, 32, %s3248, %s3234
        $region44: #{dense_block_forward.13} parent=35 // pred_fallthru
          _
      $region36: #{dense_block_forward.13} parent=5 // pred_fallthru
        _
      %p3254 = scmp.le.s32.totalorder 2, %s15
      // Predicated region
      $region45: #{dense_block_forward.13} parent=5 // pred_check
        %p3255 = pneg %p3254
      $region46: #{dense_block_forward.13} parent=5 // pred_check_branch
        %3257 = sbr.rel (%p3255) target = $region48
      $region47: #{dense_block_forward.13} parent=5 // pred_region
        %s3258 = ssub.s32 %s15, 2
        // Predicated region
        $region49: #{dense_block_forward.13} parent=47 // pred_check
          %p3259 = pneg %p133
        $region50: #{dense_block_forward.13} parent=47 // pred_check_branch
          %3261 = sbr.rel (%p3259) target = $region52
        $region51: #{dense_block_forward.13} parent=47 // pred_region
          %p3262 = scmp.lt.s32.totalorder %s21, 1
          %s3263 = scalar_select %p3262, %s21, 1
          %s3264 = smul.addr %s3263, 32
          %s3265 = smul.addr %s3264, 8
          %s3266 = scalar_lea.vmem %s4, %s3265
        $region52: #{dense_block_forward.13} parent=47 // pred_fallthru
          _
        // Predicated region
        $region53: #{dense_block_forward.13} parent=47 // pred_check
          %p3267 = pneg %p159
        $region54: #{dense_block_forward.13} parent=47 // pred_check_branch
          %3269 = sbr.rel (%p3267) target = $region56
        $region55: #{dense_block_forward.13} parent=47 // pred_region
          %s3270 = sand.u32 %s144, 1
          %s3271 = scalar_lea.sflag [#allocation3], %s3270
          %s3272 = sand.u32 %s144, 1
          %s3273 = smul.addr %s3272, 2
          %s3274 = scalar_lea.vmem [#allocation2], %s3273
          %3275 = dma.done %s3271, 32
        $region56: #{dense_block_forward.13} parent=47 // pred_fallthru
          _
      $region48: #{dense_block_forward.13} parent=5 // pred_fallthru
        _
    $region6: #{dense_block_forward.13} parent=1 // loop_footer
      %s19 = sadd.s32 1, %s15
    $region7: #{dense_block_forward.13} parent=1 // loop_footer_branch
      %14 = sbr.rel target = $region3
    $region8: #{dense_block_forward.13} parent=1 // loop_exit
      _
    %3276 = vsyncpa [#allocation3], 1
    %s3277 = scalar_lea.sflag [#allocation3], 1
    %3278 = vsyncpa %s3277, 1

</llo_original>
